<compile_context>
chip_gen: v7x
topology: tpu7x:2x2x1
jax: 0.10.0
libtpu: 0.0.40
codegen_flags: <defaults>
</compile_context>

<pallas_src>
import numpy as np
import jax
import jax.numpy as jnp
from jax.experimental import pallas as pl
from jax.experimental.pallas import tpu as pltpu


PRELU_ALPHA = 0.25             # nn.PReLU() default init (single shared slope)
SYMBOL_LEN = 2560              # lengthofsymbol in ReadOFDMSymbol
MATMUL_DTYPE = jnp.bfloat16    # set to jnp.float32 for bit-accurate validation

W1_OUT = (SYMBOL_LEN - 128) // 4 + 1        # 609 conv1 output positions
W2_OUT = (W1_OUT - 8) // 8 + 1              # 76  conv2 output positions
ROWS_USED = W2_OUT * 8                      # 608 conv1 positions actually consumed by conv2
GROUPS = W2_OUT // 4                        # 19 groups of 4 conv2 positions (= 32 conv1 rows)
GROUP_LANES = 32 * 256                      # 8192 im2col lanes per group (32 rows x K=256)


# ---------------------------------------------------------------------------
# The single fused kernel: one batch element per grid step.
# ---------------------------------------------------------------------------
def _fused_kernel(p_ref, w1_ref, b1_ref, w2_ref, b2_ref,
                  wl1_ref, bl1_ref, wl2_ref, bl2_ref, wl3_ref, bl3_ref,
                  o_ref):
    p = p_ref.at[0]                                              # (19, 8192) ref view (no load)

    # --- features_1 + features_2 (BN folded, PReLU) -------------------------
    # 8 consecutive conv1 rows are produced along lanes by the block-diagonal
    # w1 (2048 -> 512); applying the matching 512-row slice of the block-diagonal
    # conv2 weight per sub-group s and accumulating yields the conv2 pre-activation
    # directly as a lane-dense (19, 128) tile (lane = s*32 + out_channel).
    y2 = jnp.zeros((GROUPS, 128), jnp.float32)
    for s in range(4):
        patches = p[:, s * 2048:(s + 1) * 2048]                  # (19, 2048) bf16
        z = jnp.dot(patches, w1_ref[...],
                    preferred_element_type=jnp.float32)          # conv1 pre-act (19, 512)
        z = z + b1_ref[...]                                      # folded BN bias (f32)
        z = jnp.where(z > 0, z, PRELU_ALPHA * z)                 # PReLU
        y2 = y2 + jnp.dot(z.astype(MATMUL_DTYPE),
                          w2_ref[s * 512:(s + 1) * 512, :],
                          preferred_element_type=jnp.float32)    # conv2 partial (19, 128)
    y2 = y2 + b2_ref[...]
    y2 = jnp.where(y2 > 0, y2, PRELU_ALPHA * y2)                 # (19, 128) f32
    y2 = y2.astype(MATMUL_DTYPE)

    # --- head: flatten + Linear(2432,256) -> PReLU -> Linear(256,64) -> PReLU
    #           -> Linear(64,2)   (Dropout = identity at eval) ---------------
    # torch.flatten's (channel, width) order is pre-baked into wl1's row order, so
    # layer 1 is 19 accumulated (1,128)x(128,256) matmuls (no in-kernel relayout).
    h = bl1_ref[...]                                             # (1, 256) f32
    for g in range(GROUPS):
        h = h + jnp.dot(y2[g:g + 1, :],
                        wl1_ref[g * 128:(g + 1) * 128, :],
                        preferred_element_type=jnp.float32)
    h = jnp.where(h > 0, h, PRELU_ALPHA * h)
    h = jnp.dot(h.astype(MATMUL_DTYPE), wl2_ref[...],
                preferred_element_type=jnp.float32) + bl2_ref[...]
    h = jnp.where(h > 0, h, PRELU_ALPHA * h)
    o = jnp.dot(h.astype(MATMUL_DTYPE), wl3_ref[...],
                preferred_element_type=jnp.float32) + bl3_ref[...]
    o_ref[0] = o.astype(o_ref.dtype)                             # lane-dense (1, 128) store


def fused_forward(p, params):
    """p: (B, 19, 8192) im2col; returns (B, 1, 128) f32 (lane-padded head output)."""
    B = p.shape[0]
    w = params

    def resident(arr):                       # weight / bias: DMA'd once, VMEM resident
        assert arr.ndim == 2
        return pl.BlockSpec(arr.shape, lambda b: (0, 0))

    return pl.pallas_call(
        _fused_kernel,
        out_shape=jax.ShapeDtypeStruct((B, 1, 128), jnp.float32),
        grid_spec=pltpu.PrefetchScalarGridSpec(
            num_scalar_prefetch=0,
            grid=(B,),
            in_specs=[
                pl.BlockSpec((1, GROUPS, GROUP_LANES), lambda b: (b, 0, 0)),
                resident(w["w1"]), resident(w["b1"]),
                resident(w["w2"]), resident(w["b2"]),
                resident(w["wl1"]), resident(w["bl1"]),
                resident(w["wl2"]), resident(w["bl2"]),
                resident(w["wl3"]), resident(w["bl3"]),
            ],
            out_specs=pl.BlockSpec((1, 1, 128), lambda b: (b, 0, 0)),
        ),
        compiler_params=pltpu.CompilerParams(
            dimension_semantics=("parallel",),          # v7x: shard batch over both TCs
            vmem_limit_bytes=32 * 1024 * 1024,
        ),
    )(p, w["w1"], w["b1"], w["w2"], w["b2"],
      w["wl1"], w["bl1"], w["wl2"], w["bl2"], w["wl3"], w["bl3"])


# ---------------------------------------------------------------------------
# Parameters (deterministic synthetic init; shapes from Residual_model.__init__)
# ---------------------------------------------------------------------------
def init_params(key):
    ks = jax.random.split(key, 7)
    eps = 1e-5
    # BatchNorm2d in eval mode with default stats (mean=0, var=1, gamma=1, beta=0)
    bn_scale = 1.0 / np.sqrt(1.0 + eps)

    # features_1: Conv2d(1, 64, (2, 128), stride=4) + BN(64)  (folded)
    w1 = jax.random.normal(ks[0], (64, 1, 2, 128), jnp.float32) * 0.02      # (O, I, kh, kw)
    b1 = jax.random.normal(ks[1], (64,), jnp.float32) * 0.01
    # merged real|imag K=256 weight (rows: [real kw | imag kw]), columns = out channels
    w1m = jnp.concatenate([w1[:, 0, 0, :].T, w1[:, 0, 1, :].T], axis=0) * bn_scale   # (256, 64)
    w1_bd = jnp.kron(jnp.eye(8, dtype=jnp.float32), w1m).astype(MATMUL_DTYPE)        # (2048, 512)
    b1_t = jnp.tile(b1 * bn_scale, 8).reshape(1, 512).astype(jnp.float32)

    # features_2: Conv2d(64, 32, (1, 8), stride=8) + BN(32)  (folded)
    w2 = jax.random.normal(ks[2], (32, 64, 1, 8), jnp.float32) * 0.02       # (O, C, 1, kw)
    b2 = jax.random.normal(ks[3], (32,), jnp.float32) * 0.01
    # rows ordered (kw, c1) to match the conv1 lane order t*64 + c1
    w2m = jnp.transpose(w2[:, :, 0, :], (2, 1, 0)).reshape(8 * 64, 32) * bn_scale    # (512, 32)
    w2_bd = jnp.kron(jnp.eye(4, dtype=jnp.float32), w2m).astype(MATMUL_DTYPE)        # (2048, 128)
    b2_t = jnp.tile(b2 * bn_scale, 4).reshape(1, 128).astype(jnp.float32)

    # head: Linear(2432,256) -> PReLU -> Drop -> Linear(256,64) -> PReLU -> Drop -> Linear(64,2)
    # _init_vit_weights: trunc_normal(std=0.01) weights, zero biases.
    wl1 = jax.random.truncated_normal(ks[4], -2.0, 2.0, (2432, 256), jnp.float32) * 0.01
    # torch.flatten order is (channel, width); the kernel consumes rows ordered
    # g*128 + s*32 + c (width w = 4g + s) -> permute wl1 rows to match.
    wl1 = wl1.reshape(32, GROUPS, 4, 256).transpose(1, 2, 0, 3).reshape(2432, 256)
    wl1 = wl1.astype(MATMUL_DTYPE)
    bl1 = jnp.zeros((1, 256), jnp.float32)

    wl2 = (jax.random.truncated_normal(ks[5], -2.0, 2.0, (256, 64), jnp.float32) * 0.01)
    wl2 = wl2.astype(MATMUL_DTYPE)
    bl2 = jnp.zeros((1, 64), jnp.float32)

    wl3 = jax.random.truncated_normal(ks[6], -2.0, 2.0, (64, 2), jnp.float32) * 0.01
    wl3 = jnp.pad(wl3, ((0, 0), (0, 126))).astype(MATMUL_DTYPE)   # lane-pad 2 -> 128 (dense store)
    bl3 = jnp.zeros((1, 128), jnp.float32)

    return dict(w1=w1_bd, b1=b1_t, w2=w2_bd, b2=b2_t,
                wl1=wl1, bl1=bl1, wl2=wl2, bl2=bl2, wl3=wl3, bl3=bl3)


# ---------------------------------------------------------------------------
# Forward pass
# ---------------------------------------------------------------------------
def residual_model_forward(x_complex, params):
    B = x_complex.shape[0]

    # ReadOFDMSymbol: (B, 2560) complex -> real/imag planes (the H axis of the conv input).
    # TODO(synk): ReadOFDMSymbol_otfs is not defined in the source module; reproducing
    # ReadOFDMSymbol semantics (real on H=0, imag on H=1).
    xr = jnp.real(x_complex).astype(MATMUL_DTYPE)                 # (B, 2560)
    xi = jnp.imag(x_complex).astype(MATMUL_DTYPE)

    # conv1 im2col via 32 static strided slices (column index k = 4*j + r); real and
    # imag are concatenated along K (single K=256 weight), then 32 conv1 rows are
    # grouped per sublane row so the fused kernel never needs an in-kernel relayout.
    # TODO(synk): the im2col itself is still a host-side XLA fusion (bf16, ~7.6x
    # expansion); doing it inside the kernel would require lane-level window gathers.
    def im2col(xc):
        x4 = xc.reshape(B, 640, 4)
        cols = [x4[:, j:j + ROWS_USED, :] for j in range(32)]     # each (B, 608, 4)
        return jnp.concatenate(cols, axis=-1)                     # (B, 608, 128)

    p = jnp.concatenate([im2col(xr), im2col(xi)], axis=-1)        # (B, 608, 256)
    p = p.reshape(B, GROUPS, GROUP_LANES)                         # (B, 19, 8192)

    out = fused_forward(p, params)                                # (B, 1, 128) f32
    return out.reshape(B, 128)[:, :2]                             # (B, 2)


# ---------------------------------------------------------------------------
if __name__ == "__main__":
    key = jax.random.PRNGKey(0)
    kp, kr, ki = jax.random.split(key, 3)

    params = init_params(kp)

    B = 4  # small batch
    real = jax.random.normal(kr, (B, SYMBOL_LEN), jnp.float32)
    imag = jax.random.normal(ki, (B, SYMBOL_LEN), jnp.float32)
    x = (real + 1j * imag).astype(jnp.complex64)

    fwd = jax.jit(residual_model_forward)
    y = jax.block_until_ready(fwd(x, params))
    assert y.shape == (B, 2) and y.dtype == jnp.float32
    assert bool(jnp.all(jnp.isfinite(y)))
    print("KERNEL_OK")
</pallas_src>

<mosaic_0001>
module attributes {stable_mosaic.version = 11 : i64} {
  func.func @_fused_kernel(%arg0: i32, %arg1: memref<1x19x8192xbf16, #tpu.memory_space<vmem>>, %arg2: memref<2048x512xbf16, #tpu.memory_space<vmem>>, %arg3: memref<1x512xf32, #tpu.memory_space<vmem>>, %arg4: memref<2048x128xbf16, #tpu.memory_space<vmem>>, %arg5: memref<1x128xf32, #tpu.memory_space<vmem>>, %arg6: memref<2432x256xbf16, #tpu.memory_space<vmem>>, %arg7: memref<1x256xf32, #tpu.memory_space<vmem>>, %arg8: memref<256x64xbf16, #tpu.memory_space<vmem>>, %arg9: memref<1x64xf32, #tpu.memory_space<vmem>>, %arg10: memref<64x128xbf16, #tpu.memory_space<vmem>>, %arg11: memref<1x128xf32, #tpu.memory_space<vmem>>, %arg12: memref<1x1x128xf32, #tpu.memory_space<vmem>>) attributes {dimension_semantics = [#tpu.dimension_semantics<parallel>], iteration_bounds = array<i64: 4>, scalar_prefetch = 0 : i64, scratch_operands = 0 : i64, tpu.core_type = #tpu.core_type<tc>, window_params = [{transform_indices = @transform_0, window_bounds = array<i64: 1, 19, 8192>}, {pipeline_mode = #tpu.pipeline_mode<synchronous>, transform_indices = @transform_1, window_bounds = array<i64: 2048, 512>}, {pipeline_mode = #tpu.pipeline_mode<synchronous>, transform_indices = @transform_2, window_bounds = array<i64: 1, 512>}, {pipeline_mode = #tpu.pipeline_mode<synchronous>, transform_indices = @transform_3, window_bounds = array<i64: 2048, 128>}, {pipeline_mode = #tpu.pipeline_mode<synchronous>, transform_indices = @transform_4, window_bounds = array<i64: 1, 128>}, {pipeline_mode = #tpu.pipeline_mode<synchronous>, transform_indices = @transform_5, window_bounds = array<i64: 2432, 256>}, {pipeline_mode = #tpu.pipeline_mode<synchronous>, transform_indices = @transform_6, window_bounds = array<i64: 1, 256>}, {pipeline_mode = #tpu.pipeline_mode<synchronous>, transform_indices = @transform_7, window_bounds = array<i64: 256, 64>}, {pipeline_mode = #tpu.pipeline_mode<synchronous>, transform_indices = @transform_8, window_bounds = array<i64: 1, 64>}, {pipeline_mode = #tpu.pipeline_mode<synchronous>, transform_indices = @transform_9, window_bounds = array<i64: 64, 128>}, {pipeline_mode = #tpu.pipeline_mode<synchronous>, transform_indices = @transform_10, window_bounds = array<i64: 1, 128>}, {transform_indices = @transform_11, window_bounds = array<i64: 1, 1, 128>}]} {
    %cst = arith.constant 0.000000e+00 : f32
    %0 = vector.broadcast %cst : f32 to vector<19x128xf32>
    %c0_i32 = arith.constant 0 : i32
    %c0_i32_0 = arith.constant 0 : i32
    %c0_i32_1 = arith.constant 0 : i32
    %1 = tpu.memref_slice %arg1[%c0_i32, %c0_i32_0, %c0_i32_1] : memref<1x19x8192xbf16, #tpu.memory_space<vmem>> -> memref<1x19x8192xbf16, #tpu.memory_space<vmem>>
    %2 = tpu.memref_squeeze %1 : memref<1x19x8192xbf16, #tpu.memory_space<vmem>> -> memref<19x8192xbf16, #tpu.memory_space<vmem>>
    %c0 = arith.constant 0 : index
    %c0_2 = arith.constant 0 : index
    %3 = vector.load %2[%c0, %c0_2] : memref<19x8192xbf16, #tpu.memory_space<vmem>>, vector<19x2048xbf16>
    %c0_3 = arith.constant 0 : index
    %c0_4 = arith.constant 0 : index
    %4 = vector.load %arg2[%c0_3, %c0_4] : memref<2048x512xbf16, #tpu.memory_space<vmem>>, vector<2048x512xbf16>
    %cst_5 = arith.constant dense<0.000000e+00> : vector<19x512xf32>
    %5 = tpu.matmul %3, %4, %cst_5 {dimension_numbers = #tpu.dot_dimension_numbers<[1], [0], [0], [1], [0, 0, 1, 1], [], []>} : vector<19x2048xbf16>, vector<2048x512xbf16>, vector<19x512xf32> -> vector<19x512xf32>
    %c0_6 = arith.constant 0 : index
    %c0_7 = arith.constant 0 : index
    %6 = vector.load %arg3[%c0_6, %c0_7] : memref<1x512xf32, #tpu.memory_space<vmem>>, vector<1x512xf32>
    %7 = vector.broadcast %6 : vector<1x512xf32> to vector<19x512xf32>
    %8 = arith.addf %5, %7 : vector<19x512xf32>
    %cst_8 = arith.constant 0.000000e+00 : f32
    %9 = vector.broadcast %cst_8 : f32 to vector<19x512xf32>
    %10 = arith.cmpf ogt, %8, %9 : vector<19x512xf32>
    %cst_9 = arith.constant 2.500000e-01 : f32
    %11 = vector.broadcast %cst_9 : f32 to vector<19x512xf32>
    %12 = arith.mulf %11, %8 : vector<19x512xf32>
    %13 = arith.select %10, %8, %12 : vector<19x512xi1>, vector<19x512xf32>
    %14 = arith.truncf %13 : vector<19x512xf32> to vector<19x512xbf16>
    %c0_10 = arith.constant 0 : index
    %c0_11 = arith.constant 0 : index
    %15 = vector.load %arg4[%c0_10, %c0_11] : memref<2048x128xbf16, #tpu.memory_space<vmem>>, vector<512x128xbf16>
    %cst_12 = arith.constant dense<0.000000e+00> : vector<19x128xf32>
    %16 = tpu.matmul %14, %15, %cst_12 {dimension_numbers = #tpu.dot_dimension_numbers<[1], [0], [0], [1], [0, 0, 1, 1], [], []>} : vector<19x512xbf16>, vector<512x128xbf16>, vector<19x128xf32> -> vector<19x128xf32>
    %17 = arith.addf %0, %16 : vector<19x128xf32>
    %c0_i32_13 = arith.constant 0 : i32
    %c0_i32_14 = arith.constant 0 : i32
    %c0_i32_15 = arith.constant 0 : i32
    %18 = tpu.memref_slice %arg1[%c0_i32_13, %c0_i32_14, %c0_i32_15] : memref<1x19x8192xbf16, #tpu.memory_space<vmem>> -> memref<1x19x8192xbf16, #tpu.memory_space<vmem>>
    %19 = tpu.memref_squeeze %18 : memref<1x19x8192xbf16, #tpu.memory_space<vmem>> -> memref<19x8192xbf16, #tpu.memory_space<vmem>>
    %c0_16 = arith.constant 0 : index
    %c2048 = arith.constant 2048 : index
    %20 = vector.load %19[%c0_16, %c2048] : memref<19x8192xbf16, #tpu.memory_space<vmem>>, vector<19x2048xbf16>
    %c0_17 = arith.constant 0 : index
    %c0_18 = arith.constant 0 : index
    %21 = vector.load %arg2[%c0_17, %c0_18] : memref<2048x512xbf16, #tpu.memory_space<vmem>>, vector<2048x512xbf16>
    %cst_19 = arith.constant dense<0.000000e+00> : vector<19x512xf32>
    %22 = tpu.matmul %20, %21, %cst_19 {dimension_numbers = #tpu.dot_dimension_numbers<[1], [0], [0], [1], [0, 0, 1, 1], [], []>} : vector<19x2048xbf16>, vector<2048x512xbf16>, vector<19x512xf32> -> vector<19x512xf32>
    %c0_20 = arith.constant 0 : index
    %c0_21 = arith.constant 0 : index
    %23 = vector.load %arg3[%c0_20, %c0_21] : memref<1x512xf32, #tpu.memory_space<vmem>>, vector<1x512xf32>
    %24 = vector.broadcast %23 : vector<1x512xf32> to vector<19x512xf32>
    %25 = arith.addf %22, %24 : vector<19x512xf32>
    %cst_22 = arith.constant 0.000000e+00 : f32
    %26 = vector.broadcast %cst_22 : f32 to vector<19x512xf32>
    %27 = arith.cmpf ogt, %25, %26 : vector<19x512xf32>
    %cst_23 = arith.constant 2.500000e-01 : f32
    %28 = vector.broadcast %cst_23 : f32 to vector<19x512xf32>
    %29 = arith.mulf %28, %25 : vector<19x512xf32>
    %30 = arith.select %27, %25, %29 : vector<19x512xi1>, vector<19x512xf32>
    %31 = arith.truncf %30 : vector<19x512xf32> to vector<19x512xbf16>
    %c512 = arith.constant 512 : index
    %c0_24 = arith.constant 0 : index
    %32 = vector.load %arg4[%c512, %c0_24] : memref<2048x128xbf16, #tpu.memory_space<vmem>>, vector<512x128xbf16>
    %cst_25 = arith.constant dense<0.000000e+00> : vector<19x128xf32>
    %33 = tpu.matmul %31, %32, %cst_25 {dimension_numbers = #tpu.dot_dimension_numbers<[1], [0], [0], [1], [0, 0, 1, 1], [], []>} : vector<19x512xbf16>, vector<512x128xbf16>, vector<19x128xf32> -> vector<19x128xf32>
    %34 = arith.addf %17, %33 : vector<19x128xf32>
    %c0_i32_26 = arith.constant 0 : i32
    %c0_i32_27 = arith.constant 0 : i32
    %c0_i32_28 = arith.constant 0 : i32
    %35 = tpu.memref_slice %arg1[%c0_i32_26, %c0_i32_27, %c0_i32_28] : memref<1x19x8192xbf16, #tpu.memory_space<vmem>> -> memref<1x19x8192xbf16, #tpu.memory_space<vmem>>
    %36 = tpu.memref_squeeze %35 : memref<1x19x8192xbf16, #tpu.memory_space<vmem>> -> memref<19x8192xbf16, #tpu.memory_space<vmem>>
    %c0_29 = arith.constant 0 : index
    %c4096 = arith.constant 4096 : index
    %37 = vector.load %36[%c0_29, %c4096] : memref<19x8192xbf16, #tpu.memory_space<vmem>>, vector<19x2048xbf16>
    %c0_30 = arith.constant 0 : index
    %c0_31 = arith.constant 0 : index
    %38 = vector.load %arg2[%c0_30, %c0_31] : memref<2048x512xbf16, #tpu.memory_space<vmem>>, vector<2048x512xbf16>
    %cst_32 = arith.constant dense<0.000000e+00> : vector<19x512xf32>
    %39 = tpu.matmul %37, %38, %cst_32 {dimension_numbers = #tpu.dot_dimension_numbers<[1], [0], [0], [1], [0, 0, 1, 1], [], []>} : vector<19x2048xbf16>, vector<2048x512xbf16>, vector<19x512xf32> -> vector<19x512xf32>
    %c0_33 = arith.constant 0 : index
    %c0_34 = arith.constant 0 : index
    %40 = vector.load %arg3[%c0_33, %c0_34] : memref<1x512xf32, #tpu.memory_space<vmem>>, vector<1x512xf32>
    %41 = vector.broadcast %40 : vector<1x512xf32> to vector<19x512xf32>
    %42 = arith.addf %39, %41 : vector<19x512xf32>
    %cst_35 = arith.constant 0.000000e+00 : f32
    %43 = vector.broadcast %cst_35 : f32 to vector<19x512xf32>
    %44 = arith.cmpf ogt, %42, %43 : vector<19x512xf32>
    %cst_36 = arith.constant 2.500000e-01 : f32
    %45 = vector.broadcast %cst_36 : f32 to vector<19x512xf32>
    %46 = arith.mulf %45, %42 : vector<19x512xf32>
    %47 = arith.select %44, %42, %46 : vector<19x512xi1>, vector<19x512xf32>
    %48 = arith.truncf %47 : vector<19x512xf32> to vector<19x512xbf16>
    %c1024 = arith.constant 1024 : index
    %c0_37 = arith.constant 0 : index
    %49 = vector.load %arg4[%c1024, %c0_37] : memref<2048x128xbf16, #tpu.memory_space<vmem>>, vector<512x128xbf16>
    %cst_38 = arith.constant dense<0.000000e+00> : vector<19x128xf32>
    %50 = tpu.matmul %48, %49, %cst_38 {dimension_numbers = #tpu.dot_dimension_numbers<[1], [0], [0], [1], [0, 0, 1, 1], [], []>} : vector<19x512xbf16>, vector<512x128xbf16>, vector<19x128xf32> -> vector<19x128xf32>
    %51 = arith.addf %34, %50 : vector<19x128xf32>
    %c0_i32_39 = arith.constant 0 : i32
    %c0_i32_40 = arith.constant 0 : i32
    %c0_i32_41 = arith.constant 0 : i32
    %52 = tpu.memref_slice %arg1[%c0_i32_39, %c0_i32_40, %c0_i32_41] : memref<1x19x8192xbf16, #tpu.memory_space<vmem>> -> memref<1x19x8192xbf16, #tpu.memory_space<vmem>>
    %53 = tpu.memref_squeeze %52 : memref<1x19x8192xbf16, #tpu.memory_space<vmem>> -> memref<19x8192xbf16, #tpu.memory_space<vmem>>
    %c0_42 = arith.constant 0 : index
    %c6144 = arith.constant 6144 : index
    %54 = vector.load %53[%c0_42, %c6144] : memref<19x8192xbf16, #tpu.memory_space<vmem>>, vector<19x2048xbf16>
    %c0_43 = arith.constant 0 : index
    %c0_44 = arith.constant 0 : index
    %55 = vector.load %arg2[%c0_43, %c0_44] : memref<2048x512xbf16, #tpu.memory_space<vmem>>, vector<2048x512xbf16>
    %cst_45 = arith.constant dense<0.000000e+00> : vector<19x512xf32>
    %56 = tpu.matmul %54, %55, %cst_45 {dimension_numbers = #tpu.dot_dimension_numbers<[1], [0], [0], [1], [0, 0, 1, 1], [], []>} : vector<19x2048xbf16>, vector<2048x512xbf16>, vector<19x512xf32> -> vector<19x512xf32>
    %c0_46 = arith.constant 0 : index
    %c0_47 = arith.constant 0 : index
    %57 = vector.load %arg3[%c0_46, %c0_47] : memref<1x512xf32, #tpu.memory_space<vmem>>, vector<1x512xf32>
    %58 = vector.broadcast %57 : vector<1x512xf32> to vector<19x512xf32>
    %59 = arith.addf %56, %58 : vector<19x512xf32>
    %cst_48 = arith.constant 0.000000e+00 : f32
    %60 = vector.broadcast %cst_48 : f32 to vector<19x512xf32>
    %61 = arith.cmpf ogt, %59, %60 : vector<19x512xf32>
    %cst_49 = arith.constant 2.500000e-01 : f32
    %62 = vector.broadcast %cst_49 : f32 to vector<19x512xf32>
    %63 = arith.mulf %62, %59 : vector<19x512xf32>
    %64 = arith.select %61, %59, %63 : vector<19x512xi1>, vector<19x512xf32>
    %65 = arith.truncf %64 : vector<19x512xf32> to vector<19x512xbf16>
    %c1536 = arith.constant 1536 : index
    %c0_50 = arith.constant 0 : index
    %66 = vector.load %arg4[%c1536, %c0_50] : memref<2048x128xbf16, #tpu.memory_space<vmem>>, vector<512x128xbf16>
    %cst_51 = arith.constant dense<0.000000e+00> : vector<19x128xf32>
    %67 = tpu.matmul %65, %66, %cst_51 {dimension_numbers = #tpu.dot_dimension_numbers<[1], [0], [0], [1], [0, 0, 1, 1], [], []>} : vector<19x512xbf16>, vector<512x128xbf16>, vector<19x128xf32> -> vector<19x128xf32>
    %68 = arith.addf %51, %67 : vector<19x128xf32>
    %c0_52 = arith.constant 0 : index
    %c0_53 = arith.constant 0 : index
    %69 = vector.load %arg5[%c0_52, %c0_53] : memref<1x128xf32, #tpu.memory_space<vmem>>, vector<1x128xf32>
    %70 = vector.broadcast %69 : vector<1x128xf32> to vector<19x128xf32>
    %71 = arith.addf %68, %70 : vector<19x128xf32>
    %cst_54 = arith.constant 0.000000e+00 : f32
    %72 = vector.broadcast %cst_54 : f32 to vector<19x128xf32>
    %73 = arith.cmpf ogt, %71, %72 : vector<19x128xf32>
    %cst_55 = arith.constant 2.500000e-01 : f32
    %74 = vector.broadcast %cst_55 : f32 to vector<19x128xf32>
    %75 = arith.mulf %74, %71 : vector<19x128xf32>
    %76 = arith.select %73, %71, %75 : vector<19x128xi1>, vector<19x128xf32>
    %77 = arith.truncf %76 : vector<19x128xf32> to vector<19x128xbf16>
    %c0_56 = arith.constant 0 : index
    %c0_57 = arith.constant 0 : index
    %78 = vector.load %arg7[%c0_56, %c0_57] : memref<1x256xf32, #tpu.memory_space<vmem>>, vector<1x256xf32>
    %79 = vector.extract_strided_slice %77 {offsets = [0, 0], sizes = [1, 128], strides = [1, 1]} : vector<19x128xbf16> to vector<1x128xbf16>
    %c0_58 = arith.constant 0 : index
    %c0_59 = arith.constant 0 : index
    %80 = vector.load %arg6[%c0_58, %c0_59] : memref<2432x256xbf16, #tpu.memory_space<vmem>>, vector<128x256xbf16>
    %cst_60 = arith.constant dense<0.000000e+00> : vector<1x256xf32>
    %81 = tpu.matmul %79, %80, %cst_60 {dimension_numbers = #tpu.dot_dimension_numbers<[1], [0], [0], [1], [0, 0, 1, 1], [], []>} : vector<1x128xbf16>, vector<128x256xbf16>, vector<1x256xf32> -> vector<1x256xf32>
    %82 = arith.addf %78, %81 : vector<1x256xf32>
    %83 = vector.extract_strided_slice %77 {offsets = [1, 0], sizes = [1, 128], strides = [1, 1]} : vector<19x128xbf16> to vector<1x128xbf16>
    %c128 = arith.constant 128 : index
    %c0_61 = arith.constant 0 : index
    %84 = vector.load %arg6[%c128, %c0_61] : memref<2432x256xbf16, #tpu.memory_space<vmem>>, vector<128x256xbf16>
    %cst_62 = arith.constant dense<0.000000e+00> : vector<1x256xf32>
    %85 = tpu.matmul %83, %84, %cst_62 {dimension_numbers = #tpu.dot_dimension_numbers<[1], [0], [0], [1], [0, 0, 1, 1], [], []>} : vector<1x128xbf16>, vector<128x256xbf16>, vector<1x256xf32> -> vector<1x256xf32>
    %86 = arith.addf %82, %85 : vector<1x256xf32>
    %87 = vector.extract_strided_slice %77 {offsets = [2, 0], sizes = [1, 128], strides = [1, 1]} : vector<19x128xbf16> to vector<1x128xbf16>
    %c256 = arith.constant 256 : index
    %c0_63 = arith.constant 0 : index
    %88 = vector.load %arg6[%c256, %c0_63] : memref<2432x256xbf16, #tpu.memory_space<vmem>>, vector<128x256xbf16>
    %cst_64 = arith.constant dense<0.000000e+00> : vector<1x256xf32>
    %89 = tpu.matmul %87, %88, %cst_64 {dimension_numbers = #tpu.dot_dimension_numbers<[1], [0], [0], [1], [0, 0, 1, 1], [], []>} : vector<1x128xbf16>, vector<128x256xbf16>, vector<1x256xf32> -> vector<1x256xf32>
    %90 = arith.addf %86, %89 : vector<1x256xf32>
    %91 = vector.extract_strided_slice %77 {offsets = [3, 0], sizes = [1, 128], strides = [1, 1]} : vector<19x128xbf16> to vector<1x128xbf16>
    %c384 = arith.constant 384 : index
    %c0_65 = arith.constant 0 : index
    %92 = vector.load %arg6[%c384, %c0_65] : memref<2432x256xbf16, #tpu.memory_space<vmem>>, vector<128x256xbf16>
    %cst_66 = arith.constant dense<0.000000e+00> : vector<1x256xf32>
    %93 = tpu.matmul %91, %92, %cst_66 {dimension_numbers = #tpu.dot_dimension_numbers<[1], [0], [0], [1], [0, 0, 1, 1], [], []>} : vector<1x128xbf16>, vector<128x256xbf16>, vector<1x256xf32> -> vector<1x256xf32>
    %94 = arith.addf %90, %93 : vector<1x256xf32>
    %95 = vector.extract_strided_slice %77 {offsets = [4, 0], sizes = [1, 128], strides = [1, 1]} : vector<19x128xbf16> to vector<1x128xbf16>
    %c512_67 = arith.constant 512 : index
    %c0_68 = arith.constant 0 : index
    %96 = vector.load %arg6[%c512_67, %c0_68] : memref<2432x256xbf16, #tpu.memory_space<vmem>>, vector<128x256xbf16>
    %cst_69 = arith.constant dense<0.000000e+00> : vector<1x256xf32>
    %97 = tpu.matmul %95, %96, %cst_69 {dimension_numbers = #tpu.dot_dimension_numbers<[1], [0], [0], [1], [0, 0, 1, 1], [], []>} : vector<1x128xbf16>, vector<128x256xbf16>, vector<1x256xf32> -> vector<1x256xf32>
    %98 = arith.addf %94, %97 : vector<1x256xf32>
    %99 = vector.extract_strided_slice %77 {offsets = [5, 0], sizes = [1, 128], strides = [1, 1]} : vector<19x128xbf16> to vector<1x128xbf16>
    %c640 = arith.constant 640 : index
    %c0_70 = arith.constant 0 : index
    %100 = vector.load %arg6[%c640, %c0_70] : memref<2432x256xbf16, #tpu.memory_space<vmem>>, vector<128x256xbf16>
    %cst_71 = arith.constant dense<0.000000e+00> : vector<1x256xf32>
    %101 = tpu.matmul %99, %100, %cst_71 {dimension_numbers = #tpu.dot_dimension_numbers<[1], [0], [0], [1], [0, 0, 1, 1], [], []>} : vector<1x128xbf16>, vector<128x256xbf16>, vector<1x256xf32> -> vector<1x256xf32>
    %102 = arith.addf %98, %101 : vector<1x256xf32>
    %103 = vector.extract_strided_slice %77 {offsets = [6, 0], sizes = [1, 128], strides = [1, 1]} : vector<19x128xbf16> to vector<1x128xbf16>
    %c768 = arith.constant 768 : index
    %c0_72 = arith.constant 0 : index
    %104 = vector.load %arg6[%c768, %c0_72] : memref<2432x256xbf16, #tpu.memory_space<vmem>>, vector<128x256xbf16>
    %cst_73 = arith.constant dense<0.000000e+00> : vector<1x256xf32>
    %105 = tpu.matmul %103, %104, %cst_73 {dimension_numbers = #tpu.dot_dimension_numbers<[1], [0], [0], [1], [0, 0, 1, 1], [], []>} : vector<1x128xbf16>, vector<128x256xbf16>, vector<1x256xf32> -> vector<1x256xf32>
    %106 = arith.addf %102, %105 : vector<1x256xf32>
    %107 = vector.extract_strided_slice %77 {offsets = [7, 0], sizes = [1, 128], strides = [1, 1]} : vector<19x128xbf16> to vector<1x128xbf16>
    %c896 = arith.constant 896 : index
    %c0_74 = arith.constant 0 : index
    %108 = vector.load %arg6[%c896, %c0_74] : memref<2432x256xbf16, #tpu.memory_space<vmem>>, vector<128x256xbf16>
    %cst_75 = arith.constant dense<0.000000e+00> : vector<1x256xf32>
    %109 = tpu.matmul %107, %108, %cst_75 {dimension_numbers = #tpu.dot_dimension_numbers<[1], [0], [0], [1], [0, 0, 1, 1], [], []>} : vector<1x128xbf16>, vector<128x256xbf16>, vector<1x256xf32> -> vector<1x256xf32>
    %110 = arith.addf %106, %109 : vector<1x256xf32>
    %111 = vector.extract_strided_slice %77 {offsets = [8, 0], sizes = [1, 128], strides = [1, 1]} : vector<19x128xbf16> to vector<1x128xbf16>
    %c1024_76 = arith.constant 1024 : index
    %c0_77 = arith.constant 0 : index
    %112 = vector.load %arg6[%c1024_76, %c0_77] : memref<2432x256xbf16, #tpu.memory_space<vmem>>, vector<128x256xbf16>
    %cst_78 = arith.constant dense<0.000000e+00> : vector<1x256xf32>
    %113 = tpu.matmul %111, %112, %cst_78 {dimension_numbers = #tpu.dot_dimension_numbers<[1], [0], [0], [1], [0, 0, 1, 1], [], []>} : vector<1x128xbf16>, vector<128x256xbf16>, vector<1x256xf32> -> vector<1x256xf32>
    %114 = arith.addf %110, %113 : vector<1x256xf32>
    %115 = vector.extract_strided_slice %77 {offsets = [9, 0], sizes = [1, 128], strides = [1, 1]} : vector<19x128xbf16> to vector<1x128xbf16>
    %c1152 = arith.constant 1152 : index
    %c0_79 = arith.constant 0 : index
    %116 = vector.load %arg6[%c1152, %c0_79] : memref<2432x256xbf16, #tpu.memory_space<vmem>>, vector<128x256xbf16>
    %cst_80 = arith.constant dense<0.000000e+00> : vector<1x256xf32>
    %117 = tpu.matmul %115, %116, %cst_80 {dimension_numbers = #tpu.dot_dimension_numbers<[1], [0], [0], [1], [0, 0, 1, 1], [], []>} : vector<1x128xbf16>, vector<128x256xbf16>, vector<1x256xf32> -> vector<1x256xf32>
    %118 = arith.addf %114, %117 : vector<1x256xf32>
    %119 = vector.extract_strided_slice %77 {offsets = [10, 0], sizes = [1, 128], strides = [1, 1]} : vector<19x128xbf16> to vector<1x128xbf16>
    %c1280 = arith.constant 1280 : index
    %c0_81 = arith.constant 0 : index
    %120 = vector.load %arg6[%c1280, %c0_81] : memref<2432x256xbf16, #tpu.memory_space<vmem>>, vector<128x256xbf16>
    %cst_82 = arith.constant dense<0.000000e+00> : vector<1x256xf32>
    %121 = tpu.matmul %119, %120, %cst_82 {dimension_numbers = #tpu.dot_dimension_numbers<[1], [0], [0], [1], [0, 0, 1, 1], [], []>} : vector<1x128xbf16>, vector<128x256xbf16>, vector<1x256xf32> -> vector<1x256xf32>
    %122 = arith.addf %118, %121 : vector<1x256xf32>
    %123 = vector.extract_strided_slice %77 {offsets = [11, 0], sizes = [1, 128], strides = [1, 1]} : vector<19x128xbf16> to vector<1x128xbf16>
    %c1408 = arith.constant 1408 : index
    %c0_83 = arith.constant 0 : index
    %124 = vector.load %arg6[%c1408, %c0_83] : memref<2432x256xbf16, #tpu.memory_space<vmem>>, vector<128x256xbf16>
    %cst_84 = arith.constant dense<0.000000e+00> : vector<1x256xf32>
    %125 = tpu.matmul %123, %124, %cst_84 {dimension_numbers = #tpu.dot_dimension_numbers<[1], [0], [0], [1], [0, 0, 1, 1], [], []>} : vector<1x128xbf16>, vector<128x256xbf16>, vector<1x256xf32> -> vector<1x256xf32>
    %126 = arith.addf %122, %125 : vector<1x256xf32>
    %127 = vector.extract_strided_slice %77 {offsets = [12, 0], sizes = [1, 128], strides = [1, 1]} : vector<19x128xbf16> to vector<1x128xbf16>
    %c1536_85 = arith.constant 1536 : index
    %c0_86 = arith.constant 0 : index
    %128 = vector.load %arg6[%c1536_85, %c0_86] : memref<2432x256xbf16, #tpu.memory_space<vmem>>, vector<128x256xbf16>
    %cst_87 = arith.constant dense<0.000000e+00> : vector<1x256xf32>
    %129 = tpu.matmul %127, %128, %cst_87 {dimension_numbers = #tpu.dot_dimension_numbers<[1], [0], [0], [1], [0, 0, 1, 1], [], []>} : vector<1x128xbf16>, vector<128x256xbf16>, vector<1x256xf32> -> vector<1x256xf32>
    %130 = arith.addf %126, %129 : vector<1x256xf32>
    %131 = vector.extract_strided_slice %77 {offsets = [13, 0], sizes = [1, 128], strides = [1, 1]} : vector<19x128xbf16> to vector<1x128xbf16>
    %c1664 = arith.constant 1664 : index
    %c0_88 = arith.constant 0 : index
    %132 = vector.load %arg6[%c1664, %c0_88] : memref<2432x256xbf16, #tpu.memory_space<vmem>>, vector<128x256xbf16>
    %cst_89 = arith.constant dense<0.000000e+00> : vector<1x256xf32>
    %133 = tpu.matmul %131, %132, %cst_89 {dimension_numbers = #tpu.dot_dimension_numbers<[1], [0], [0], [1], [0, 0, 1, 1], [], []>} : vector<1x128xbf16>, vector<128x256xbf16>, vector<1x256xf32> -> vector<1x256xf32>
    %134 = arith.addf %130, %133 : vector<1x256xf32>
    %135 = vector.extract_strided_slice %77 {offsets = [14, 0], sizes = [1, 128], strides = [1, 1]} : vector<19x128xbf16> to vector<1x128xbf16>
    %c1792 = arith.constant 1792 : index
    %c0_90 = arith.constant 0 : index
    %136 = vector.load %arg6[%c1792, %c0_90] : memref<2432x256xbf16, #tpu.memory_space<vmem>>, vector<128x256xbf16>
    %cst_91 = arith.constant dense<0.000000e+00> : vector<1x256xf32>
    %137 = tpu.matmul %135, %136, %cst_91 {dimension_numbers = #tpu.dot_dimension_numbers<[1], [0], [0], [1], [0, 0, 1, 1], [], []>} : vector<1x128xbf16>, vector<128x256xbf16>, vector<1x256xf32> -> vector<1x256xf32>
    %138 = arith.addf %134, %137 : vector<1x256xf32>
    %139 = vector.extract_strided_slice %77 {offsets = [15, 0], sizes = [1, 128], strides = [1, 1]} : vector<19x128xbf16> to vector<1x128xbf16>
    %c1920 = arith.constant 1920 : index
    %c0_92 = arith.constant 0 : index
    %140 = vector.load %arg6[%c1920, %c0_92] : memref<2432x256xbf16, #tpu.memory_space<vmem>>, vector<128x256xbf16>
    %cst_93 = arith.constant dense<0.000000e+00> : vector<1x256xf32>
    %141 = tpu.matmul %139, %140, %cst_93 {dimension_numbers = #tpu.dot_dimension_numbers<[1], [0], [0], [1], [0, 0, 1, 1], [], []>} : vector<1x128xbf16>, vector<128x256xbf16>, vector<1x256xf32> -> vector<1x256xf32>
    %142 = arith.addf %138, %141 : vector<1x256xf32>
    %143 = vector.extract_strided_slice %77 {offsets = [16, 0], sizes = [1, 128], strides = [1, 1]} : vector<19x128xbf16> to vector<1x128xbf16>
    %c2048_94 = arith.constant 2048 : index
    %c0_95 = arith.constant 0 : index
    %144 = vector.load %arg6[%c2048_94, %c0_95] : memref<2432x256xbf16, #tpu.memory_space<vmem>>, vector<128x256xbf16>
    %cst_96 = arith.constant dense<0.000000e+00> : vector<1x256xf32>
    %145 = tpu.matmul %143, %144, %cst_96 {dimension_numbers = #tpu.dot_dimension_numbers<[1], [0], [0], [1], [0, 0, 1, 1], [], []>} : vector<1x128xbf16>, vector<128x256xbf16>, vector<1x256xf32> -> vector<1x256xf32>
    %146 = arith.addf %142, %145 : vector<1x256xf32>
    %147 = vector.extract_strided_slice %77 {offsets = [17, 0], sizes = [1, 128], strides = [1, 1]} : vector<19x128xbf16> to vector<1x128xbf16>
    %c2176 = arith.constant 2176 : index
    %c0_97 = arith.constant 0 : index
    %148 = vector.load %arg6[%c2176, %c0_97] : memref<2432x256xbf16, #tpu.memory_space<vmem>>, vector<128x256xbf16>
    %cst_98 = arith.constant dense<0.000000e+00> : vector<1x256xf32>
    %149 = tpu.matmul %147, %148, %cst_98 {dimension_numbers = #tpu.dot_dimension_numbers<[1], [0], [0], [1], [0, 0, 1, 1], [], []>} : vector<1x128xbf16>, vector<128x256xbf16>, vector<1x256xf32> -> vector<1x256xf32>
    %150 = arith.addf %146, %149 : vector<1x256xf32>
    %151 = vector.extract_strided_slice %77 {offsets = [18, 0], sizes = [1, 128], strides = [1, 1]} : vector<19x128xbf16> to vector<1x128xbf16>
    %c2304 = arith.constant 2304 : index
    %c0_99 = arith.constant 0 : index
    %152 = vector.load %arg6[%c2304, %c0_99] : memref<2432x256xbf16, #tpu.memory_space<vmem>>, vector<128x256xbf16>
    %cst_100 = arith.constant dense<0.000000e+00> : vector<1x256xf32>
    %153 = tpu.matmul %151, %152, %cst_100 {dimension_numbers = #tpu.dot_dimension_numbers<[1], [0], [0], [1], [0, 0, 1, 1], [], []>} : vector<1x128xbf16>, vector<128x256xbf16>, vector<1x256xf32> -> vector<1x256xf32>
    %154 = arith.addf %150, %153 : vector<1x256xf32>
    %cst_101 = arith.constant 0.000000e+00 : f32
    %155 = vector.broadcast %cst_101 : f32 to vector<1x256xf32>
    %156 = arith.cmpf ogt, %154, %155 : vector<1x256xf32>
    %cst_102 = arith.constant 2.500000e-01 : f32
    %157 = vector.broadcast %cst_102 : f32 to vector<1x256xf32>
    %158 = arith.mulf %157, %154 : vector<1x256xf32>
    %159 = arith.select %156, %154, %158 : vector<1x256xi1>, vector<1x256xf32>
    %160 = arith.truncf %159 : vector<1x256xf32> to vector<1x256xbf16>
    %c0_103 = arith.constant 0 : index
    %c0_104 = arith.constant 0 : index
    %161 = vector.load %arg8[%c0_103, %c0_104] : memref<256x64xbf16, #tpu.memory_space<vmem>>, vector<256x64xbf16>
    %cst_105 = arith.constant dense<0.000000e+00> : vector<1x64xf32>
    %162 = tpu.matmul %160, %161, %cst_105 {dimension_numbers = #tpu.dot_dimension_numbers<[1], [0], [0], [1], [0, 0, 1, 1], [], []>} : vector<1x256xbf16>, vector<256x64xbf16>, vector<1x64xf32> -> vector<1x64xf32>
    %c0_106 = arith.constant 0 : index
    %c0_107 = arith.constant 0 : index
    %163 = vector.load %arg9[%c0_106, %c0_107] : memref<1x64xf32, #tpu.memory_space<vmem>>, vector<1x64xf32>
    %164 = arith.addf %162, %163 : vector<1x64xf32>
    %cst_108 = arith.constant 0.000000e+00 : f32
    %165 = vector.broadcast %cst_108 : f32 to vector<1x64xf32>
    %166 = arith.cmpf ogt, %164, %165 : vector<1x64xf32>
    %cst_109 = arith.constant 2.500000e-01 : f32
    %167 = vector.broadcast %cst_109 : f32 to vector<1x64xf32>
    %168 = arith.mulf %167, %164 : vector<1x64xf32>
    %169 = arith.select %166, %164, %168 : vector<1x64xi1>, vector<1x64xf32>
    %170 = arith.truncf %169 : vector<1x64xf32> to vector<1x64xbf16>
    %c0_110 = arith.constant 0 : index
    %c0_111 = arith.constant 0 : index
    %171 = vector.load %arg10[%c0_110, %c0_111] : memref<64x128xbf16, #tpu.memory_space<vmem>>, vector<64x128xbf16>
    %cst_112 = arith.constant dense<0.000000e+00> : vector<1x128xf32>
    %172 = tpu.matmul %170, %171, %cst_112 {dimension_numbers = #tpu.dot_dimension_numbers<[1], [0], [0], [1], [0, 0, 1, 1], [], []>} : vector<1x64xbf16>, vector<64x128xbf16>, vector<1x128xf32> -> vector<1x128xf32>
    %c0_113 = arith.constant 0 : index
    %c0_114 = arith.constant 0 : index
    %173 = vector.load %arg11[%c0_113, %c0_114] : memref<1x128xf32, #tpu.memory_space<vmem>>, vector<1x128xf32>
    %174 = arith.addf %172, %173 : vector<1x128xf32>
    %c0_115 = arith.constant 0 : index
    %c0_116 = arith.constant 0 : index
    %c0_117 = arith.constant 0 : index
    %175 = vector.load %arg12[%c0_115, %c0_116, %c0_117] : memref<1x1x128xf32, #tpu.memory_space<vmem>>, vector<1x1x128xf32>
    %176 = vector.shape_cast %175 : vector<1x1x128xf32> to vector<1x128xf32>
    %177 = vector.shape_cast %174 : vector<1x128xf32> to vector<1x1x128xf32>
    tpu.vector_store %arg12[%c0_115, %c0_116, %c0_117], %177 {strides = array<i32>} : memref<1x1x128xf32, #tpu.memory_space<vmem>>, vector<1x1x128xf32>,
    return
  }
  func.func @transform_0(%arg0: i32) -> (i32, i32, i32) {
    %c0_i32 = arith.constant 0 : i32
    %c0_i32_0 = arith.constant 0 : i32
    %c0_i32_1 = arith.constant 0 : i32
    return %arg0, %c0_i32, %c0_i32_0 : i32, i32, i32
  }
  func.func @transform_1(%arg0: i32) -> (i32, i32) {
    %c0_i32 = arith.constant 0 : i32
    %c0_i32_0 = arith.constant 0 : i32
    %c0_i32_1 = arith.constant 0 : i32
    return %c0_i32, %c0_i32_0 : i32, i32
  }
  func.func @transform_2(%arg0: i32) -> (i32, i32) {
    %c0_i32 = arith.constant 0 : i32
    %c0_i32_0 = arith.constant 0 : i32
    %c0_i32_1 = arith.constant 0 : i32
    return %c0_i32, %c0_i32_0 : i32, i32
  }
  func.func @transform_3(%arg0: i32) -> (i32, i32) {
    %c0_i32 = arith.constant 0 : i32
    %c0_i32_0 = arith.constant 0 : i32
    %c0_i32_1 = arith.constant 0 : i32
    return %c0_i32, %c0_i32_0 : i32, i32
  }
  func.func @transform_4(%arg0: i32) -> (i32, i32) {
    %c0_i32 = arith.constant 0 : i32
    %c0_i32_0 = arith.constant 0 : i32
    %c0_i32_1 = arith.constant 0 : i32
    return %c0_i32, %c0_i32_0 : i32, i32
  }
  func.func @transform_5(%arg0: i32) -> (i32, i32) {
    %c0_i32 = arith.constant 0 : i32
    %c0_i32_0 = arith.constant 0 : i32
    %c0_i32_1 = arith.constant 0 : i32
    return %c0_i32, %c0_i32_0 : i32, i32
  }
  func.func @transform_6(%arg0: i32) -> (i32, i32) {
    %c0_i32 = arith.constant 0 : i32
    %c0_i32_0 = arith.constant 0 : i32
    %c0_i32_1 = arith.constant 0 : i32
    return %c0_i32, %c0_i32_0 : i32, i32
  }
  func.func @transform_7(%arg0: i32) -> (i32, i32) {
    %c0_i32 = arith.constant 0 : i32
    %c0_i32_0 = arith.constant 0 : i32
    %c0_i32_1 = arith.constant 0 : i32
    return %c0_i32, %c0_i32_0 : i32, i32
  }
  func.func @transform_8(%arg0: i32) -> (i32, i32) {
    %c0_i32 = arith.constant 0 : i32
    %c0_i32_0 = arith.constant 0 : i32
    %c0_i32_1 = arith.constant 0 : i32
    return %c0_i32, %c0_i32_0 : i32, i32
  }
  func.func @transform_9(%arg0: i32) -> (i32, i32) {
    %c0_i32 = arith.constant 0 : i32
    %c0_i32_0 = arith.constant 0 : i32
    %c0_i32_1 = arith.constant 0 : i32
    return %c0_i32, %c0_i32_0 : i32, i32
  }
  func.func @transform_10(%arg0: i32) -> (i32, i32) {
    %c0_i32 = arith.constant 0 : i32
    %c0_i32_0 = arith.constant 0 : i32
    %c0_i32_1 = arith.constant 0 : i32
    return %c0_i32, %c0_i32_0 : i32, i32
  }
  func.func @transform_11(%arg0: i32) -> (i32, i32, i32) {
    %c0_i32 = arith.constant 0 : i32
    %c0_i32_0 = arith.constant 0 : i32
    %c0_i32_1 = arith.constant 0 : i32
    return %arg0, %c0_i32, %c0_i32_0 : i32, i32, i32
  }
}

</mosaic_0001>

<llo_original>
// kernel: custom-call.1
$region0: #{custom-call.1}
  %s0 = inlined_call_operand.hbm [shape: c64[4,2560], index: 0, kind: input, shape index: {}]
  %s1 = inlined_call_operand.vmem [shape: f32[4,2560], index: 1, kind: output, shape index: {}]
  %s2 = scalar_lea.hbm %s0, 1280
  $region1: #{custom-call.1} parent=0
    #allocation0 [shape = 's32[1]{0}', space=sflag, size = 0x4, scoped, tag = 'scoped memory for custom-call.1']
    %3 = vsyncpa [#allocation0], 0
    %s4 = sshll.u32 %s1, 4
    %s5 = int_to_ptr.vmem [resolvable:$true] %s4
    %7 = dma.hbm_to_vmem [thread:$0]  %s2, 1280, %s5, [#allocation0]
    %8 = dma.done [#allocation0], 1280
    %9 = vsyncpa [#allocation0], 1

// kernel: custom-call
$region0: #{custom-call}
  %s0 = inlined_call_operand.hbm [shape: c64[4,2560], index: 0, kind: input, shape index: {}]
  %s1 = inlined_call_operand.vmem [shape: f32[4,2560], index: 1, kind: output, shape index: {}]
  $region1: #{custom-call} parent=0
    #allocation0 [shape = 's32[1]{0}', space=sflag, size = 0x4, scoped, tag = 'scoped memory for custom-call']
    %2 = vsyncpa [#allocation0], 0
    %s3 = sshll.u32 %s1, 4
    %s4 = int_to_ptr.vmem [resolvable:$true] %s3
    %6 = dma.hbm_to_vmem [thread:$0]  %s0, 1280, %s4, [#allocation0]
    %7 = dma.done [#allocation0], 1280
    %8 = vsyncpa [#allocation0], 1

// kernel: residual_model_forward.1
$region0: #{residual_model_forward.1}
  #allocation0 [shape = 'u32[]', space=smem, size = 0x4, offset = 0x4, fixed_abs, tag = 'smem constant byte address 0x4 - core index']
  #allocation1 [shape = 'u32[144,128]{1,0:T(1,128)}', space=vmem, size = 0x12000, scoped, tag = 'internal scratch']
  %s0 = inlined_call_operand.vmem [shape: bf16[4,19,8192], index: 0, kind: input, shape index: {}]
  %s1 = inlined_call_operand.vmem [shape: bf16[2048,512], index: 1, kind: input, shape index: {}]
  %s2 = inlined_call_operand.vmem [shape: f32[1,512], index: 2, kind: input, shape index: {}]
  %s3 = inlined_call_operand.vmem [shape: bf16[2048,128], index: 3, kind: input, shape index: {}]
  %s4 = inlined_call_operand.vmem [shape: f32[1,128], index: 4, kind: input, shape index: {}]
  %s5 = inlined_call_operand.hbm [shape: bf16[2432,256], index: 5, kind: input, shape index: {}]
  %s6 = inlined_call_operand.vmem [shape: f32[1,256], index: 6, kind: input, shape index: {}]
  %s7 = inlined_call_operand.vmem [shape: bf16[256,64], index: 7, kind: input, shape index: {}]
  %s8 = inlined_call_operand.vmem [shape: f32[1,64], index: 8, kind: input, shape index: {}]
  %s9 = inlined_call_operand.vmem [shape: bf16[64,128], index: 9, kind: input, shape index: {}]
  %s10 = inlined_call_operand.vmem [shape: f32[1,128], index: 10, kind: input, shape index: {}]
  %s11 = inlined_call_operand.vmem [shape: f32[4,1,128], index: 11, kind: output, shape index: {}]
  %s12 = sld [smem:[#allocation0]]
  $region81: #{residual_model_forward.1} parent=0
    _
  %s14 = ssub.s32 1, %s12
  %s15 = scalar_select 0, %s14, %s12
  $region1: #{residual_model_forward.1} parent=0
    #allocation2 [shape = 'u8[1245184]{0}', space=vmem, size = 0x130000, scoped, tag = 'input window, operand 5, single buffered']
    #allocation3 [shape = 's32[2]{0}', space=sflag, size = 0x8, scoped, tag = 'scoped memory for residual_model_forward.1']
    %16 = vsyncpa [#allocation3], 0
    loop: start=0, step=1, limit=6
    $region2: #{residual_model_forward.1} parent=1 // loop_pre_header
      _
    $region3: #{residual_model_forward.1} parent=1 // loop_header
      %s18 = sphi 0, %s22
      %p19 = scmp.ge.s32.totalorder %s18, 6
      %s28 = sphi 0, %s30
      %s31 = sphi 0, %s28
      %s32 = sphi 0, %s31
      %s48 = sphi 0, %s32
      %s52 = sphi 0, %s52
      %s54 = sphi 0, %s52
      %s55 = sphi 0, %s54
      %s69 = sphi 0, %s55
      %s73 = sphi 0, %s73
      %s75 = sphi 0, %s73
      %s76 = sphi 0, %s75
      %s90 = sphi 0, %s76
      %s94 = sphi 0, %s94
      %s96 = sphi 0, %s94
      %s97 = sphi 0, %s96
      %s111 = sphi 0, %s97
      %s115 = sphi 0, %s115
      %s117 = sphi 0, %s115
      %s118 = sphi 0, %s117
      %s132 = sphi 0, %s118
      %s136 = sphi 0, %s136
      %s138 = sphi 0, %s136
      %s139 = sphi 0, %s138
      %s153 = sphi 0, %s139
      %s157 = sphi 0, %s157
      %s159 = sphi 0, %s157
      %s160 = sphi 0, %s159
      %s174 = sphi 0, %s160
      %s178 = sphi 0, %s178
      %s180 = sphi 0, %s178
      %s181 = sphi 0, %s180
      %s195 = sphi 0, %s181
      %s199 = sphi 0, %s199
      %s201 = sphi 0, %s199
      %s202 = sphi 0, %s201
      %s216 = sphi 0, %s202
      %s220 = sphi 0, %s220
      %s222 = sphi 0, %s220
      %s223 = sphi 0, %s222
      %s237 = sphi 0, %s223
      %s241 = sphi 0, %s241
      %s243 = sphi 0, %s241
      %s244 = sphi 0, %s243
      %s258 = sphi 0, %s244
      %s264 = sphi 0, %s266
      %s267 = sphi 0, %s264
      %s268 = sphi 0, %s267
      %s284 = sphi 0, %s268
    $region4: #{residual_model_forward.1} parent=1 // loop_header_branch
      %21 = sbr.rel (%p19) target = $region8
    $region5: #{residual_model_forward.1} parent=1 // loop_body
      %s23 = ssub.s32 %s18, 1
      %s24 = ssub.s32 %s18, 2
      %s25 = sadd.s32 %s18, 1
      %s26 = ssub.s32 %s18, %s25
      %p27 = scmp.eq.s32.totalorder %s26, 0
      %s29 = sadd.s32 %s28, 1
      %s30 = scalar_select %p27, %s28, %s29
      %p33 = pneg %p27
      %p34 = scmp.eq.s32.totalorder %s18, 3
      %p35 = por %p33, %p34
      %p36 = scmp.ne.s32.totalorder %s28, %s31
      %p37 = scmp.eq.s32.totalorder %s18, 0
      %p38 = por %p36, %p37
      %p39 = scmp.ne.s32.totalorder %s28, %s31
      %p40 = scmp.eq.s32.totalorder %s23, 3
      %p41 = por %p39, %p40
      %p42 = scmp.ne.s32.totalorder %s31, %s32
      %p43 = scmp.eq.s32.totalorder %s23, 0
      %p44 = por %p42, %p43
      %p45 = scmp.ne.s32.totalorder %s31, %s32
      %p46 = scmp.eq.s32.totalorder %s24, 3
      %p47 = por %p45, %p46
      %p49 = scmp.ne.s32.totalorder %s32, %s48
      %p50 = scmp.eq.s32.totalorder %s24, 0
      %p51 = por %p49, %p50
      %s53 = sadd.s32 %s52, 1
      %p56 = scmp.eq.s32.totalorder %s18, 3
      %p57 = scmp.ne.s32.totalorder %s52, %s54
      %p58 = scmp.eq.s32.totalorder %s18, 0
      %p59 = por %p57, %p58
      %p60 = scmp.ne.s32.totalorder %s52, %s54
      %p61 = scmp.eq.s32.totalorder %s23, 3
      %p62 = por %p60, %p61
      %p63 = scmp.ne.s32.totalorder %s54, %s55
      %p64 = scmp.eq.s32.totalorder %s23, 0
      %p65 = por %p63, %p64
      %p66 = scmp.ne.s32.totalorder %s54, %s55
      %p67 = scmp.eq.s32.totalorder %s24, 3
      %p68 = por %p66, %p67
      %p70 = scmp.ne.s32.totalorder %s55, %s69
      %p71 = scmp.eq.s32.totalorder %s24, 0
      %p72 = por %p70, %p71
      %s74 = sadd.s32 %s73, 1
      %p77 = scmp.eq.s32.totalorder %s18, 3
      %p78 = scmp.ne.s32.totalorder %s73, %s75
      %p79 = scmp.eq.s32.totalorder %s18, 0
      %p80 = por %p78, %p79
      %p81 = scmp.ne.s32.totalorder %s73, %s75
      %p82 = scmp.eq.s32.totalorder %s23, 3
      %p83 = por %p81, %p82
      %p84 = scmp.ne.s32.totalorder %s75, %s76
      %p85 = scmp.eq.s32.totalorder %s23, 0
      %p86 = por %p84, %p85
      %p87 = scmp.ne.s32.totalorder %s75, %s76
      %p88 = scmp.eq.s32.totalorder %s24, 3
      %p89 = por %p87, %p88
      %p91 = scmp.ne.s32.totalorder %s76, %s90
      %p92 = scmp.eq.s32.totalorder %s24, 0
      %p93 = por %p91, %p92
      %s95 = sadd.s32 %s94, 1
      %p98 = scmp.eq.s32.totalorder %s18, 3
      %p99 = scmp.ne.s32.totalorder %s94, %s96
      %p100 = scmp.eq.s32.totalorder %s18, 0
      %p101 = por %p99, %p100
      %p102 = scmp.ne.s32.totalorder %s94, %s96
      %p103 = scmp.eq.s32.totalorder %s23, 3
      %p104 = por %p102, %p103
      %p105 = scmp.ne.s32.totalorder %s96, %s97
      %p106 = scmp.eq.s32.totalorder %s23, 0
      %p107 = por %p105, %p106
      %p108 = scmp.ne.s32.totalorder %s96, %s97
      %p109 = scmp.eq.s32.totalorder %s24, 3
      %p110 = por %p108, %p109
      %p112 = scmp.ne.s32.totalorder %s97, %s111
      %p113 = scmp.eq.s32.totalorder %s24, 0
      %p114 = por %p112, %p113
      %s116 = sadd.s32 %s115, 1
      %p119 = scmp.eq.s32.totalorder %s18, 3
      %p120 = scmp.ne.s32.totalorder %s115, %s117
      %p121 = scmp.eq.s32.totalorder %s18, 0
      %p122 = por %p120, %p121
      %p123 = scmp.ne.s32.totalorder %s115, %s117
      %p124 = scmp.eq.s32.totalorder %s23, 3
      %p125 = por %p123, %p124
      %p126 = scmp.ne.s32.totalorder %s117, %s118
      %p127 = scmp.eq.s32.totalorder %s23, 0
      %p128 = por %p126, %p127
      %p129 = scmp.ne.s32.totalorder %s117, %s118
      %p130 = scmp.eq.s32.totalorder %s24, 3
      %p131 = por %p129, %p130
      %p133 = scmp.ne.s32.totalorder %s118, %s132
      %p134 = scmp.eq.s32.totalorder %s24, 0
      %p135 = por %p133, %p134
      %s137 = sadd.s32 %s136, 1
      %p140 = scmp.eq.s32.totalorder %s18, 3
      %p141 = scmp.ne.s32.totalorder %s136, %s138
      %p142 = scmp.eq.s32.totalorder %s18, 0
      %p143 = por %p141, %p142
      %p144 = scmp.ne.s32.totalorder %s136, %s138
      %p145 = scmp.eq.s32.totalorder %s23, 3
      %p146 = por %p144, %p145
      %p147 = scmp.ne.s32.totalorder %s138, %s139
      %p148 = scmp.eq.s32.totalorder %s23, 0
      %p149 = por %p147, %p148
      %p150 = scmp.ne.s32.totalorder %s138, %s139
      %p151 = scmp.eq.s32.totalorder %s24, 3
      %p152 = por %p150, %p151
      %p154 = scmp.ne.s32.totalorder %s139, %s153
      %p155 = scmp.eq.s32.totalorder %s24, 0
      %p156 = por %p154, %p155
      %s158 = sadd.s32 %s157, 1
      %p161 = scmp.eq.s32.totalorder %s18, 3
      %p162 = scmp.ne.s32.totalorder %s157, %s159
      %p163 = scmp.eq.s32.totalorder %s18, 0
      %p164 = por %p162, %p163
      %p165 = scmp.ne.s32.totalorder %s157, %s159
      %p166 = scmp.eq.s32.totalorder %s23, 3
      %p167 = por %p165, %p166
      %p168 = scmp.ne.s32.totalorder %s159, %s160
      %p169 = scmp.eq.s32.totalorder %s23, 0
      %p170 = por %p168, %p169
      %p171 = scmp.ne.s32.totalorder %s159, %s160
      %p172 = scmp.eq.s32.totalorder %s24, 3
      %p173 = por %p171, %p172
      %p175 = scmp.ne.s32.totalorder %s160, %s174
      %p176 = scmp.eq.s32.totalorder %s24, 0
      %p177 = por %p175, %p176
      %s179 = sadd.s32 %s178, 1
      %p182 = scmp.eq.s32.totalorder %s18, 3
      %p183 = scmp.ne.s32.totalorder %s178, %s180
      %p184 = scmp.eq.s32.totalorder %s18, 0
      %p185 = por %p183, %p184
      %p186 = scmp.ne.s32.totalorder %s178, %s180
      %p187 = scmp.eq.s32.totalorder %s23, 3
      %p188 = por %p186, %p187
      %p189 = scmp.ne.s32.totalorder %s180, %s181
      %p190 = scmp.eq.s32.totalorder %s23, 0
      %p191 = por %p189, %p190
      %p192 = scmp.ne.s32.totalorder %s180, %s181
      %p193 = scmp.eq.s32.totalorder %s24, 3
      %p194 = por %p192, %p193
      %p196 = scmp.ne.s32.totalorder %s181, %s195
      %p197 = scmp.eq.s32.totalorder %s24, 0
      %p198 = por %p196, %p197
      %s200 = sadd.s32 %s199, 1
      %p203 = scmp.eq.s32.totalorder %s18, 3
      %p204 = scmp.ne.s32.totalorder %s199, %s201
      %p205 = scmp.eq.s32.totalorder %s18, 0
      %p206 = por %p204, %p205
      %p207 = scmp.ne.s32.totalorder %s199, %s201
      %p208 = scmp.eq.s32.totalorder %s23, 3
      %p209 = por %p207, %p208
      %p210 = scmp.ne.s32.totalorder %s201, %s202
      %p211 = scmp.eq.s32.totalorder %s23, 0
      %p212 = por %p210, %p211
      %p213 = scmp.ne.s32.totalorder %s201, %s202
      %p214 = scmp.eq.s32.totalorder %s24, 3
      %p215 = por %p213, %p214
      %p217 = scmp.ne.s32.totalorder %s202, %s216
      %p218 = scmp.eq.s32.totalorder %s24, 0
      %p219 = por %p217, %p218
      %s221 = sadd.s32 %s220, 1
      %p224 = scmp.eq.s32.totalorder %s18, 3
      %p225 = scmp.ne.s32.totalorder %s220, %s222
      %p226 = scmp.eq.s32.totalorder %s18, 0
      %p227 = por %p225, %p226
      %p228 = scmp.ne.s32.totalorder %s220, %s222
      %p229 = scmp.eq.s32.totalorder %s23, 3
      %p230 = por %p228, %p229
      %p231 = scmp.ne.s32.totalorder %s222, %s223
      %p232 = scmp.eq.s32.totalorder %s23, 0
      %p233 = por %p231, %p232
      %p234 = scmp.ne.s32.totalorder %s222, %s223
      %p235 = scmp.eq.s32.totalorder %s24, 3
      %p236 = por %p234, %p235
      %p238 = scmp.ne.s32.totalorder %s223, %s237
      %p239 = scmp.eq.s32.totalorder %s24, 0
      %p240 = por %p238, %p239
      %s242 = sadd.s32 %s241, 1
      %p245 = scmp.eq.s32.totalorder %s18, 3
      %p246 = scmp.ne.s32.totalorder %s241, %s243
      %p247 = scmp.eq.s32.totalorder %s18, 0
      %p248 = por %p246, %p247
      %p249 = scmp.ne.s32.totalorder %s241, %s243
      %p250 = scmp.eq.s32.totalorder %s23, 3
      %p251 = por %p249, %p250
      %p252 = scmp.ne.s32.totalorder %s243, %s244
      %p253 = scmp.eq.s32.totalorder %s23, 0
      %p254 = por %p252, %p253
      %p255 = scmp.ne.s32.totalorder %s243, %s244
      %p256 = scmp.eq.s32.totalorder %s24, 3
      %p257 = por %p255, %p256
      %p259 = scmp.ne.s32.totalorder %s244, %s258
      %p260 = scmp.eq.s32.totalorder %s24, 0
      %p261 = por %p259, %p260
      %s262 = ssub.s32 %s18, %s25
      %p263 = scmp.eq.s32.totalorder %s262, 0
      %s265 = sadd.s32 %s264, 1
      %s266 = scalar_select %p263, %s264, %s265
      %p269 = pneg %p263
      %p270 = scmp.eq.s32.totalorder %s18, 3
      %p271 = por %p269, %p270
      %p272 = scmp.ne.s32.totalorder %s264, %s267
      %p273 = scmp.eq.s32.totalorder %s18, 0
      %p274 = por %p272, %p273
      %p275 = scmp.ne.s32.totalorder %s264, %s267
      %p276 = scmp.eq.s32.totalorder %s23, 3
      %p277 = por %p275, %p276
      %p278 = scmp.ne.s32.totalorder %s267, %s268
      %p279 = scmp.eq.s32.totalorder %s23, 0
      %p280 = por %p278, %p279
      %p281 = scmp.ne.s32.totalorder %s267, %s268
      %p282 = scmp.eq.s32.totalorder %s24, 3
      %p283 = por %p281, %p282
      %p285 = scmp.ne.s32.totalorder %s268, %s284
      %p286 = scmp.eq.s32.totalorder %s24, 0
      %p287 = por %p285, %p286
      %p288 = scmp.le.s32.totalorder 1, %s18
      %p289 = scmp.lt.s32.totalorder %s18, 5
      %p290 = pnand %p288, %p289
      %p291 = pneg %p290
      // Predicated region
      $region9: #{residual_model_forward.1} parent=5 // pred_check
        _
      $region10: #{residual_model_forward.1} parent=5 // pred_check_branch
        %293 = sbr.rel (%p290) target = $region12
      $region11: #{residual_model_forward.1} parent=5 // pred_region
        %s294 = ssub.s32 %s18, 1
        // Predicated region
        $region13: #{residual_model_forward.1} parent=11 // pred_check
          %p295 = pneg %p65
        $region14: #{residual_model_forward.1} parent=11 // pred_check_branch
          %297 = sbr.rel (%p295) target = $region16
        $region15: #{residual_model_forward.1} parent=11 // pred_region
          _
        $region16: #{residual_model_forward.1} parent=11 // pred_fallthru
          _
        // Predicated region
        $region17: #{residual_model_forward.1} parent=11 // pred_check
          %p298 = pneg %p86
        $region18: #{residual_model_forward.1} parent=11 // pred_check_branch
          %300 = sbr.rel (%p298) target = $region20
        $region19: #{residual_model_forward.1} parent=11 // pred_region
          _
        $region20: #{residual_model_forward.1} parent=11 // pred_fallthru
          _
        // Predicated region
        $region21: #{residual_model_forward.1} parent=11 // pred_check
          %p301 = pneg %p107
        $region22: #{residual_model_forward.1} parent=11 // pred_check_branch
          %303 = sbr.rel (%p301) target = $region24
        $region23: #{residual_model_forward.1} parent=11 // pred_region
          _
        $region24: #{residual_model_forward.1} parent=11 // pred_fallthru
          _
        // Predicated region
        $region25: #{residual_model_forward.1} parent=11 // pred_check
          %p304 = pneg %p128
        $region26: #{residual_model_forward.1} parent=11 // pred_check_branch
          %306 = sbr.rel (%p304) target = $region28
        $region27: #{residual_model_forward.1} parent=11 // pred_region
          _
        $region28: #{residual_model_forward.1} parent=11 // pred_fallthru
          _
        // Predicated region
        $region29: #{residual_model_forward.1} parent=11 // pred_check
          %p307 = pneg %p149
        $region30: #{residual_model_forward.1} parent=11 // pred_check_branch
          %309 = sbr.rel (%p307) target = $region32
        $region31: #{residual_model_forward.1} parent=11 // pred_region
          %s311 = ssub.s32 38912, 38912
          %312 = vsyncadd [#allocation3], %s311
          %s313 = sshll.u32 [#allocation2], 4
          %s314 = int_to_ptr.vmem [resolvable:$true] %s313
          %319 = dma.hbm_to_vmem [thread:$0]  %s5, 38912, %s314, [#allocation3], 128, 128, 8
        $region32: #{residual_model_forward.1} parent=11 // pred_fallthru
          _
        // Predicated region
        $region33: #{residual_model_forward.1} parent=11 // pred_check
          %p320 = pneg %p170
        $region34: #{residual_model_forward.1} parent=11 // pred_check_branch
          %322 = sbr.rel (%p320) target = $region36
        $region35: #{residual_model_forward.1} parent=11 // pred_region
          _
        $region36: #{residual_model_forward.1} parent=11 // pred_fallthru
          _
        // Predicated region
        $region37: #{residual_model_forward.1} parent=11 // pred_check
          %p323 = pneg %p191
        $region38: #{residual_model_forward.1} parent=11 // pred_check_branch
          %325 = sbr.rel (%p323) target = $region40
        $region39: #{residual_model_forward.1} parent=11 // pred_region
          _
        $region40: #{residual_model_forward.1} parent=11 // pred_fallthru
          _
        // Predicated region
        $region41: #{residual_model_forward.1} parent=11 // pred_check
          %p326 = pneg %p212
        $region42: #{residual_model_forward.1} parent=11 // pred_check_branch
          %328 = sbr.rel (%p326) target = $region44
        $region43: #{residual_model_forward.1} parent=11 // pred_region
          _
        $region44: #{residual_model_forward.1} parent=11 // pred_fallthru
          _
        // Predicated region
        $region45: #{residual_model_forward.1} parent=11 // pred_check
          %p329 = pneg %p233
        $region46: #{residual_model_forward.1} parent=11 // pred_check_branch
          %331 = sbr.rel (%p329) target = $region48
        $region47: #{residual_model_forward.1} parent=11 // pred_region
          _
        $region48: #{residual_model_forward.1} parent=11 // pred_fallthru
          _
        // Predicated region
        $region49: #{residual_model_forward.1} parent=11 // pred_check
          %p332 = pneg %p254
        $region50: #{residual_model_forward.1} parent=11 // pred_check_branch
          %334 = sbr.rel (%p332) target = $region52
        $region51: #{residual_model_forward.1} parent=11 // pred_region
          _
        $region52: #{residual_model_forward.1} parent=11 // pred_fallthru
          _
      $region12: #{residual_model_forward.1} parent=5 // pred_fallthru
        _
      %p335 = scmp.lt.s32.totalorder %s18, 4
      // Predicated region
      $region53: #{residual_model_forward.1} parent=5 // pred_check
        %p336 = pneg %p335
      $region54: #{residual_model_forward.1} parent=5 // pred_check_branch
        %338 = sbr.rel (%p336) target = $region56
      $region55: #{residual_model_forward.1} parent=5 // pred_region
        // Predicated region
        $region57: #{residual_model_forward.1} parent=55 // pred_check
          %p339 = pneg %p38
        $region58: #{residual_model_forward.1} parent=55 // pred_check_branch
          %341 = sbr.rel (%p339) target = $region60
        $region59: #{residual_model_forward.1} parent=55 // pred_region
          %p342 = scmp.lt.s32.totalorder %s18, 3
          %s343 = scalar_select %p342, %s18, 3
          %s344 = smul.addr %s343, 192
          %s345 = smul.addr %s344, 4
          %s346 = scalar_lea.vmem %s0, %s345
        $region60: #{residual_model_forward.1} parent=55 // pred_fallthru
          _
      $region56: #{residual_model_forward.1} parent=5 // pred_fallthru
        _
      %p347 = scmp.le.s32.totalorder 1, %s18
      %p348 = scmp.lt.s32.totalorder %s18, 5
      %p349 = pnand %p347, %p348
      %p350 = pneg %p349
      // Predicated region
      $region61: #{residual_model_forward.1} parent=5 // pred_check
        _
      $region62: #{residual_model_forward.1} parent=5 // pred_check_branch
        %352 = sbr.rel (%p349) target = $region64
      $region63: #{residual_model_forward.1} parent=5 // pred_region
        %s353 = ssub.s32 %s18, 1
        // Predicated region
        $region65: #{residual_model_forward.1} parent=63 // pred_check
          %p354 = pneg %p149
        $region66: #{residual_model_forward.1} parent=63 // pred_check_branch
          %356 = sbr.rel (%p354) target = $region68
        $region67: #{residual_model_forward.1} parent=63 // pred_region
          %357 = dma.done [#allocation3], 38912
        $region68: #{residual_model_forward.1} parent=63 // pred_fallthru
          _
        %p358 = scmp.lt.s32.totalorder %s23, 3
        %s359 = scalar_select %p358, %s23, 3
        %s360 = smul.addr %s359, 192
        %s361 = smul.addr %s360, 4
        %s362 = scalar_lea.vmem %s0, %s361
        %p363 = pneg %p44
        %p364 = pneg %p41
        %p365 = pneg %p65
        %p366 = pneg %p62
        %p367 = pneg %p86
        %p368 = pneg %p83
        %p369 = pneg %p107
        %p370 = pneg %p104
        %p371 = pneg %p128
        %p372 = pneg %p125
        %p373 = pneg %p149
        %p374 = pneg %p146
        %p375 = pneg %p170
        %p376 = pneg %p167
        %p377 = pneg %p191
        %p378 = pneg %p188
        %p379 = pneg %p212
        %p380 = pneg %p209
        %p381 = pneg %p233
        %p382 = pneg %p230
        %p383 = pneg %p254
        %p384 = pneg %p251
        %p385 = pneg %p280
        %p386 = pneg %p277
        %p387 = scmp.lt.s32.totalorder %s23, 3
        %s388 = scalar_select %p387, %s23, 3
        %s389 = scalar_lea.vmem %s11, %s388
        %p390 = scmp.lt.s32.totalorder %s23, 3
        %s391 = scalar_select %p390, %s23, 3
        %s392 = smul.addr %s391, 192
        %s393 = smul.addr %s392, 4
        %s394 = scalar_lea.vmem %s0, %s393
        %p395 = scmp.lt.s32.totalorder %s23, 3
        %s396 = scalar_select %p395, %s23, 3
        %s397 = scalar_lea.vmem %s11, %s396
        %v399 = vld [vmem:[%s394] sm:$0xff]
        %v400 = vld [vmem:[%s394 + $0x8] sm:$0xff]
        %v401 = vld [vmem:[%s394 + $0x10] sm:$0xff]
        %v402 = vld [vmem:[%s394 + $0x18] sm:$0xff]
        %v403 = vld [vmem:[%s394 + $0x20] sm:$0xff]
        %v404 = vld [vmem:[%s394 + $0x28] sm:$0xff]
        %v405 = vld [vmem:[%s394 + $0x30] sm:$0xff]
        %v406 = vld [vmem:[%s394 + $0x38] sm:$0xff]
        %v407 = vld [vmem:[%s394 + $0x100] sm:$0xff]
        %v408 = vld [vmem:[%s394 + $0x108] sm:$0xff]
        %v409 = vld [vmem:[%s394 + $0x110] sm:$0xff]
        %v410 = vld [vmem:[%s394 + $0x118] sm:$0xff]
        %v411 = vld [vmem:[%s394 + $0x120] sm:$0xff]
        %v412 = vld [vmem:[%s394 + $0x128] sm:$0xff]
        %v413 = vld [vmem:[%s394 + $0x130] sm:$0xff]
        %v414 = vld [vmem:[%s394 + $0x138] sm:$0xff]
        %v415 = vld [vmem:[%s394 + $0x200] sm:$0x33]
        %v416 = vld [vmem:[%s394 + $0x208] sm:$0x33]
        %v417 = vld [vmem:[%s394 + $0x210] sm:$0x33]
        %v418 = vld [vmem:[%s394 + $0x218] sm:$0x33]
        %v419 = vld [vmem:[%s394 + $0x220] sm:$0x33]
        %v420 = vld [vmem:[%s394 + $0x228] sm:$0x33]
        %v421 = vld [vmem:[%s394 + $0x230] sm:$0x33]
        %v422 = vld [vmem:[%s394 + $0x238] sm:$0x33]
        %v423 = vld [vmem:[%s1] sm:$0xff]
        %v424 = vld [vmem:[%s1 + $0x8] sm:$0xff]
        %v425 = vld [vmem:[%s1 + $0x10] sm:$0xff]
        %v426 = vld [vmem:[%s1 + $0x18] sm:$0xff]
        %v427 = vld [vmem:[%s1 + $0x20] sm:$0xff]
        %v428 = vld [vmem:[%s1 + $0x28] sm:$0xff]
        %v429 = vld [vmem:[%s1 + $0x30] sm:$0xff]
        %v430 = vld [vmem:[%s1 + $0x38] sm:$0xff]
        %v431 = vld [vmem:[%s1 + $0x40] sm:$0xff]
        %v432 = vld [vmem:[%s1 + $0x48] sm:$0xff]
        %v433 = vld [vmem:[%s1 + $0x50] sm:$0xff]
        %v434 = vld [vmem:[%s1 + $0x58] sm:$0xff]
        %v435 = vld [vmem:[%s1 + $0x60] sm:$0xff]
        %v436 = vld [vmem:[%s1 + $0x68] sm:$0xff]
        %v437 = vld [vmem:[%s1 + $0x70] sm:$0xff]
        %v438 = vld [vmem:[%s1 + $0x78] sm:$0xff]
        %v439 = vld [vmem:[%s1 + $0x80] sm:$0xff]
        %v440 = vld [vmem:[%s1 + $0x88] sm:$0xff]
        %v441 = vld [vmem:[%s1 + $0x90] sm:$0xff]
        %v442 = vld [vmem:[%s1 + $0x98] sm:$0xff]
        %v443 = vld [vmem:[%s1 + $0xa0] sm:$0xff]
        %v444 = vld [vmem:[%s1 + $0xa8] sm:$0xff]
        %v445 = vld [vmem:[%s1 + $0xb0] sm:$0xff]
        %v446 = vld [vmem:[%s1 + $0xb8] sm:$0xff]
        %v447 = vld [vmem:[%s1 + $0xc0] sm:$0xff]
        %v448 = vld [vmem:[%s1 + $0xc8] sm:$0xff]
        %v449 = vld [vmem:[%s1 + $0xd0] sm:$0xff]
        %v450 = vld [vmem:[%s1 + $0xd8] sm:$0xff]
        %v451 = vld [vmem:[%s1 + $0xe0] sm:$0xff]
        %v452 = vld [vmem:[%s1 + $0xe8] sm:$0xff]
        %v453 = vld [vmem:[%s1 + $0xf0] sm:$0xff]
        %v454 = vld [vmem:[%s1 + $0xf8] sm:$0xff]
        %v455 = vld [vmem:[%s1 + $0x100] sm:$0xff]
        %v456 = vld [vmem:[%s1 + $0x108] sm:$0xff]
        %v457 = vld [vmem:[%s1 + $0x110] sm:$0xff]
        %v458 = vld [vmem:[%s1 + $0x118] sm:$0xff]
        %v459 = vld [vmem:[%s1 + $0x120] sm:$0xff]
        %v460 = vld [vmem:[%s1 + $0x128] sm:$0xff]
        %v461 = vld [vmem:[%s1 + $0x130] sm:$0xff]
        %v462 = vld [vmem:[%s1 + $0x138] sm:$0xff]
        %v463 = vld [vmem:[%s1 + $0x140] sm:$0xff]
        %v464 = vld [vmem:[%s1 + $0x148] sm:$0xff]
        %v465 = vld [vmem:[%s1 + $0x150] sm:$0xff]
        %v466 = vld [vmem:[%s1 + $0x158] sm:$0xff]
        %v467 = vld [vmem:[%s1 + $0x160] sm:$0xff]
        %v468 = vld [vmem:[%s1 + $0x168] sm:$0xff]
        %v469 = vld [vmem:[%s1 + $0x170] sm:$0xff]
        %v470 = vld [vmem:[%s1 + $0x178] sm:$0xff]
        %v471 = vld [vmem:[%s1 + $0x180] sm:$0xff]
        %v472 = vld [vmem:[%s1 + $0x188] sm:$0xff]
        %v473 = vld [vmem:[%s1 + $0x190] sm:$0xff]
        %v474 = vld [vmem:[%s1 + $0x198] sm:$0xff]
        %v475 = vld [vmem:[%s1 + $0x1a0] sm:$0xff]
        %v476 = vld [vmem:[%s1 + $0x1a8] sm:$0xff]
        %v477 = vld [vmem:[%s1 + $0x1b0] sm:$0xff]
        %v478 = vld [vmem:[%s1 + $0x1b8] sm:$0xff]
        %v479 = vld [vmem:[%s1 + $0x1c0] sm:$0xff]
        %v480 = vld [vmem:[%s1 + $0x1c8] sm:$0xff]
        %v481 = vld [vmem:[%s1 + $0x1d0] sm:$0xff]
        %v482 = vld [vmem:[%s1 + $0x1d8] sm:$0xff]
        %v483 = vld [vmem:[%s1 + $0x1e0] sm:$0xff]
        %v484 = vld [vmem:[%s1 + $0x1e8] sm:$0xff]
        %v485 = vld [vmem:[%s1 + $0x1f0] sm:$0xff]
        %v486 = vld [vmem:[%s1 + $0x1f8] sm:$0xff]
        %v487 = vld [vmem:[%s1 + $0x200] sm:$0xff]
        %v488 = vld [vmem:[%s1 + $0x208] sm:$0xff]
        %v489 = vld [vmem:[%s1 + $0x210] sm:$0xff]
        %v490 = vld [vmem:[%s1 + $0x218] sm:$0xff]
        %v491 = vld [vmem:[%s1 + $0x220] sm:$0xff]
        %v492 = vld [vmem:[%s1 + $0x228] sm:$0xff]
        %v493 = vld [vmem:[%s1 + $0x230] sm:$0xff]
        %v494 = vld [vmem:[%s1 + $0x238] sm:$0xff]
        %v495 = vld [vmem:[%s1 + $0x240] sm:$0xff]
        %v496 = vld [vmem:[%s1 + $0x248] sm:$0xff]
        %v497 = vld [vmem:[%s1 + $0x250] sm:$0xff]
        %v498 = vld [vmem:[%s1 + $0x258] sm:$0xff]
        %v499 = vld [vmem:[%s1 + $0x260] sm:$0xff]
        %v500 = vld [vmem:[%s1 + $0x268] sm:$0xff]
        %v501 = vld [vmem:[%s1 + $0x270] sm:$0xff]
        %v502 = vld [vmem:[%s1 + $0x278] sm:$0xff]
        %v503 = vld [vmem:[%s1 + $0x280] sm:$0xff]
        %v504 = vld [vmem:[%s1 + $0x288] sm:$0xff]
        %v505 = vld [vmem:[%s1 + $0x290] sm:$0xff]
        %v506 = vld [vmem:[%s1 + $0x298] sm:$0xff]
        %v507 = vld [vmem:[%s1 + $0x2a0] sm:$0xff]
        %v508 = vld [vmem:[%s1 + $0x2a8] sm:$0xff]
        %v509 = vld [vmem:[%s1 + $0x2b0] sm:$0xff]
        %v510 = vld [vmem:[%s1 + $0x2b8] sm:$0xff]
        %v511 = vld [vmem:[%s1 + $0x2c0] sm:$0xff]
        %v512 = vld [vmem:[%s1 + $0x2c8] sm:$0xff]
        %v513 = vld [vmem:[%s1 + $0x2d0] sm:$0xff]
        %v514 = vld [vmem:[%s1 + $0x2d8] sm:$0xff]
        %v515 = vld [vmem:[%s1 + $0x2e0] sm:$0xff]
        %v516 = vld [vmem:[%s1 + $0x2e8] sm:$0xff]
        %v517 = vld [vmem:[%s1 + $0x2f0] sm:$0xff]
        %v518 = vld [vmem:[%s1 + $0x2f8] sm:$0xff]
        %v519 = vld [vmem:[%s1 + $0x300] sm:$0xff]
        %v520 = vld [vmem:[%s1 + $0x308] sm:$0xff]
        %v521 = vld [vmem:[%s1 + $0x310] sm:$0xff]
        %v522 = vld [vmem:[%s1 + $0x318] sm:$0xff]
        %v523 = vld [vmem:[%s1 + $0x320] sm:$0xff]
        %v524 = vld [vmem:[%s1 + $0x328] sm:$0xff]
        %v525 = vld [vmem:[%s1 + $0x330] sm:$0xff]
        %v526 = vld [vmem:[%s1 + $0x338] sm:$0xff]
        %v527 = vld [vmem:[%s1 + $0x340] sm:$0xff]
        %v528 = vld [vmem:[%s1 + $0x348] sm:$0xff]
        %v529 = vld [vmem:[%s1 + $0x350] sm:$0xff]
        %v530 = vld [vmem:[%s1 + $0x358] sm:$0xff]
        %v531 = vld [vmem:[%s1 + $0x360] sm:$0xff]
        %v532 = vld [vmem:[%s1 + $0x368] sm:$0xff]
        %v533 = vld [vmem:[%s1 + $0x370] sm:$0xff]
        %v534 = vld [vmem:[%s1 + $0x378] sm:$0xff]
        %v535 = vld [vmem:[%s1 + $0x380] sm:$0xff]
        %v536 = vld [vmem:[%s1 + $0x388] sm:$0xff]
        %v537 = vld [vmem:[%s1 + $0x390] sm:$0xff]
        %v538 = vld [vmem:[%s1 + $0x398] sm:$0xff]
        %v539 = vld [vmem:[%s1 + $0x3a0] sm:$0xff]
        %v540 = vld [vmem:[%s1 + $0x3a8] sm:$0xff]
        %v541 = vld [vmem:[%s1 + $0x3b0] sm:$0xff]
        %v542 = vld [vmem:[%s1 + $0x3b8] sm:$0xff]
        %v543 = vld [vmem:[%s1 + $0x3c0] sm:$0xff]
        %v544 = vld [vmem:[%s1 + $0x3c8] sm:$0xff]
        %v545 = vld [vmem:[%s1 + $0x3d0] sm:$0xff]
        %v546 = vld [vmem:[%s1 + $0x3d8] sm:$0xff]
        %v547 = vld [vmem:[%s1 + $0x3e0] sm:$0xff]
        %v548 = vld [vmem:[%s1 + $0x3e8] sm:$0xff]
        %v549 = vld [vmem:[%s1 + $0x3f0] sm:$0xff]
        %v550 = vld [vmem:[%s1 + $0x3f8] sm:$0xff]
        %v551 = vld [vmem:[%s1 + $0x400] sm:$0xff]
        %v552 = vld [vmem:[%s1 + $0x408] sm:$0xff]
        %v553 = vld [vmem:[%s1 + $0x410] sm:$0xff]
        %v554 = vld [vmem:[%s1 + $0x418] sm:$0xff]
        %v555 = vld [vmem:[%s1 + $0x420] sm:$0xff]
        %v556 = vld [vmem:[%s1 + $0x428] sm:$0xff]
        %v557 = vld [vmem:[%s1 + $0x430] sm:$0xff]
        %v558 = vld [vmem:[%s1 + $0x438] sm:$0xff]
        %v559 = vld [vmem:[%s1 + $0x440] sm:$0xff]
        %v560 = vld [vmem:[%s1 + $0x448] sm:$0xff]
        %v561 = vld [vmem:[%s1 + $0x450] sm:$0xff]
        %v562 = vld [vmem:[%s1 + $0x458] sm:$0xff]
        %v563 = vld [vmem:[%s1 + $0x460] sm:$0xff]
        %v564 = vld [vmem:[%s1 + $0x468] sm:$0xff]
        %v565 = vld [vmem:[%s1 + $0x470] sm:$0xff]
        %v566 = vld [vmem:[%s1 + $0x478] sm:$0xff]
        %v567 = vld [vmem:[%s1 + $0x480] sm:$0xff]
        %v568 = vld [vmem:[%s1 + $0x488] sm:$0xff]
        %v569 = vld [vmem:[%s1 + $0x490] sm:$0xff]
        %v570 = vld [vmem:[%s1 + $0x498] sm:$0xff]
        %v571 = vld [vmem:[%s1 + $0x4a0] sm:$0xff]
        %v572 = vld [vmem:[%s1 + $0x4a8] sm:$0xff]
        %v573 = vld [vmem:[%s1 + $0x4b0] sm:$0xff]
        %v574 = vld [vmem:[%s1 + $0x4b8] sm:$0xff]
        %v575 = vld [vmem:[%s1 + $0x4c0] sm:$0xff]
        %v576 = vld [vmem:[%s1 + $0x4c8] sm:$0xff]
        %v577 = vld [vmem:[%s1 + $0x4d0] sm:$0xff]
        %v578 = vld [vmem:[%s1 + $0x4d8] sm:$0xff]
        %v579 = vld [vmem:[%s1 + $0x4e0] sm:$0xff]
        %v580 = vld [vmem:[%s1 + $0x4e8] sm:$0xff]
        %v581 = vld [vmem:[%s1 + $0x4f0] sm:$0xff]
        %v582 = vld [vmem:[%s1 + $0x4f8] sm:$0xff]
        %v583 = vld [vmem:[%s1 + $0x500] sm:$0xff]
        %v584 = vld [vmem:[%s1 + $0x508] sm:$0xff]
        %v585 = vld [vmem:[%s1 + $0x510] sm:$0xff]
        %v586 = vld [vmem:[%s1 + $0x518] sm:$0xff]
        %v587 = vld [vmem:[%s1 + $0x520] sm:$0xff]
        %v588 = vld [vmem:[%s1 + $0x528] sm:$0xff]
        %v589 = vld [vmem:[%s1 + $0x530] sm:$0xff]
        %v590 = vld [vmem:[%s1 + $0x538] sm:$0xff]
        %v591 = vld [vmem:[%s1 + $0x540] sm:$0xff]
        %v592 = vld [vmem:[%s1 + $0x548] sm:$0xff]
        %v593 = vld [vmem:[%s1 + $0x550] sm:$0xff]
        %v594 = vld [vmem:[%s1 + $0x558] sm:$0xff]
        %v595 = vld [vmem:[%s1 + $0x560] sm:$0xff]
        %v596 = vld [vmem:[%s1 + $0x568] sm:$0xff]
        %v597 = vld [vmem:[%s1 + $0x570] sm:$0xff]
        %v598 = vld [vmem:[%s1 + $0x578] sm:$0xff]
        %v599 = vld [vmem:[%s1 + $0x580] sm:$0xff]
        %v600 = vld [vmem:[%s1 + $0x588] sm:$0xff]
        %v601 = vld [vmem:[%s1 + $0x590] sm:$0xff]
        %v602 = vld [vmem:[%s1 + $0x598] sm:$0xff]
        %v603 = vld [vmem:[%s1 + $0x5a0] sm:$0xff]
        %v604 = vld [vmem:[%s1 + $0x5a8] sm:$0xff]
        %v605 = vld [vmem:[%s1 + $0x5b0] sm:$0xff]
        %v606 = vld [vmem:[%s1 + $0x5b8] sm:$0xff]
        %v607 = vld [vmem:[%s1 + $0x5c0] sm:$0xff]
        %v608 = vld [vmem:[%s1 + $0x5c8] sm:$0xff]
        %v609 = vld [vmem:[%s1 + $0x5d0] sm:$0xff]
        %v610 = vld [vmem:[%s1 + $0x5d8] sm:$0xff]
        %v611 = vld [vmem:[%s1 + $0x5e0] sm:$0xff]
        %v612 = vld [vmem:[%s1 + $0x5e8] sm:$0xff]
        %v613 = vld [vmem:[%s1 + $0x5f0] sm:$0xff]
        %v614 = vld [vmem:[%s1 + $0x5f8] sm:$0xff]
        %v615 = vld [vmem:[%s1 + $0x600] sm:$0xff]
        %v616 = vld [vmem:[%s1 + $0x608] sm:$0xff]
        %v617 = vld [vmem:[%s1 + $0x610] sm:$0xff]
        %v618 = vld [vmem:[%s1 + $0x618] sm:$0xff]
        %v619 = vld [vmem:[%s1 + $0x620] sm:$0xff]
        %v620 = vld [vmem:[%s1 + $0x628] sm:$0xff]
        %v621 = vld [vmem:[%s1 + $0x630] sm:$0xff]
        %v622 = vld [vmem:[%s1 + $0x638] sm:$0xff]
        %v623 = vld [vmem:[%s1 + $0x640] sm:$0xff]
        %v624 = vld [vmem:[%s1 + $0x648] sm:$0xff]
        %v625 = vld [vmem:[%s1 + $0x650] sm:$0xff]
        %v626 = vld [vmem:[%s1 + $0x658] sm:$0xff]
        %v627 = vld [vmem:[%s1 + $0x660] sm:$0xff]
        %v628 = vld [vmem:[%s1 + $0x668] sm:$0xff]
        %v629 = vld [vmem:[%s1 + $0x670] sm:$0xff]
        %v630 = vld [vmem:[%s1 + $0x678] sm:$0xff]
        %v631 = vld [vmem:[%s1 + $0x680] sm:$0xff]
        %v632 = vld [vmem:[%s1 + $0x688] sm:$0xff]
        %v633 = vld [vmem:[%s1 + $0x690] sm:$0xff]
        %v634 = vld [vmem:[%s1 + $0x698] sm:$0xff]
        %v635 = vld [vmem:[%s1 + $0x6a0] sm:$0xff]
        %v636 = vld [vmem:[%s1 + $0x6a8] sm:$0xff]
        %v637 = vld [vmem:[%s1 + $0x6b0] sm:$0xff]
        %v638 = vld [vmem:[%s1 + $0x6b8] sm:$0xff]
        %v639 = vld [vmem:[%s1 + $0x6c0] sm:$0xff]
        %v640 = vld [vmem:[%s1 + $0x6c8] sm:$0xff]
        %v641 = vld [vmem:[%s1 + $0x6d0] sm:$0xff]
        %v642 = vld [vmem:[%s1 + $0x6d8] sm:$0xff]
        %v643 = vld [vmem:[%s1 + $0x6e0] sm:$0xff]
        %v644 = vld [vmem:[%s1 + $0x6e8] sm:$0xff]
        %v645 = vld [vmem:[%s1 + $0x6f0] sm:$0xff]
        %v646 = vld [vmem:[%s1 + $0x6f8] sm:$0xff]
        %v647 = vld [vmem:[%s1 + $0x700] sm:$0xff]
        %v648 = vld [vmem:[%s1 + $0x708] sm:$0xff]
        %v649 = vld [vmem:[%s1 + $0x710] sm:$0xff]
        %v650 = vld [vmem:[%s1 + $0x718] sm:$0xff]
        %v651 = vld [vmem:[%s1 + $0x720] sm:$0xff]
        %v652 = vld [vmem:[%s1 + $0x728] sm:$0xff]
        %v653 = vld [vmem:[%s1 + $0x730] sm:$0xff]
        %v654 = vld [vmem:[%s1 + $0x738] sm:$0xff]
        %v655 = vld [vmem:[%s1 + $0x740] sm:$0xff]
        %v656 = vld [vmem:[%s1 + $0x748] sm:$0xff]
        %v657 = vld [vmem:[%s1 + $0x750] sm:$0xff]
        %v658 = vld [vmem:[%s1 + $0x758] sm:$0xff]
        %v659 = vld [vmem:[%s1 + $0x760] sm:$0xff]
        %v660 = vld [vmem:[%s1 + $0x768] sm:$0xff]
        %v661 = vld [vmem:[%s1 + $0x770] sm:$0xff]
        %v662 = vld [vmem:[%s1 + $0x778] sm:$0xff]
        %v663 = vld [vmem:[%s1 + $0x780] sm:$0xff]
        %v664 = vld [vmem:[%s1 + $0x788] sm:$0xff]
        %v665 = vld [vmem:[%s1 + $0x790] sm:$0xff]
        %v666 = vld [vmem:[%s1 + $0x798] sm:$0xff]
        %v667 = vld [vmem:[%s1 + $0x7a0] sm:$0xff]
        %v668 = vld [vmem:[%s1 + $0x7a8] sm:$0xff]
        %v669 = vld [vmem:[%s1 + $0x7b0] sm:$0xff]
        %v670 = vld [vmem:[%s1 + $0x7b8] sm:$0xff]
        %v671 = vld [vmem:[%s1 + $0x7c0] sm:$0xff]
        %v672 = vld [vmem:[%s1 + $0x7c8] sm:$0xff]
        %v673 = vld [vmem:[%s1 + $0x7d0] sm:$0xff]
        %v674 = vld [vmem:[%s1 + $0x7d8] sm:$0xff]
        %v675 = vld [vmem:[%s1 + $0x7e0] sm:$0xff]
        %v676 = vld [vmem:[%s1 + $0x7e8] sm:$0xff]
        %v677 = vld [vmem:[%s1 + $0x7f0] sm:$0xff]
        %v678 = vld [vmem:[%s1 + $0x7f8] sm:$0xff]
        %v679 = vld [vmem:[%s1 + $0x800] sm:$0xff]
        %v680 = vld [vmem:[%s1 + $0x808] sm:$0xff]
        %v681 = vld [vmem:[%s1 + $0x810] sm:$0xff]
        %v682 = vld [vmem:[%s1 + $0x818] sm:$0xff]
        %v683 = vld [vmem:[%s1 + $0x820] sm:$0xff]
        %v684 = vld [vmem:[%s1 + $0x828] sm:$0xff]
        %v685 = vld [vmem:[%s1 + $0x830] sm:$0xff]
        %v686 = vld [vmem:[%s1 + $0x838] sm:$0xff]
        %v687 = vld [vmem:[%s1 + $0x840] sm:$0xff]
        %v688 = vld [vmem:[%s1 + $0x848] sm:$0xff]
        %v689 = vld [vmem:[%s1 + $0x850] sm:$0xff]
        %v690 = vld [vmem:[%s1 + $0x858] sm:$0xff]
        %v691 = vld [vmem:[%s1 + $0x860] sm:$0xff]
        %v692 = vld [vmem:[%s1 + $0x868] sm:$0xff]
        %v693 = vld [vmem:[%s1 + $0x870] sm:$0xff]
        %v694 = vld [vmem:[%s1 + $0x878] sm:$0xff]
        %v695 = vld [vmem:[%s1 + $0x880] sm:$0xff]
        %v696 = vld [vmem:[%s1 + $0x888] sm:$0xff]
        %v697 = vld [vmem:[%s1 + $0x890] sm:$0xff]
        %v698 = vld [vmem:[%s1 + $0x898] sm:$0xff]
        %v699 = vld [vmem:[%s1 + $0x8a0] sm:$0xff]
        %v700 = vld [vmem:[%s1 + $0x8a8] sm:$0xff]
        %v701 = vld [vmem:[%s1 + $0x8b0] sm:$0xff]
        %v702 = vld [vmem:[%s1 + $0x8b8] sm:$0xff]
        %v703 = vld [vmem:[%s1 + $0x8c0] sm:$0xff]
        %v704 = vld [vmem:[%s1 + $0x8c8] sm:$0xff]
        %v705 = vld [vmem:[%s1 + $0x8d0] sm:$0xff]
        %v706 = vld [vmem:[%s1 + $0x8d8] sm:$0xff]
        %v707 = vld [vmem:[%s1 + $0x8e0] sm:$0xff]
        %v708 = vld [vmem:[%s1 + $0x8e8] sm:$0xff]
        %v709 = vld [vmem:[%s1 + $0x8f0] sm:$0xff]
        %v710 = vld [vmem:[%s1 + $0x8f8] sm:$0xff]
        %v711 = vld [vmem:[%s1 + $0x900] sm:$0xff]
        %v712 = vld [vmem:[%s1 + $0x908] sm:$0xff]
        %v713 = vld [vmem:[%s1 + $0x910] sm:$0xff]
        %v714 = vld [vmem:[%s1 + $0x918] sm:$0xff]
        %v715 = vld [vmem:[%s1 + $0x920] sm:$0xff]
        %v716 = vld [vmem:[%s1 + $0x928] sm:$0xff]
        %v717 = vld [vmem:[%s1 + $0x930] sm:$0xff]
        %v718 = vld [vmem:[%s1 + $0x938] sm:$0xff]
        %v719 = vld [vmem:[%s1 + $0x940] sm:$0xff]
        %v720 = vld [vmem:[%s1 + $0x948] sm:$0xff]
        %v721 = vld [vmem:[%s1 + $0x950] sm:$0xff]
        %v722 = vld [vmem:[%s1 + $0x958] sm:$0xff]
        %v723 = vld [vmem:[%s1 + $0x960] sm:$0xff]
        %v724 = vld [vmem:[%s1 + $0x968] sm:$0xff]
        %v725 = vld [vmem:[%s1 + $0x970] sm:$0xff]
        %v726 = vld [vmem:[%s1 + $0x978] sm:$0xff]
        %v727 = vld [vmem:[%s1 + $0x980] sm:$0xff]
        %v728 = vld [vmem:[%s1 + $0x988] sm:$0xff]
        %v729 = vld [vmem:[%s1 + $0x990] sm:$0xff]
        %v730 = vld [vmem:[%s1 + $0x998] sm:$0xff]
        %v731 = vld [vmem:[%s1 + $0x9a0] sm:$0xff]
        %v732 = vld [vmem:[%s1 + $0x9a8] sm:$0xff]
        %v733 = vld [vmem:[%s1 + $0x9b0] sm:$0xff]
        %v734 = vld [vmem:[%s1 + $0x9b8] sm:$0xff]
        %v735 = vld [vmem:[%s1 + $0x9c0] sm:$0xff]
        %v736 = vld [vmem:[%s1 + $0x9c8] sm:$0xff]
        %v737 = vld [vmem:[%s1 + $0x9d0] sm:$0xff]
        %v738 = vld [vmem:[%s1 + $0x9d8] sm:$0xff]
        %v739 = vld [vmem:[%s1 + $0x9e0] sm:$0xff]
        %v740 = vld [vmem:[%s1 + $0x9e8] sm:$0xff]
        %v741 = vld [vmem:[%s1 + $0x9f0] sm:$0xff]
        %v742 = vld [vmem:[%s1 + $0x9f8] sm:$0xff]
        %v743 = vld [vmem:[%s1 + $0xa00] sm:$0xff]
        %v744 = vld [vmem:[%s1 + $0xa08] sm:$0xff]
        %v745 = vld [vmem:[%s1 + $0xa10] sm:$0xff]
        %v746 = vld [vmem:[%s1 + $0xa18] sm:$0xff]
        %v747 = vld [vmem:[%s1 + $0xa20] sm:$0xff]
        %v748 = vld [vmem:[%s1 + $0xa28] sm:$0xff]
        %v749 = vld [vmem:[%s1 + $0xa30] sm:$0xff]
        %v750 = vld [vmem:[%s1 + $0xa38] sm:$0xff]
        %v751 = vld [vmem:[%s1 + $0xa40] sm:$0xff]
        %v752 = vld [vmem:[%s1 + $0xa48] sm:$0xff]
        %v753 = vld [vmem:[%s1 + $0xa50] sm:$0xff]
        %v754 = vld [vmem:[%s1 + $0xa58] sm:$0xff]
        %v755 = vld [vmem:[%s1 + $0xa60] sm:$0xff]
        %v756 = vld [vmem:[%s1 + $0xa68] sm:$0xff]
        %v757 = vld [vmem:[%s1 + $0xa70] sm:$0xff]
        %v758 = vld [vmem:[%s1 + $0xa78] sm:$0xff]
        %v759 = vld [vmem:[%s1 + $0xa80] sm:$0xff]
        %v760 = vld [vmem:[%s1 + $0xa88] sm:$0xff]
        %v761 = vld [vmem:[%s1 + $0xa90] sm:$0xff]
        %v762 = vld [vmem:[%s1 + $0xa98] sm:$0xff]
        %v763 = vld [vmem:[%s1 + $0xaa0] sm:$0xff]
        %v764 = vld [vmem:[%s1 + $0xaa8] sm:$0xff]
        %v765 = vld [vmem:[%s1 + $0xab0] sm:$0xff]
        %v766 = vld [vmem:[%s1 + $0xab8] sm:$0xff]
        %v767 = vld [vmem:[%s1 + $0xac0] sm:$0xff]
        %v768 = vld [vmem:[%s1 + $0xac8] sm:$0xff]
        %v769 = vld [vmem:[%s1 + $0xad0] sm:$0xff]
        %v770 = vld [vmem:[%s1 + $0xad8] sm:$0xff]
        %v771 = vld [vmem:[%s1 + $0xae0] sm:$0xff]
        %v772 = vld [vmem:[%s1 + $0xae8] sm:$0xff]
        %v773 = vld [vmem:[%s1 + $0xaf0] sm:$0xff]
        %v774 = vld [vmem:[%s1 + $0xaf8] sm:$0xff]
        %v775 = vld [vmem:[%s1 + $0xb00] sm:$0xff]
        %v776 = vld [vmem:[%s1 + $0xb08] sm:$0xff]
        %v777 = vld [vmem:[%s1 + $0xb10] sm:$0xff]
        %v778 = vld [vmem:[%s1 + $0xb18] sm:$0xff]
        %v779 = vld [vmem:[%s1 + $0xb20] sm:$0xff]
        %v780 = vld [vmem:[%s1 + $0xb28] sm:$0xff]
        %v781 = vld [vmem:[%s1 + $0xb30] sm:$0xff]
        %v782 = vld [vmem:[%s1 + $0xb38] sm:$0xff]
        %v783 = vld [vmem:[%s1 + $0xb40] sm:$0xff]
        %v784 = vld [vmem:[%s1 + $0xb48] sm:$0xff]
        %v785 = vld [vmem:[%s1 + $0xb50] sm:$0xff]
        %v786 = vld [vmem:[%s1 + $0xb58] sm:$0xff]
        %v787 = vld [vmem:[%s1 + $0xb60] sm:$0xff]
        %v788 = vld [vmem:[%s1 + $0xb68] sm:$0xff]
        %v789 = vld [vmem:[%s1 + $0xb70] sm:$0xff]
        %v790 = vld [vmem:[%s1 + $0xb78] sm:$0xff]
        %v791 = vld [vmem:[%s1 + $0xb80] sm:$0xff]
        %v792 = vld [vmem:[%s1 + $0xb88] sm:$0xff]
        %v793 = vld [vmem:[%s1 + $0xb90] sm:$0xff]
        %v794 = vld [vmem:[%s1 + $0xb98] sm:$0xff]
        %v795 = vld [vmem:[%s1 + $0xba0] sm:$0xff]
        %v796 = vld [vmem:[%s1 + $0xba8] sm:$0xff]
        %v797 = vld [vmem:[%s1 + $0xbb0] sm:$0xff]
        %v798 = vld [vmem:[%s1 + $0xbb8] sm:$0xff]
        %v799 = vld [vmem:[%s1 + $0xbc0] sm:$0xff]
        %v800 = vld [vmem:[%s1 + $0xbc8] sm:$0xff]
        %v801 = vld [vmem:[%s1 + $0xbd0] sm:$0xff]
        %v802 = vld [vmem:[%s1 + $0xbd8] sm:$0xff]
        %v803 = vld [vmem:[%s1 + $0xbe0] sm:$0xff]
        %v804 = vld [vmem:[%s1 + $0xbe8] sm:$0xff]
        %v805 = vld [vmem:[%s1 + $0xbf0] sm:$0xff]
        %v806 = vld [vmem:[%s1 + $0xbf8] sm:$0xff]
        %v807 = vld [vmem:[%s1 + $0xc00] sm:$0xff]
        %v808 = vld [vmem:[%s1 + $0xc08] sm:$0xff]
        %v809 = vld [vmem:[%s1 + $0xc10] sm:$0xff]
        %v810 = vld [vmem:[%s1 + $0xc18] sm:$0xff]
        %v811 = vld [vmem:[%s1 + $0xc20] sm:$0xff]
        %v812 = vld [vmem:[%s1 + $0xc28] sm:$0xff]
        %v813 = vld [vmem:[%s1 + $0xc30] sm:$0xff]
        %v814 = vld [vmem:[%s1 + $0xc38] sm:$0xff]
        %v815 = vld [vmem:[%s1 + $0xc40] sm:$0xff]
        %v816 = vld [vmem:[%s1 + $0xc48] sm:$0xff]
        %v817 = vld [vmem:[%s1 + $0xc50] sm:$0xff]
        %v818 = vld [vmem:[%s1 + $0xc58] sm:$0xff]
        %v819 = vld [vmem:[%s1 + $0xc60] sm:$0xff]
        %v820 = vld [vmem:[%s1 + $0xc68] sm:$0xff]
        %v821 = vld [vmem:[%s1 + $0xc70] sm:$0xff]
        %v822 = vld [vmem:[%s1 + $0xc78] sm:$0xff]
        %v823 = vld [vmem:[%s1 + $0xc80] sm:$0xff]
        %v824 = vld [vmem:[%s1 + $0xc88] sm:$0xff]
        %v825 = vld [vmem:[%s1 + $0xc90] sm:$0xff]
        %v826 = vld [vmem:[%s1 + $0xc98] sm:$0xff]
        %v827 = vld [vmem:[%s1 + $0xca0] sm:$0xff]
        %v828 = vld [vmem:[%s1 + $0xca8] sm:$0xff]
        %v829 = vld [vmem:[%s1 + $0xcb0] sm:$0xff]
        %v830 = vld [vmem:[%s1 + $0xcb8] sm:$0xff]
        %v831 = vld [vmem:[%s1 + $0xcc0] sm:$0xff]
        %v832 = vld [vmem:[%s1 + $0xcc8] sm:$0xff]
        %v833 = vld [vmem:[%s1 + $0xcd0] sm:$0xff]
        %v834 = vld [vmem:[%s1 + $0xcd8] sm:$0xff]
        %v835 = vld [vmem:[%s1 + $0xce0] sm:$0xff]
        %v836 = vld [vmem:[%s1 + $0xce8] sm:$0xff]
        %v837 = vld [vmem:[%s1 + $0xcf0] sm:$0xff]
        %v838 = vld [vmem:[%s1 + $0xcf8] sm:$0xff]
        %v839 = vld [vmem:[%s1 + $0xd00] sm:$0xff]
        %v840 = vld [vmem:[%s1 + $0xd08] sm:$0xff]
        %v841 = vld [vmem:[%s1 + $0xd10] sm:$0xff]
        %v842 = vld [vmem:[%s1 + $0xd18] sm:$0xff]
        %v843 = vld [vmem:[%s1 + $0xd20] sm:$0xff]
        %v844 = vld [vmem:[%s1 + $0xd28] sm:$0xff]
        %v845 = vld [vmem:[%s1 + $0xd30] sm:$0xff]
        %v846 = vld [vmem:[%s1 + $0xd38] sm:$0xff]
        %v847 = vld [vmem:[%s1 + $0xd40] sm:$0xff]
        %v848 = vld [vmem:[%s1 + $0xd48] sm:$0xff]
        %v849 = vld [vmem:[%s1 + $0xd50] sm:$0xff]
        %v850 = vld [vmem:[%s1 + $0xd58] sm:$0xff]
        %v851 = vld [vmem:[%s1 + $0xd60] sm:$0xff]
        %v852 = vld [vmem:[%s1 + $0xd68] sm:$0xff]
        %v853 = vld [vmem:[%s1 + $0xd70] sm:$0xff]
        %v854 = vld [vmem:[%s1 + $0xd78] sm:$0xff]
        %v855 = vld [vmem:[%s1 + $0xd80] sm:$0xff]
        %v856 = vld [vmem:[%s1 + $0xd88] sm:$0xff]
        %v857 = vld [vmem:[%s1 + $0xd90] sm:$0xff]
        %v858 = vld [vmem:[%s1 + $0xd98] sm:$0xff]
        %v859 = vld [vmem:[%s1 + $0xda0] sm:$0xff]
        %v860 = vld [vmem:[%s1 + $0xda8] sm:$0xff]
        %v861 = vld [vmem:[%s1 + $0xdb0] sm:$0xff]
        %v862 = vld [vmem:[%s1 + $0xdb8] sm:$0xff]
        %v863 = vld [vmem:[%s1 + $0xdc0] sm:$0xff]
        %v864 = vld [vmem:[%s1 + $0xdc8] sm:$0xff]
        %v865 = vld [vmem:[%s1 + $0xdd0] sm:$0xff]
        %v866 = vld [vmem:[%s1 + $0xdd8] sm:$0xff]
        %v867 = vld [vmem:[%s1 + $0xde0] sm:$0xff]
        %v868 = vld [vmem:[%s1 + $0xde8] sm:$0xff]
        %v869 = vld [vmem:[%s1 + $0xdf0] sm:$0xff]
        %v870 = vld [vmem:[%s1 + $0xdf8] sm:$0xff]
        %v871 = vld [vmem:[%s1 + $0xe00] sm:$0xff]
        %v872 = vld [vmem:[%s1 + $0xe08] sm:$0xff]
        %v873 = vld [vmem:[%s1 + $0xe10] sm:$0xff]
        %v874 = vld [vmem:[%s1 + $0xe18] sm:$0xff]
        %v875 = vld [vmem:[%s1 + $0xe20] sm:$0xff]
        %v876 = vld [vmem:[%s1 + $0xe28] sm:$0xff]
        %v877 = vld [vmem:[%s1 + $0xe30] sm:$0xff]
        %v878 = vld [vmem:[%s1 + $0xe38] sm:$0xff]
        %v879 = vld [vmem:[%s1 + $0xe40] sm:$0xff]
        %v880 = vld [vmem:[%s1 + $0xe48] sm:$0xff]
        %v881 = vld [vmem:[%s1 + $0xe50] sm:$0xff]
        %v882 = vld [vmem:[%s1 + $0xe58] sm:$0xff]
        %v883 = vld [vmem:[%s1 + $0xe60] sm:$0xff]
        %v884 = vld [vmem:[%s1 + $0xe68] sm:$0xff]
        %v885 = vld [vmem:[%s1 + $0xe70] sm:$0xff]
        %v886 = vld [vmem:[%s1 + $0xe78] sm:$0xff]
        %v887 = vld [vmem:[%s1 + $0xe80] sm:$0xff]
        %v888 = vld [vmem:[%s1 + $0xe88] sm:$0xff]
        %v889 = vld [vmem:[%s1 + $0xe90] sm:$0xff]
        %v890 = vld [vmem:[%s1 + $0xe98] sm:$0xff]
        %v891 = vld [vmem:[%s1 + $0xea0] sm:$0xff]
        %v892 = vld [vmem:[%s1 + $0xea8] sm:$0xff]
        %v893 = vld [vmem:[%s1 + $0xeb0] sm:$0xff]
        %v894 = vld [vmem:[%s1 + $0xeb8] sm:$0xff]
        %v895 = vld [vmem:[%s1 + $0xec0] sm:$0xff]
        %v896 = vld [vmem:[%s1 + $0xec8] sm:$0xff]
        %v897 = vld [vmem:[%s1 + $0xed0] sm:$0xff]
        %v898 = vld [vmem:[%s1 + $0xed8] sm:$0xff]
        %v899 = vld [vmem:[%s1 + $0xee0] sm:$0xff]
        %v900 = vld [vmem:[%s1 + $0xee8] sm:$0xff]
        %v901 = vld [vmem:[%s1 + $0xef0] sm:$0xff]
        %v902 = vld [vmem:[%s1 + $0xef8] sm:$0xff]
        %v903 = vld [vmem:[%s1 + $0xf00] sm:$0xff]
        %v904 = vld [vmem:[%s1 + $0xf08] sm:$0xff]
        %v905 = vld [vmem:[%s1 + $0xf10] sm:$0xff]
        %v906 = vld [vmem:[%s1 + $0xf18] sm:$0xff]
        %v907 = vld [vmem:[%s1 + $0xf20] sm:$0xff]
        %v908 = vld [vmem:[%s1 + $0xf28] sm:$0xff]
        %v909 = vld [vmem:[%s1 + $0xf30] sm:$0xff]
        %v910 = vld [vmem:[%s1 + $0xf38] sm:$0xff]
        %v911 = vld [vmem:[%s1 + $0xf40] sm:$0xff]
        %v912 = vld [vmem:[%s1 + $0xf48] sm:$0xff]
        %v913 = vld [vmem:[%s1 + $0xf50] sm:$0xff]
        %v914 = vld [vmem:[%s1 + $0xf58] sm:$0xff]
        %v915 = vld [vmem:[%s1 + $0xf60] sm:$0xff]
        %v916 = vld [vmem:[%s1 + $0xf68] sm:$0xff]
        %v917 = vld [vmem:[%s1 + $0xf70] sm:$0xff]
        %v918 = vld [vmem:[%s1 + $0xf78] sm:$0xff]
        %v919 = vld [vmem:[%s1 + $0xf80] sm:$0xff]
        %v920 = vld [vmem:[%s1 + $0xf88] sm:$0xff]
        %v921 = vld [vmem:[%s1 + $0xf90] sm:$0xff]
        %v922 = vld [vmem:[%s1 + $0xf98] sm:$0xff]
        %v923 = vld [vmem:[%s1 + $0xfa0] sm:$0xff]
        %v924 = vld [vmem:[%s1 + $0xfa8] sm:$0xff]
        %v925 = vld [vmem:[%s1 + $0xfb0] sm:$0xff]
        %v926 = vld [vmem:[%s1 + $0xfb8] sm:$0xff]
        %v927 = vld [vmem:[%s1 + $0xfc0] sm:$0xff]
        %v928 = vld [vmem:[%s1 + $0xfc8] sm:$0xff]
        %v929 = vld [vmem:[%s1 + $0xfd0] sm:$0xff]
        %v930 = vld [vmem:[%s1 + $0xfd8] sm:$0xff]
        %v931 = vld [vmem:[%s1 + $0xfe0] sm:$0xff]
        %v932 = vld [vmem:[%s1 + $0xfe8] sm:$0xff]
        %v933 = vld [vmem:[%s1 + $0xff0] sm:$0xff]
        %v934 = vld [vmem:[%s1 + $0xff8] sm:$0xff]
        %v935 = vld [vmem:[%s2] sm:$0xf]
        %v937 = vlaneseq
        %v938 = vshrl.u32 %v937, 7
        %v939 = vsub.s32 0, %v938
        %v940 = vrot.slane %v935, %v939
        %v941 = vlaneseq
        %v942 = vshrl.u32 %v941, 7
        %v943 = vsub.s32 1, %v942
        %v944 = vrot.slane %v935, %v943
        %v945 = vlaneseq
        %v946 = vshrl.u32 %v945, 7
        %v947 = vsub.s32 2, %v946
        %v948 = vrot.slane %v935, %v947
        %v949 = vlaneseq
        %v950 = vshrl.u32 %v949, 7
        %v951 = vsub.s32 3, %v950
        %v952 = vrot.slane %v935, %v951
        %v981 = vunpack.c.l.b16 %v399
        %v982 = vunpack.c.h.b16 %v399
        %v983 = vunpack.c.l.b16 %v400
        %v984 = vunpack.c.h.b16 %v400
        %v985 = vunpack.c.l.b16 %v401
        %v986 = vunpack.c.h.b16 %v401
        %v987 = vunpack.c.l.b16 %v402
        %v988 = vunpack.c.h.b16 %v402
        %v989 = vunpack.c.l.b16 %v403
        %v990 = vunpack.c.h.b16 %v403
        %v991 = vunpack.c.l.b16 %v404
        %v992 = vunpack.c.h.b16 %v404
        %v993 = vunpack.c.l.b16 %v405
        %v994 = vunpack.c.h.b16 %v405
        %v995 = vunpack.c.l.b16 %v406
        %v996 = vunpack.c.h.b16 %v406
        %v997 = vunpack.c.l.b16 %v407
        %v998 = vunpack.c.h.b16 %v407
        %v999 = vunpack.c.l.b16 %v408
        %v1000 = vunpack.c.h.b16 %v408
        %v1001 = vunpack.c.l.b16 %v409
        %v1002 = vunpack.c.h.b16 %v409
        %v1003 = vunpack.c.l.b16 %v410
        %v1004 = vunpack.c.h.b16 %v410
        %v1005 = vunpack.c.l.b16 %v411
        %v1006 = vunpack.c.h.b16 %v411
        %v1007 = vunpack.c.l.b16 %v412
        %v1008 = vunpack.c.h.b16 %v412
        %v1009 = vunpack.c.l.b16 %v413
        %v1010 = vunpack.c.h.b16 %v413
        %v1011 = vunpack.c.l.b16 %v414
        %v1012 = vunpack.c.h.b16 %v414
        %v1013 = vunpack.c.l.b16 %v415
        %v1014 = vunpack.c.h.b16 %v415
        %v1015 = vunpack.c.l.b16 %v416
        %v1016 = vunpack.c.h.b16 %v416
        %v1017 = vunpack.c.l.b16 %v417
        %v1018 = vunpack.c.h.b16 %v417
        %v1019 = vunpack.c.l.b16 %v418
        %v1020 = vunpack.c.h.b16 %v418
        %v1021 = vunpack.c.l.b16 %v419
        %v1022 = vunpack.c.h.b16 %v419
        %v1023 = vunpack.c.l.b16 %v420
        %v1024 = vunpack.c.h.b16 %v420
        %v1025 = vunpack.c.l.b16 %v421
        %v1026 = vunpack.c.h.b16 %v421
        %v1027 = vunpack.c.l.b16 %v422
        %v1028 = vunpack.c.h.b16 %v422
        %v1029 = vpack.c.b16 %v997, %v981
        %v1030 = vpack.c.b16 %v998, %v982
        %v1031 = vpack.c.b16 %v999, %v983
        %v1032 = vpack.c.b16 %v1000, %v984
        %v1033 = vpack.c.b16 %v1001, %v985
        %v1034 = vpack.c.b16 %v1002, %v986
        %v1035 = vpack.c.b16 %v1003, %v987
        %v1036 = vpack.c.b16 %v1004, %v988
        %v1037 = vpack.c.b16 %v1005, %v989
        %v1038 = vpack.c.b16 %v1006, %v990
        %v1039 = vpack.c.b16 %v1007, %v991
        %v1040 = vpack.c.b16 %v1008, %v992
        %v1041 = vpack.c.b16 %v1009, %v993
        %v1042 = vpack.c.b16 %v1010, %v994
        %v1043 = vpack.c.b16 %v1011, %v995
        %v1044 = vpack.c.b16 %v1012, %v996
        %v1045 = vpack.c.b16 %v1013, %v1013
        %v1046 = vpack.c.b16 %v1014, %v1014
        %v1047 = vpack.c.b16 %v1015, %v1015
        %v1048 = vpack.c.b16 %v1016, %v1016
        %v1049 = vpack.c.b16 %v1017, %v1017
        %v1050 = vpack.c.b16 %v1018, %v1018
        %v1051 = vpack.c.b16 %v1019, %v1019
        %v1052 = vpack.c.b16 %v1020, %v1020
        %v1053 = vpack.c.b16 %v1021, %v1021
        %v1054 = vpack.c.b16 %v1022, %v1022
        %v1055 = vpack.c.b16 %v1023, %v1023
        %v1056 = vpack.c.b16 %v1024, %v1024
        %v1057 = vpack.c.b16 %v1025, %v1025
        %v1058 = vpack.c.b16 %v1026, %v1026
        %v1059 = vpack.c.b16 %v1027, %v1027
        %v1060 = vpack.c.b16 %v1028, %v1028
        %v1605 = vunpack.c.l.b16 %v423
        %v1606 = vunpack.c.h.b16 %v423
        %v1607 = vunpack.c.l.b16 %v424
        %v1608 = vunpack.c.h.b16 %v424
        %v1609 = vunpack.c.l.b16 %v425
        %v1610 = vunpack.c.h.b16 %v425
        %v1611 = vunpack.c.l.b16 %v426
        %v1612 = vunpack.c.h.b16 %v426
        %v1613 = vunpack.c.l.b16 %v427
        %v1614 = vunpack.c.h.b16 %v427
        %v1615 = vunpack.c.l.b16 %v428
        %v1616 = vunpack.c.h.b16 %v428
        %v1617 = vunpack.c.l.b16 %v429
        %v1618 = vunpack.c.h.b16 %v429
        %v1619 = vunpack.c.l.b16 %v430
        %v1620 = vunpack.c.h.b16 %v430
        %v1621 = vunpack.c.l.b16 %v431
        %v1622 = vunpack.c.h.b16 %v431
        %v1623 = vunpack.c.l.b16 %v432
        %v1624 = vunpack.c.h.b16 %v432
        %v1625 = vunpack.c.l.b16 %v433
        %v1626 = vunpack.c.h.b16 %v433
        %v1627 = vunpack.c.l.b16 %v434
        %v1628 = vunpack.c.h.b16 %v434
        %v1629 = vunpack.c.l.b16 %v435
        %v1630 = vunpack.c.h.b16 %v435
        %v1631 = vunpack.c.l.b16 %v436
        %v1632 = vunpack.c.h.b16 %v436
        %v1633 = vunpack.c.l.b16 %v437
        %v1634 = vunpack.c.h.b16 %v437
        %v1635 = vunpack.c.l.b16 %v438
        %v1636 = vunpack.c.h.b16 %v438
        %v1637 = vunpack.c.l.b16 %v439
        %v1638 = vunpack.c.h.b16 %v439
        %v1639 = vunpack.c.l.b16 %v440
        %v1640 = vunpack.c.h.b16 %v440
        %v1641 = vunpack.c.l.b16 %v441
        %v1642 = vunpack.c.h.b16 %v441
        %v1643 = vunpack.c.l.b16 %v442
        %v1644 = vunpack.c.h.b16 %v442
        %v1645 = vunpack.c.l.b16 %v443
        %v1646 = vunpack.c.h.b16 %v443
        %v1647 = vunpack.c.l.b16 %v444
        %v1648 = vunpack.c.h.b16 %v444
        %v1649 = vunpack.c.l.b16 %v445
        %v1650 = vunpack.c.h.b16 %v445
        %v1651 = vunpack.c.l.b16 %v446
        %v1652 = vunpack.c.h.b16 %v446
        %v1653 = vunpack.c.l.b16 %v447
        %v1654 = vunpack.c.h.b16 %v447
        %v1655 = vunpack.c.l.b16 %v448
        %v1656 = vunpack.c.h.b16 %v448
        %v1657 = vunpack.c.l.b16 %v449
        %v1658 = vunpack.c.h.b16 %v449
        %v1659 = vunpack.c.l.b16 %v450
        %v1660 = vunpack.c.h.b16 %v450
        %v1661 = vunpack.c.l.b16 %v451
        %v1662 = vunpack.c.h.b16 %v451
        %v1663 = vunpack.c.l.b16 %v452
        %v1664 = vunpack.c.h.b16 %v452
        %v1665 = vunpack.c.l.b16 %v453
        %v1666 = vunpack.c.h.b16 %v453
        %v1667 = vunpack.c.l.b16 %v454
        %v1668 = vunpack.c.h.b16 %v454
        %v1669 = vunpack.c.l.b16 %v455
        %v1670 = vunpack.c.h.b16 %v455
        %v1671 = vunpack.c.l.b16 %v456
        %v1672 = vunpack.c.h.b16 %v456
        %v1673 = vunpack.c.l.b16 %v457
        %v1674 = vunpack.c.h.b16 %v457
        %v1675 = vunpack.c.l.b16 %v458
        %v1676 = vunpack.c.h.b16 %v458
        %v1677 = vunpack.c.l.b16 %v459
        %v1678 = vunpack.c.h.b16 %v459
        %v1679 = vunpack.c.l.b16 %v460
        %v1680 = vunpack.c.h.b16 %v460
        %v1681 = vunpack.c.l.b16 %v461
        %v1682 = vunpack.c.h.b16 %v461
        %v1683 = vunpack.c.l.b16 %v462
        %v1684 = vunpack.c.h.b16 %v462
        %v1685 = vunpack.c.l.b16 %v463
        %v1686 = vunpack.c.h.b16 %v463
        %v1687 = vunpack.c.l.b16 %v464
        %v1688 = vunpack.c.h.b16 %v464
        %v1689 = vunpack.c.l.b16 %v465
        %v1690 = vunpack.c.h.b16 %v465
        %v1691 = vunpack.c.l.b16 %v466
        %v1692 = vunpack.c.h.b16 %v466
        %v1693 = vunpack.c.l.b16 %v467
        %v1694 = vunpack.c.h.b16 %v467
        %v1695 = vunpack.c.l.b16 %v468
        %v1696 = vunpack.c.h.b16 %v468
        %v1697 = vunpack.c.l.b16 %v469
        %v1698 = vunpack.c.h.b16 %v469
        %v1699 = vunpack.c.l.b16 %v470
        %v1700 = vunpack.c.h.b16 %v470
        %v1701 = vunpack.c.l.b16 %v471
        %v1702 = vunpack.c.h.b16 %v471
        %v1703 = vunpack.c.l.b16 %v472
        %v1704 = vunpack.c.h.b16 %v472
        %v1705 = vunpack.c.l.b16 %v473
        %v1706 = vunpack.c.h.b16 %v473
        %v1707 = vunpack.c.l.b16 %v474
        %v1708 = vunpack.c.h.b16 %v474
        %v1709 = vunpack.c.l.b16 %v475
        %v1710 = vunpack.c.h.b16 %v475
        %v1711 = vunpack.c.l.b16 %v476
        %v1712 = vunpack.c.h.b16 %v476
        %v1713 = vunpack.c.l.b16 %v477
        %v1714 = vunpack.c.h.b16 %v477
        %v1715 = vunpack.c.l.b16 %v478
        %v1716 = vunpack.c.h.b16 %v478
        %v1717 = vunpack.c.l.b16 %v479
        %v1718 = vunpack.c.h.b16 %v479
        %v1719 = vunpack.c.l.b16 %v480
        %v1720 = vunpack.c.h.b16 %v480
        %v1721 = vunpack.c.l.b16 %v481
        %v1722 = vunpack.c.h.b16 %v481
        %v1723 = vunpack.c.l.b16 %v482
        %v1724 = vunpack.c.h.b16 %v482
        %v1725 = vunpack.c.l.b16 %v483
        %v1726 = vunpack.c.h.b16 %v483
        %v1727 = vunpack.c.l.b16 %v484
        %v1728 = vunpack.c.h.b16 %v484
        %v1729 = vunpack.c.l.b16 %v485
        %v1730 = vunpack.c.h.b16 %v485
        %v1731 = vunpack.c.l.b16 %v486
        %v1732 = vunpack.c.h.b16 %v486
        %v1733 = vunpack.c.l.b16 %v487
        %v1734 = vunpack.c.h.b16 %v487
        %v1735 = vunpack.c.l.b16 %v488
        %v1736 = vunpack.c.h.b16 %v488
        %v1737 = vunpack.c.l.b16 %v489
        %v1738 = vunpack.c.h.b16 %v489
        %v1739 = vunpack.c.l.b16 %v490
        %v1740 = vunpack.c.h.b16 %v490
        %v1741 = vunpack.c.l.b16 %v491
        %v1742 = vunpack.c.h.b16 %v491
        %v1743 = vunpack.c.l.b16 %v492
        %v1744 = vunpack.c.h.b16 %v492
        %v1745 = vunpack.c.l.b16 %v493
        %v1746 = vunpack.c.h.b16 %v493
        %v1747 = vunpack.c.l.b16 %v494
        %v1748 = vunpack.c.h.b16 %v494
        %v1749 = vunpack.c.l.b16 %v495
        %v1750 = vunpack.c.h.b16 %v495
        %v1751 = vunpack.c.l.b16 %v496
        %v1752 = vunpack.c.h.b16 %v496
        %v1753 = vunpack.c.l.b16 %v497
        %v1754 = vunpack.c.h.b16 %v497
        %v1755 = vunpack.c.l.b16 %v498
        %v1756 = vunpack.c.h.b16 %v498
        %v1757 = vunpack.c.l.b16 %v499
        %v1758 = vunpack.c.h.b16 %v499
        %v1759 = vunpack.c.l.b16 %v500
        %v1760 = vunpack.c.h.b16 %v500
        %v1761 = vunpack.c.l.b16 %v501
        %v1762 = vunpack.c.h.b16 %v501
        %v1763 = vunpack.c.l.b16 %v502
        %v1764 = vunpack.c.h.b16 %v502
        %v1765 = vunpack.c.l.b16 %v503
        %v1766 = vunpack.c.h.b16 %v503
        %v1767 = vunpack.c.l.b16 %v504
        %v1768 = vunpack.c.h.b16 %v504
        %v1769 = vunpack.c.l.b16 %v505
        %v1770 = vunpack.c.h.b16 %v505
        %v1771 = vunpack.c.l.b16 %v506
        %v1772 = vunpack.c.h.b16 %v506
        %v1773 = vunpack.c.l.b16 %v507
        %v1774 = vunpack.c.h.b16 %v507
        %v1775 = vunpack.c.l.b16 %v508
        %v1776 = vunpack.c.h.b16 %v508
        %v1777 = vunpack.c.l.b16 %v509
        %v1778 = vunpack.c.h.b16 %v509
        %v1779 = vunpack.c.l.b16 %v510
        %v1780 = vunpack.c.h.b16 %v510
        %v1781 = vunpack.c.l.b16 %v511
        %v1782 = vunpack.c.h.b16 %v511
        %v1783 = vunpack.c.l.b16 %v512
        %v1784 = vunpack.c.h.b16 %v512
        %v1785 = vunpack.c.l.b16 %v513
        %v1786 = vunpack.c.h.b16 %v513
        %v1787 = vunpack.c.l.b16 %v514
        %v1788 = vunpack.c.h.b16 %v514
        %v1789 = vunpack.c.l.b16 %v515
        %v1790 = vunpack.c.h.b16 %v515
        %v1791 = vunpack.c.l.b16 %v516
        %v1792 = vunpack.c.h.b16 %v516
        %v1793 = vunpack.c.l.b16 %v517
        %v1794 = vunpack.c.h.b16 %v517
        %v1795 = vunpack.c.l.b16 %v518
        %v1796 = vunpack.c.h.b16 %v518
        %v1797 = vunpack.c.l.b16 %v519
        %v1798 = vunpack.c.h.b16 %v519
        %v1799 = vunpack.c.l.b16 %v520
        %v1800 = vunpack.c.h.b16 %v520
        %v1801 = vunpack.c.l.b16 %v521
        %v1802 = vunpack.c.h.b16 %v521
        %v1803 = vunpack.c.l.b16 %v522
        %v1804 = vunpack.c.h.b16 %v522
        %v1805 = vunpack.c.l.b16 %v523
        %v1806 = vunpack.c.h.b16 %v523
        %v1807 = vunpack.c.l.b16 %v524
        %v1808 = vunpack.c.h.b16 %v524
        %v1809 = vunpack.c.l.b16 %v525
        %v1810 = vunpack.c.h.b16 %v525
        %v1811 = vunpack.c.l.b16 %v526
        %v1812 = vunpack.c.h.b16 %v526
        %v1813 = vunpack.c.l.b16 %v527
        %v1814 = vunpack.c.h.b16 %v527
        %v1815 = vunpack.c.l.b16 %v528
        %v1816 = vunpack.c.h.b16 %v528
        %v1817 = vunpack.c.l.b16 %v529
        %v1818 = vunpack.c.h.b16 %v529
        %v1819 = vunpack.c.l.b16 %v530
        %v1820 = vunpack.c.h.b16 %v530
        %v1821 = vunpack.c.l.b16 %v531
        %v1822 = vunpack.c.h.b16 %v531
        %v1823 = vunpack.c.l.b16 %v532
        %v1824 = vunpack.c.h.b16 %v532
        %v1825 = vunpack.c.l.b16 %v533
        %v1826 = vunpack.c.h.b16 %v533
        %v1827 = vunpack.c.l.b16 %v534
        %v1828 = vunpack.c.h.b16 %v534
        %v1829 = vunpack.c.l.b16 %v535
        %v1830 = vunpack.c.h.b16 %v535
        %v1831 = vunpack.c.l.b16 %v536
        %v1832 = vunpack.c.h.b16 %v536
        %v1833 = vunpack.c.l.b16 %v537
        %v1834 = vunpack.c.h.b16 %v537
        %v1835 = vunpack.c.l.b16 %v538
        %v1836 = vunpack.c.h.b16 %v538
        %v1837 = vunpack.c.l.b16 %v539
        %v1838 = vunpack.c.h.b16 %v539
        %v1839 = vunpack.c.l.b16 %v540
        %v1840 = vunpack.c.h.b16 %v540
        %v1841 = vunpack.c.l.b16 %v541
        %v1842 = vunpack.c.h.b16 %v541
        %v1843 = vunpack.c.l.b16 %v542
        %v1844 = vunpack.c.h.b16 %v542
        %v1845 = vunpack.c.l.b16 %v543
        %v1846 = vunpack.c.h.b16 %v543
        %v1847 = vunpack.c.l.b16 %v544
        %v1848 = vunpack.c.h.b16 %v544
        %v1849 = vunpack.c.l.b16 %v545
        %v1850 = vunpack.c.h.b16 %v545
        %v1851 = vunpack.c.l.b16 %v546
        %v1852 = vunpack.c.h.b16 %v546
        %v1853 = vunpack.c.l.b16 %v547
        %v1854 = vunpack.c.h.b16 %v547
        %v1855 = vunpack.c.l.b16 %v548
        %v1856 = vunpack.c.h.b16 %v548
        %v1857 = vunpack.c.l.b16 %v549
        %v1858 = vunpack.c.h.b16 %v549
        %v1859 = vunpack.c.l.b16 %v550
        %v1860 = vunpack.c.h.b16 %v550
        %v1861 = vunpack.c.l.b16 %v551
        %v1862 = vunpack.c.h.b16 %v551
        %v1863 = vunpack.c.l.b16 %v552
        %v1864 = vunpack.c.h.b16 %v552
        %v1865 = vunpack.c.l.b16 %v553
        %v1866 = vunpack.c.h.b16 %v553
        %v1867 = vunpack.c.l.b16 %v554
        %v1868 = vunpack.c.h.b16 %v554
        %v1869 = vunpack.c.l.b16 %v555
        %v1870 = vunpack.c.h.b16 %v555
        %v1871 = vunpack.c.l.b16 %v556
        %v1872 = vunpack.c.h.b16 %v556
        %v1873 = vunpack.c.l.b16 %v557
        %v1874 = vunpack.c.h.b16 %v557
        %v1875 = vunpack.c.l.b16 %v558
        %v1876 = vunpack.c.h.b16 %v558
        %v1877 = vunpack.c.l.b16 %v559
        %v1878 = vunpack.c.h.b16 %v559
        %v1879 = vunpack.c.l.b16 %v560
        %v1880 = vunpack.c.h.b16 %v560
        %v1881 = vunpack.c.l.b16 %v561
        %v1882 = vunpack.c.h.b16 %v561
        %v1883 = vunpack.c.l.b16 %v562
        %v1884 = vunpack.c.h.b16 %v562
        %v1885 = vunpack.c.l.b16 %v563
        %v1886 = vunpack.c.h.b16 %v563
        %v1887 = vunpack.c.l.b16 %v564
        %v1888 = vunpack.c.h.b16 %v564
        %v1889 = vunpack.c.l.b16 %v565
        %v1890 = vunpack.c.h.b16 %v565
        %v1891 = vunpack.c.l.b16 %v566
        %v1892 = vunpack.c.h.b16 %v566
        %v1893 = vunpack.c.l.b16 %v567
        %v1894 = vunpack.c.h.b16 %v567
        %v1895 = vunpack.c.l.b16 %v568
        %v1896 = vunpack.c.h.b16 %v568
        %v1897 = vunpack.c.l.b16 %v569
        %v1898 = vunpack.c.h.b16 %v569
        %v1899 = vunpack.c.l.b16 %v570
        %v1900 = vunpack.c.h.b16 %v570
        %v1901 = vunpack.c.l.b16 %v571
        %v1902 = vunpack.c.h.b16 %v571
        %v1903 = vunpack.c.l.b16 %v572
        %v1904 = vunpack.c.h.b16 %v572
        %v1905 = vunpack.c.l.b16 %v573
        %v1906 = vunpack.c.h.b16 %v573
        %v1907 = vunpack.c.l.b16 %v574
        %v1908 = vunpack.c.h.b16 %v574
        %v1909 = vunpack.c.l.b16 %v575
        %v1910 = vunpack.c.h.b16 %v575
        %v1911 = vunpack.c.l.b16 %v576
        %v1912 = vunpack.c.h.b16 %v576
        %v1913 = vunpack.c.l.b16 %v577
        %v1914 = vunpack.c.h.b16 %v577
        %v1915 = vunpack.c.l.b16 %v578
        %v1916 = vunpack.c.h.b16 %v578
        %v1917 = vunpack.c.l.b16 %v579
        %v1918 = vunpack.c.h.b16 %v579
        %v1919 = vunpack.c.l.b16 %v580
        %v1920 = vunpack.c.h.b16 %v580
        %v1921 = vunpack.c.l.b16 %v581
        %v1922 = vunpack.c.h.b16 %v581
        %v1923 = vunpack.c.l.b16 %v582
        %v1924 = vunpack.c.h.b16 %v582
        %v1925 = vunpack.c.l.b16 %v583
        %v1926 = vunpack.c.h.b16 %v583
        %v1927 = vunpack.c.l.b16 %v584
        %v1928 = vunpack.c.h.b16 %v584
        %v1929 = vunpack.c.l.b16 %v585
        %v1930 = vunpack.c.h.b16 %v585
        %v1931 = vunpack.c.l.b16 %v586
        %v1932 = vunpack.c.h.b16 %v586
        %v1933 = vunpack.c.l.b16 %v587
        %v1934 = vunpack.c.h.b16 %v587
        %v1935 = vunpack.c.l.b16 %v588
        %v1936 = vunpack.c.h.b16 %v588
        %v1937 = vunpack.c.l.b16 %v589
        %v1938 = vunpack.c.h.b16 %v589
        %v1939 = vunpack.c.l.b16 %v590
        %v1940 = vunpack.c.h.b16 %v590
        %v1941 = vunpack.c.l.b16 %v591
        %v1942 = vunpack.c.h.b16 %v591
        %v1943 = vunpack.c.l.b16 %v592
        %v1944 = vunpack.c.h.b16 %v592
        %v1945 = vunpack.c.l.b16 %v593
        %v1946 = vunpack.c.h.b16 %v593
        %v1947 = vunpack.c.l.b16 %v594
        %v1948 = vunpack.c.h.b16 %v594
        %v1949 = vunpack.c.l.b16 %v595
        %v1950 = vunpack.c.h.b16 %v595
        %v1951 = vunpack.c.l.b16 %v596
        %v1952 = vunpack.c.h.b16 %v596
        %v1953 = vunpack.c.l.b16 %v597
        %v1954 = vunpack.c.h.b16 %v597
        %v1955 = vunpack.c.l.b16 %v598
        %v1956 = vunpack.c.h.b16 %v598
        %v1957 = vunpack.c.l.b16 %v599
        %v1958 = vunpack.c.h.b16 %v599
        %v1959 = vunpack.c.l.b16 %v600
        %v1960 = vunpack.c.h.b16 %v600
        %v1961 = vunpack.c.l.b16 %v601
        %v1962 = vunpack.c.h.b16 %v601
        %v1963 = vunpack.c.l.b16 %v602
        %v1964 = vunpack.c.h.b16 %v602
        %v1965 = vunpack.c.l.b16 %v603
        %v1966 = vunpack.c.h.b16 %v603
        %v1967 = vunpack.c.l.b16 %v604
        %v1968 = vunpack.c.h.b16 %v604
        %v1969 = vunpack.c.l.b16 %v605
        %v1970 = vunpack.c.h.b16 %v605
        %v1971 = vunpack.c.l.b16 %v606
        %v1972 = vunpack.c.h.b16 %v606
        %v1973 = vunpack.c.l.b16 %v607
        %v1974 = vunpack.c.h.b16 %v607
        %v1975 = vunpack.c.l.b16 %v608
        %v1976 = vunpack.c.h.b16 %v608
        %v1977 = vunpack.c.l.b16 %v609
        %v1978 = vunpack.c.h.b16 %v609
        %v1979 = vunpack.c.l.b16 %v610
        %v1980 = vunpack.c.h.b16 %v610
        %v1981 = vunpack.c.l.b16 %v611
        %v1982 = vunpack.c.h.b16 %v611
        %v1983 = vunpack.c.l.b16 %v612
        %v1984 = vunpack.c.h.b16 %v612
        %v1985 = vunpack.c.l.b16 %v613
        %v1986 = vunpack.c.h.b16 %v613
        %v1987 = vunpack.c.l.b16 %v614
        %v1988 = vunpack.c.h.b16 %v614
        %v1989 = vunpack.c.l.b16 %v615
        %v1990 = vunpack.c.h.b16 %v615
        %v1991 = vunpack.c.l.b16 %v616
        %v1992 = vunpack.c.h.b16 %v616
        %v1993 = vunpack.c.l.b16 %v617
        %v1994 = vunpack.c.h.b16 %v617
        %v1995 = vunpack.c.l.b16 %v618
        %v1996 = vunpack.c.h.b16 %v618
        %v1997 = vunpack.c.l.b16 %v619
        %v1998 = vunpack.c.h.b16 %v619
        %v1999 = vunpack.c.l.b16 %v620
        %v2000 = vunpack.c.h.b16 %v620
        %v2001 = vunpack.c.l.b16 %v621
        %v2002 = vunpack.c.h.b16 %v621
        %v2003 = vunpack.c.l.b16 %v622
        %v2004 = vunpack.c.h.b16 %v622
        %v2005 = vunpack.c.l.b16 %v623
        %v2006 = vunpack.c.h.b16 %v623
        %v2007 = vunpack.c.l.b16 %v624
        %v2008 = vunpack.c.h.b16 %v624
        %v2009 = vunpack.c.l.b16 %v625
        %v2010 = vunpack.c.h.b16 %v625
        %v2011 = vunpack.c.l.b16 %v626
        %v2012 = vunpack.c.h.b16 %v626
        %v2013 = vunpack.c.l.b16 %v627
        %v2014 = vunpack.c.h.b16 %v627
        %v2015 = vunpack.c.l.b16 %v628
        %v2016 = vunpack.c.h.b16 %v628
        %v2017 = vunpack.c.l.b16 %v629
        %v2018 = vunpack.c.h.b16 %v629
        %v2019 = vunpack.c.l.b16 %v630
        %v2020 = vunpack.c.h.b16 %v630
        %v2021 = vunpack.c.l.b16 %v631
        %v2022 = vunpack.c.h.b16 %v631
        %v2023 = vunpack.c.l.b16 %v632
        %v2024 = vunpack.c.h.b16 %v632
        %v2025 = vunpack.c.l.b16 %v633
        %v2026 = vunpack.c.h.b16 %v633
        %v2027 = vunpack.c.l.b16 %v634
        %v2028 = vunpack.c.h.b16 %v634
        %v2029 = vunpack.c.l.b16 %v635
        %v2030 = vunpack.c.h.b16 %v635
        %v2031 = vunpack.c.l.b16 %v636
        %v2032 = vunpack.c.h.b16 %v636
        %v2033 = vunpack.c.l.b16 %v637
        %v2034 = vunpack.c.h.b16 %v637
        %v2035 = vunpack.c.l.b16 %v638
        %v2036 = vunpack.c.h.b16 %v638
        %v2037 = vunpack.c.l.b16 %v639
        %v2038 = vunpack.c.h.b16 %v639
        %v2039 = vunpack.c.l.b16 %v640
        %v2040 = vunpack.c.h.b16 %v640
        %v2041 = vunpack.c.l.b16 %v641
        %v2042 = vunpack.c.h.b16 %v641
        %v2043 = vunpack.c.l.b16 %v642
        %v2044 = vunpack.c.h.b16 %v642
        %v2045 = vunpack.c.l.b16 %v643
        %v2046 = vunpack.c.h.b16 %v643
        %v2047 = vunpack.c.l.b16 %v644
        %v2048 = vunpack.c.h.b16 %v644
        %v2049 = vunpack.c.l.b16 %v645
        %v2050 = vunpack.c.h.b16 %v645
        %v2051 = vunpack.c.l.b16 %v646
        %v2052 = vunpack.c.h.b16 %v646
        %v2053 = vunpack.c.l.b16 %v647
        %v2054 = vunpack.c.h.b16 %v647
        %v2055 = vunpack.c.l.b16 %v648
        %v2056 = vunpack.c.h.b16 %v648
        %v2057 = vunpack.c.l.b16 %v649
        %v2058 = vunpack.c.h.b16 %v649
        %v2059 = vunpack.c.l.b16 %v650
        %v2060 = vunpack.c.h.b16 %v650
        %v2061 = vunpack.c.l.b16 %v651
        %v2062 = vunpack.c.h.b16 %v651
        %v2063 = vunpack.c.l.b16 %v652
        %v2064 = vunpack.c.h.b16 %v652
        %v2065 = vunpack.c.l.b16 %v653
        %v2066 = vunpack.c.h.b16 %v653
        %v2067 = vunpack.c.l.b16 %v654
        %v2068 = vunpack.c.h.b16 %v654
        %v2069 = vunpack.c.l.b16 %v655
        %v2070 = vunpack.c.h.b16 %v655
        %v2071 = vunpack.c.l.b16 %v656
        %v2072 = vunpack.c.h.b16 %v656
        %v2073 = vunpack.c.l.b16 %v657
        %v2074 = vunpack.c.h.b16 %v657
        %v2075 = vunpack.c.l.b16 %v658
        %v2076 = vunpack.c.h.b16 %v658
        %v2077 = vunpack.c.l.b16 %v659
        %v2078 = vunpack.c.h.b16 %v659
        %v2079 = vunpack.c.l.b16 %v660
        %v2080 = vunpack.c.h.b16 %v660
        %v2081 = vunpack.c.l.b16 %v661
        %v2082 = vunpack.c.h.b16 %v661
        %v2083 = vunpack.c.l.b16 %v662
        %v2084 = vunpack.c.h.b16 %v662
        %v2085 = vunpack.c.l.b16 %v663
        %v2086 = vunpack.c.h.b16 %v663
        %v2087 = vunpack.c.l.b16 %v664
        %v2088 = vunpack.c.h.b16 %v664
        %v2089 = vunpack.c.l.b16 %v665
        %v2090 = vunpack.c.h.b16 %v665
        %v2091 = vunpack.c.l.b16 %v666
        %v2092 = vunpack.c.h.b16 %v666
        %v2093 = vunpack.c.l.b16 %v667
        %v2094 = vunpack.c.h.b16 %v667
        %v2095 = vunpack.c.l.b16 %v668
        %v2096 = vunpack.c.h.b16 %v668
        %v2097 = vunpack.c.l.b16 %v669
        %v2098 = vunpack.c.h.b16 %v669
        %v2099 = vunpack.c.l.b16 %v670
        %v2100 = vunpack.c.h.b16 %v670
        %v2101 = vunpack.c.l.b16 %v671
        %v2102 = vunpack.c.h.b16 %v671
        %v2103 = vunpack.c.l.b16 %v672
        %v2104 = vunpack.c.h.b16 %v672
        %v2105 = vunpack.c.l.b16 %v673
        %v2106 = vunpack.c.h.b16 %v673
        %v2107 = vunpack.c.l.b16 %v674
        %v2108 = vunpack.c.h.b16 %v674
        %v2109 = vunpack.c.l.b16 %v675
        %v2110 = vunpack.c.h.b16 %v675
        %v2111 = vunpack.c.l.b16 %v676
        %v2112 = vunpack.c.h.b16 %v676
        %v2113 = vunpack.c.l.b16 %v677
        %v2114 = vunpack.c.h.b16 %v677
        %v2115 = vunpack.c.l.b16 %v678
        %v2116 = vunpack.c.h.b16 %v678
        %v2117 = vunpack.c.l.b16 %v679
        %v2118 = vunpack.c.h.b16 %v679
        %v2119 = vunpack.c.l.b16 %v680
        %v2120 = vunpack.c.h.b16 %v680
        %v2121 = vunpack.c.l.b16 %v681
        %v2122 = vunpack.c.h.b16 %v681
        %v2123 = vunpack.c.l.b16 %v682
        %v2124 = vunpack.c.h.b16 %v682
        %v2125 = vunpack.c.l.b16 %v683
        %v2126 = vunpack.c.h.b16 %v683
        %v2127 = vunpack.c.l.b16 %v684
        %v2128 = vunpack.c.h.b16 %v684
        %v2129 = vunpack.c.l.b16 %v685
        %v2130 = vunpack.c.h.b16 %v685
        %v2131 = vunpack.c.l.b16 %v686
        %v2132 = vunpack.c.h.b16 %v686
        %v2133 = vunpack.c.l.b16 %v687
        %v2134 = vunpack.c.h.b16 %v687
        %v2135 = vunpack.c.l.b16 %v688
        %v2136 = vunpack.c.h.b16 %v688
        %v2137 = vunpack.c.l.b16 %v689
        %v2138 = vunpack.c.h.b16 %v689
        %v2139 = vunpack.c.l.b16 %v690
        %v2140 = vunpack.c.h.b16 %v690
        %v2141 = vunpack.c.l.b16 %v691
        %v2142 = vunpack.c.h.b16 %v691
        %v2143 = vunpack.c.l.b16 %v692
        %v2144 = vunpack.c.h.b16 %v692
        %v2145 = vunpack.c.l.b16 %v693
        %v2146 = vunpack.c.h.b16 %v693
        %v2147 = vunpack.c.l.b16 %v694
        %v2148 = vunpack.c.h.b16 %v694
        %v2149 = vunpack.c.l.b16 %v695
        %v2150 = vunpack.c.h.b16 %v695
        %v2151 = vunpack.c.l.b16 %v696
        %v2152 = vunpack.c.h.b16 %v696
        %v2153 = vunpack.c.l.b16 %v697
        %v2154 = vunpack.c.h.b16 %v697
        %v2155 = vunpack.c.l.b16 %v698
        %v2156 = vunpack.c.h.b16 %v698
        %v2157 = vunpack.c.l.b16 %v699
        %v2158 = vunpack.c.h.b16 %v699
        %v2159 = vunpack.c.l.b16 %v700
        %v2160 = vunpack.c.h.b16 %v700
        %v2161 = vunpack.c.l.b16 %v701
        %v2162 = vunpack.c.h.b16 %v701
        %v2163 = vunpack.c.l.b16 %v702
        %v2164 = vunpack.c.h.b16 %v702
        %v2165 = vunpack.c.l.b16 %v703
        %v2166 = vunpack.c.h.b16 %v703
        %v2167 = vunpack.c.l.b16 %v704
        %v2168 = vunpack.c.h.b16 %v704
        %v2169 = vunpack.c.l.b16 %v705
        %v2170 = vunpack.c.h.b16 %v705
        %v2171 = vunpack.c.l.b16 %v706
        %v2172 = vunpack.c.h.b16 %v706
        %v2173 = vunpack.c.l.b16 %v707
        %v2174 = vunpack.c.h.b16 %v707
        %v2175 = vunpack.c.l.b16 %v708
        %v2176 = vunpack.c.h.b16 %v708
        %v2177 = vunpack.c.l.b16 %v709
        %v2178 = vunpack.c.h.b16 %v709
        %v2179 = vunpack.c.l.b16 %v710
        %v2180 = vunpack.c.h.b16 %v710
        %v2181 = vunpack.c.l.b16 %v711
        %v2182 = vunpack.c.h.b16 %v711
        %v2183 = vunpack.c.l.b16 %v712
        %v2184 = vunpack.c.h.b16 %v712
        %v2185 = vunpack.c.l.b16 %v713
        %v2186 = vunpack.c.h.b16 %v713
        %v2187 = vunpack.c.l.b16 %v714
        %v2188 = vunpack.c.h.b16 %v714
        %v2189 = vunpack.c.l.b16 %v715
        %v2190 = vunpack.c.h.b16 %v715
        %v2191 = vunpack.c.l.b16 %v716
        %v2192 = vunpack.c.h.b16 %v716
        %v2193 = vunpack.c.l.b16 %v717
        %v2194 = vunpack.c.h.b16 %v717
        %v2195 = vunpack.c.l.b16 %v718
        %v2196 = vunpack.c.h.b16 %v718
        %v2197 = vunpack.c.l.b16 %v719
        %v2198 = vunpack.c.h.b16 %v719
        %v2199 = vunpack.c.l.b16 %v720
        %v2200 = vunpack.c.h.b16 %v720
        %v2201 = vunpack.c.l.b16 %v721
        %v2202 = vunpack.c.h.b16 %v721
        %v2203 = vunpack.c.l.b16 %v722
        %v2204 = vunpack.c.h.b16 %v722
        %v2205 = vunpack.c.l.b16 %v723
        %v2206 = vunpack.c.h.b16 %v723
        %v2207 = vunpack.c.l.b16 %v724
        %v2208 = vunpack.c.h.b16 %v724
        %v2209 = vunpack.c.l.b16 %v725
        %v2210 = vunpack.c.h.b16 %v725
        %v2211 = vunpack.c.l.b16 %v726
        %v2212 = vunpack.c.h.b16 %v726
        %v2213 = vunpack.c.l.b16 %v727
        %v2214 = vunpack.c.h.b16 %v727
        %v2215 = vunpack.c.l.b16 %v728
        %v2216 = vunpack.c.h.b16 %v728
        %v2217 = vunpack.c.l.b16 %v729
        %v2218 = vunpack.c.h.b16 %v729
        %v2219 = vunpack.c.l.b16 %v730
        %v2220 = vunpack.c.h.b16 %v730
        %v2221 = vunpack.c.l.b16 %v731
        %v2222 = vunpack.c.h.b16 %v731
        %v2223 = vunpack.c.l.b16 %v732
        %v2224 = vunpack.c.h.b16 %v732
        %v2225 = vunpack.c.l.b16 %v733
        %v2226 = vunpack.c.h.b16 %v733
        %v2227 = vunpack.c.l.b16 %v734
        %v2228 = vunpack.c.h.b16 %v734
        %v2229 = vunpack.c.l.b16 %v735
        %v2230 = vunpack.c.h.b16 %v735
        %v2231 = vunpack.c.l.b16 %v736
        %v2232 = vunpack.c.h.b16 %v736
        %v2233 = vunpack.c.l.b16 %v737
        %v2234 = vunpack.c.h.b16 %v737
        %v2235 = vunpack.c.l.b16 %v738
        %v2236 = vunpack.c.h.b16 %v738
        %v2237 = vunpack.c.l.b16 %v739
        %v2238 = vunpack.c.h.b16 %v739
        %v2239 = vunpack.c.l.b16 %v740
        %v2240 = vunpack.c.h.b16 %v740
        %v2241 = vunpack.c.l.b16 %v741
        %v2242 = vunpack.c.h.b16 %v741
        %v2243 = vunpack.c.l.b16 %v742
        %v2244 = vunpack.c.h.b16 %v742
        %v2245 = vunpack.c.l.b16 %v743
        %v2246 = vunpack.c.h.b16 %v743
        %v2247 = vunpack.c.l.b16 %v744
        %v2248 = vunpack.c.h.b16 %v744
        %v2249 = vunpack.c.l.b16 %v745
        %v2250 = vunpack.c.h.b16 %v745
        %v2251 = vunpack.c.l.b16 %v746
        %v2252 = vunpack.c.h.b16 %v746
        %v2253 = vunpack.c.l.b16 %v747
        %v2254 = vunpack.c.h.b16 %v747
        %v2255 = vunpack.c.l.b16 %v748
        %v2256 = vunpack.c.h.b16 %v748
        %v2257 = vunpack.c.l.b16 %v749
        %v2258 = vunpack.c.h.b16 %v749
        %v2259 = vunpack.c.l.b16 %v750
        %v2260 = vunpack.c.h.b16 %v750
        %v2261 = vunpack.c.l.b16 %v751
        %v2262 = vunpack.c.h.b16 %v751
        %v2263 = vunpack.c.l.b16 %v752
        %v2264 = vunpack.c.h.b16 %v752
        %v2265 = vunpack.c.l.b16 %v753
        %v2266 = vunpack.c.h.b16 %v753
        %v2267 = vunpack.c.l.b16 %v754
        %v2268 = vunpack.c.h.b16 %v754
        %v2269 = vunpack.c.l.b16 %v755
        %v2270 = vunpack.c.h.b16 %v755
        %v2271 = vunpack.c.l.b16 %v756
        %v2272 = vunpack.c.h.b16 %v756
        %v2273 = vunpack.c.l.b16 %v757
        %v2274 = vunpack.c.h.b16 %v757
        %v2275 = vunpack.c.l.b16 %v758
        %v2276 = vunpack.c.h.b16 %v758
        %v2277 = vunpack.c.l.b16 %v759
        %v2278 = vunpack.c.h.b16 %v759
        %v2279 = vunpack.c.l.b16 %v760
        %v2280 = vunpack.c.h.b16 %v760
        %v2281 = vunpack.c.l.b16 %v761
        %v2282 = vunpack.c.h.b16 %v761
        %v2283 = vunpack.c.l.b16 %v762
        %v2284 = vunpack.c.h.b16 %v762
        %v2285 = vunpack.c.l.b16 %v763
        %v2286 = vunpack.c.h.b16 %v763
        %v2287 = vunpack.c.l.b16 %v764
        %v2288 = vunpack.c.h.b16 %v764
        %v2289 = vunpack.c.l.b16 %v765
        %v2290 = vunpack.c.h.b16 %v765
        %v2291 = vunpack.c.l.b16 %v766
        %v2292 = vunpack.c.h.b16 %v766
        %v2293 = vunpack.c.l.b16 %v767
        %v2294 = vunpack.c.h.b16 %v767
        %v2295 = vunpack.c.l.b16 %v768
        %v2296 = vunpack.c.h.b16 %v768
        %v2297 = vunpack.c.l.b16 %v769
        %v2298 = vunpack.c.h.b16 %v769
        %v2299 = vunpack.c.l.b16 %v770
        %v2300 = vunpack.c.h.b16 %v770
        %v2301 = vunpack.c.l.b16 %v771
        %v2302 = vunpack.c.h.b16 %v771
        %v2303 = vunpack.c.l.b16 %v772
        %v2304 = vunpack.c.h.b16 %v772
        %v2305 = vunpack.c.l.b16 %v773
        %v2306 = vunpack.c.h.b16 %v773
        %v2307 = vunpack.c.l.b16 %v774
        %v2308 = vunpack.c.h.b16 %v774
        %v2309 = vunpack.c.l.b16 %v775
        %v2310 = vunpack.c.h.b16 %v775
        %v2311 = vunpack.c.l.b16 %v776
        %v2312 = vunpack.c.h.b16 %v776
        %v2313 = vunpack.c.l.b16 %v777
        %v2314 = vunpack.c.h.b16 %v777
        %v2315 = vunpack.c.l.b16 %v778
        %v2316 = vunpack.c.h.b16 %v778
        %v2317 = vunpack.c.l.b16 %v779
        %v2318 = vunpack.c.h.b16 %v779
        %v2319 = vunpack.c.l.b16 %v780
        %v2320 = vunpack.c.h.b16 %v780
        %v2321 = vunpack.c.l.b16 %v781
        %v2322 = vunpack.c.h.b16 %v781
        %v2323 = vunpack.c.l.b16 %v782
        %v2324 = vunpack.c.h.b16 %v782
        %v2325 = vunpack.c.l.b16 %v783
        %v2326 = vunpack.c.h.b16 %v783
        %v2327 = vunpack.c.l.b16 %v784
        %v2328 = vunpack.c.h.b16 %v784
        %v2329 = vunpack.c.l.b16 %v785
        %v2330 = vunpack.c.h.b16 %v785
        %v2331 = vunpack.c.l.b16 %v786
        %v2332 = vunpack.c.h.b16 %v786
        %v2333 = vunpack.c.l.b16 %v787
        %v2334 = vunpack.c.h.b16 %v787
        %v2335 = vunpack.c.l.b16 %v788
        %v2336 = vunpack.c.h.b16 %v788
        %v2337 = vunpack.c.l.b16 %v789
        %v2338 = vunpack.c.h.b16 %v789
        %v2339 = vunpack.c.l.b16 %v790
        %v2340 = vunpack.c.h.b16 %v790
        %v2341 = vunpack.c.l.b16 %v791
        %v2342 = vunpack.c.h.b16 %v791
        %v2343 = vunpack.c.l.b16 %v792
        %v2344 = vunpack.c.h.b16 %v792
        %v2345 = vunpack.c.l.b16 %v793
        %v2346 = vunpack.c.h.b16 %v793
        %v2347 = vunpack.c.l.b16 %v794
        %v2348 = vunpack.c.h.b16 %v794
        %v2349 = vunpack.c.l.b16 %v795
        %v2350 = vunpack.c.h.b16 %v795
        %v2351 = vunpack.c.l.b16 %v796
        %v2352 = vunpack.c.h.b16 %v796
        %v2353 = vunpack.c.l.b16 %v797
        %v2354 = vunpack.c.h.b16 %v797
        %v2355 = vunpack.c.l.b16 %v798
        %v2356 = vunpack.c.h.b16 %v798
        %v2357 = vunpack.c.l.b16 %v799
        %v2358 = vunpack.c.h.b16 %v799
        %v2359 = vunpack.c.l.b16 %v800
        %v2360 = vunpack.c.h.b16 %v800
        %v2361 = vunpack.c.l.b16 %v801
        %v2362 = vunpack.c.h.b16 %v801
        %v2363 = vunpack.c.l.b16 %v802
        %v2364 = vunpack.c.h.b16 %v802
        %v2365 = vunpack.c.l.b16 %v803
        %v2366 = vunpack.c.h.b16 %v803
        %v2367 = vunpack.c.l.b16 %v804
        %v2368 = vunpack.c.h.b16 %v804
        %v2369 = vunpack.c.l.b16 %v805
        %v2370 = vunpack.c.h.b16 %v805
        %v2371 = vunpack.c.l.b16 %v806
        %v2372 = vunpack.c.h.b16 %v806
        %v2373 = vunpack.c.l.b16 %v807
        %v2374 = vunpack.c.h.b16 %v807
        %v2375 = vunpack.c.l.b16 %v808
        %v2376 = vunpack.c.h.b16 %v808
        %v2377 = vunpack.c.l.b16 %v809
        %v2378 = vunpack.c.h.b16 %v809
        %v2379 = vunpack.c.l.b16 %v810
        %v2380 = vunpack.c.h.b16 %v810
        %v2381 = vunpack.c.l.b16 %v811
        %v2382 = vunpack.c.h.b16 %v811
        %v2383 = vunpack.c.l.b16 %v812
        %v2384 = vunpack.c.h.b16 %v812
        %v2385 = vunpack.c.l.b16 %v813
        %v2386 = vunpack.c.h.b16 %v813
        %v2387 = vunpack.c.l.b16 %v814
        %v2388 = vunpack.c.h.b16 %v814
        %v2389 = vunpack.c.l.b16 %v815
        %v2390 = vunpack.c.h.b16 %v815
        %v2391 = vunpack.c.l.b16 %v816
        %v2392 = vunpack.c.h.b16 %v816
        %v2393 = vunpack.c.l.b16 %v817
        %v2394 = vunpack.c.h.b16 %v817
        %v2395 = vunpack.c.l.b16 %v818
        %v2396 = vunpack.c.h.b16 %v818
        %v2397 = vunpack.c.l.b16 %v819
        %v2398 = vunpack.c.h.b16 %v819
        %v2399 = vunpack.c.l.b16 %v820
        %v2400 = vunpack.c.h.b16 %v820
        %v2401 = vunpack.c.l.b16 %v821
        %v2402 = vunpack.c.h.b16 %v821
        %v2403 = vunpack.c.l.b16 %v822
        %v2404 = vunpack.c.h.b16 %v822
        %v2405 = vunpack.c.l.b16 %v823
        %v2406 = vunpack.c.h.b16 %v823
        %v2407 = vunpack.c.l.b16 %v824
        %v2408 = vunpack.c.h.b16 %v824
        %v2409 = vunpack.c.l.b16 %v825
        %v2410 = vunpack.c.h.b16 %v825
        %v2411 = vunpack.c.l.b16 %v826
        %v2412 = vunpack.c.h.b16 %v826
        %v2413 = vunpack.c.l.b16 %v827
        %v2414 = vunpack.c.h.b16 %v827
        %v2415 = vunpack.c.l.b16 %v828
        %v2416 = vunpack.c.h.b16 %v828
        %v2417 = vunpack.c.l.b16 %v829
        %v2418 = vunpack.c.h.b16 %v829
        %v2419 = vunpack.c.l.b16 %v830
        %v2420 = vunpack.c.h.b16 %v830
        %v2421 = vunpack.c.l.b16 %v831
        %v2422 = vunpack.c.h.b16 %v831
        %v2423 = vunpack.c.l.b16 %v832
        %v2424 = vunpack.c.h.b16 %v832
        %v2425 = vunpack.c.l.b16 %v833
        %v2426 = vunpack.c.h.b16 %v833
        %v2427 = vunpack.c.l.b16 %v834
        %v2428 = vunpack.c.h.b16 %v834
        %v2429 = vunpack.c.l.b16 %v835
        %v2430 = vunpack.c.h.b16 %v835
        %v2431 = vunpack.c.l.b16 %v836
        %v2432 = vunpack.c.h.b16 %v836
        %v2433 = vunpack.c.l.b16 %v837
        %v2434 = vunpack.c.h.b16 %v837
        %v2435 = vunpack.c.l.b16 %v838
        %v2436 = vunpack.c.h.b16 %v838
        %v2437 = vunpack.c.l.b16 %v839
        %v2438 = vunpack.c.h.b16 %v839
        %v2439 = vunpack.c.l.b16 %v840
        %v2440 = vunpack.c.h.b16 %v840
        %v2441 = vunpack.c.l.b16 %v841
        %v2442 = vunpack.c.h.b16 %v841
        %v2443 = vunpack.c.l.b16 %v842
        %v2444 = vunpack.c.h.b16 %v842
        %v2445 = vunpack.c.l.b16 %v843
        %v2446 = vunpack.c.h.b16 %v843
        %v2447 = vunpack.c.l.b16 %v844
        %v2448 = vunpack.c.h.b16 %v844
        %v2449 = vunpack.c.l.b16 %v845
        %v2450 = vunpack.c.h.b16 %v845
        %v2451 = vunpack.c.l.b16 %v846
        %v2452 = vunpack.c.h.b16 %v846
        %v2453 = vunpack.c.l.b16 %v847
        %v2454 = vunpack.c.h.b16 %v847
        %v2455 = vunpack.c.l.b16 %v848
        %v2456 = vunpack.c.h.b16 %v848
        %v2457 = vunpack.c.l.b16 %v849
        %v2458 = vunpack.c.h.b16 %v849
        %v2459 = vunpack.c.l.b16 %v850
        %v2460 = vunpack.c.h.b16 %v850
        %v2461 = vunpack.c.l.b16 %v851
        %v2462 = vunpack.c.h.b16 %v851
        %v2463 = vunpack.c.l.b16 %v852
        %v2464 = vunpack.c.h.b16 %v852
        %v2465 = vunpack.c.l.b16 %v853
        %v2466 = vunpack.c.h.b16 %v853
        %v2467 = vunpack.c.l.b16 %v854
        %v2468 = vunpack.c.h.b16 %v854
        %v2469 = vunpack.c.l.b16 %v855
        %v2470 = vunpack.c.h.b16 %v855
        %v2471 = vunpack.c.l.b16 %v856
        %v2472 = vunpack.c.h.b16 %v856
        %v2473 = vunpack.c.l.b16 %v857
        %v2474 = vunpack.c.h.b16 %v857
        %v2475 = vunpack.c.l.b16 %v858
        %v2476 = vunpack.c.h.b16 %v858
        %v2477 = vunpack.c.l.b16 %v859
        %v2478 = vunpack.c.h.b16 %v859
        %v2479 = vunpack.c.l.b16 %v860
        %v2480 = vunpack.c.h.b16 %v860
        %v2481 = vunpack.c.l.b16 %v861
        %v2482 = vunpack.c.h.b16 %v861
        %v2483 = vunpack.c.l.b16 %v862
        %v2484 = vunpack.c.h.b16 %v862
        %v2485 = vunpack.c.l.b16 %v863
        %v2486 = vunpack.c.h.b16 %v863
        %v2487 = vunpack.c.l.b16 %v864
        %v2488 = vunpack.c.h.b16 %v864
        %v2489 = vunpack.c.l.b16 %v865
        %v2490 = vunpack.c.h.b16 %v865
        %v2491 = vunpack.c.l.b16 %v866
        %v2492 = vunpack.c.h.b16 %v866
        %v2493 = vunpack.c.l.b16 %v867
        %v2494 = vunpack.c.h.b16 %v867
        %v2495 = vunpack.c.l.b16 %v868
        %v2496 = vunpack.c.h.b16 %v868
        %v2497 = vunpack.c.l.b16 %v869
        %v2498 = vunpack.c.h.b16 %v869
        %v2499 = vunpack.c.l.b16 %v870
        %v2500 = vunpack.c.h.b16 %v870
        %v2501 = vunpack.c.l.b16 %v871
        %v2502 = vunpack.c.h.b16 %v871
        %v2503 = vunpack.c.l.b16 %v872
        %v2504 = vunpack.c.h.b16 %v872
        %v2505 = vunpack.c.l.b16 %v873
        %v2506 = vunpack.c.h.b16 %v873
        %v2507 = vunpack.c.l.b16 %v874
        %v2508 = vunpack.c.h.b16 %v874
        %v2509 = vunpack.c.l.b16 %v875
        %v2510 = vunpack.c.h.b16 %v875
        %v2511 = vunpack.c.l.b16 %v876
        %v2512 = vunpack.c.h.b16 %v876
        %v2513 = vunpack.c.l.b16 %v877
        %v2514 = vunpack.c.h.b16 %v877
        %v2515 = vunpack.c.l.b16 %v878
        %v2516 = vunpack.c.h.b16 %v878
        %v2517 = vunpack.c.l.b16 %v879
        %v2518 = vunpack.c.h.b16 %v879
        %v2519 = vunpack.c.l.b16 %v880
        %v2520 = vunpack.c.h.b16 %v880
        %v2521 = vunpack.c.l.b16 %v881
        %v2522 = vunpack.c.h.b16 %v881
        %v2523 = vunpack.c.l.b16 %v882
        %v2524 = vunpack.c.h.b16 %v882
        %v2525 = vunpack.c.l.b16 %v883
        %v2526 = vunpack.c.h.b16 %v883
        %v2527 = vunpack.c.l.b16 %v884
        %v2528 = vunpack.c.h.b16 %v884
        %v2529 = vunpack.c.l.b16 %v885
        %v2530 = vunpack.c.h.b16 %v885
        %v2531 = vunpack.c.l.b16 %v886
        %v2532 = vunpack.c.h.b16 %v886
        %v2533 = vunpack.c.l.b16 %v887
        %v2534 = vunpack.c.h.b16 %v887
        %v2535 = vunpack.c.l.b16 %v888
        %v2536 = vunpack.c.h.b16 %v888
        %v2537 = vunpack.c.l.b16 %v889
        %v2538 = vunpack.c.h.b16 %v889
        %v2539 = vunpack.c.l.b16 %v890
        %v2540 = vunpack.c.h.b16 %v890
        %v2541 = vunpack.c.l.b16 %v891
        %v2542 = vunpack.c.h.b16 %v891
        %v2543 = vunpack.c.l.b16 %v892
        %v2544 = vunpack.c.h.b16 %v892
        %v2545 = vunpack.c.l.b16 %v893
        %v2546 = vunpack.c.h.b16 %v893
        %v2547 = vunpack.c.l.b16 %v894
        %v2548 = vunpack.c.h.b16 %v894
        %v2549 = vunpack.c.l.b16 %v895
        %v2550 = vunpack.c.h.b16 %v895
        %v2551 = vunpack.c.l.b16 %v896
        %v2552 = vunpack.c.h.b16 %v896
        %v2553 = vunpack.c.l.b16 %v897
        %v2554 = vunpack.c.h.b16 %v897
        %v2555 = vunpack.c.l.b16 %v898
        %v2556 = vunpack.c.h.b16 %v898
        %v2557 = vunpack.c.l.b16 %v899
        %v2558 = vunpack.c.h.b16 %v899
        %v2559 = vunpack.c.l.b16 %v900
        %v2560 = vunpack.c.h.b16 %v900
        %v2561 = vunpack.c.l.b16 %v901
        %v2562 = vunpack.c.h.b16 %v901
        %v2563 = vunpack.c.l.b16 %v902
        %v2564 = vunpack.c.h.b16 %v902
        %v2565 = vunpack.c.l.b16 %v903
        %v2566 = vunpack.c.h.b16 %v903
        %v2567 = vunpack.c.l.b16 %v904
        %v2568 = vunpack.c.h.b16 %v904
        %v2569 = vunpack.c.l.b16 %v905
        %v2570 = vunpack.c.h.b16 %v905
        %v2571 = vunpack.c.l.b16 %v906
        %v2572 = vunpack.c.h.b16 %v906
        %v2573 = vunpack.c.l.b16 %v907
        %v2574 = vunpack.c.h.b16 %v907
        %v2575 = vunpack.c.l.b16 %v908
        %v2576 = vunpack.c.h.b16 %v908
        %v2577 = vunpack.c.l.b16 %v909
        %v2578 = vunpack.c.h.b16 %v909
        %v2579 = vunpack.c.l.b16 %v910
        %v2580 = vunpack.c.h.b16 %v910
        %v2581 = vunpack.c.l.b16 %v911
        %v2582 = vunpack.c.h.b16 %v911
        %v2583 = vunpack.c.l.b16 %v912
        %v2584 = vunpack.c.h.b16 %v912
        %v2585 = vunpack.c.l.b16 %v913
        %v2586 = vunpack.c.h.b16 %v913
        %v2587 = vunpack.c.l.b16 %v914
        %v2588 = vunpack.c.h.b16 %v914
        %v2589 = vunpack.c.l.b16 %v915
        %v2590 = vunpack.c.h.b16 %v915
        %v2591 = vunpack.c.l.b16 %v916
        %v2592 = vunpack.c.h.b16 %v916
        %v2593 = vunpack.c.l.b16 %v917
        %v2594 = vunpack.c.h.b16 %v917
        %v2595 = vunpack.c.l.b16 %v918
        %v2596 = vunpack.c.h.b16 %v918
        %v2597 = vunpack.c.l.b16 %v919
        %v2598 = vunpack.c.h.b16 %v919
        %v2599 = vunpack.c.l.b16 %v920
        %v2600 = vunpack.c.h.b16 %v920
        %v2601 = vunpack.c.l.b16 %v921
        %v2602 = vunpack.c.h.b16 %v921
        %v2603 = vunpack.c.l.b16 %v922
        %v2604 = vunpack.c.h.b16 %v922
        %v2605 = vunpack.c.l.b16 %v923
        %v2606 = vunpack.c.h.b16 %v923
        %v2607 = vunpack.c.l.b16 %v924
        %v2608 = vunpack.c.h.b16 %v924
        %v2609 = vunpack.c.l.b16 %v925
        %v2610 = vunpack.c.h.b16 %v925
        %v2611 = vunpack.c.l.b16 %v926
        %v2612 = vunpack.c.h.b16 %v926
        %v2613 = vunpack.c.l.b16 %v927
        %v2614 = vunpack.c.h.b16 %v927
        %v2615 = vunpack.c.l.b16 %v928
        %v2616 = vunpack.c.h.b16 %v928
        %v2617 = vunpack.c.l.b16 %v929
        %v2618 = vunpack.c.h.b16 %v929
        %v2619 = vunpack.c.l.b16 %v930
        %v2620 = vunpack.c.h.b16 %v930
        %v2621 = vunpack.c.l.b16 %v931
        %v2622 = vunpack.c.h.b16 %v931
        %v2623 = vunpack.c.l.b16 %v932
        %v2624 = vunpack.c.h.b16 %v932
        %v2625 = vunpack.c.l.b16 %v933
        %v2626 = vunpack.c.h.b16 %v933
        %v2627 = vunpack.c.l.b16 %v934
        %v2628 = vunpack.c.h.b16 %v934
        %v2629 = vpack.c.b16 %v1609, %v1605
        %v2630 = vpack.c.b16 %v1610, %v1606
        %v2631 = vpack.c.b16 %v1611, %v1607
        %v2632 = vpack.c.b16 %v1612, %v1608
        %v2633 = vpack.c.b16 %v1617, %v1613
        %v2634 = vpack.c.b16 %v1618, %v1614
        %v2635 = vpack.c.b16 %v1619, %v1615
        %v2636 = vpack.c.b16 %v1620, %v1616
        %v2637 = vpack.c.b16 %v1625, %v1621
        %v2638 = vpack.c.b16 %v1626, %v1622
        %v2639 = vpack.c.b16 %v1627, %v1623
        %v2640 = vpack.c.b16 %v1628, %v1624
        %v2641 = vpack.c.b16 %v1633, %v1629
        %v2642 = vpack.c.b16 %v1634, %v1630
        %v2643 = vpack.c.b16 %v1635, %v1631
        %v2644 = vpack.c.b16 %v1636, %v1632
        %v2645 = vpack.c.b16 %v1641, %v1637
        %v2646 = vpack.c.b16 %v1642, %v1638
        %v2647 = vpack.c.b16 %v1643, %v1639
        %v2648 = vpack.c.b16 %v1644, %v1640
        %v2649 = vpack.c.b16 %v1649, %v1645
        %v2650 = vpack.c.b16 %v1650, %v1646
        %v2651 = vpack.c.b16 %v1651, %v1647
        %v2652 = vpack.c.b16 %v1652, %v1648
        %v2653 = vpack.c.b16 %v1657, %v1653
        %v2654 = vpack.c.b16 %v1658, %v1654
        %v2655 = vpack.c.b16 %v1659, %v1655
        %v2656 = vpack.c.b16 %v1660, %v1656
        %v2657 = vpack.c.b16 %v1665, %v1661
        %v2658 = vpack.c.b16 %v1666, %v1662
        %v2659 = vpack.c.b16 %v1667, %v1663
        %v2660 = vpack.c.b16 %v1668, %v1664
        %v2661 = vpack.c.b16 %v1673, %v1669
        %v2662 = vpack.c.b16 %v1674, %v1670
        %v2663 = vpack.c.b16 %v1675, %v1671
        %v2664 = vpack.c.b16 %v1676, %v1672
        %v2665 = vpack.c.b16 %v1681, %v1677
        %v2666 = vpack.c.b16 %v1682, %v1678
        %v2667 = vpack.c.b16 %v1683, %v1679
        %v2668 = vpack.c.b16 %v1684, %v1680
        %v2669 = vpack.c.b16 %v1689, %v1685
        %v2670 = vpack.c.b16 %v1690, %v1686
        %v2671 = vpack.c.b16 %v1691, %v1687
        %v2672 = vpack.c.b16 %v1692, %v1688
        %v2673 = vpack.c.b16 %v1697, %v1693
        %v2674 = vpack.c.b16 %v1698, %v1694
        %v2675 = vpack.c.b16 %v1699, %v1695
        %v2676 = vpack.c.b16 %v1700, %v1696
        %v2677 = vpack.c.b16 %v1705, %v1701
        %v2678 = vpack.c.b16 %v1706, %v1702
        %v2679 = vpack.c.b16 %v1707, %v1703
        %v2680 = vpack.c.b16 %v1708, %v1704
        %v2681 = vpack.c.b16 %v1713, %v1709
        %v2682 = vpack.c.b16 %v1714, %v1710
        %v2683 = vpack.c.b16 %v1715, %v1711
        %v2684 = vpack.c.b16 %v1716, %v1712
        %v2685 = vpack.c.b16 %v1721, %v1717
        %v2686 = vpack.c.b16 %v1722, %v1718
        %v2687 = vpack.c.b16 %v1723, %v1719
        %v2688 = vpack.c.b16 %v1724, %v1720
        %v2689 = vpack.c.b16 %v1729, %v1725
        %v2690 = vpack.c.b16 %v1730, %v1726
        %v2691 = vpack.c.b16 %v1731, %v1727
        %v2692 = vpack.c.b16 %v1732, %v1728
        %v2693 = vpack.c.b16 %v1737, %v1733
        %v2694 = vpack.c.b16 %v1738, %v1734
        %v2695 = vpack.c.b16 %v1739, %v1735
        %v2696 = vpack.c.b16 %v1740, %v1736
        %v2697 = vpack.c.b16 %v1745, %v1741
        %v2698 = vpack.c.b16 %v1746, %v1742
        %v2699 = vpack.c.b16 %v1747, %v1743
        %v2700 = vpack.c.b16 %v1748, %v1744
        %v2701 = vpack.c.b16 %v1753, %v1749
        %v2702 = vpack.c.b16 %v1754, %v1750
        %v2703 = vpack.c.b16 %v1755, %v1751
        %v2704 = vpack.c.b16 %v1756, %v1752
        %v2705 = vpack.c.b16 %v1761, %v1757
        %v2706 = vpack.c.b16 %v1762, %v1758
        %v2707 = vpack.c.b16 %v1763, %v1759
        %v2708 = vpack.c.b16 %v1764, %v1760
        %v2709 = vpack.c.b16 %v1769, %v1765
        %v2710 = vpack.c.b16 %v1770, %v1766
        %v2711 = vpack.c.b16 %v1771, %v1767
        %v2712 = vpack.c.b16 %v1772, %v1768
        %v2713 = vpack.c.b16 %v1777, %v1773
        %v2714 = vpack.c.b16 %v1778, %v1774
        %v2715 = vpack.c.b16 %v1779, %v1775
        %v2716 = vpack.c.b16 %v1780, %v1776
        %v2717 = vpack.c.b16 %v1785, %v1781
        %v2718 = vpack.c.b16 %v1786, %v1782
        %v2719 = vpack.c.b16 %v1787, %v1783
        %v2720 = vpack.c.b16 %v1788, %v1784
        %v2721 = vpack.c.b16 %v1793, %v1789
        %v2722 = vpack.c.b16 %v1794, %v1790
        %v2723 = vpack.c.b16 %v1795, %v1791
        %v2724 = vpack.c.b16 %v1796, %v1792
        %v2725 = vpack.c.b16 %v1801, %v1797
        %v2726 = vpack.c.b16 %v1802, %v1798
        %v2727 = vpack.c.b16 %v1803, %v1799
        %v2728 = vpack.c.b16 %v1804, %v1800
        %v2729 = vpack.c.b16 %v1809, %v1805
        %v2730 = vpack.c.b16 %v1810, %v1806
        %v2731 = vpack.c.b16 %v1811, %v1807
        %v2732 = vpack.c.b16 %v1812, %v1808
        %v2733 = vpack.c.b16 %v1817, %v1813
        %v2734 = vpack.c.b16 %v1818, %v1814
        %v2735 = vpack.c.b16 %v1819, %v1815
        %v2736 = vpack.c.b16 %v1820, %v1816
        %v2737 = vpack.c.b16 %v1825, %v1821
        %v2738 = vpack.c.b16 %v1826, %v1822
        %v2739 = vpack.c.b16 %v1827, %v1823
        %v2740 = vpack.c.b16 %v1828, %v1824
        %v2741 = vpack.c.b16 %v1833, %v1829
        %v2742 = vpack.c.b16 %v1834, %v1830
        %v2743 = vpack.c.b16 %v1835, %v1831
        %v2744 = vpack.c.b16 %v1836, %v1832
        %v2745 = vpack.c.b16 %v1841, %v1837
        %v2746 = vpack.c.b16 %v1842, %v1838
        %v2747 = vpack.c.b16 %v1843, %v1839
        %v2748 = vpack.c.b16 %v1844, %v1840
        %v2749 = vpack.c.b16 %v1849, %v1845
        %v2750 = vpack.c.b16 %v1850, %v1846
        %v2751 = vpack.c.b16 %v1851, %v1847
        %v2752 = vpack.c.b16 %v1852, %v1848
        %v2753 = vpack.c.b16 %v1857, %v1853
        %v2754 = vpack.c.b16 %v1858, %v1854
        %v2755 = vpack.c.b16 %v1859, %v1855
        %v2756 = vpack.c.b16 %v1860, %v1856
        %v2757 = vpack.c.b16 %v1865, %v1861
        %v2758 = vpack.c.b16 %v1866, %v1862
        %v2759 = vpack.c.b16 %v1867, %v1863
        %v2760 = vpack.c.b16 %v1868, %v1864
        %v2761 = vpack.c.b16 %v1873, %v1869
        %v2762 = vpack.c.b16 %v1874, %v1870
        %v2763 = vpack.c.b16 %v1875, %v1871
        %v2764 = vpack.c.b16 %v1876, %v1872
        %v2765 = vpack.c.b16 %v1881, %v1877
        %v2766 = vpack.c.b16 %v1882, %v1878
        %v2767 = vpack.c.b16 %v1883, %v1879
        %v2768 = vpack.c.b16 %v1884, %v1880
        %v2769 = vpack.c.b16 %v1889, %v1885
        %v2770 = vpack.c.b16 %v1890, %v1886
        %v2771 = vpack.c.b16 %v1891, %v1887
        %v2772 = vpack.c.b16 %v1892, %v1888
        %v2773 = vpack.c.b16 %v1897, %v1893
        %v2774 = vpack.c.b16 %v1898, %v1894
        %v2775 = vpack.c.b16 %v1899, %v1895
        %v2776 = vpack.c.b16 %v1900, %v1896
        %v2777 = vpack.c.b16 %v1905, %v1901
        %v2778 = vpack.c.b16 %v1906, %v1902
        %v2779 = vpack.c.b16 %v1907, %v1903
        %v2780 = vpack.c.b16 %v1908, %v1904
        %v2781 = vpack.c.b16 %v1913, %v1909
        %v2782 = vpack.c.b16 %v1914, %v1910
        %v2783 = vpack.c.b16 %v1915, %v1911
        %v2784 = vpack.c.b16 %v1916, %v1912
        %v2785 = vpack.c.b16 %v1921, %v1917
        %v2786 = vpack.c.b16 %v1922, %v1918
        %v2787 = vpack.c.b16 %v1923, %v1919
        %v2788 = vpack.c.b16 %v1924, %v1920
        %v2789 = vpack.c.b16 %v1929, %v1925
        %v2790 = vpack.c.b16 %v1930, %v1926
        %v2791 = vpack.c.b16 %v1931, %v1927
        %v2792 = vpack.c.b16 %v1932, %v1928
        %v2793 = vpack.c.b16 %v1937, %v1933
        %v2794 = vpack.c.b16 %v1938, %v1934
        %v2795 = vpack.c.b16 %v1939, %v1935
        %v2796 = vpack.c.b16 %v1940, %v1936
        %v2797 = vpack.c.b16 %v1945, %v1941
        %v2798 = vpack.c.b16 %v1946, %v1942
        %v2799 = vpack.c.b16 %v1947, %v1943
        %v2800 = vpack.c.b16 %v1948, %v1944
        %v2801 = vpack.c.b16 %v1953, %v1949
        %v2802 = vpack.c.b16 %v1954, %v1950
        %v2803 = vpack.c.b16 %v1955, %v1951
        %v2804 = vpack.c.b16 %v1956, %v1952
        %v2805 = vpack.c.b16 %v1961, %v1957
        %v2806 = vpack.c.b16 %v1962, %v1958
        %v2807 = vpack.c.b16 %v1963, %v1959
        %v2808 = vpack.c.b16 %v1964, %v1960
        %v2809 = vpack.c.b16 %v1969, %v1965
        %v2810 = vpack.c.b16 %v1970, %v1966
        %v2811 = vpack.c.b16 %v1971, %v1967
        %v2812 = vpack.c.b16 %v1972, %v1968
        %v2813 = vpack.c.b16 %v1977, %v1973
        %v2814 = vpack.c.b16 %v1978, %v1974
        %v2815 = vpack.c.b16 %v1979, %v1975
        %v2816 = vpack.c.b16 %v1980, %v1976
        %v2817 = vpack.c.b16 %v1985, %v1981
        %v2818 = vpack.c.b16 %v1986, %v1982
        %v2819 = vpack.c.b16 %v1987, %v1983
        %v2820 = vpack.c.b16 %v1988, %v1984
        %v2821 = vpack.c.b16 %v1993, %v1989
        %v2822 = vpack.c.b16 %v1994, %v1990
        %v2823 = vpack.c.b16 %v1995, %v1991
        %v2824 = vpack.c.b16 %v1996, %v1992
        %v2825 = vpack.c.b16 %v2001, %v1997
        %v2826 = vpack.c.b16 %v2002, %v1998
        %v2827 = vpack.c.b16 %v2003, %v1999
        %v2828 = vpack.c.b16 %v2004, %v2000
        %v2829 = vpack.c.b16 %v2009, %v2005
        %v2830 = vpack.c.b16 %v2010, %v2006
        %v2831 = vpack.c.b16 %v2011, %v2007
        %v2832 = vpack.c.b16 %v2012, %v2008
        %v2833 = vpack.c.b16 %v2017, %v2013
        %v2834 = vpack.c.b16 %v2018, %v2014
        %v2835 = vpack.c.b16 %v2019, %v2015
        %v2836 = vpack.c.b16 %v2020, %v2016
        %v2837 = vpack.c.b16 %v2025, %v2021
        %v2838 = vpack.c.b16 %v2026, %v2022
        %v2839 = vpack.c.b16 %v2027, %v2023
        %v2840 = vpack.c.b16 %v2028, %v2024
        %v2841 = vpack.c.b16 %v2033, %v2029
        %v2842 = vpack.c.b16 %v2034, %v2030
        %v2843 = vpack.c.b16 %v2035, %v2031
        %v2844 = vpack.c.b16 %v2036, %v2032
        %v2845 = vpack.c.b16 %v2041, %v2037
        %v2846 = vpack.c.b16 %v2042, %v2038
        %v2847 = vpack.c.b16 %v2043, %v2039
        %v2848 = vpack.c.b16 %v2044, %v2040
        %v2849 = vpack.c.b16 %v2049, %v2045
        %v2850 = vpack.c.b16 %v2050, %v2046
        %v2851 = vpack.c.b16 %v2051, %v2047
        %v2852 = vpack.c.b16 %v2052, %v2048
        %v2853 = vpack.c.b16 %v2057, %v2053
        %v2854 = vpack.c.b16 %v2058, %v2054
        %v2855 = vpack.c.b16 %v2059, %v2055
        %v2856 = vpack.c.b16 %v2060, %v2056
        %v2857 = vpack.c.b16 %v2065, %v2061
        %v2858 = vpack.c.b16 %v2066, %v2062
        %v2859 = vpack.c.b16 %v2067, %v2063
        %v2860 = vpack.c.b16 %v2068, %v2064
        %v2861 = vpack.c.b16 %v2073, %v2069
        %v2862 = vpack.c.b16 %v2074, %v2070
        %v2863 = vpack.c.b16 %v2075, %v2071
        %v2864 = vpack.c.b16 %v2076, %v2072
        %v2865 = vpack.c.b16 %v2081, %v2077
        %v2866 = vpack.c.b16 %v2082, %v2078
        %v2867 = vpack.c.b16 %v2083, %v2079
        %v2868 = vpack.c.b16 %v2084, %v2080
        %v2869 = vpack.c.b16 %v2089, %v2085
        %v2870 = vpack.c.b16 %v2090, %v2086
        %v2871 = vpack.c.b16 %v2091, %v2087
        %v2872 = vpack.c.b16 %v2092, %v2088
        %v2873 = vpack.c.b16 %v2097, %v2093
        %v2874 = vpack.c.b16 %v2098, %v2094
        %v2875 = vpack.c.b16 %v2099, %v2095
        %v2876 = vpack.c.b16 %v2100, %v2096
        %v2877 = vpack.c.b16 %v2105, %v2101
        %v2878 = vpack.c.b16 %v2106, %v2102
        %v2879 = vpack.c.b16 %v2107, %v2103
        %v2880 = vpack.c.b16 %v2108, %v2104
        %v2881 = vpack.c.b16 %v2113, %v2109
        %v2882 = vpack.c.b16 %v2114, %v2110
        %v2883 = vpack.c.b16 %v2115, %v2111
        %v2884 = vpack.c.b16 %v2116, %v2112
        %v2885 = vpack.c.b16 %v2121, %v2117
        %v2886 = vpack.c.b16 %v2122, %v2118
        %v2887 = vpack.c.b16 %v2123, %v2119
        %v2888 = vpack.c.b16 %v2124, %v2120
        %v2889 = vpack.c.b16 %v2129, %v2125
        %v2890 = vpack.c.b16 %v2130, %v2126
        %v2891 = vpack.c.b16 %v2131, %v2127
        %v2892 = vpack.c.b16 %v2132, %v2128
        %v2893 = vpack.c.b16 %v2137, %v2133
        %v2894 = vpack.c.b16 %v2138, %v2134
        %v2895 = vpack.c.b16 %v2139, %v2135
        %v2896 = vpack.c.b16 %v2140, %v2136
        %v2897 = vpack.c.b16 %v2145, %v2141
        %v2898 = vpack.c.b16 %v2146, %v2142
        %v2899 = vpack.c.b16 %v2147, %v2143
        %v2900 = vpack.c.b16 %v2148, %v2144
        %v2901 = vpack.c.b16 %v2153, %v2149
        %v2902 = vpack.c.b16 %v2154, %v2150
        %v2903 = vpack.c.b16 %v2155, %v2151
        %v2904 = vpack.c.b16 %v2156, %v2152
        %v2905 = vpack.c.b16 %v2161, %v2157
        %v2906 = vpack.c.b16 %v2162, %v2158
        %v2907 = vpack.c.b16 %v2163, %v2159
        %v2908 = vpack.c.b16 %v2164, %v2160
        %v2909 = vpack.c.b16 %v2169, %v2165
        %v2910 = vpack.c.b16 %v2170, %v2166
        %v2911 = vpack.c.b16 %v2171, %v2167
        %v2912 = vpack.c.b16 %v2172, %v2168
        %v2913 = vpack.c.b16 %v2177, %v2173
        %v2914 = vpack.c.b16 %v2178, %v2174
        %v2915 = vpack.c.b16 %v2179, %v2175
        %v2916 = vpack.c.b16 %v2180, %v2176
        %v2917 = vpack.c.b16 %v2185, %v2181
        %v2918 = vpack.c.b16 %v2186, %v2182
        %v2919 = vpack.c.b16 %v2187, %v2183
        %v2920 = vpack.c.b16 %v2188, %v2184
        %v2921 = vpack.c.b16 %v2193, %v2189
        %v2922 = vpack.c.b16 %v2194, %v2190
        %v2923 = vpack.c.b16 %v2195, %v2191
        %v2924 = vpack.c.b16 %v2196, %v2192
        %v2925 = vpack.c.b16 %v2201, %v2197
        %v2926 = vpack.c.b16 %v2202, %v2198
        %v2927 = vpack.c.b16 %v2203, %v2199
        %v2928 = vpack.c.b16 %v2204, %v2200
        %v2929 = vpack.c.b16 %v2209, %v2205
        %v2930 = vpack.c.b16 %v2210, %v2206
        %v2931 = vpack.c.b16 %v2211, %v2207
        %v2932 = vpack.c.b16 %v2212, %v2208
        %v2933 = vpack.c.b16 %v2217, %v2213
        %v2934 = vpack.c.b16 %v2218, %v2214
        %v2935 = vpack.c.b16 %v2219, %v2215
        %v2936 = vpack.c.b16 %v2220, %v2216
        %v2937 = vpack.c.b16 %v2225, %v2221
        %v2938 = vpack.c.b16 %v2226, %v2222
        %v2939 = vpack.c.b16 %v2227, %v2223
        %v2940 = vpack.c.b16 %v2228, %v2224
        %v2941 = vpack.c.b16 %v2233, %v2229
        %v2942 = vpack.c.b16 %v2234, %v2230
        %v2943 = vpack.c.b16 %v2235, %v2231
        %v2944 = vpack.c.b16 %v2236, %v2232
        %v2945 = vpack.c.b16 %v2241, %v2237
        %v2946 = vpack.c.b16 %v2242, %v2238
        %v2947 = vpack.c.b16 %v2243, %v2239
        %v2948 = vpack.c.b16 %v2244, %v2240
        %v2949 = vpack.c.b16 %v2249, %v2245
        %v2950 = vpack.c.b16 %v2250, %v2246
        %v2951 = vpack.c.b16 %v2251, %v2247
        %v2952 = vpack.c.b16 %v2252, %v2248
        %v2953 = vpack.c.b16 %v2257, %v2253
        %v2954 = vpack.c.b16 %v2258, %v2254
        %v2955 = vpack.c.b16 %v2259, %v2255
        %v2956 = vpack.c.b16 %v2260, %v2256
        %v2957 = vpack.c.b16 %v2265, %v2261
        %v2958 = vpack.c.b16 %v2266, %v2262
        %v2959 = vpack.c.b16 %v2267, %v2263
        %v2960 = vpack.c.b16 %v2268, %v2264
        %v2961 = vpack.c.b16 %v2273, %v2269
        %v2962 = vpack.c.b16 %v2274, %v2270
        %v2963 = vpack.c.b16 %v2275, %v2271
        %v2964 = vpack.c.b16 %v2276, %v2272
        %v2965 = vpack.c.b16 %v2281, %v2277
        %v2966 = vpack.c.b16 %v2282, %v2278
        %v2967 = vpack.c.b16 %v2283, %v2279
        %v2968 = vpack.c.b16 %v2284, %v2280
        %v2969 = vpack.c.b16 %v2289, %v2285
        %v2970 = vpack.c.b16 %v2290, %v2286
        %v2971 = vpack.c.b16 %v2291, %v2287
        %v2972 = vpack.c.b16 %v2292, %v2288
        %v2973 = vpack.c.b16 %v2297, %v2293
        %v2974 = vpack.c.b16 %v2298, %v2294
        %v2975 = vpack.c.b16 %v2299, %v2295
        %v2976 = vpack.c.b16 %v2300, %v2296
        %v2977 = vpack.c.b16 %v2305, %v2301
        %v2978 = vpack.c.b16 %v2306, %v2302
        %v2979 = vpack.c.b16 %v2307, %v2303
        %v2980 = vpack.c.b16 %v2308, %v2304
        %v2981 = vpack.c.b16 %v2313, %v2309
        %v2982 = vpack.c.b16 %v2314, %v2310
        %v2983 = vpack.c.b16 %v2315, %v2311
        %v2984 = vpack.c.b16 %v2316, %v2312
        %v2985 = vpack.c.b16 %v2321, %v2317
        %v2986 = vpack.c.b16 %v2322, %v2318
        %v2987 = vpack.c.b16 %v2323, %v2319
        %v2988 = vpack.c.b16 %v2324, %v2320
        %v2989 = vpack.c.b16 %v2329, %v2325
        %v2990 = vpack.c.b16 %v2330, %v2326
        %v2991 = vpack.c.b16 %v2331, %v2327
        %v2992 = vpack.c.b16 %v2332, %v2328
        %v2993 = vpack.c.b16 %v2337, %v2333
        %v2994 = vpack.c.b16 %v2338, %v2334
        %v2995 = vpack.c.b16 %v2339, %v2335
        %v2996 = vpack.c.b16 %v2340, %v2336
        %v2997 = vpack.c.b16 %v2345, %v2341
        %v2998 = vpack.c.b16 %v2346, %v2342
        %v2999 = vpack.c.b16 %v2347, %v2343
        %v3000 = vpack.c.b16 %v2348, %v2344
        %v3001 = vpack.c.b16 %v2353, %v2349
        %v3002 = vpack.c.b16 %v2354, %v2350
        %v3003 = vpack.c.b16 %v2355, %v2351
        %v3004 = vpack.c.b16 %v2356, %v2352
        %v3005 = vpack.c.b16 %v2361, %v2357
        %v3006 = vpack.c.b16 %v2362, %v2358
        %v3007 = vpack.c.b16 %v2363, %v2359
        %v3008 = vpack.c.b16 %v2364, %v2360
        %v3009 = vpack.c.b16 %v2369, %v2365
        %v3010 = vpack.c.b16 %v2370, %v2366
        %v3011 = vpack.c.b16 %v2371, %v2367
        %v3012 = vpack.c.b16 %v2372, %v2368
        %v3013 = vpack.c.b16 %v2377, %v2373
        %v3014 = vpack.c.b16 %v2378, %v2374
        %v3015 = vpack.c.b16 %v2379, %v2375
        %v3016 = vpack.c.b16 %v2380, %v2376
        %v3017 = vpack.c.b16 %v2385, %v2381
        %v3018 = vpack.c.b16 %v2386, %v2382
        %v3019 = vpack.c.b16 %v2387, %v2383
        %v3020 = vpack.c.b16 %v2388, %v2384
        %v3021 = vpack.c.b16 %v2393, %v2389
        %v3022 = vpack.c.b16 %v2394, %v2390
        %v3023 = vpack.c.b16 %v2395, %v2391
        %v3024 = vpack.c.b16 %v2396, %v2392
        %v3025 = vpack.c.b16 %v2401, %v2397
        %v3026 = vpack.c.b16 %v2402, %v2398
        %v3027 = vpack.c.b16 %v2403, %v2399
        %v3028 = vpack.c.b16 %v2404, %v2400
        %v3029 = vpack.c.b16 %v2409, %v2405
        %v3030 = vpack.c.b16 %v2410, %v2406
        %v3031 = vpack.c.b16 %v2411, %v2407
        %v3032 = vpack.c.b16 %v2412, %v2408
        %v3033 = vpack.c.b16 %v2417, %v2413
        %v3034 = vpack.c.b16 %v2418, %v2414
        %v3035 = vpack.c.b16 %v2419, %v2415
        %v3036 = vpack.c.b16 %v2420, %v2416
        %v3037 = vpack.c.b16 %v2425, %v2421
        %v3038 = vpack.c.b16 %v2426, %v2422
        %v3039 = vpack.c.b16 %v2427, %v2423
        %v3040 = vpack.c.b16 %v2428, %v2424
        %v3041 = vpack.c.b16 %v2433, %v2429
        %v3042 = vpack.c.b16 %v2434, %v2430
        %v3043 = vpack.c.b16 %v2435, %v2431
        %v3044 = vpack.c.b16 %v2436, %v2432
        %v3045 = vpack.c.b16 %v2441, %v2437
        %v3046 = vpack.c.b16 %v2442, %v2438
        %v3047 = vpack.c.b16 %v2443, %v2439
        %v3048 = vpack.c.b16 %v2444, %v2440
        %v3049 = vpack.c.b16 %v2449, %v2445
        %v3050 = vpack.c.b16 %v2450, %v2446
        %v3051 = vpack.c.b16 %v2451, %v2447
        %v3052 = vpack.c.b16 %v2452, %v2448
        %v3053 = vpack.c.b16 %v2457, %v2453
        %v3054 = vpack.c.b16 %v2458, %v2454
        %v3055 = vpack.c.b16 %v2459, %v2455
        %v3056 = vpack.c.b16 %v2460, %v2456
        %v3057 = vpack.c.b16 %v2465, %v2461
        %v3058 = vpack.c.b16 %v2466, %v2462
        %v3059 = vpack.c.b16 %v2467, %v2463
        %v3060 = vpack.c.b16 %v2468, %v2464
        %v3061 = vpack.c.b16 %v2473, %v2469
        %v3062 = vpack.c.b16 %v2474, %v2470
        %v3063 = vpack.c.b16 %v2475, %v2471
        %v3064 = vpack.c.b16 %v2476, %v2472
        %v3065 = vpack.c.b16 %v2481, %v2477
        %v3066 = vpack.c.b16 %v2482, %v2478
        %v3067 = vpack.c.b16 %v2483, %v2479
        %v3068 = vpack.c.b16 %v2484, %v2480
        %v3069 = vpack.c.b16 %v2489, %v2485
        %v3070 = vpack.c.b16 %v2490, %v2486
        %v3071 = vpack.c.b16 %v2491, %v2487
        %v3072 = vpack.c.b16 %v2492, %v2488
        %v3073 = vpack.c.b16 %v2497, %v2493
        %v3074 = vpack.c.b16 %v2498, %v2494
        %v3075 = vpack.c.b16 %v2499, %v2495
        %v3076 = vpack.c.b16 %v2500, %v2496
        %v3077 = vpack.c.b16 %v2505, %v2501
        %v3078 = vpack.c.b16 %v2506, %v2502
        %v3079 = vpack.c.b16 %v2507, %v2503
        %v3080 = vpack.c.b16 %v2508, %v2504
        %v3081 = vpack.c.b16 %v2513, %v2509
        %v3082 = vpack.c.b16 %v2514, %v2510
        %v3083 = vpack.c.b16 %v2515, %v2511
        %v3084 = vpack.c.b16 %v2516, %v2512
        %v3085 = vpack.c.b16 %v2521, %v2517
        %v3086 = vpack.c.b16 %v2522, %v2518
        %v3087 = vpack.c.b16 %v2523, %v2519
        %v3088 = vpack.c.b16 %v2524, %v2520
        %v3089 = vpack.c.b16 %v2529, %v2525
        %v3090 = vpack.c.b16 %v2530, %v2526
        %v3091 = vpack.c.b16 %v2531, %v2527
        %v3092 = vpack.c.b16 %v2532, %v2528
        %v3093 = vpack.c.b16 %v2537, %v2533
        %v3094 = vpack.c.b16 %v2538, %v2534
        %v3095 = vpack.c.b16 %v2539, %v2535
        %v3096 = vpack.c.b16 %v2540, %v2536
        %v3097 = vpack.c.b16 %v2545, %v2541
        %v3098 = vpack.c.b16 %v2546, %v2542
        %v3099 = vpack.c.b16 %v2547, %v2543
        %v3100 = vpack.c.b16 %v2548, %v2544
        %v3101 = vpack.c.b16 %v2553, %v2549
        %v3102 = vpack.c.b16 %v2554, %v2550
        %v3103 = vpack.c.b16 %v2555, %v2551
        %v3104 = vpack.c.b16 %v2556, %v2552
        %v3105 = vpack.c.b16 %v2561, %v2557
        %v3106 = vpack.c.b16 %v2562, %v2558
        %v3107 = vpack.c.b16 %v2563, %v2559
        %v3108 = vpack.c.b16 %v2564, %v2560
        %v3109 = vpack.c.b16 %v2569, %v2565
        %v3110 = vpack.c.b16 %v2570, %v2566
        %v3111 = vpack.c.b16 %v2571, %v2567
        %v3112 = vpack.c.b16 %v2572, %v2568
        %v3113 = vpack.c.b16 %v2577, %v2573
        %v3114 = vpack.c.b16 %v2578, %v2574
        %v3115 = vpack.c.b16 %v2579, %v2575
        %v3116 = vpack.c.b16 %v2580, %v2576
        %v3117 = vpack.c.b16 %v2585, %v2581
        %v3118 = vpack.c.b16 %v2586, %v2582
        %v3119 = vpack.c.b16 %v2587, %v2583
        %v3120 = vpack.c.b16 %v2588, %v2584
        %v3121 = vpack.c.b16 %v2593, %v2589
        %v3122 = vpack.c.b16 %v2594, %v2590
        %v3123 = vpack.c.b16 %v2595, %v2591
        %v3124 = vpack.c.b16 %v2596, %v2592
        %v3125 = vpack.c.b16 %v2601, %v2597
        %v3126 = vpack.c.b16 %v2602, %v2598
        %v3127 = vpack.c.b16 %v2603, %v2599
        %v3128 = vpack.c.b16 %v2604, %v2600
        %v3129 = vpack.c.b16 %v2609, %v2605
        %v3130 = vpack.c.b16 %v2610, %v2606
        %v3131 = vpack.c.b16 %v2611, %v2607
        %v3132 = vpack.c.b16 %v2612, %v2608
        %v3133 = vpack.c.b16 %v2617, %v2613
        %v3134 = vpack.c.b16 %v2618, %v2614
        %v3135 = vpack.c.b16 %v2619, %v2615
        %v3136 = vpack.c.b16 %v2620, %v2616
        %v3137 = vpack.c.b16 %v2625, %v2621
        %v3138 = vpack.c.b16 %v2626, %v2622
        %v3139 = vpack.c.b16 %v2627, %v2623
        %v3140 = vpack.c.b16 %v2628, %v2624
        %3653 = vmatprep.subr.bf16.mxu0 %v2630
        %3654 = vmatpush1.bf16.msra.mxu0 %v2629
        %3655 = vmatprep.subr.bf16.mxu0 %v2634
        %3656 = vmatpush1.bf16.msra.mxu0 %v2633
        %3657 = vmatprep.subr.bf16.mxu0 %v2638
        %3658 = vmatpush1.bf16.msra.mxu0 %v2637
        %3659 = vmatprep.subr.bf16.mxu0 %v2642
        %3660 = vmatpush1.bf16.msra.mxu0 %v2641
        %3661 = vmatprep.subr.bf16.mxu0 %v2646
        %3662 = vmatpush1.bf16.msra.mxu0 %v2645
        %3663 = vmatprep.subr.bf16.mxu0 %v2650
        %3664 = vmatpush1.bf16.msra.mxu0 %v2649
        %3665 = vmatprep.subr.bf16.mxu0 %v2654
        %3666 = vmatpush1.bf16.msra.mxu0 %v2653
        %3667 = vmatprep.subr.bf16.mxu0 %v2658
        %3668 = vmatpush1.bf16.msra.mxu0 %v2657
        %3669 = vmatprep.subr.bf16.mxu0 %v2662
        %3670 = vmatpush1.bf16.msra.mxu0 %v2661
        %3671 = vmatprep.subr.bf16.mxu0 %v2666
        %3672 = vmatpush1.bf16.msra.mxu0 %v2665
        %3673 = vmatprep.subr.bf16.mxu0 %v2670
        %3674 = vmatpush1.bf16.msra.mxu0 %v2669
        %3675 = vmatprep.subr.bf16.mxu0 %v2674
        %3676 = vmatpush1.bf16.msra.mxu0 %v2673
        %3677 = vmatprep.subr.bf16.mxu0 %v2678
        %3678 = vmatpush1.bf16.msra.mxu0 %v2677
        %3679 = vmatprep.subr.bf16.mxu0 %v2682
        %3680 = vmatpush1.bf16.msra.mxu0 %v2681
        %3681 = vmatprep.subr.bf16.mxu0 %v2686
        %3682 = vmatpush1.bf16.msra.mxu0 %v2685
        %3683 = vmatprep.subr.bf16.mxu0 %v2690
        %3684 = vmatpush1.bf16.msra.mxu0 %v2689
        %3685 = vmatprep.mubr.bf16.mxu0 %v1030
        %3686 = vmatmul.mubr.bf16.gmra.mrb[0].mxu0 %v1029
        %v3687 = vpop.f32.mrb[0].mxu0
        %v3688 = vadd.f32 %v940, %v3687
        %v3689 = vpop.f32.mrb[0].mxu0
        %v3690 = vadd.f32 %v944, %v3689
        %v3691 = vpop.f32.mrb[0].mxu0
        %v3692 = vadd.f32 %v940, %v3691
        %v3693 = vpop.f32.mrb[0].mxu0
        %v3694 = vadd.f32 %v944, %v3693
        %3695 = vmatprep.mubr.bf16.mxu0 %v1046
        %3696 = vmatmul.mubr.bf16.gmra.mrb[0].mxu0 %v1045
        %v3697 = vpop.f32.mrb[0].mxu0
        %v3698 = vadd.f32 %v940, %v3697
        %v3699 = vpop.f32.mrb[0].mxu0
        %v3700 = vadd.f32 %v944, %v3699
        %v3701 = vpop.f32.mrb[0].mxu0
        %v3702 = vpop.f32.mrb[0].mxu0
        %3703 = vdwg.mxu0
        %3704 = vmatprep.subr.bf16.mxu0 %v2694
        %3705 = vmatpush1.bf16.msra.mxu0 %v2693
        %3706 = vmatprep.subr.bf16.mxu0 %v2698
        %3707 = vmatpush1.bf16.msra.mxu0 %v2697
        %3708 = vmatprep.subr.bf16.mxu0 %v2702
        %3709 = vmatpush1.bf16.msra.mxu0 %v2701
        %3710 = vmatprep.subr.bf16.mxu0 %v2706
        %3711 = vmatpush1.bf16.msra.mxu0 %v2705
        %3712 = vmatprep.subr.bf16.mxu0 %v2710
        %3713 = vmatpush1.bf16.msra.mxu0 %v2709
        %3714 = vmatprep.subr.bf16.mxu0 %v2714
        %3715 = vmatpush1.bf16.msra.mxu0 %v2713
        %3716 = vmatprep.subr.bf16.mxu0 %v2718
        %3717 = vmatpush1.bf16.msra.mxu0 %v2717
        %3718 = vmatprep.subr.bf16.mxu0 %v2722
        %3719 = vmatpush1.bf16.msra.mxu0 %v2721
        %3720 = vmatprep.subr.bf16.mxu0 %v2726
        %3721 = vmatpush1.bf16.msra.mxu0 %v2725
        %3722 = vmatprep.subr.bf16.mxu0 %v2730
        %3723 = vmatpush1.bf16.msra.mxu0 %v2729
        %3724 = vmatprep.subr.bf16.mxu0 %v2734
        %3725 = vmatpush1.bf16.msra.mxu0 %v2733
        %3726 = vmatprep.subr.bf16.mxu0 %v2738
        %3727 = vmatpush1.bf16.msra.mxu0 %v2737
        %3728 = vmatprep.subr.bf16.mxu0 %v2742
        %3729 = vmatpush1.bf16.msra.mxu0 %v2741
        %3730 = vmatprep.subr.bf16.mxu0 %v2746
        %3731 = vmatpush1.bf16.msra.mxu0 %v2745
        %3732 = vmatprep.subr.bf16.mxu0 %v2750
        %3733 = vmatpush1.bf16.msra.mxu0 %v2749
        %3734 = vmatprep.subr.bf16.mxu0 %v2754
        %3735 = vmatpush1.bf16.msra.mxu0 %v2753
        %3736 = vmatprep.mubr.bf16.mxu0 %v1032
        %3737 = vmatmul.mubr.bf16.gmra.mrb[0].mxu0 %v1031
        %v3738 = vpop.f32.mrb[0].mxu0
        %v3739 = vadd.f32 %v3688, %v3738
        %v3740 = vpop.f32.mrb[0].mxu0
        %v3741 = vadd.f32 %v3690, %v3740
        %v3742 = vpop.f32.mrb[0].mxu0
        %v3743 = vadd.f32 %v3692, %v3742
        %v3744 = vpop.f32.mrb[0].mxu0
        %v3745 = vadd.f32 %v3694, %v3744
        %3746 = vmatprep.mubr.bf16.mxu0 %v1048
        %3747 = vmatmul.mubr.bf16.gmra.mrb[0].mxu0 %v1047
        %v3748 = vpop.f32.mrb[0].mxu0
        %v3749 = vadd.f32 %v3698, %v3748
        %v3750 = vpop.f32.mrb[0].mxu0
        %v3751 = vadd.f32 %v3700, %v3750
        %v3752 = vpop.f32.mrb[0].mxu0
        %v3753 = vpop.f32.mrb[0].mxu0
        %3754 = vdwg.mxu0
        %3755 = vmatprep.subr.bf16.mxu0 %v2758
        %3756 = vmatpush1.bf16.msra.mxu0 %v2757
        %3757 = vmatprep.subr.bf16.mxu0 %v2762
        %3758 = vmatpush1.bf16.msra.mxu0 %v2761
        %3759 = vmatprep.subr.bf16.mxu0 %v2766
        %3760 = vmatpush1.bf16.msra.mxu0 %v2765
        %3761 = vmatprep.subr.bf16.mxu0 %v2770
        %3762 = vmatpush1.bf16.msra.mxu0 %v2769
        %3763 = vmatprep.subr.bf16.mxu0 %v2774
        %3764 = vmatpush1.bf16.msra.mxu0 %v2773
        %3765 = vmatprep.subr.bf16.mxu0 %v2778
        %3766 = vmatpush1.bf16.msra.mxu0 %v2777
        %3767 = vmatprep.subr.bf16.mxu0 %v2782
        %3768 = vmatpush1.bf16.msra.mxu0 %v2781
        %3769 = vmatprep.subr.bf16.mxu0 %v2786
        %3770 = vmatpush1.bf16.msra.mxu0 %v2785
        %3771 = vmatprep.subr.bf16.mxu0 %v2790
        %3772 = vmatpush1.bf16.msra.mxu0 %v2789
        %3773 = vmatprep.subr.bf16.mxu0 %v2794
        %3774 = vmatpush1.bf16.msra.mxu0 %v2793
        %3775 = vmatprep.subr.bf16.mxu0 %v2798
        %3776 = vmatpush1.bf16.msra.mxu0 %v2797
        %3777 = vmatprep.subr.bf16.mxu0 %v2802
        %3778 = vmatpush1.bf16.msra.mxu0 %v2801
        %3779 = vmatprep.subr.bf16.mxu0 %v2806
        %3780 = vmatpush1.bf16.msra.mxu0 %v2805
        %3781 = vmatprep.subr.bf16.mxu0 %v2810
        %3782 = vmatpush1.bf16.msra.mxu0 %v2809
        %3783 = vmatprep.subr.bf16.mxu0 %v2814
        %3784 = vmatpush1.bf16.msra.mxu0 %v2813
        %3785 = vmatprep.subr.bf16.mxu0 %v2818
        %3786 = vmatpush1.bf16.msra.mxu0 %v2817
        %3787 = vmatprep.mubr.bf16.mxu0 %v1034
        %3788 = vmatmul.mubr.bf16.gmra.mrb[0].mxu0 %v1033
        %v3789 = vpop.f32.mrb[0].mxu0
        %v3790 = vadd.f32 %v3739, %v3789
        %v3791 = vpop.f32.mrb[0].mxu0
        %v3792 = vadd.f32 %v3741, %v3791
        %v3793 = vpop.f32.mrb[0].mxu0
        %v3794 = vadd.f32 %v3743, %v3793
        %v3795 = vpop.f32.mrb[0].mxu0
        %v3796 = vadd.f32 %v3745, %v3795
        %3797 = vmatprep.mubr.bf16.mxu0 %v1050
        %3798 = vmatmul.mubr.bf16.gmra.mrb[0].mxu0 %v1049
        %v3799 = vpop.f32.mrb[0].mxu0
        %v3800 = vadd.f32 %v3749, %v3799
        %v3801 = vpop.f32.mrb[0].mxu0
        %v3802 = vadd.f32 %v3751, %v3801
        %v3803 = vpop.f32.mrb[0].mxu0
        %v3804 = vpop.f32.mrb[0].mxu0
        %3805 = vdwg.mxu0
        %3806 = vmatprep.subr.bf16.mxu0 %v2822
        %3807 = vmatpush1.bf16.msra.mxu0 %v2821
        %3808 = vmatprep.subr.bf16.mxu0 %v2826
        %3809 = vmatpush1.bf16.msra.mxu0 %v2825
        %3810 = vmatprep.subr.bf16.mxu0 %v2830
        %3811 = vmatpush1.bf16.msra.mxu0 %v2829
        %3812 = vmatprep.subr.bf16.mxu0 %v2834
        %3813 = vmatpush1.bf16.msra.mxu0 %v2833
        %3814 = vmatprep.subr.bf16.mxu0 %v2838
        %3815 = vmatpush1.bf16.msra.mxu0 %v2837
        %3816 = vmatprep.subr.bf16.mxu0 %v2842
        %3817 = vmatpush1.bf16.msra.mxu0 %v2841
        %3818 = vmatprep.subr.bf16.mxu0 %v2846
        %3819 = vmatpush1.bf16.msra.mxu0 %v2845
        %3820 = vmatprep.subr.bf16.mxu0 %v2850
        %3821 = vmatpush1.bf16.msra.mxu0 %v2849
        %3822 = vmatprep.subr.bf16.mxu0 %v2854
        %3823 = vmatpush1.bf16.msra.mxu0 %v2853
        %3824 = vmatprep.subr.bf16.mxu0 %v2858
        %3825 = vmatpush1.bf16.msra.mxu0 %v2857
        %3826 = vmatprep.subr.bf16.mxu0 %v2862
        %3827 = vmatpush1.bf16.msra.mxu0 %v2861
        %3828 = vmatprep.subr.bf16.mxu0 %v2866
        %3829 = vmatpush1.bf16.msra.mxu0 %v2865
        %3830 = vmatprep.subr.bf16.mxu0 %v2870
        %3831 = vmatpush1.bf16.msra.mxu0 %v2869
        %3832 = vmatprep.subr.bf16.mxu0 %v2874
        %3833 = vmatpush1.bf16.msra.mxu0 %v2873
        %3834 = vmatprep.subr.bf16.mxu0 %v2878
        %3835 = vmatpush1.bf16.msra.mxu0 %v2877
        %3836 = vmatprep.subr.bf16.mxu0 %v2882
        %3837 = vmatpush1.bf16.msra.mxu0 %v2881
        %3838 = vmatprep.mubr.bf16.mxu0 %v1036
        %3839 = vmatmul.mubr.bf16.gmra.mrb[0].mxu0 %v1035
        %v3840 = vpop.f32.mrb[0].mxu0
        %v3841 = vadd.f32 %v3790, %v3840
        %v3842 = vpop.f32.mrb[0].mxu0
        %v3843 = vadd.f32 %v3792, %v3842
        %v3844 = vpop.f32.mrb[0].mxu0
        %v3845 = vadd.f32 %v3794, %v3844
        %v3846 = vpop.f32.mrb[0].mxu0
        %v3847 = vadd.f32 %v3796, %v3846
        %3848 = vmatprep.mubr.bf16.mxu0 %v1052
        %3849 = vmatmul.mubr.bf16.gmra.mrb[0].mxu0 %v1051
        %v3850 = vpop.f32.mrb[0].mxu0
        %v3851 = vadd.f32 %v3800, %v3850
        %v3852 = vpop.f32.mrb[0].mxu0
        %v3853 = vadd.f32 %v3802, %v3852
        %v3854 = vpop.f32.mrb[0].mxu0
        %v3855 = vpop.f32.mrb[0].mxu0
        %3856 = vdwg.mxu0
        %3857 = vmatprep.subr.bf16.mxu0 %v2886
        %3858 = vmatpush1.bf16.msra.mxu0 %v2885
        %3859 = vmatprep.subr.bf16.mxu0 %v2890
        %3860 = vmatpush1.bf16.msra.mxu0 %v2889
        %3861 = vmatprep.subr.bf16.mxu0 %v2894
        %3862 = vmatpush1.bf16.msra.mxu0 %v2893
        %3863 = vmatprep.subr.bf16.mxu0 %v2898
        %3864 = vmatpush1.bf16.msra.mxu0 %v2897
        %3865 = vmatprep.subr.bf16.mxu0 %v2902
        %3866 = vmatpush1.bf16.msra.mxu0 %v2901
        %3867 = vmatprep.subr.bf16.mxu0 %v2906
        %3868 = vmatpush1.bf16.msra.mxu0 %v2905
        %3869 = vmatprep.subr.bf16.mxu0 %v2910
        %3870 = vmatpush1.bf16.msra.mxu0 %v2909
        %3871 = vmatprep.subr.bf16.mxu0 %v2914
        %3872 = vmatpush1.bf16.msra.mxu0 %v2913
        %3873 = vmatprep.subr.bf16.mxu0 %v2918
        %3874 = vmatpush1.bf16.msra.mxu0 %v2917
        %3875 = vmatprep.subr.bf16.mxu0 %v2922
        %3876 = vmatpush1.bf16.msra.mxu0 %v2921
        %3877 = vmatprep.subr.bf16.mxu0 %v2926
        %3878 = vmatpush1.bf16.msra.mxu0 %v2925
        %3879 = vmatprep.subr.bf16.mxu0 %v2930
        %3880 = vmatpush1.bf16.msra.mxu0 %v2929
        %3881 = vmatprep.subr.bf16.mxu0 %v2934
        %3882 = vmatpush1.bf16.msra.mxu0 %v2933
        %3883 = vmatprep.subr.bf16.mxu0 %v2938
        %3884 = vmatpush1.bf16.msra.mxu0 %v2937
        %3885 = vmatprep.subr.bf16.mxu0 %v2942
        %3886 = vmatpush1.bf16.msra.mxu0 %v2941
        %3887 = vmatprep.subr.bf16.mxu0 %v2946
        %3888 = vmatpush1.bf16.msra.mxu0 %v2945
        %3889 = vmatprep.mubr.bf16.mxu0 %v1038
        %3890 = vmatmul.mubr.bf16.gmra.mrb[0].mxu0 %v1037
        %v3891 = vpop.f32.mrb[0].mxu0
        %v3892 = vadd.f32 %v3841, %v3891
        %v3893 = vpop.f32.mrb[0].mxu0
        %v3894 = vadd.f32 %v3843, %v3893
        %v3895 = vpop.f32.mrb[0].mxu0
        %v3896 = vadd.f32 %v3845, %v3895
        %v3897 = vpop.f32.mrb[0].mxu0
        %v3898 = vadd.f32 %v3847, %v3897
        %3899 = vmatprep.mubr.bf16.mxu0 %v1054
        %3900 = vmatmul.mubr.bf16.gmra.mrb[0].mxu0 %v1053
        %v3901 = vpop.f32.mrb[0].mxu0
        %v3902 = vadd.f32 %v3851, %v3901
        %v3903 = vpop.f32.mrb[0].mxu0
        %v3904 = vadd.f32 %v3853, %v3903
        %v3905 = vpop.f32.mrb[0].mxu0
        %v3906 = vpop.f32.mrb[0].mxu0
        %3907 = vdwg.mxu0
        %3908 = vmatprep.subr.bf16.mxu0 %v2950
        %3909 = vmatpush1.bf16.msra.mxu0 %v2949
        %3910 = vmatprep.subr.bf16.mxu0 %v2954
        %3911 = vmatpush1.bf16.msra.mxu0 %v2953
        %3912 = vmatprep.subr.bf16.mxu0 %v2958
        %3913 = vmatpush1.bf16.msra.mxu0 %v2957
        %3914 = vmatprep.subr.bf16.mxu0 %v2962
        %3915 = vmatpush1.bf16.msra.mxu0 %v2961
        %3916 = vmatprep.subr.bf16.mxu0 %v2966
        %3917 = vmatpush1.bf16.msra.mxu0 %v2965
        %3918 = vmatprep.subr.bf16.mxu0 %v2970
        %3919 = vmatpush1.bf16.msra.mxu0 %v2969
        %3920 = vmatprep.subr.bf16.mxu0 %v2974
        %3921 = vmatpush1.bf16.msra.mxu0 %v2973
        %3922 = vmatprep.subr.bf16.mxu0 %v2978
        %3923 = vmatpush1.bf16.msra.mxu0 %v2977
        %3924 = vmatprep.subr.bf16.mxu0 %v2982
        %3925 = vmatpush1.bf16.msra.mxu0 %v2981
        %3926 = vmatprep.subr.bf16.mxu0 %v2986
        %3927 = vmatpush1.bf16.msra.mxu0 %v2985
        %3928 = vmatprep.subr.bf16.mxu0 %v2990
        %3929 = vmatpush1.bf16.msra.mxu0 %v2989
        %3930 = vmatprep.subr.bf16.mxu0 %v2994
        %3931 = vmatpush1.bf16.msra.mxu0 %v2993
        %3932 = vmatprep.subr.bf16.mxu0 %v2998
        %3933 = vmatpush1.bf16.msra.mxu0 %v2997
        %3934 = vmatprep.subr.bf16.mxu0 %v3002
        %3935 = vmatpush1.bf16.msra.mxu0 %v3001
        %3936 = vmatprep.subr.bf16.mxu0 %v3006
        %3937 = vmatpush1.bf16.msra.mxu0 %v3005
        %3938 = vmatprep.subr.bf16.mxu0 %v3010
        %3939 = vmatpush1.bf16.msra.mxu0 %v3009
        %3940 = vmatprep.mubr.bf16.mxu0 %v1040
        %3941 = vmatmul.mubr.bf16.gmra.mrb[0].mxu0 %v1039
        %v3942 = vpop.f32.mrb[0].mxu0
        %v3943 = vadd.f32 %v3892, %v3942
        %v3944 = vpop.f32.mrb[0].mxu0
        %v3945 = vadd.f32 %v3894, %v3944
        %v3946 = vpop.f32.mrb[0].mxu0
        %v3947 = vadd.f32 %v3896, %v3946
        %v3948 = vpop.f32.mrb[0].mxu0
        %v3949 = vadd.f32 %v3898, %v3948
        %3950 = vmatprep.mubr.bf16.mxu0 %v1056
        %3951 = vmatmul.mubr.bf16.gmra.mrb[0].mxu0 %v1055
        %v3952 = vpop.f32.mrb[0].mxu0
        %v3953 = vadd.f32 %v3902, %v3952
        %v3954 = vpop.f32.mrb[0].mxu0
        %v3955 = vadd.f32 %v3904, %v3954
        %v3956 = vpop.f32.mrb[0].mxu0
        %v3957 = vpop.f32.mrb[0].mxu0
        %3958 = vdwg.mxu0
        %3959 = vmatprep.subr.bf16.mxu0 %v3014
        %3960 = vmatpush1.bf16.msra.mxu0 %v3013
        %3961 = vmatprep.subr.bf16.mxu0 %v3018
        %3962 = vmatpush1.bf16.msra.mxu0 %v3017
        %3963 = vmatprep.subr.bf16.mxu0 %v3022
        %3964 = vmatpush1.bf16.msra.mxu0 %v3021
        %3965 = vmatprep.subr.bf16.mxu0 %v3026
        %3966 = vmatpush1.bf16.msra.mxu0 %v3025
        %3967 = vmatprep.subr.bf16.mxu0 %v3030
        %3968 = vmatpush1.bf16.msra.mxu0 %v3029
        %3969 = vmatprep.subr.bf16.mxu0 %v3034
        %3970 = vmatpush1.bf16.msra.mxu0 %v3033
        %3971 = vmatprep.subr.bf16.mxu0 %v3038
        %3972 = vmatpush1.bf16.msra.mxu0 %v3037
        %3973 = vmatprep.subr.bf16.mxu0 %v3042
        %3974 = vmatpush1.bf16.msra.mxu0 %v3041
        %3975 = vmatprep.subr.bf16.mxu0 %v3046
        %3976 = vmatpush1.bf16.msra.mxu0 %v3045
        %3977 = vmatprep.subr.bf16.mxu0 %v3050
        %3978 = vmatpush1.bf16.msra.mxu0 %v3049
        %3979 = vmatprep.subr.bf16.mxu0 %v3054
        %3980 = vmatpush1.bf16.msra.mxu0 %v3053
        %3981 = vmatprep.subr.bf16.mxu0 %v3058
        %3982 = vmatpush1.bf16.msra.mxu0 %v3057
        %3983 = vmatprep.subr.bf16.mxu0 %v3062
        %3984 = vmatpush1.bf16.msra.mxu0 %v3061
        %3985 = vmatprep.subr.bf16.mxu0 %v3066
        %3986 = vmatpush1.bf16.msra.mxu0 %v3065
        %3987 = vmatprep.subr.bf16.mxu0 %v3070
        %3988 = vmatpush1.bf16.msra.mxu0 %v3069
        %3989 = vmatprep.subr.bf16.mxu0 %v3074
        %3990 = vmatpush1.bf16.msra.mxu0 %v3073
        %3991 = vmatprep.mubr.bf16.mxu0 %v1042
        %3992 = vmatmul.mubr.bf16.gmra.mrb[0].mxu0 %v1041
        %v3993 = vpop.f32.mrb[0].mxu0
        %v3994 = vadd.f32 %v3943, %v3993
        %v3995 = vpop.f32.mrb[0].mxu0
        %v3996 = vadd.f32 %v3945, %v3995
        %v3997 = vpop.f32.mrb[0].mxu0
        %v3998 = vadd.f32 %v3947, %v3997
        %v3999 = vpop.f32.mrb[0].mxu0
        %v4000 = vadd.f32 %v3949, %v3999
        %4001 = vmatprep.mubr.bf16.mxu0 %v1058
        %4002 = vmatmul.mubr.bf16.gmra.mrb[0].mxu0 %v1057
        %v4003 = vpop.f32.mrb[0].mxu0
        %v4004 = vadd.f32 %v3953, %v4003
        %v4005 = vpop.f32.mrb[0].mxu0
        %v4006 = vadd.f32 %v3955, %v4005
        %v4007 = vpop.f32.mrb[0].mxu0
        %v4008 = vpop.f32.mrb[0].mxu0
        %4009 = vdwg.mxu0
        %4010 = vmatprep.subr.bf16.mxu0 %v3078
        %4011 = vmatpush1.bf16.msra.mxu0 %v3077
        %4012 = vmatprep.subr.bf16.mxu0 %v3082
        %4013 = vmatpush1.bf16.msra.mxu0 %v3081
        %4014 = vmatprep.subr.bf16.mxu0 %v3086
        %4015 = vmatpush1.bf16.msra.mxu0 %v3085
        %4016 = vmatprep.subr.bf16.mxu0 %v3090
        %4017 = vmatpush1.bf16.msra.mxu0 %v3089
        %4018 = vmatprep.subr.bf16.mxu0 %v3094
        %4019 = vmatpush1.bf16.msra.mxu0 %v3093
        %4020 = vmatprep.subr.bf16.mxu0 %v3098
        %4021 = vmatpush1.bf16.msra.mxu0 %v3097
        %4022 = vmatprep.subr.bf16.mxu0 %v3102
        %4023 = vmatpush1.bf16.msra.mxu0 %v3101
        %4024 = vmatprep.subr.bf16.mxu0 %v3106
        %4025 = vmatpush1.bf16.msra.mxu0 %v3105
        %4026 = vmatprep.subr.bf16.mxu0 %v3110
        %4027 = vmatpush1.bf16.msra.mxu0 %v3109
        %4028 = vmatprep.subr.bf16.mxu0 %v3114
        %4029 = vmatpush1.bf16.msra.mxu0 %v3113
        %4030 = vmatprep.subr.bf16.mxu0 %v3118
        %4031 = vmatpush1.bf16.msra.mxu0 %v3117
        %4032 = vmatprep.subr.bf16.mxu0 %v3122
        %4033 = vmatpush1.bf16.msra.mxu0 %v3121
        %4034 = vmatprep.subr.bf16.mxu0 %v3126
        %4035 = vmatpush1.bf16.msra.mxu0 %v3125
        %4036 = vmatprep.subr.bf16.mxu0 %v3130
        %4037 = vmatpush1.bf16.msra.mxu0 %v3129
        %4038 = vmatprep.subr.bf16.mxu0 %v3134
        %4039 = vmatpush1.bf16.msra.mxu0 %v3133
        %4040 = vmatprep.subr.bf16.mxu0 %v3138
        %4041 = vmatpush1.bf16.msra.mxu0 %v3137
        %4042 = vmatprep.mubr.bf16.mxu0 %v1044
        %4043 = vmatmul.mubr.bf16.gmra.mrb[0].mxu0 %v1043
        %v4044 = vpop.f32.mrb[0].mxu0
        %v4045 = vadd.f32 %v3994, %v4044
        %v4046 = vpop.f32.mrb[0].mxu0
        %v4047 = vadd.f32 %v3996, %v4046
        %v4048 = vpop.f32.mrb[0].mxu0
        %v4049 = vadd.f32 %v3998, %v4048
        %v4050 = vpop.f32.mrb[0].mxu0
        %v4051 = vadd.f32 %v4000, %v4050
        %4052 = vmatprep.mubr.bf16.mxu0 %v1060
        %4053 = vmatmul.mubr.bf16.gmra.mrb[0].mxu0 %v1059
        %v4054 = vpop.f32.mrb[0].mxu0
        %v4055 = vadd.f32 %v4004, %v4054
        %v4056 = vpop.f32.mrb[0].mxu0
        %v4057 = vadd.f32 %v4006, %v4056
        %v4058 = vpop.f32.mrb[0].mxu0
        %v4059 = vpop.f32.mrb[0].mxu0
        %4060 = vdwg.mxu0
        %4061 = vmatprep.subr.bf16.mxu0 %v2632
        %4062 = vmatpush1.bf16.msra.mxu0 %v2631
        %4063 = vmatprep.subr.bf16.mxu0 %v2636
        %4064 = vmatpush1.bf16.msra.mxu0 %v2635
        %4065 = vmatprep.subr.bf16.mxu0 %v2640
        %4066 = vmatpush1.bf16.msra.mxu0 %v2639
        %4067 = vmatprep.subr.bf16.mxu0 %v2644
        %4068 = vmatpush1.bf16.msra.mxu0 %v2643
        %4069 = vmatprep.subr.bf16.mxu0 %v2648
        %4070 = vmatpush1.bf16.msra.mxu0 %v2647
        %4071 = vmatprep.subr.bf16.mxu0 %v2652
        %4072 = vmatpush1.bf16.msra.mxu0 %v2651
        %4073 = vmatprep.subr.bf16.mxu0 %v2656
        %4074 = vmatpush1.bf16.msra.mxu0 %v2655
        %4075 = vmatprep.subr.bf16.mxu0 %v2660
        %4076 = vmatpush1.bf16.msra.mxu0 %v2659
        %4077 = vmatprep.subr.bf16.mxu0 %v2664
        %4078 = vmatpush1.bf16.msra.mxu0 %v2663
        %4079 = vmatprep.subr.bf16.mxu0 %v2668
        %4080 = vmatpush1.bf16.msra.mxu0 %v2667
        %4081 = vmatprep.subr.bf16.mxu0 %v2672
        %4082 = vmatpush1.bf16.msra.mxu0 %v2671
        %4083 = vmatprep.subr.bf16.mxu0 %v2676
        %4084 = vmatpush1.bf16.msra.mxu0 %v2675
        %4085 = vmatprep.subr.bf16.mxu0 %v2680
        %4086 = vmatpush1.bf16.msra.mxu0 %v2679
        %4087 = vmatprep.subr.bf16.mxu0 %v2684
        %4088 = vmatpush1.bf16.msra.mxu0 %v2683
        %4089 = vmatprep.subr.bf16.mxu0 %v2688
        %4090 = vmatpush1.bf16.msra.mxu0 %v2687
        %4091 = vmatprep.subr.bf16.mxu0 %v2692
        %4092 = vmatpush1.bf16.msra.mxu0 %v2691
        %4093 = vmatprep.mubr.bf16.mxu0 %v1030
        %4094 = vmatmul.mubr.bf16.gmra.mrb[0].mxu0 %v1029
        %v4095 = vpop.f32.mrb[0].mxu0
        %v4096 = vadd.f32 %v948, %v4095
        %v4097 = vpop.f32.mrb[0].mxu0
        %v4098 = vadd.f32 %v952, %v4097
        %v4099 = vpop.f32.mrb[0].mxu0
        %v4100 = vadd.f32 %v948, %v4099
        %v4101 = vpop.f32.mrb[0].mxu0
        %v4102 = vadd.f32 %v952, %v4101
        %4103 = vmatprep.mubr.bf16.mxu0 %v1046
        %4104 = vmatmul.mubr.bf16.gmra.mrb[0].mxu0 %v1045
        %v4105 = vpop.f32.mrb[0].mxu0
        %v4106 = vadd.f32 %v948, %v4105
        %v4107 = vpop.f32.mrb[0].mxu0
        %v4108 = vadd.f32 %v952, %v4107
        %v4109 = vpop.f32.mrb[0].mxu0
        %v4110 = vpop.f32.mrb[0].mxu0
        %4111 = vdwg.mxu0
        %4112 = vmatprep.subr.bf16.mxu0 %v2696
        %4113 = vmatpush1.bf16.msra.mxu0 %v2695
        %4114 = vmatprep.subr.bf16.mxu0 %v2700
        %4115 = vmatpush1.bf16.msra.mxu0 %v2699
        %4116 = vmatprep.subr.bf16.mxu0 %v2704
        %4117 = vmatpush1.bf16.msra.mxu0 %v2703
        %4118 = vmatprep.subr.bf16.mxu0 %v2708
        %4119 = vmatpush1.bf16.msra.mxu0 %v2707
        %4120 = vmatprep.subr.bf16.mxu0 %v2712
        %4121 = vmatpush1.bf16.msra.mxu0 %v2711
        %4122 = vmatprep.subr.bf16.mxu0 %v2716
        %4123 = vmatpush1.bf16.msra.mxu0 %v2715
        %4124 = vmatprep.subr.bf16.mxu0 %v2720
        %4125 = vmatpush1.bf16.msra.mxu0 %v2719
        %4126 = vmatprep.subr.bf16.mxu0 %v2724
        %4127 = vmatpush1.bf16.msra.mxu0 %v2723
        %4128 = vmatprep.subr.bf16.mxu0 %v2728
        %4129 = vmatpush1.bf16.msra.mxu0 %v2727
        %4130 = vmatprep.subr.bf16.mxu0 %v2732
        %4131 = vmatpush1.bf16.msra.mxu0 %v2731
        %4132 = vmatprep.subr.bf16.mxu0 %v2736
        %4133 = vmatpush1.bf16.msra.mxu0 %v2735
        %4134 = vmatprep.subr.bf16.mxu0 %v2740
        %4135 = vmatpush1.bf16.msra.mxu0 %v2739
        %4136 = vmatprep.subr.bf16.mxu0 %v2744
        %4137 = vmatpush1.bf16.msra.mxu0 %v2743
        %4138 = vmatprep.subr.bf16.mxu0 %v2748
        %4139 = vmatpush1.bf16.msra.mxu0 %v2747
        %4140 = vmatprep.subr.bf16.mxu0 %v2752
        %4141 = vmatpush1.bf16.msra.mxu0 %v2751
        %4142 = vmatprep.subr.bf16.mxu0 %v2756
        %4143 = vmatpush1.bf16.msra.mxu0 %v2755
        %4144 = vmatprep.mubr.bf16.mxu0 %v1032
        %4145 = vmatmul.mubr.bf16.gmra.mrb[0].mxu0 %v1031
        %v4146 = vpop.f32.mrb[0].mxu0
        %v4147 = vadd.f32 %v4096, %v4146
        %v4148 = vpop.f32.mrb[0].mxu0
        %v4149 = vadd.f32 %v4098, %v4148
        %v4150 = vpop.f32.mrb[0].mxu0
        %v4151 = vadd.f32 %v4100, %v4150
        %v4152 = vpop.f32.mrb[0].mxu0
        %v4153 = vadd.f32 %v4102, %v4152
        %4154 = vmatprep.mubr.bf16.mxu0 %v1048
        %4155 = vmatmul.mubr.bf16.gmra.mrb[0].mxu0 %v1047
        %v4156 = vpop.f32.mrb[0].mxu0
        %v4157 = vadd.f32 %v4106, %v4156
        %v4158 = vpop.f32.mrb[0].mxu0
        %v4159 = vadd.f32 %v4108, %v4158
        %v4160 = vpop.f32.mrb[0].mxu0
        %v4161 = vpop.f32.mrb[0].mxu0
        %4162 = vdwg.mxu0
        %4163 = vmatprep.subr.bf16.mxu0 %v2760
        %4164 = vmatpush1.bf16.msra.mxu0 %v2759
        %4165 = vmatprep.subr.bf16.mxu0 %v2764
        %4166 = vmatpush1.bf16.msra.mxu0 %v2763
        %4167 = vmatprep.subr.bf16.mxu0 %v2768
        %4168 = vmatpush1.bf16.msra.mxu0 %v2767
        %4169 = vmatprep.subr.bf16.mxu0 %v2772
        %4170 = vmatpush1.bf16.msra.mxu0 %v2771
        %4171 = vmatprep.subr.bf16.mxu0 %v2776
        %4172 = vmatpush1.bf16.msra.mxu0 %v2775
        %4173 = vmatprep.subr.bf16.mxu0 %v2780
        %4174 = vmatpush1.bf16.msra.mxu0 %v2779
        %4175 = vmatprep.subr.bf16.mxu0 %v2784
        %4176 = vmatpush1.bf16.msra.mxu0 %v2783
        %4177 = vmatprep.subr.bf16.mxu0 %v2788
        %4178 = vmatpush1.bf16.msra.mxu0 %v2787
        %4179 = vmatprep.subr.bf16.mxu0 %v2792
        %4180 = vmatpush1.bf16.msra.mxu0 %v2791
        %4181 = vmatprep.subr.bf16.mxu0 %v2796
        %4182 = vmatpush1.bf16.msra.mxu0 %v2795
        %4183 = vmatprep.subr.bf16.mxu0 %v2800
        %4184 = vmatpush1.bf16.msra.mxu0 %v2799
        %4185 = vmatprep.subr.bf16.mxu0 %v2804
        %4186 = vmatpush1.bf16.msra.mxu0 %v2803
        %4187 = vmatprep.subr.bf16.mxu0 %v2808
        %4188 = vmatpush1.bf16.msra.mxu0 %v2807
        %4189 = vmatprep.subr.bf16.mxu0 %v2812
        %4190 = vmatpush1.bf16.msra.mxu0 %v2811
        %4191 = vmatprep.subr.bf16.mxu0 %v2816
        %4192 = vmatpush1.bf16.msra.mxu0 %v2815
        %4193 = vmatprep.subr.bf16.mxu0 %v2820
        %4194 = vmatpush1.bf16.msra.mxu0 %v2819
        %4195 = vmatprep.mubr.bf16.mxu0 %v1034
        %4196 = vmatmul.mubr.bf16.gmra.mrb[0].mxu0 %v1033
        %v4197 = vpop.f32.mrb[0].mxu0
        %v4198 = vadd.f32 %v4147, %v4197
        %v4199 = vpop.f32.mrb[0].mxu0
        %v4200 = vadd.f32 %v4149, %v4199
        %v4201 = vpop.f32.mrb[0].mxu0
        %v4202 = vadd.f32 %v4151, %v4201
        %v4203 = vpop.f32.mrb[0].mxu0
        %v4204 = vadd.f32 %v4153, %v4203
        %4205 = vmatprep.mubr.bf16.mxu0 %v1050
        %4206 = vmatmul.mubr.bf16.gmra.mrb[0].mxu0 %v1049
        %v4207 = vpop.f32.mrb[0].mxu0
        %v4208 = vadd.f32 %v4157, %v4207
        %v4209 = vpop.f32.mrb[0].mxu0
        %v4210 = vadd.f32 %v4159, %v4209
        %v4211 = vpop.f32.mrb[0].mxu0
        %v4212 = vpop.f32.mrb[0].mxu0
        %4213 = vdwg.mxu0
        %4214 = vmatprep.subr.bf16.mxu0 %v2824
        %4215 = vmatpush1.bf16.msra.mxu0 %v2823
        %4216 = vmatprep.subr.bf16.mxu0 %v2828
        %4217 = vmatpush1.bf16.msra.mxu0 %v2827
        %4218 = vmatprep.subr.bf16.mxu0 %v2832
        %4219 = vmatpush1.bf16.msra.mxu0 %v2831
        %4220 = vmatprep.subr.bf16.mxu0 %v2836
        %4221 = vmatpush1.bf16.msra.mxu0 %v2835
        %4222 = vmatprep.subr.bf16.mxu0 %v2840
        %4223 = vmatpush1.bf16.msra.mxu0 %v2839
        %4224 = vmatprep.subr.bf16.mxu0 %v2844
        %4225 = vmatpush1.bf16.msra.mxu0 %v2843
        %4226 = vmatprep.subr.bf16.mxu0 %v2848
        %4227 = vmatpush1.bf16.msra.mxu0 %v2847
        %4228 = vmatprep.subr.bf16.mxu0 %v2852
        %4229 = vmatpush1.bf16.msra.mxu0 %v2851
        %4230 = vmatprep.subr.bf16.mxu0 %v2856
        %4231 = vmatpush1.bf16.msra.mxu0 %v2855
        %4232 = vmatprep.subr.bf16.mxu0 %v2860
        %4233 = vmatpush1.bf16.msra.mxu0 %v2859
        %4234 = vmatprep.subr.bf16.mxu0 %v2864
        %4235 = vmatpush1.bf16.msra.mxu0 %v2863
        %4236 = vmatprep.subr.bf16.mxu0 %v2868
        %4237 = vmatpush1.bf16.msra.mxu0 %v2867
        %4238 = vmatprep.subr.bf16.mxu0 %v2872
        %4239 = vmatpush1.bf16.msra.mxu0 %v2871
        %4240 = vmatprep.subr.bf16.mxu0 %v2876
        %4241 = vmatpush1.bf16.msra.mxu0 %v2875
        %4242 = vmatprep.subr.bf16.mxu0 %v2880
        %4243 = vmatpush1.bf16.msra.mxu0 %v2879
        %4244 = vmatprep.subr.bf16.mxu0 %v2884
        %4245 = vmatpush1.bf16.msra.mxu0 %v2883
        %4246 = vmatprep.mubr.bf16.mxu0 %v1036
        %4247 = vmatmul.mubr.bf16.gmra.mrb[0].mxu0 %v1035
        %v4248 = vpop.f32.mrb[0].mxu0
        %v4249 = vadd.f32 %v4198, %v4248
        %v4250 = vpop.f32.mrb[0].mxu0
        %v4251 = vadd.f32 %v4200, %v4250
        %v4252 = vpop.f32.mrb[0].mxu0
        %v4253 = vadd.f32 %v4202, %v4252
        %v4254 = vpop.f32.mrb[0].mxu0
        %v4255 = vadd.f32 %v4204, %v4254
        %4256 = vmatprep.mubr.bf16.mxu0 %v1052
        %4257 = vmatmul.mubr.bf16.gmra.mrb[0].mxu0 %v1051
        %v4258 = vpop.f32.mrb[0].mxu0
        %v4259 = vadd.f32 %v4208, %v4258
        %v4260 = vpop.f32.mrb[0].mxu0
        %v4261 = vadd.f32 %v4210, %v4260
        %v4262 = vpop.f32.mrb[0].mxu0
        %v4263 = vpop.f32.mrb[0].mxu0
        %4264 = vdwg.mxu0
        %4265 = vmatprep.subr.bf16.mxu0 %v2888
        %4266 = vmatpush1.bf16.msra.mxu0 %v2887
        %4267 = vmatprep.subr.bf16.mxu0 %v2892
        %4268 = vmatpush1.bf16.msra.mxu0 %v2891
        %4269 = vmatprep.subr.bf16.mxu0 %v2896
        %4270 = vmatpush1.bf16.msra.mxu0 %v2895
        %4271 = vmatprep.subr.bf16.mxu0 %v2900
        %4272 = vmatpush1.bf16.msra.mxu0 %v2899
        %4273 = vmatprep.subr.bf16.mxu0 %v2904
        %4274 = vmatpush1.bf16.msra.mxu0 %v2903
        %4275 = vmatprep.subr.bf16.mxu0 %v2908
        %4276 = vmatpush1.bf16.msra.mxu0 %v2907
        %4277 = vmatprep.subr.bf16.mxu0 %v2912
        %4278 = vmatpush1.bf16.msra.mxu0 %v2911
        %4279 = vmatprep.subr.bf16.mxu0 %v2916
        %4280 = vmatpush1.bf16.msra.mxu0 %v2915
        %4281 = vmatprep.subr.bf16.mxu0 %v2920
        %4282 = vmatpush1.bf16.msra.mxu0 %v2919
        %4283 = vmatprep.subr.bf16.mxu0 %v2924
        %4284 = vmatpush1.bf16.msra.mxu0 %v2923
        %4285 = vmatprep.subr.bf16.mxu0 %v2928
        %4286 = vmatpush1.bf16.msra.mxu0 %v2927
        %4287 = vmatprep.subr.bf16.mxu0 %v2932
        %4288 = vmatpush1.bf16.msra.mxu0 %v2931
        %4289 = vmatprep.subr.bf16.mxu0 %v2936
        %4290 = vmatpush1.bf16.msra.mxu0 %v2935
        %4291 = vmatprep.subr.bf16.mxu0 %v2940
        %4292 = vmatpush1.bf16.msra.mxu0 %v2939
        %4293 = vmatprep.subr.bf16.mxu0 %v2944
        %4294 = vmatpush1.bf16.msra.mxu0 %v2943
        %4295 = vmatprep.subr.bf16.mxu0 %v2948
        %4296 = vmatpush1.bf16.msra.mxu0 %v2947
        %4297 = vmatprep.mubr.bf16.mxu0 %v1038
        %4298 = vmatmul.mubr.bf16.gmra.mrb[0].mxu0 %v1037
        %v4299 = vpop.f32.mrb[0].mxu0
        %v4300 = vadd.f32 %v4249, %v4299
        %v4301 = vpop.f32.mrb[0].mxu0
        %v4302 = vadd.f32 %v4251, %v4301
        %v4303 = vpop.f32.mrb[0].mxu0
        %v4304 = vadd.f32 %v4253, %v4303
        %v4305 = vpop.f32.mrb[0].mxu0
        %v4306 = vadd.f32 %v4255, %v4305
        %4307 = vmatprep.mubr.bf16.mxu0 %v1054
        %4308 = vmatmul.mubr.bf16.gmra.mrb[0].mxu0 %v1053
        %v4309 = vpop.f32.mrb[0].mxu0
        %v4310 = vadd.f32 %v4259, %v4309
        %v4311 = vpop.f32.mrb[0].mxu0
        %v4312 = vadd.f32 %v4261, %v4311
        %v4313 = vpop.f32.mrb[0].mxu0
        %v4314 = vpop.f32.mrb[0].mxu0
        %4315 = vdwg.mxu0
        %4316 = vmatprep.subr.bf16.mxu0 %v2952
        %4317 = vmatpush1.bf16.msra.mxu0 %v2951
        %4318 = vmatprep.subr.bf16.mxu0 %v2956
        %4319 = vmatpush1.bf16.msra.mxu0 %v2955
        %4320 = vmatprep.subr.bf16.mxu0 %v2960
        %4321 = vmatpush1.bf16.msra.mxu0 %v2959
        %4322 = vmatprep.subr.bf16.mxu0 %v2964
        %4323 = vmatpush1.bf16.msra.mxu0 %v2963
        %4324 = vmatprep.subr.bf16.mxu0 %v2968
        %4325 = vmatpush1.bf16.msra.mxu0 %v2967
        %4326 = vmatprep.subr.bf16.mxu0 %v2972
        %4327 = vmatpush1.bf16.msra.mxu0 %v2971
        %4328 = vmatprep.subr.bf16.mxu0 %v2976
        %4329 = vmatpush1.bf16.msra.mxu0 %v2975
        %4330 = vmatprep.subr.bf16.mxu0 %v2980
        %4331 = vmatpush1.bf16.msra.mxu0 %v2979
        %4332 = vmatprep.subr.bf16.mxu0 %v2984
        %4333 = vmatpush1.bf16.msra.mxu0 %v2983
        %4334 = vmatprep.subr.bf16.mxu0 %v2988
        %4335 = vmatpush1.bf16.msra.mxu0 %v2987
        %4336 = vmatprep.subr.bf16.mxu0 %v2992
        %4337 = vmatpush1.bf16.msra.mxu0 %v2991
        %4338 = vmatprep.subr.bf16.mxu0 %v2996
        %4339 = vmatpush1.bf16.msra.mxu0 %v2995
        %4340 = vmatprep.subr.bf16.mxu0 %v3000
        %4341 = vmatpush1.bf16.msra.mxu0 %v2999
        %4342 = vmatprep.subr.bf16.mxu0 %v3004
        %4343 = vmatpush1.bf16.msra.mxu0 %v3003
        %4344 = vmatprep.subr.bf16.mxu0 %v3008
        %4345 = vmatpush1.bf16.msra.mxu0 %v3007
        %4346 = vmatprep.subr.bf16.mxu0 %v3012
        %4347 = vmatpush1.bf16.msra.mxu0 %v3011
        %4348 = vmatprep.mubr.bf16.mxu0 %v1040
        %4349 = vmatmul.mubr.bf16.gmra.mrb[0].mxu0 %v1039
        %v4350 = vpop.f32.mrb[0].mxu0
        %v4351 = vadd.f32 %v4300, %v4350
        %v4352 = vpop.f32.mrb[0].mxu0
        %v4353 = vadd.f32 %v4302, %v4352
        %v4354 = vpop.f32.mrb[0].mxu0
        %v4355 = vadd.f32 %v4304, %v4354
        %v4356 = vpop.f32.mrb[0].mxu0
        %v4357 = vadd.f32 %v4306, %v4356
        %4358 = vmatprep.mubr.bf16.mxu0 %v1056
        %4359 = vmatmul.mubr.bf16.gmra.mrb[0].mxu0 %v1055
        %v4360 = vpop.f32.mrb[0].mxu0
        %v4361 = vadd.f32 %v4310, %v4360
        %v4362 = vpop.f32.mrb[0].mxu0
        %v4363 = vadd.f32 %v4312, %v4362
        %v4364 = vpop.f32.mrb[0].mxu0
        %v4365 = vpop.f32.mrb[0].mxu0
        %4366 = vdwg.mxu0
        %4367 = vmatprep.subr.bf16.mxu0 %v3016
        %4368 = vmatpush1.bf16.msra.mxu0 %v3015
        %4369 = vmatprep.subr.bf16.mxu0 %v3020
        %4370 = vmatpush1.bf16.msra.mxu0 %v3019
        %4371 = vmatprep.subr.bf16.mxu0 %v3024
        %4372 = vmatpush1.bf16.msra.mxu0 %v3023
        %4373 = vmatprep.subr.bf16.mxu0 %v3028
        %4374 = vmatpush1.bf16.msra.mxu0 %v3027
        %4375 = vmatprep.subr.bf16.mxu0 %v3032
        %4376 = vmatpush1.bf16.msra.mxu0 %v3031
        %4377 = vmatprep.subr.bf16.mxu0 %v3036
        %4378 = vmatpush1.bf16.msra.mxu0 %v3035
        %4379 = vmatprep.subr.bf16.mxu0 %v3040
        %4380 = vmatpush1.bf16.msra.mxu0 %v3039
        %4381 = vmatprep.subr.bf16.mxu0 %v3044
        %4382 = vmatpush1.bf16.msra.mxu0 %v3043
        %4383 = vmatprep.subr.bf16.mxu0 %v3048
        %4384 = vmatpush1.bf16.msra.mxu0 %v3047
        %4385 = vmatprep.subr.bf16.mxu0 %v3052
        %4386 = vmatpush1.bf16.msra.mxu0 %v3051
        %4387 = vmatprep.subr.bf16.mxu0 %v3056
        %4388 = vmatpush1.bf16.msra.mxu0 %v3055
        %4389 = vmatprep.subr.bf16.mxu0 %v3060
        %4390 = vmatpush1.bf16.msra.mxu0 %v3059
        %4391 = vmatprep.subr.bf16.mxu0 %v3064
        %4392 = vmatpush1.bf16.msra.mxu0 %v3063
        %4393 = vmatprep.subr.bf16.mxu0 %v3068
        %4394 = vmatpush1.bf16.msra.mxu0 %v3067
        %4395 = vmatprep.subr.bf16.mxu0 %v3072
        %4396 = vmatpush1.bf16.msra.mxu0 %v3071
        %4397 = vmatprep.subr.bf16.mxu0 %v3076
        %4398 = vmatpush1.bf16.msra.mxu0 %v3075
        %4399 = vmatprep.mubr.bf16.mxu0 %v1042
        %4400 = vmatmul.mubr.bf16.gmra.mrb[0].mxu0 %v1041
        %v4401 = vpop.f32.mrb[0].mxu0
        %v4402 = vadd.f32 %v4351, %v4401
        %v4403 = vpop.f32.mrb[0].mxu0
        %v4404 = vadd.f32 %v4353, %v4403
        %v4405 = vpop.f32.mrb[0].mxu0
        %v4406 = vadd.f32 %v4355, %v4405
        %v4407 = vpop.f32.mrb[0].mxu0
        %v4408 = vadd.f32 %v4357, %v4407
        %4409 = vmatprep.mubr.bf16.mxu0 %v1058
        %4410 = vmatmul.mubr.bf16.gmra.mrb[0].mxu0 %v1057
        %v4411 = vpop.f32.mrb[0].mxu0
        %v4412 = vadd.f32 %v4361, %v4411
        %v4413 = vpop.f32.mrb[0].mxu0
        %v4414 = vadd.f32 %v4363, %v4413
        %v4415 = vpop.f32.mrb[0].mxu0
        %v4416 = vpop.f32.mrb[0].mxu0
        %4417 = vdwg.mxu0
        %4418 = vmatprep.subr.bf16.mxu0 %v3080
        %4419 = vmatpush1.bf16.msra.mxu0 %v3079
        %4420 = vmatprep.subr.bf16.mxu0 %v3084
        %4421 = vmatpush1.bf16.msra.mxu0 %v3083
        %4422 = vmatprep.subr.bf16.mxu0 %v3088
        %4423 = vmatpush1.bf16.msra.mxu0 %v3087
        %4424 = vmatprep.subr.bf16.mxu0 %v3092
        %4425 = vmatpush1.bf16.msra.mxu0 %v3091
        %4426 = vmatprep.subr.bf16.mxu0 %v3096
        %4427 = vmatpush1.bf16.msra.mxu0 %v3095
        %4428 = vmatprep.subr.bf16.mxu0 %v3100
        %4429 = vmatpush1.bf16.msra.mxu0 %v3099
        %4430 = vmatprep.subr.bf16.mxu0 %v3104
        %4431 = vmatpush1.bf16.msra.mxu0 %v3103
        %4432 = vmatprep.subr.bf16.mxu0 %v3108
        %4433 = vmatpush1.bf16.msra.mxu0 %v3107
        %4434 = vmatprep.subr.bf16.mxu0 %v3112
        %4435 = vmatpush1.bf16.msra.mxu0 %v3111
        %4436 = vmatprep.subr.bf16.mxu0 %v3116
        %4437 = vmatpush1.bf16.msra.mxu0 %v3115
        %4438 = vmatprep.subr.bf16.mxu0 %v3120
        %4439 = vmatpush1.bf16.msra.mxu0 %v3119
        %4440 = vmatprep.subr.bf16.mxu0 %v3124
        %4441 = vmatpush1.bf16.msra.mxu0 %v3123
        %4442 = vmatprep.subr.bf16.mxu0 %v3128
        %4443 = vmatpush1.bf16.msra.mxu0 %v3127
        %4444 = vmatprep.subr.bf16.mxu0 %v3132
        %4445 = vmatpush1.bf16.msra.mxu0 %v3131
        %4446 = vmatprep.subr.bf16.mxu0 %v3136
        %4447 = vmatpush1.bf16.msra.mxu0 %v3135
        %4448 = vmatprep.subr.bf16.mxu0 %v3140
        %4449 = vmatpush1.bf16.msra.mxu0 %v3139
        %4450 = vmatprep.mubr.bf16.mxu0 %v1044
        %4451 = vmatmul.mubr.bf16.gmra.mrb[0].mxu0 %v1043
        %v4452 = vpop.f32.mrb[0].mxu0
        %v4453 = vadd.f32 %v4402, %v4452
        %v4454 = vpop.f32.mrb[0].mxu0
        %v4455 = vadd.f32 %v4404, %v4454
        %v4456 = vpop.f32.mrb[0].mxu0
        %v4457 = vadd.f32 %v4406, %v4456
        %v4458 = vpop.f32.mrb[0].mxu0
        %v4459 = vadd.f32 %v4408, %v4458
        %4460 = vmatprep.mubr.bf16.mxu0 %v1060
        %4461 = vmatmul.mubr.bf16.gmra.mrb[0].mxu0 %v1059
        %v4462 = vpop.f32.mrb[0].mxu0
        %v4463 = vadd.f32 %v4412, %v4462
        %v4464 = vpop.f32.mrb[0].mxu0
        %v4465 = vadd.f32 %v4414, %v4464
        %v4466 = vpop.f32.mrb[0].mxu0
        %v4467 = vpop.f32.mrb[0].mxu0
        %4468 = vdwg.mxu0
        %vm4469 = vcmp.gt.f32.partialorder %v4045, 0.0
        %vm4470 = vcmp.gt.f32.partialorder %v4047, 0.0
        %vm4471 = vcmp.gt.f32.partialorder %v4453, 0.0
        %vm4472 = vcmp.gt.f32.partialorder %v4455, 0.0
        %vm4473 = vcmp.gt.f32.partialorder %v4049, 0.0
        %vm4474 = vcmp.gt.f32.partialorder %v4051, 0.0
        %vm4475 = vcmp.gt.f32.partialorder %v4457, 0.0
        %vm4476 = vcmp.gt.f32.partialorder %v4459, 0.0
        %vm4477 = vcmp.gt.f32.partialorder %v4055, 0.0
        %vm4478 = vcmp.gt.f32.partialorder %v4057, 0.0
        %vm4479 = vcmp.gt.f32.partialorder %v4463, 0.0
        %vm4480 = vcmp.gt.f32.partialorder %v4465, 0.0
        %v4481 = vmul.f32 %v4045, 0.25
        %v4482 = vmul.f32 %v4047, 0.25
        %v4483 = vmul.f32 %v4453, 0.25
        %v4484 = vmul.f32 %v4455, 0.25
        %v4485 = vmul.f32 %v4049, 0.25
        %v4486 = vmul.f32 %v4051, 0.25
        %v4487 = vmul.f32 %v4457, 0.25
        %v4488 = vmul.f32 %v4459, 0.25
        %v4489 = vmul.f32 %v4055, 0.25
        %v4490 = vmul.f32 %v4057, 0.25
        %v4491 = vmul.f32 %v4463, 0.25
        %v4492 = vmul.f32 %v4465, 0.25
        %v4493 = vsel %vm4469, %v4045, %v4481
        %v4494 = vsel %vm4470, %v4047, %v4482
        %v4495 = vsel %vm4471, %v4453, %v4483
        %v4496 = vsel %vm4472, %v4455, %v4484
        %v4497 = vsel %vm4473, %v4049, %v4485
        %v4498 = vsel %vm4474, %v4051, %v4486
        %v4499 = vsel %vm4475, %v4457, %v4487
        %v4500 = vsel %vm4476, %v4459, %v4488
        %v4501 = vsel %vm4477, %v4055, %v4489
        %v4502 = vsel %vm4478, %v4057, %v4490
        %v4503 = vsel %vm4479, %v4463, %v4491
        %v4504 = vsel %vm4480, %v4465, %v4492
        %v4505 = vpack.c.bf16 %v4497, %v4493
        %v4506 = vpack.c.bf16 %v4498, %v4494
        %v4507 = vpack.c.bf16 %v4499, %v4495
        %v4508 = vpack.c.bf16 %v4500, %v4496
        %v4509 = vpack.c.bf16 %v4501, %v4501
        %v4510 = vpack.c.bf16 %v4502, %v4502
        %v4511 = vpack.c.bf16 %v4503, %v4503
        %v4512 = vpack.c.bf16 %v4504, %v4504
        %v4513 = vld [vmem:[%s3] sm:$0xf]
        %v4514 = vld [vmem:[%s3 + $0x4] sm:$0xf]
        %v4515 = vld [vmem:[%s3 + $0x8] sm:$0xf]
        %v4516 = vld [vmem:[%s3 + $0xc] sm:$0xf]
        %v4517 = vld [vmem:[%s3 + $0x10] sm:$0xf]
        %v4518 = vld [vmem:[%s3 + $0x14] sm:$0xf]
        %v4519 = vld [vmem:[%s3 + $0x18] sm:$0xf]
        %v4520 = vld [vmem:[%s3 + $0x1c] sm:$0xf]
        %v4521 = vld [vmem:[%s3 + $0x20] sm:$0xf]
        %v4522 = vld [vmem:[%s3 + $0x24] sm:$0xf]
        %v4523 = vld [vmem:[%s3 + $0x28] sm:$0xf]
        %v4524 = vld [vmem:[%s3 + $0x2c] sm:$0xf]
        %v4525 = vld [vmem:[%s3 + $0x30] sm:$0xf]
        %v4526 = vld [vmem:[%s3 + $0x34] sm:$0xf]
        %v4527 = vld [vmem:[%s3 + $0x38] sm:$0xf]
        %v4528 = vld [vmem:[%s3 + $0x3c] sm:$0xf]
        %v4529 = vld [vmem:[%s3 + $0x40] sm:$0xf]
        %v4530 = vld [vmem:[%s3 + $0x44] sm:$0xf]
        %v4531 = vld [vmem:[%s3 + $0x48] sm:$0xf]
        %v4532 = vld [vmem:[%s3 + $0x4c] sm:$0xf]
        %v4533 = vld [vmem:[%s3 + $0x50] sm:$0xf]
        %v4534 = vld [vmem:[%s3 + $0x54] sm:$0xf]
        %v4535 = vld [vmem:[%s3 + $0x58] sm:$0xf]
        %v4536 = vld [vmem:[%s3 + $0x5c] sm:$0xf]
        %v4537 = vld [vmem:[%s3 + $0x60] sm:$0xf]
        %v4538 = vld [vmem:[%s3 + $0x64] sm:$0xf]
        %v4539 = vld [vmem:[%s3 + $0x68] sm:$0xf]
        %v4540 = vld [vmem:[%s3 + $0x6c] sm:$0xf]
        %v4541 = vld [vmem:[%s3 + $0x70] sm:$0xf]
        %v4542 = vld [vmem:[%s3 + $0x74] sm:$0xf]
        %v4543 = vld [vmem:[%s3 + $0x78] sm:$0xf]
        %v4544 = vld [vmem:[%s3 + $0x7c] sm:$0xf]
        %v4545 = vld [vmem:[%s3 + $0x80] sm:$0xf]
        %v4546 = vld [vmem:[%s3 + $0x84] sm:$0xf]
        %v4547 = vld [vmem:[%s3 + $0x88] sm:$0xf]
        %v4548 = vld [vmem:[%s3 + $0x8c] sm:$0xf]
        %v4549 = vld [vmem:[%s3 + $0x90] sm:$0xf]
        %v4550 = vld [vmem:[%s3 + $0x94] sm:$0xf]
        %v4551 = vld [vmem:[%s3 + $0x98] sm:$0xf]
        %v4552 = vld [vmem:[%s3 + $0x9c] sm:$0xf]
        %v4553 = vld [vmem:[%s3 + $0xa0] sm:$0xf]
        %v4554 = vld [vmem:[%s3 + $0xa4] sm:$0xf]
        %v4555 = vld [vmem:[%s3 + $0xa8] sm:$0xf]
        %v4556 = vld [vmem:[%s3 + $0xac] sm:$0xf]
        %v4557 = vld [vmem:[%s3 + $0xb0] sm:$0xf]
        %v4558 = vld [vmem:[%s3 + $0xb4] sm:$0xf]
        %v4559 = vld [vmem:[%s3 + $0xb8] sm:$0xf]
        %v4560 = vld [vmem:[%s3 + $0xbc] sm:$0xf]
        %v4561 = vld [vmem:[%s3 + $0xc0] sm:$0xf]
        %v4562 = vld [vmem:[%s3 + $0xc4] sm:$0xf]
        %v4563 = vld [vmem:[%s3 + $0xc8] sm:$0xf]
        %v4564 = vld [vmem:[%s3 + $0xcc] sm:$0xf]
        %v4565 = vld [vmem:[%s3 + $0xd0] sm:$0xf]
        %v4566 = vld [vmem:[%s3 + $0xd4] sm:$0xf]
        %v4567 = vld [vmem:[%s3 + $0xd8] sm:$0xf]
        %v4568 = vld [vmem:[%s3 + $0xdc] sm:$0xf]
        %v4569 = vld [vmem:[%s3 + $0xe0] sm:$0xf]
        %v4570 = vld [vmem:[%s3 + $0xe4] sm:$0xf]
        %v4571 = vld [vmem:[%s3 + $0xe8] sm:$0xf]
        %v4572 = vld [vmem:[%s3 + $0xec] sm:$0xf]
        %v4573 = vld [vmem:[%s3 + $0xf0] sm:$0xf]
        %v4574 = vld [vmem:[%s3 + $0xf4] sm:$0xf]
        %v4575 = vld [vmem:[%s3 + $0xf8] sm:$0xf]
        %v4576 = vld [vmem:[%s3 + $0xfc] sm:$0xf]
        %v4577 = vld [vmem:[%s394 + $0x40] sm:$0xff]
        %v4578 = vld [vmem:[%s394 + $0x48] sm:$0xff]
        %v4579 = vld [vmem:[%s394 + $0x50] sm:$0xff]
        %v4580 = vld [vmem:[%s394 + $0x58] sm:$0xff]
        %v4581 = vld [vmem:[%s394 + $0x60] sm:$0xff]
        %v4582 = vld [vmem:[%s394 + $0x68] sm:$0xff]
        %v4583 = vld [vmem:[%s394 + $0x70] sm:$0xff]
        %v4584 = vld [vmem:[%s394 + $0x78] sm:$0xff]
        %v4585 = vld [vmem:[%s394 + $0x140] sm:$0xff]
        %v4586 = vld [vmem:[%s394 + $0x148] sm:$0xff]
        %v4587 = vld [vmem:[%s394 + $0x150] sm:$0xff]
        %v4588 = vld [vmem:[%s394 + $0x158] sm:$0xff]
        %v4589 = vld [vmem:[%s394 + $0x160] sm:$0xff]
        %v4590 = vld [vmem:[%s394 + $0x168] sm:$0xff]
        %v4591 = vld [vmem:[%s394 + $0x170] sm:$0xff]
        %v4592 = vld [vmem:[%s394 + $0x178] sm:$0xff]
        %v4593 = vld [vmem:[%s394 + $0x240] sm:$0x33]
        %v4594 = vld [vmem:[%s394 + $0x248] sm:$0x33]
        %v4595 = vld [vmem:[%s394 + $0x250] sm:$0x33]
        %v4596 = vld [vmem:[%s394 + $0x258] sm:$0x33]
        %v4597 = vld [vmem:[%s394 + $0x260] sm:$0x33]
        %v4598 = vld [vmem:[%s394 + $0x268] sm:$0x33]
        %v4599 = vld [vmem:[%s394 + $0x270] sm:$0x33]
        %v4600 = vld [vmem:[%s394 + $0x278] sm:$0x33]
        %v4625 = vunpack.c.l.b16 %v4577
        %v4626 = vunpack.c.h.b16 %v4577
        %v4627 = vunpack.c.l.b16 %v4578
        %v4628 = vunpack.c.h.b16 %v4578
        %v4629 = vunpack.c.l.b16 %v4579
        %v4630 = vunpack.c.h.b16 %v4579
        %v4631 = vunpack.c.l.b16 %v4580
        %v4632 = vunpack.c.h.b16 %v4580
        %v4633 = vunpack.c.l.b16 %v4581
        %v4634 = vunpack.c.h.b16 %v4581
        %v4635 = vunpack.c.l.b16 %v4582
        %v4636 = vunpack.c.h.b16 %v4582
        %v4637 = vunpack.c.l.b16 %v4583
        %v4638 = vunpack.c.h.b16 %v4583
        %v4639 = vunpack.c.l.b16 %v4584
        %v4640 = vunpack.c.h.b16 %v4584
        %v4641 = vunpack.c.l.b16 %v4585
        %v4642 = vunpack.c.h.b16 %v4585
        %v4643 = vunpack.c.l.b16 %v4586
        %v4644 = vunpack.c.h.b16 %v4586
        %v4645 = vunpack.c.l.b16 %v4587
        %v4646 = vunpack.c.h.b16 %v4587
        %v4647 = vunpack.c.l.b16 %v4588
        %v4648 = vunpack.c.h.b16 %v4588
        %v4649 = vunpack.c.l.b16 %v4589
        %v4650 = vunpack.c.h.b16 %v4589
        %v4651 = vunpack.c.l.b16 %v4590
        %v4652 = vunpack.c.h.b16 %v4590
        %v4653 = vunpack.c.l.b16 %v4591
        %v4654 = vunpack.c.h.b16 %v4591
        %v4655 = vunpack.c.l.b16 %v4592
        %v4656 = vunpack.c.h.b16 %v4592
        %v4657 = vunpack.c.l.b16 %v4593
        %v4658 = vunpack.c.h.b16 %v4593
        %v4659 = vunpack.c.l.b16 %v4594
        %v4660 = vunpack.c.h.b16 %v4594
        %v4661 = vunpack.c.l.b16 %v4595
        %v4662 = vunpack.c.h.b16 %v4595
        %v4663 = vunpack.c.l.b16 %v4596
        %v4664 = vunpack.c.h.b16 %v4596
        %v4665 = vunpack.c.l.b16 %v4597
        %v4666 = vunpack.c.h.b16 %v4597
        %v4667 = vunpack.c.l.b16 %v4598
        %v4668 = vunpack.c.h.b16 %v4598
        %v4669 = vunpack.c.l.b16 %v4599
        %v4670 = vunpack.c.h.b16 %v4599
        %v4671 = vunpack.c.l.b16 %v4600
        %v4672 = vunpack.c.h.b16 %v4600
        %v4673 = vpack.c.b16 %v4641, %v4625
        %v4674 = vpack.c.b16 %v4642, %v4626
        %v4675 = vpack.c.b16 %v4643, %v4627
        %v4676 = vpack.c.b16 %v4644, %v4628
        %v4677 = vpack.c.b16 %v4645, %v4629
        %v4678 = vpack.c.b16 %v4646, %v4630
        %v4679 = vpack.c.b16 %v4647, %v4631
        %v4680 = vpack.c.b16 %v4648, %v4632
        %v4681 = vpack.c.b16 %v4649, %v4633
        %v4682 = vpack.c.b16 %v4650, %v4634
        %v4683 = vpack.c.b16 %v4651, %v4635
        %v4684 = vpack.c.b16 %v4652, %v4636
        %v4685 = vpack.c.b16 %v4653, %v4637
        %v4686 = vpack.c.b16 %v4654, %v4638
        %v4687 = vpack.c.b16 %v4655, %v4639
        %v4688 = vpack.c.b16 %v4656, %v4640
        %v4689 = vpack.c.b16 %v4657, %v4657
        %v4690 = vpack.c.b16 %v4658, %v4658
        %v4691 = vpack.c.b16 %v4659, %v4659
        %v4692 = vpack.c.b16 %v4660, %v4660
        %v4693 = vpack.c.b16 %v4661, %v4661
        %v4694 = vpack.c.b16 %v4662, %v4662
        %v4695 = vpack.c.b16 %v4663, %v4663
        %v4696 = vpack.c.b16 %v4664, %v4664
        %v4697 = vpack.c.b16 %v4665, %v4665
        %v4698 = vpack.c.b16 %v4666, %v4666
        %v4699 = vpack.c.b16 %v4667, %v4667
        %v4700 = vpack.c.b16 %v4668, %v4668
        %v4701 = vpack.c.b16 %v4669, %v4669
        %v4702 = vpack.c.b16 %v4670, %v4670
        %v4703 = vpack.c.b16 %v4671, %v4671
        %v4704 = vpack.c.b16 %v4672, %v4672
        %4737 = vmatprep.subr.bf16.mxu0 %v2630
        %4738 = vmatpush1.bf16.msra.mxu0 %v2629
        %4739 = vmatprep.subr.bf16.mxu0 %v2634
        %4740 = vmatpush1.bf16.msra.mxu0 %v2633
        %4741 = vmatprep.subr.bf16.mxu0 %v2638
        %4742 = vmatpush1.bf16.msra.mxu0 %v2637
        %4743 = vmatprep.subr.bf16.mxu0 %v2642
        %4744 = vmatpush1.bf16.msra.mxu0 %v2641
        %4745 = vmatprep.subr.bf16.mxu0 %v2646
        %4746 = vmatpush1.bf16.msra.mxu0 %v2645
        %4747 = vmatprep.subr.bf16.mxu0 %v2650
        %4748 = vmatpush1.bf16.msra.mxu0 %v2649
        %4749 = vmatprep.subr.bf16.mxu0 %v2654
        %4750 = vmatpush1.bf16.msra.mxu0 %v2653
        %4751 = vmatprep.subr.bf16.mxu0 %v2658
        %4752 = vmatpush1.bf16.msra.mxu0 %v2657
        %4753 = vmatprep.subr.bf16.mxu0 %v2662
        %4754 = vmatpush1.bf16.msra.mxu0 %v2661
        %4755 = vmatprep.subr.bf16.mxu0 %v2666
        %4756 = vmatpush1.bf16.msra.mxu0 %v2665
        %4757 = vmatprep.subr.bf16.mxu0 %v2670
        %4758 = vmatpush1.bf16.msra.mxu0 %v2669
        %4759 = vmatprep.subr.bf16.mxu0 %v2674
        %4760 = vmatpush1.bf16.msra.mxu0 %v2673
        %4761 = vmatprep.subr.bf16.mxu0 %v2678
        %4762 = vmatpush1.bf16.msra.mxu0 %v2677
        %4763 = vmatprep.subr.bf16.mxu0 %v2682
        %4764 = vmatpush1.bf16.msra.mxu0 %v2681
        %4765 = vmatprep.subr.bf16.mxu0 %v2686
        %4766 = vmatpush1.bf16.msra.mxu0 %v2685
        %4767 = vmatprep.subr.bf16.mxu0 %v2690
        %4768 = vmatpush1.bf16.msra.mxu0 %v2689
        %4769 = vmatprep.mubr.bf16.mxu0 %v4674
        %4770 = vmatmul.mubr.bf16.gmra.mrb[0].mxu0 %v4673
        %v4771 = vpop.f32.mrb[0].mxu0
        %v4772 = vadd.f32 %v940, %v4771
        %v4773 = vpop.f32.mrb[0].mxu0
        %v4774 = vadd.f32 %v944, %v4773
        %v4775 = vpop.f32.mrb[0].mxu0
        %v4776 = vadd.f32 %v940, %v4775
        %v4777 = vpop.f32.mrb[0].mxu0
        %v4778 = vadd.f32 %v944, %v4777
        %4779 = vmatprep.mubr.bf16.mxu0 %v4690
        %4780 = vmatmul.mubr.bf16.gmra.mrb[0].mxu0 %v4689
        %v4781 = vpop.f32.mrb[0].mxu0
        %v4782 = vadd.f32 %v940, %v4781
        %v4783 = vpop.f32.mrb[0].mxu0
        %v4784 = vadd.f32 %v944, %v4783
        %v4785 = vpop.f32.mrb[0].mxu0
        %v4786 = vpop.f32.mrb[0].mxu0
        %4787 = vdwg.mxu0
        %4788 = vmatprep.subr.bf16.mxu0 %v2694
        %4789 = vmatpush1.bf16.msra.mxu0 %v2693
        %4790 = vmatprep.subr.bf16.mxu0 %v2698
        %4791 = vmatpush1.bf16.msra.mxu0 %v2697
        %4792 = vmatprep.subr.bf16.mxu0 %v2702
        %4793 = vmatpush1.bf16.msra.mxu0 %v2701
        %4794 = vmatprep.subr.bf16.mxu0 %v2706
        %4795 = vmatpush1.bf16.msra.mxu0 %v2705
        %4796 = vmatprep.subr.bf16.mxu0 %v2710
        %4797 = vmatpush1.bf16.msra.mxu0 %v2709
        %4798 = vmatprep.subr.bf16.mxu0 %v2714
        %4799 = vmatpush1.bf16.msra.mxu0 %v2713
        %4800 = vmatprep.subr.bf16.mxu0 %v2718
        %4801 = vmatpush1.bf16.msra.mxu0 %v2717
        %4802 = vmatprep.subr.bf16.mxu0 %v2722
        %4803 = vmatpush1.bf16.msra.mxu0 %v2721
        %4804 = vmatprep.subr.bf16.mxu0 %v2726
        %4805 = vmatpush1.bf16.msra.mxu0 %v2725
        %4806 = vmatprep.subr.bf16.mxu0 %v2730
        %4807 = vmatpush1.bf16.msra.mxu0 %v2729
        %4808 = vmatprep.subr.bf16.mxu0 %v2734
        %4809 = vmatpush1.bf16.msra.mxu0 %v2733
        %4810 = vmatprep.subr.bf16.mxu0 %v2738
        %4811 = vmatpush1.bf16.msra.mxu0 %v2737
        %4812 = vmatprep.subr.bf16.mxu0 %v2742
        %4813 = vmatpush1.bf16.msra.mxu0 %v2741
        %4814 = vmatprep.subr.bf16.mxu0 %v2746
        %4815 = vmatpush1.bf16.msra.mxu0 %v2745
        %4816 = vmatprep.subr.bf16.mxu0 %v2750
        %4817 = vmatpush1.bf16.msra.mxu0 %v2749
        %4818 = vmatprep.subr.bf16.mxu0 %v2754
        %4819 = vmatpush1.bf16.msra.mxu0 %v2753
        %4820 = vmatprep.mubr.bf16.mxu0 %v4676
        %4821 = vmatmul.mubr.bf16.gmra.mrb[0].mxu0 %v4675
        %v4822 = vpop.f32.mrb[0].mxu0
        %v4823 = vadd.f32 %v4772, %v4822
        %v4824 = vpop.f32.mrb[0].mxu0
        %v4825 = vadd.f32 %v4774, %v4824
        %v4826 = vpop.f32.mrb[0].mxu0
        %v4827 = vadd.f32 %v4776, %v4826
        %v4828 = vpop.f32.mrb[0].mxu0
        %v4829 = vadd.f32 %v4778, %v4828
        %4830 = vmatprep.mubr.bf16.mxu0 %v4692
        %4831 = vmatmul.mubr.bf16.gmra.mrb[0].mxu0 %v4691
        %v4832 = vpop.f32.mrb[0].mxu0
        %v4833 = vadd.f32 %v4782, %v4832
        %v4834 = vpop.f32.mrb[0].mxu0
        %v4835 = vadd.f32 %v4784, %v4834
        %v4836 = vpop.f32.mrb[0].mxu0
        %v4837 = vpop.f32.mrb[0].mxu0
        %4838 = vdwg.mxu0
        %4839 = vmatprep.subr.bf16.mxu0 %v2758
        %4840 = vmatpush1.bf16.msra.mxu0 %v2757
        %4841 = vmatprep.subr.bf16.mxu0 %v2762
        %4842 = vmatpush1.bf16.msra.mxu0 %v2761
        %4843 = vmatprep.subr.bf16.mxu0 %v2766
        %4844 = vmatpush1.bf16.msra.mxu0 %v2765
        %4845 = vmatprep.subr.bf16.mxu0 %v2770
        %4846 = vmatpush1.bf16.msra.mxu0 %v2769
        %4847 = vmatprep.subr.bf16.mxu0 %v2774
        %4848 = vmatpush1.bf16.msra.mxu0 %v2773
        %4849 = vmatprep.subr.bf16.mxu0 %v2778
        %4850 = vmatpush1.bf16.msra.mxu0 %v2777
        %4851 = vmatprep.subr.bf16.mxu0 %v2782
        %4852 = vmatpush1.bf16.msra.mxu0 %v2781
        %4853 = vmatprep.subr.bf16.mxu0 %v2786
        %4854 = vmatpush1.bf16.msra.mxu0 %v2785
        %4855 = vmatprep.subr.bf16.mxu0 %v2790
        %4856 = vmatpush1.bf16.msra.mxu0 %v2789
        %4857 = vmatprep.subr.bf16.mxu0 %v2794
        %4858 = vmatpush1.bf16.msra.mxu0 %v2793
        %4859 = vmatprep.subr.bf16.mxu0 %v2798
        %4860 = vmatpush1.bf16.msra.mxu0 %v2797
        %4861 = vmatprep.subr.bf16.mxu0 %v2802
        %4862 = vmatpush1.bf16.msra.mxu0 %v2801
        %4863 = vmatprep.subr.bf16.mxu0 %v2806
        %4864 = vmatpush1.bf16.msra.mxu0 %v2805
        %4865 = vmatprep.subr.bf16.mxu0 %v2810
        %4866 = vmatpush1.bf16.msra.mxu0 %v2809
        %4867 = vmatprep.subr.bf16.mxu0 %v2814
        %4868 = vmatpush1.bf16.msra.mxu0 %v2813
        %4869 = vmatprep.subr.bf16.mxu0 %v2818
        %4870 = vmatpush1.bf16.msra.mxu0 %v2817
        %4871 = vmatprep.mubr.bf16.mxu0 %v4678
        %4872 = vmatmul.mubr.bf16.gmra.mrb[0].mxu0 %v4677
        %v4873 = vpop.f32.mrb[0].mxu0
        %v4874 = vadd.f32 %v4823, %v4873
        %v4875 = vpop.f32.mrb[0].mxu0
        %v4876 = vadd.f32 %v4825, %v4875
        %v4877 = vpop.f32.mrb[0].mxu0
        %v4878 = vadd.f32 %v4827, %v4877
        %v4879 = vpop.f32.mrb[0].mxu0
        %v4880 = vadd.f32 %v4829, %v4879
        %4881 = vmatprep.mubr.bf16.mxu0 %v4694
        %4882 = vmatmul.mubr.bf16.gmra.mrb[0].mxu0 %v4693
        %v4883 = vpop.f32.mrb[0].mxu0
        %v4884 = vadd.f32 %v4833, %v4883
        %v4885 = vpop.f32.mrb[0].mxu0
        %v4886 = vadd.f32 %v4835, %v4885
        %v4887 = vpop.f32.mrb[0].mxu0
        %v4888 = vpop.f32.mrb[0].mxu0
        %4889 = vdwg.mxu0
        %4890 = vmatprep.subr.bf16.mxu0 %v2822
        %4891 = vmatpush1.bf16.msra.mxu0 %v2821
        %4892 = vmatprep.subr.bf16.mxu0 %v2826
        %4893 = vmatpush1.bf16.msra.mxu0 %v2825
        %4894 = vmatprep.subr.bf16.mxu0 %v2830
        %4895 = vmatpush1.bf16.msra.mxu0 %v2829
        %4896 = vmatprep.subr.bf16.mxu0 %v2834
        %4897 = vmatpush1.bf16.msra.mxu0 %v2833
        %4898 = vmatprep.subr.bf16.mxu0 %v2838
        %4899 = vmatpush1.bf16.msra.mxu0 %v2837
        %4900 = vmatprep.subr.bf16.mxu0 %v2842
        %4901 = vmatpush1.bf16.msra.mxu0 %v2841
        %4902 = vmatprep.subr.bf16.mxu0 %v2846
        %4903 = vmatpush1.bf16.msra.mxu0 %v2845
        %4904 = vmatprep.subr.bf16.mxu0 %v2850
        %4905 = vmatpush1.bf16.msra.mxu0 %v2849
        %4906 = vmatprep.subr.bf16.mxu0 %v2854
        %4907 = vmatpush1.bf16.msra.mxu0 %v2853
        %4908 = vmatprep.subr.bf16.mxu0 %v2858
        %4909 = vmatpush1.bf16.msra.mxu0 %v2857
        %4910 = vmatprep.subr.bf16.mxu0 %v2862
        %4911 = vmatpush1.bf16.msra.mxu0 %v2861
        %4912 = vmatprep.subr.bf16.mxu0 %v2866
        %4913 = vmatpush1.bf16.msra.mxu0 %v2865
        %4914 = vmatprep.subr.bf16.mxu0 %v2870
        %4915 = vmatpush1.bf16.msra.mxu0 %v2869
        %4916 = vmatprep.subr.bf16.mxu0 %v2874
        %4917 = vmatpush1.bf16.msra.mxu0 %v2873
        %4918 = vmatprep.subr.bf16.mxu0 %v2878
        %4919 = vmatpush1.bf16.msra.mxu0 %v2877
        %4920 = vmatprep.subr.bf16.mxu0 %v2882
        %4921 = vmatpush1.bf16.msra.mxu0 %v2881
        %4922 = vmatprep.mubr.bf16.mxu0 %v4680
        %4923 = vmatmul.mubr.bf16.gmra.mrb[0].mxu0 %v4679
        %v4924 = vpop.f32.mrb[0].mxu0
        %v4925 = vadd.f32 %v4874, %v4924
        %v4926 = vpop.f32.mrb[0].mxu0
        %v4927 = vadd.f32 %v4876, %v4926
        %v4928 = vpop.f32.mrb[0].mxu0
        %v4929 = vadd.f32 %v4878, %v4928
        %v4930 = vpop.f32.mrb[0].mxu0
        %v4931 = vadd.f32 %v4880, %v4930
        %4932 = vmatprep.mubr.bf16.mxu0 %v4696
        %4933 = vmatmul.mubr.bf16.gmra.mrb[0].mxu0 %v4695
        %v4934 = vpop.f32.mrb[0].mxu0
        %v4935 = vadd.f32 %v4884, %v4934
        %v4936 = vpop.f32.mrb[0].mxu0
        %v4937 = vadd.f32 %v4886, %v4936
        %v4938 = vpop.f32.mrb[0].mxu0
        %v4939 = vpop.f32.mrb[0].mxu0
        %4940 = vdwg.mxu0
        %4941 = vmatprep.subr.bf16.mxu0 %v2886
        %4942 = vmatpush1.bf16.msra.mxu0 %v2885
        %4943 = vmatprep.subr.bf16.mxu0 %v2890
        %4944 = vmatpush1.bf16.msra.mxu0 %v2889
        %4945 = vmatprep.subr.bf16.mxu0 %v2894
        %4946 = vmatpush1.bf16.msra.mxu0 %v2893
        %4947 = vmatprep.subr.bf16.mxu0 %v2898
        %4948 = vmatpush1.bf16.msra.mxu0 %v2897
        %4949 = vmatprep.subr.bf16.mxu0 %v2902
        %4950 = vmatpush1.bf16.msra.mxu0 %v2901
        %4951 = vmatprep.subr.bf16.mxu0 %v2906
        %4952 = vmatpush1.bf16.msra.mxu0 %v2905
        %4953 = vmatprep.subr.bf16.mxu0 %v2910
        %4954 = vmatpush1.bf16.msra.mxu0 %v2909
        %4955 = vmatprep.subr.bf16.mxu0 %v2914
        %4956 = vmatpush1.bf16.msra.mxu0 %v2913
        %4957 = vmatprep.subr.bf16.mxu0 %v2918
        %4958 = vmatpush1.bf16.msra.mxu0 %v2917
        %4959 = vmatprep.subr.bf16.mxu0 %v2922
        %4960 = vmatpush1.bf16.msra.mxu0 %v2921
        %4961 = vmatprep.subr.bf16.mxu0 %v2926
        %4962 = vmatpush1.bf16.msra.mxu0 %v2925
        %4963 = vmatprep.subr.bf16.mxu0 %v2930
        %4964 = vmatpush1.bf16.msra.mxu0 %v2929
        %4965 = vmatprep.subr.bf16.mxu0 %v2934
        %4966 = vmatpush1.bf16.msra.mxu0 %v2933
        %4967 = vmatprep.subr.bf16.mxu0 %v2938
        %4968 = vmatpush1.bf16.msra.mxu0 %v2937
        %4969 = vmatprep.subr.bf16.mxu0 %v2942
        %4970 = vmatpush1.bf16.msra.mxu0 %v2941
        %4971 = vmatprep.subr.bf16.mxu0 %v2946
        %4972 = vmatpush1.bf16.msra.mxu0 %v2945
        %4973 = vmatprep.mubr.bf16.mxu0 %v4682
        %4974 = vmatmul.mubr.bf16.gmra.mrb[0].mxu0 %v4681
        %v4975 = vpop.f32.mrb[0].mxu0
        %v4976 = vadd.f32 %v4925, %v4975
        %v4977 = vpop.f32.mrb[0].mxu0
        %v4978 = vadd.f32 %v4927, %v4977
        %v4979 = vpop.f32.mrb[0].mxu0
        %v4980 = vadd.f32 %v4929, %v4979
        %v4981 = vpop.f32.mrb[0].mxu0
        %v4982 = vadd.f32 %v4931, %v4981
        %4983 = vmatprep.mubr.bf16.mxu0 %v4698
        %4984 = vmatmul.mubr.bf16.gmra.mrb[0].mxu0 %v4697
        %v4985 = vpop.f32.mrb[0].mxu0
        %v4986 = vadd.f32 %v4935, %v4985
        %v4987 = vpop.f32.mrb[0].mxu0
        %v4988 = vadd.f32 %v4937, %v4987
        %v4989 = vpop.f32.mrb[0].mxu0
        %v4990 = vpop.f32.mrb[0].mxu0
        %4991 = vdwg.mxu0
        %4992 = vmatprep.subr.bf16.mxu0 %v2950
        %4993 = vmatpush1.bf16.msra.mxu0 %v2949
        %4994 = vmatprep.subr.bf16.mxu0 %v2954
        %4995 = vmatpush1.bf16.msra.mxu0 %v2953
        %4996 = vmatprep.subr.bf16.mxu0 %v2958
        %4997 = vmatpush1.bf16.msra.mxu0 %v2957
        %4998 = vmatprep.subr.bf16.mxu0 %v2962
        %4999 = vmatpush1.bf16.msra.mxu0 %v2961
        %5000 = vmatprep.subr.bf16.mxu0 %v2966
        %5001 = vmatpush1.bf16.msra.mxu0 %v2965
        %5002 = vmatprep.subr.bf16.mxu0 %v2970
        %5003 = vmatpush1.bf16.msra.mxu0 %v2969
        %5004 = vmatprep.subr.bf16.mxu0 %v2974
        %5005 = vmatpush1.bf16.msra.mxu0 %v2973
        %5006 = vmatprep.subr.bf16.mxu0 %v2978
        %5007 = vmatpush1.bf16.msra.mxu0 %v2977
        %5008 = vmatprep.subr.bf16.mxu0 %v2982
        %5009 = vmatpush1.bf16.msra.mxu0 %v2981
        %5010 = vmatprep.subr.bf16.mxu0 %v2986
        %5011 = vmatpush1.bf16.msra.mxu0 %v2985
        %5012 = vmatprep.subr.bf16.mxu0 %v2990
        %5013 = vmatpush1.bf16.msra.mxu0 %v2989
        %5014 = vmatprep.subr.bf16.mxu0 %v2994
        %5015 = vmatpush1.bf16.msra.mxu0 %v2993
        %5016 = vmatprep.subr.bf16.mxu0 %v2998
        %5017 = vmatpush1.bf16.msra.mxu0 %v2997
        %5018 = vmatprep.subr.bf16.mxu0 %v3002
        %5019 = vmatpush1.bf16.msra.mxu0 %v3001
        %5020 = vmatprep.subr.bf16.mxu0 %v3006
        %5021 = vmatpush1.bf16.msra.mxu0 %v3005
        %5022 = vmatprep.subr.bf16.mxu0 %v3010
        %5023 = vmatpush1.bf16.msra.mxu0 %v3009
        %5024 = vmatprep.mubr.bf16.mxu0 %v4684
        %5025 = vmatmul.mubr.bf16.gmra.mrb[0].mxu0 %v4683
        %v5026 = vpop.f32.mrb[0].mxu0
        %v5027 = vadd.f32 %v4976, %v5026
        %v5028 = vpop.f32.mrb[0].mxu0
        %v5029 = vadd.f32 %v4978, %v5028
        %v5030 = vpop.f32.mrb[0].mxu0
        %v5031 = vadd.f32 %v4980, %v5030
        %v5032 = vpop.f32.mrb[0].mxu0
        %v5033 = vadd.f32 %v4982, %v5032
        %5034 = vmatprep.mubr.bf16.mxu0 %v4700
        %5035 = vmatmul.mubr.bf16.gmra.mrb[0].mxu0 %v4699
        %v5036 = vpop.f32.mrb[0].mxu0
        %v5037 = vadd.f32 %v4986, %v5036
        %v5038 = vpop.f32.mrb[0].mxu0
        %v5039 = vadd.f32 %v4988, %v5038
        %v5040 = vpop.f32.mrb[0].mxu0
        %v5041 = vpop.f32.mrb[0].mxu0
        %5042 = vdwg.mxu0
        %5043 = vmatprep.subr.bf16.mxu0 %v3014
        %5044 = vmatpush1.bf16.msra.mxu0 %v3013
        %5045 = vmatprep.subr.bf16.mxu0 %v3018
        %5046 = vmatpush1.bf16.msra.mxu0 %v3017
        %5047 = vmatprep.subr.bf16.mxu0 %v3022
        %5048 = vmatpush1.bf16.msra.mxu0 %v3021
        %5049 = vmatprep.subr.bf16.mxu0 %v3026
        %5050 = vmatpush1.bf16.msra.mxu0 %v3025
        %5051 = vmatprep.subr.bf16.mxu0 %v3030
        %5052 = vmatpush1.bf16.msra.mxu0 %v3029
        %5053 = vmatprep.subr.bf16.mxu0 %v3034
        %5054 = vmatpush1.bf16.msra.mxu0 %v3033
        %5055 = vmatprep.subr.bf16.mxu0 %v3038
        %5056 = vmatpush1.bf16.msra.mxu0 %v3037
        %5057 = vmatprep.subr.bf16.mxu0 %v3042
        %5058 = vmatpush1.bf16.msra.mxu0 %v3041
        %5059 = vmatprep.subr.bf16.mxu0 %v3046
        %5060 = vmatpush1.bf16.msra.mxu0 %v3045
        %5061 = vmatprep.subr.bf16.mxu0 %v3050
        %5062 = vmatpush1.bf16.msra.mxu0 %v3049
        %5063 = vmatprep.subr.bf16.mxu0 %v3054
        %5064 = vmatpush1.bf16.msra.mxu0 %v3053
        %5065 = vmatprep.subr.bf16.mxu0 %v3058
        %5066 = vmatpush1.bf16.msra.mxu0 %v3057
        %5067 = vmatprep.subr.bf16.mxu0 %v3062
        %5068 = vmatpush1.bf16.msra.mxu0 %v3061
        %5069 = vmatprep.subr.bf16.mxu0 %v3066
        %5070 = vmatpush1.bf16.msra.mxu0 %v3065
        %5071 = vmatprep.subr.bf16.mxu0 %v3070
        %5072 = vmatpush1.bf16.msra.mxu0 %v3069
        %5073 = vmatprep.subr.bf16.mxu0 %v3074
        %5074 = vmatpush1.bf16.msra.mxu0 %v3073
        %5075 = vmatprep.mubr.bf16.mxu0 %v4686
        %5076 = vmatmul.mubr.bf16.gmra.mrb[0].mxu0 %v4685
        %v5077 = vpop.f32.mrb[0].mxu0
        %v5078 = vadd.f32 %v5027, %v5077
        %v5079 = vpop.f32.mrb[0].mxu0
        %v5080 = vadd.f32 %v5029, %v5079
        %v5081 = vpop.f32.mrb[0].mxu0
        %v5082 = vadd.f32 %v5031, %v5081
        %v5083 = vpop.f32.mrb[0].mxu0
        %v5084 = vadd.f32 %v5033, %v5083
        %5085 = vmatprep.mubr.bf16.mxu0 %v4702
        %5086 = vmatmul.mubr.bf16.gmra.mrb[0].mxu0 %v4701
        %v5087 = vpop.f32.mrb[0].mxu0
        %v5088 = vadd.f32 %v5037, %v5087
        %v5089 = vpop.f32.mrb[0].mxu0
        %v5090 = vadd.f32 %v5039, %v5089
        %v5091 = vpop.f32.mrb[0].mxu0
        %v5092 = vpop.f32.mrb[0].mxu0
        %5093 = vdwg.mxu0
        %5094 = vmatprep.subr.bf16.mxu0 %v3078
        %5095 = vmatpush1.bf16.msra.mxu0 %v3077
        %5096 = vmatprep.subr.bf16.mxu0 %v3082
        %5097 = vmatpush1.bf16.msra.mxu0 %v3081
        %5098 = vmatprep.subr.bf16.mxu0 %v3086
        %5099 = vmatpush1.bf16.msra.mxu0 %v3085
        %5100 = vmatprep.subr.bf16.mxu0 %v3090
        %5101 = vmatpush1.bf16.msra.mxu0 %v3089
        %5102 = vmatprep.subr.bf16.mxu0 %v3094
        %5103 = vmatpush1.bf16.msra.mxu0 %v3093
        %5104 = vmatprep.subr.bf16.mxu0 %v3098
        %5105 = vmatpush1.bf16.msra.mxu0 %v3097
        %5106 = vmatprep.subr.bf16.mxu0 %v3102
        %5107 = vmatpush1.bf16.msra.mxu0 %v3101
        %5108 = vmatprep.subr.bf16.mxu0 %v3106
        %5109 = vmatpush1.bf16.msra.mxu0 %v3105
        %5110 = vmatprep.subr.bf16.mxu0 %v3110
        %5111 = vmatpush1.bf16.msra.mxu0 %v3109
        %5112 = vmatprep.subr.bf16.mxu0 %v3114
        %5113 = vmatpush1.bf16.msra.mxu0 %v3113
        %5114 = vmatprep.subr.bf16.mxu0 %v3118
        %5115 = vmatpush1.bf16.msra.mxu0 %v3117
        %5116 = vmatprep.subr.bf16.mxu0 %v3122
        %5117 = vmatpush1.bf16.msra.mxu0 %v3121
        %5118 = vmatprep.subr.bf16.mxu0 %v3126
        %5119 = vmatpush1.bf16.msra.mxu0 %v3125
        %5120 = vmatprep.subr.bf16.mxu0 %v3130
        %5121 = vmatpush1.bf16.msra.mxu0 %v3129
        %5122 = vmatprep.subr.bf16.mxu0 %v3134
        %5123 = vmatpush1.bf16.msra.mxu0 %v3133
        %5124 = vmatprep.subr.bf16.mxu0 %v3138
        %5125 = vmatpush1.bf16.msra.mxu0 %v3137
        %5126 = vmatprep.mubr.bf16.mxu0 %v4688
        %5127 = vmatmul.mubr.bf16.gmra.mrb[0].mxu0 %v4687
        %v5128 = vpop.f32.mrb[0].mxu0
        %v5129 = vadd.f32 %v5078, %v5128
        %v5130 = vpop.f32.mrb[0].mxu0
        %v5131 = vadd.f32 %v5080, %v5130
        %v5132 = vpop.f32.mrb[0].mxu0
        %v5133 = vadd.f32 %v5082, %v5132
        %v5134 = vpop.f32.mrb[0].mxu0
        %v5135 = vadd.f32 %v5084, %v5134
        %5136 = vmatprep.mubr.bf16.mxu0 %v4704
        %5137 = vmatmul.mubr.bf16.gmra.mrb[0].mxu0 %v4703
        %v5138 = vpop.f32.mrb[0].mxu0
        %v5139 = vadd.f32 %v5088, %v5138
        %v5140 = vpop.f32.mrb[0].mxu0
        %v5141 = vadd.f32 %v5090, %v5140
        %v5142 = vpop.f32.mrb[0].mxu0
        %v5143 = vpop.f32.mrb[0].mxu0
        %5144 = vdwg.mxu0
        %5145 = vmatprep.subr.bf16.mxu0 %v2632
        %5146 = vmatpush1.bf16.msra.mxu0 %v2631
        %5147 = vmatprep.subr.bf16.mxu0 %v2636
        %5148 = vmatpush1.bf16.msra.mxu0 %v2635
        %5149 = vmatprep.subr.bf16.mxu0 %v2640
        %5150 = vmatpush1.bf16.msra.mxu0 %v2639
        %5151 = vmatprep.subr.bf16.mxu0 %v2644
        %5152 = vmatpush1.bf16.msra.mxu0 %v2643
        %5153 = vmatprep.subr.bf16.mxu0 %v2648
        %5154 = vmatpush1.bf16.msra.mxu0 %v2647
        %5155 = vmatprep.subr.bf16.mxu0 %v2652
        %5156 = vmatpush1.bf16.msra.mxu0 %v2651
        %5157 = vmatprep.subr.bf16.mxu0 %v2656
        %5158 = vmatpush1.bf16.msra.mxu0 %v2655
        %5159 = vmatprep.subr.bf16.mxu0 %v2660
        %5160 = vmatpush1.bf16.msra.mxu0 %v2659
        %5161 = vmatprep.subr.bf16.mxu0 %v2664
        %5162 = vmatpush1.bf16.msra.mxu0 %v2663
        %5163 = vmatprep.subr.bf16.mxu0 %v2668
        %5164 = vmatpush1.bf16.msra.mxu0 %v2667
        %5165 = vmatprep.subr.bf16.mxu0 %v2672
        %5166 = vmatpush1.bf16.msra.mxu0 %v2671
        %5167 = vmatprep.subr.bf16.mxu0 %v2676
        %5168 = vmatpush1.bf16.msra.mxu0 %v2675
        %5169 = vmatprep.subr.bf16.mxu0 %v2680
        %5170 = vmatpush1.bf16.msra.mxu0 %v2679
        %5171 = vmatprep.subr.bf16.mxu0 %v2684
        %5172 = vmatpush1.bf16.msra.mxu0 %v2683
        %5173 = vmatprep.subr.bf16.mxu0 %v2688
        %5174 = vmatpush1.bf16.msra.mxu0 %v2687
        %5175 = vmatprep.subr.bf16.mxu0 %v2692
        %5176 = vmatpush1.bf16.msra.mxu0 %v2691
        %5177 = vmatprep.mubr.bf16.mxu0 %v4674
        %5178 = vmatmul.mubr.bf16.gmra.mrb[0].mxu0 %v4673
        %v5179 = vpop.f32.mrb[0].mxu0
        %v5180 = vadd.f32 %v948, %v5179
        %v5181 = vpop.f32.mrb[0].mxu0
        %v5182 = vadd.f32 %v952, %v5181
        %v5183 = vpop.f32.mrb[0].mxu0
        %v5184 = vadd.f32 %v948, %v5183
        %v5185 = vpop.f32.mrb[0].mxu0
        %v5186 = vadd.f32 %v952, %v5185
        %5187 = vmatprep.mubr.bf16.mxu0 %v4690
        %5188 = vmatmul.mubr.bf16.gmra.mrb[0].mxu0 %v4689
        %v5189 = vpop.f32.mrb[0].mxu0
        %v5190 = vadd.f32 %v948, %v5189
        %v5191 = vpop.f32.mrb[0].mxu0
        %v5192 = vadd.f32 %v952, %v5191
        %v5193 = vpop.f32.mrb[0].mxu0
        %v5194 = vpop.f32.mrb[0].mxu0
        %5195 = vdwg.mxu0
        %5196 = vmatprep.subr.bf16.mxu0 %v2696
        %5197 = vmatpush1.bf16.msra.mxu0 %v2695
        %5198 = vmatprep.subr.bf16.mxu0 %v2700
        %5199 = vmatpush1.bf16.msra.mxu0 %v2699
        %5200 = vmatprep.subr.bf16.mxu0 %v2704
        %5201 = vmatpush1.bf16.msra.mxu0 %v2703
        %5202 = vmatprep.subr.bf16.mxu0 %v2708
        %5203 = vmatpush1.bf16.msra.mxu0 %v2707
        %5204 = vmatprep.subr.bf16.mxu0 %v2712
        %5205 = vmatpush1.bf16.msra.mxu0 %v2711
        %5206 = vmatprep.subr.bf16.mxu0 %v2716
        %5207 = vmatpush1.bf16.msra.mxu0 %v2715
        %5208 = vmatprep.subr.bf16.mxu0 %v2720
        %5209 = vmatpush1.bf16.msra.mxu0 %v2719
        %5210 = vmatprep.subr.bf16.mxu0 %v2724
        %5211 = vmatpush1.bf16.msra.mxu0 %v2723
        %5212 = vmatprep.subr.bf16.mxu0 %v2728
        %5213 = vmatpush1.bf16.msra.mxu0 %v2727
        %5214 = vmatprep.subr.bf16.mxu0 %v2732
        %5215 = vmatpush1.bf16.msra.mxu0 %v2731
        %5216 = vmatprep.subr.bf16.mxu0 %v2736
        %5217 = vmatpush1.bf16.msra.mxu0 %v2735
        %5218 = vmatprep.subr.bf16.mxu0 %v2740
        %5219 = vmatpush1.bf16.msra.mxu0 %v2739
        %5220 = vmatprep.subr.bf16.mxu0 %v2744
        %5221 = vmatpush1.bf16.msra.mxu0 %v2743
        %5222 = vmatprep.subr.bf16.mxu0 %v2748
        %5223 = vmatpush1.bf16.msra.mxu0 %v2747
        %5224 = vmatprep.subr.bf16.mxu0 %v2752
        %5225 = vmatpush1.bf16.msra.mxu0 %v2751
        %5226 = vmatprep.subr.bf16.mxu0 %v2756
        %5227 = vmatpush1.bf16.msra.mxu0 %v2755
        %5228 = vmatprep.mubr.bf16.mxu0 %v4676
        %5229 = vmatmul.mubr.bf16.gmra.mrb[0].mxu0 %v4675
        %v5230 = vpop.f32.mrb[0].mxu0
        %v5231 = vadd.f32 %v5180, %v5230
        %v5232 = vpop.f32.mrb[0].mxu0
        %v5233 = vadd.f32 %v5182, %v5232
        %v5234 = vpop.f32.mrb[0].mxu0
        %v5235 = vadd.f32 %v5184, %v5234
        %v5236 = vpop.f32.mrb[0].mxu0
        %v5237 = vadd.f32 %v5186, %v5236
        %5238 = vmatprep.mubr.bf16.mxu0 %v4692
        %5239 = vmatmul.mubr.bf16.gmra.mrb[0].mxu0 %v4691
        %v5240 = vpop.f32.mrb[0].mxu0
        %v5241 = vadd.f32 %v5190, %v5240
        %v5242 = vpop.f32.mrb[0].mxu0
        %v5243 = vadd.f32 %v5192, %v5242
        %v5244 = vpop.f32.mrb[0].mxu0
        %v5245 = vpop.f32.mrb[0].mxu0
        %5246 = vdwg.mxu0
        %5247 = vmatprep.subr.bf16.mxu0 %v2760
        %5248 = vmatpush1.bf16.msra.mxu0 %v2759
        %5249 = vmatprep.subr.bf16.mxu0 %v2764
        %5250 = vmatpush1.bf16.msra.mxu0 %v2763
        %5251 = vmatprep.subr.bf16.mxu0 %v2768
        %5252 = vmatpush1.bf16.msra.mxu0 %v2767
        %5253 = vmatprep.subr.bf16.mxu0 %v2772
        %5254 = vmatpush1.bf16.msra.mxu0 %v2771
        %5255 = vmatprep.subr.bf16.mxu0 %v2776
        %5256 = vmatpush1.bf16.msra.mxu0 %v2775
        %5257 = vmatprep.subr.bf16.mxu0 %v2780
        %5258 = vmatpush1.bf16.msra.mxu0 %v2779
        %5259 = vmatprep.subr.bf16.mxu0 %v2784
        %5260 = vmatpush1.bf16.msra.mxu0 %v2783
        %5261 = vmatprep.subr.bf16.mxu0 %v2788
        %5262 = vmatpush1.bf16.msra.mxu0 %v2787
        %5263 = vmatprep.subr.bf16.mxu0 %v2792
        %5264 = vmatpush1.bf16.msra.mxu0 %v2791
        %5265 = vmatprep.subr.bf16.mxu0 %v2796
        %5266 = vmatpush1.bf16.msra.mxu0 %v2795
        %5267 = vmatprep.subr.bf16.mxu0 %v2800
        %5268 = vmatpush1.bf16.msra.mxu0 %v2799
        %5269 = vmatprep.subr.bf16.mxu0 %v2804
        %5270 = vmatpush1.bf16.msra.mxu0 %v2803
        %5271 = vmatprep.subr.bf16.mxu0 %v2808
        %5272 = vmatpush1.bf16.msra.mxu0 %v2807
        %5273 = vmatprep.subr.bf16.mxu0 %v2812
        %5274 = vmatpush1.bf16.msra.mxu0 %v2811
        %5275 = vmatprep.subr.bf16.mxu0 %v2816
        %5276 = vmatpush1.bf16.msra.mxu0 %v2815
        %5277 = vmatprep.subr.bf16.mxu0 %v2820
        %5278 = vmatpush1.bf16.msra.mxu0 %v2819
        %5279 = vmatprep.mubr.bf16.mxu0 %v4678
        %5280 = vmatmul.mubr.bf16.gmra.mrb[0].mxu0 %v4677
        %v5281 = vpop.f32.mrb[0].mxu0
        %v5282 = vadd.f32 %v5231, %v5281
        %v5283 = vpop.f32.mrb[0].mxu0
        %v5284 = vadd.f32 %v5233, %v5283
        %v5285 = vpop.f32.mrb[0].mxu0
        %v5286 = vadd.f32 %v5235, %v5285
        %v5287 = vpop.f32.mrb[0].mxu0
        %v5288 = vadd.f32 %v5237, %v5287
        %5289 = vmatprep.mubr.bf16.mxu0 %v4694
        %5290 = vmatmul.mubr.bf16.gmra.mrb[0].mxu0 %v4693
        %v5291 = vpop.f32.mrb[0].mxu0
        %v5292 = vadd.f32 %v5241, %v5291
        %v5293 = vpop.f32.mrb[0].mxu0
        %v5294 = vadd.f32 %v5243, %v5293
        %v5295 = vpop.f32.mrb[0].mxu0
        %v5296 = vpop.f32.mrb[0].mxu0
        %5297 = vdwg.mxu0
        %5298 = vmatprep.subr.bf16.mxu0 %v2824
        %5299 = vmatpush1.bf16.msra.mxu0 %v2823
        %5300 = vmatprep.subr.bf16.mxu0 %v2828
        %5301 = vmatpush1.bf16.msra.mxu0 %v2827
        %5302 = vmatprep.subr.bf16.mxu0 %v2832
        %5303 = vmatpush1.bf16.msra.mxu0 %v2831
        %5304 = vmatprep.subr.bf16.mxu0 %v2836
        %5305 = vmatpush1.bf16.msra.mxu0 %v2835
        %5306 = vmatprep.subr.bf16.mxu0 %v2840
        %5307 = vmatpush1.bf16.msra.mxu0 %v2839
        %5308 = vmatprep.subr.bf16.mxu0 %v2844
        %5309 = vmatpush1.bf16.msra.mxu0 %v2843
        %5310 = vmatprep.subr.bf16.mxu0 %v2848
        %5311 = vmatpush1.bf16.msra.mxu0 %v2847
        %5312 = vmatprep.subr.bf16.mxu0 %v2852
        %5313 = vmatpush1.bf16.msra.mxu0 %v2851
        %5314 = vmatprep.subr.bf16.mxu0 %v2856
        %5315 = vmatpush1.bf16.msra.mxu0 %v2855
        %5316 = vmatprep.subr.bf16.mxu0 %v2860
        %5317 = vmatpush1.bf16.msra.mxu0 %v2859
        %5318 = vmatprep.subr.bf16.mxu0 %v2864
        %5319 = vmatpush1.bf16.msra.mxu0 %v2863
        %5320 = vmatprep.subr.bf16.mxu0 %v2868
        %5321 = vmatpush1.bf16.msra.mxu0 %v2867
        %5322 = vmatprep.subr.bf16.mxu0 %v2872
        %5323 = vmatpush1.bf16.msra.mxu0 %v2871
        %5324 = vmatprep.subr.bf16.mxu0 %v2876
        %5325 = vmatpush1.bf16.msra.mxu0 %v2875
        %5326 = vmatprep.subr.bf16.mxu0 %v2880
        %5327 = vmatpush1.bf16.msra.mxu0 %v2879
        %5328 = vmatprep.subr.bf16.mxu0 %v2884
        %5329 = vmatpush1.bf16.msra.mxu0 %v2883
        %5330 = vmatprep.mubr.bf16.mxu0 %v4680
        %5331 = vmatmul.mubr.bf16.gmra.mrb[0].mxu0 %v4679
        %v5332 = vpop.f32.mrb[0].mxu0
        %v5333 = vadd.f32 %v5282, %v5332
        %v5334 = vpop.f32.mrb[0].mxu0
        %v5335 = vadd.f32 %v5284, %v5334
        %v5336 = vpop.f32.mrb[0].mxu0
        %v5337 = vadd.f32 %v5286, %v5336
        %v5338 = vpop.f32.mrb[0].mxu0
        %v5339 = vadd.f32 %v5288, %v5338
        %5340 = vmatprep.mubr.bf16.mxu0 %v4696
        %5341 = vmatmul.mubr.bf16.gmra.mrb[0].mxu0 %v4695
        %v5342 = vpop.f32.mrb[0].mxu0
        %v5343 = vadd.f32 %v5292, %v5342
        %v5344 = vpop.f32.mrb[0].mxu0
        %v5345 = vadd.f32 %v5294, %v5344
        %v5346 = vpop.f32.mrb[0].mxu0
        %v5347 = vpop.f32.mrb[0].mxu0
        %5348 = vdwg.mxu0
        %5349 = vmatprep.subr.bf16.mxu0 %v2888
        %5350 = vmatpush1.bf16.msra.mxu0 %v2887
        %5351 = vmatprep.subr.bf16.mxu0 %v2892
        %5352 = vmatpush1.bf16.msra.mxu0 %v2891
        %5353 = vmatprep.subr.bf16.mxu0 %v2896
        %5354 = vmatpush1.bf16.msra.mxu0 %v2895
        %5355 = vmatprep.subr.bf16.mxu0 %v2900
        %5356 = vmatpush1.bf16.msra.mxu0 %v2899
        %5357 = vmatprep.subr.bf16.mxu0 %v2904
        %5358 = vmatpush1.bf16.msra.mxu0 %v2903
        %5359 = vmatprep.subr.bf16.mxu0 %v2908
        %5360 = vmatpush1.bf16.msra.mxu0 %v2907
        %5361 = vmatprep.subr.bf16.mxu0 %v2912
        %5362 = vmatpush1.bf16.msra.mxu0 %v2911
        %5363 = vmatprep.subr.bf16.mxu0 %v2916
        %5364 = vmatpush1.bf16.msra.mxu0 %v2915
        %5365 = vmatprep.subr.bf16.mxu0 %v2920
        %5366 = vmatpush1.bf16.msra.mxu0 %v2919
        %5367 = vmatprep.subr.bf16.mxu0 %v2924
        %5368 = vmatpush1.bf16.msra.mxu0 %v2923
        %5369 = vmatprep.subr.bf16.mxu0 %v2928
        %5370 = vmatpush1.bf16.msra.mxu0 %v2927
        %5371 = vmatprep.subr.bf16.mxu0 %v2932
        %5372 = vmatpush1.bf16.msra.mxu0 %v2931
        %5373 = vmatprep.subr.bf16.mxu0 %v2936
        %5374 = vmatpush1.bf16.msra.mxu0 %v2935
        %5375 = vmatprep.subr.bf16.mxu0 %v2940
        %5376 = vmatpush1.bf16.msra.mxu0 %v2939
        %5377 = vmatprep.subr.bf16.mxu0 %v2944
        %5378 = vmatpush1.bf16.msra.mxu0 %v2943
        %5379 = vmatprep.subr.bf16.mxu0 %v2948
        %5380 = vmatpush1.bf16.msra.mxu0 %v2947
        %5381 = vmatprep.mubr.bf16.mxu0 %v4682
        %5382 = vmatmul.mubr.bf16.gmra.mrb[0].mxu0 %v4681
        %v5383 = vpop.f32.mrb[0].mxu0
        %v5384 = vadd.f32 %v5333, %v5383
        %v5385 = vpop.f32.mrb[0].mxu0
        %v5386 = vadd.f32 %v5335, %v5385
        %v5387 = vpop.f32.mrb[0].mxu0
        %v5388 = vadd.f32 %v5337, %v5387
        %v5389 = vpop.f32.mrb[0].mxu0
        %v5390 = vadd.f32 %v5339, %v5389
        %5391 = vmatprep.mubr.bf16.mxu0 %v4698
        %5392 = vmatmul.mubr.bf16.gmra.mrb[0].mxu0 %v4697
        %v5393 = vpop.f32.mrb[0].mxu0
        %v5394 = vadd.f32 %v5343, %v5393
        %v5395 = vpop.f32.mrb[0].mxu0
        %v5396 = vadd.f32 %v5345, %v5395
        %v5397 = vpop.f32.mrb[0].mxu0
        %v5398 = vpop.f32.mrb[0].mxu0
        %5399 = vdwg.mxu0
        %5400 = vmatprep.subr.bf16.mxu0 %v2952
        %5401 = vmatpush1.bf16.msra.mxu0 %v2951
        %5402 = vmatprep.subr.bf16.mxu0 %v2956
        %5403 = vmatpush1.bf16.msra.mxu0 %v2955
        %5404 = vmatprep.subr.bf16.mxu0 %v2960
        %5405 = vmatpush1.bf16.msra.mxu0 %v2959
        %5406 = vmatprep.subr.bf16.mxu0 %v2964
        %5407 = vmatpush1.bf16.msra.mxu0 %v2963
        %5408 = vmatprep.subr.bf16.mxu0 %v2968
        %5409 = vmatpush1.bf16.msra.mxu0 %v2967
        %5410 = vmatprep.subr.bf16.mxu0 %v2972
        %5411 = vmatpush1.bf16.msra.mxu0 %v2971
        %5412 = vmatprep.subr.bf16.mxu0 %v2976
        %5413 = vmatpush1.bf16.msra.mxu0 %v2975
        %5414 = vmatprep.subr.bf16.mxu0 %v2980
        %5415 = vmatpush1.bf16.msra.mxu0 %v2979
        %5416 = vmatprep.subr.bf16.mxu0 %v2984
        %5417 = vmatpush1.bf16.msra.mxu0 %v2983
        %5418 = vmatprep.subr.bf16.mxu0 %v2988
        %5419 = vmatpush1.bf16.msra.mxu0 %v2987
        %5420 = vmatprep.subr.bf16.mxu0 %v2992
        %5421 = vmatpush1.bf16.msra.mxu0 %v2991
        %5422 = vmatprep.subr.bf16.mxu0 %v2996
        %5423 = vmatpush1.bf16.msra.mxu0 %v2995
        %5424 = vmatprep.subr.bf16.mxu0 %v3000
        %5425 = vmatpush1.bf16.msra.mxu0 %v2999
        %5426 = vmatprep.subr.bf16.mxu0 %v3004
        %5427 = vmatpush1.bf16.msra.mxu0 %v3003
        %5428 = vmatprep.subr.bf16.mxu0 %v3008
        %5429 = vmatpush1.bf16.msra.mxu0 %v3007
        %5430 = vmatprep.subr.bf16.mxu0 %v3012
        %5431 = vmatpush1.bf16.msra.mxu0 %v3011
        %5432 = vmatprep.mubr.bf16.mxu0 %v4684
        %5433 = vmatmul.mubr.bf16.gmra.mrb[0].mxu0 %v4683
        %v5434 = vpop.f32.mrb[0].mxu0
        %v5435 = vadd.f32 %v5384, %v5434
        %v5436 = vpop.f32.mrb[0].mxu0
        %v5437 = vadd.f32 %v5386, %v5436
        %v5438 = vpop.f32.mrb[0].mxu0
        %v5439 = vadd.f32 %v5388, %v5438
        %v5440 = vpop.f32.mrb[0].mxu0
        %v5441 = vadd.f32 %v5390, %v5440
        %5442 = vmatprep.mubr.bf16.mxu0 %v4700
        %5443 = vmatmul.mubr.bf16.gmra.mrb[0].mxu0 %v4699
        %v5444 = vpop.f32.mrb[0].mxu0
        %v5445 = vadd.f32 %v5394, %v5444
        %v5446 = vpop.f32.mrb[0].mxu0
        %v5447 = vadd.f32 %v5396, %v5446
        %v5448 = vpop.f32.mrb[0].mxu0
        %v5449 = vpop.f32.mrb[0].mxu0
        %5450 = vdwg.mxu0
        %5451 = vmatprep.subr.bf16.mxu0 %v3016
        %5452 = vmatpush1.bf16.msra.mxu0 %v3015
        %5453 = vmatprep.subr.bf16.mxu0 %v3020
        %5454 = vmatpush1.bf16.msra.mxu0 %v3019
        %5455 = vmatprep.subr.bf16.mxu0 %v3024
        %5456 = vmatpush1.bf16.msra.mxu0 %v3023
        %5457 = vmatprep.subr.bf16.mxu0 %v3028
        %5458 = vmatpush1.bf16.msra.mxu0 %v3027
        %5459 = vmatprep.subr.bf16.mxu0 %v3032
        %5460 = vmatpush1.bf16.msra.mxu0 %v3031
        %5461 = vmatprep.subr.bf16.mxu0 %v3036
        %5462 = vmatpush1.bf16.msra.mxu0 %v3035
        %5463 = vmatprep.subr.bf16.mxu0 %v3040
        %5464 = vmatpush1.bf16.msra.mxu0 %v3039
        %5465 = vmatprep.subr.bf16.mxu0 %v3044
        %5466 = vmatpush1.bf16.msra.mxu0 %v3043
        %5467 = vmatprep.subr.bf16.mxu0 %v3048
        %5468 = vmatpush1.bf16.msra.mxu0 %v3047
        %5469 = vmatprep.subr.bf16.mxu0 %v3052
        %5470 = vmatpush1.bf16.msra.mxu0 %v3051
        %5471 = vmatprep.subr.bf16.mxu0 %v3056
        %5472 = vmatpush1.bf16.msra.mxu0 %v3055
        %5473 = vmatprep.subr.bf16.mxu0 %v3060
        %5474 = vmatpush1.bf16.msra.mxu0 %v3059
        %5475 = vmatprep.subr.bf16.mxu0 %v3064
        %5476 = vmatpush1.bf16.msra.mxu0 %v3063
        %5477 = vmatprep.subr.bf16.mxu0 %v3068
        %5478 = vmatpush1.bf16.msra.mxu0 %v3067
        %5479 = vmatprep.subr.bf16.mxu0 %v3072
        %5480 = vmatpush1.bf16.msra.mxu0 %v3071
        %5481 = vmatprep.subr.bf16.mxu0 %v3076
        %5482 = vmatpush1.bf16.msra.mxu0 %v3075
        %5483 = vmatprep.mubr.bf16.mxu0 %v4686
        %5484 = vmatmul.mubr.bf16.gmra.mrb[0].mxu0 %v4685
        %v5485 = vpop.f32.mrb[0].mxu0
        %v5486 = vadd.f32 %v5435, %v5485
        %v5487 = vpop.f32.mrb[0].mxu0
        %v5488 = vadd.f32 %v5437, %v5487
        %v5489 = vpop.f32.mrb[0].mxu0
        %v5490 = vadd.f32 %v5439, %v5489
        %v5491 = vpop.f32.mrb[0].mxu0
        %v5492 = vadd.f32 %v5441, %v5491
        %5493 = vmatprep.mubr.bf16.mxu0 %v4702
        %5494 = vmatmul.mubr.bf16.gmra.mrb[0].mxu0 %v4701
        %v5495 = vpop.f32.mrb[0].mxu0
        %v5496 = vadd.f32 %v5445, %v5495
        %v5497 = vpop.f32.mrb[0].mxu0
        %v5498 = vadd.f32 %v5447, %v5497
        %v5499 = vpop.f32.mrb[0].mxu0
        %v5500 = vpop.f32.mrb[0].mxu0
        %5501 = vdwg.mxu0
        %5502 = vmatprep.subr.bf16.mxu0 %v3080
        %5503 = vmatpush1.bf16.msra.mxu0 %v3079
        %5504 = vmatprep.subr.bf16.mxu0 %v3084
        %5505 = vmatpush1.bf16.msra.mxu0 %v3083
        %5506 = vmatprep.subr.bf16.mxu0 %v3088
        %5507 = vmatpush1.bf16.msra.mxu0 %v3087
        %5508 = vmatprep.subr.bf16.mxu0 %v3092
        %5509 = vmatpush1.bf16.msra.mxu0 %v3091
        %5510 = vmatprep.subr.bf16.mxu0 %v3096
        %5511 = vmatpush1.bf16.msra.mxu0 %v3095
        %5512 = vmatprep.subr.bf16.mxu0 %v3100
        %5513 = vmatpush1.bf16.msra.mxu0 %v3099
        %5514 = vmatprep.subr.bf16.mxu0 %v3104
        %5515 = vmatpush1.bf16.msra.mxu0 %v3103
        %5516 = vmatprep.subr.bf16.mxu0 %v3108
        %5517 = vmatpush1.bf16.msra.mxu0 %v3107
        %5518 = vmatprep.subr.bf16.mxu0 %v3112
        %5519 = vmatpush1.bf16.msra.mxu0 %v3111
        %5520 = vmatprep.subr.bf16.mxu0 %v3116
        %5521 = vmatpush1.bf16.msra.mxu0 %v3115
        %5522 = vmatprep.subr.bf16.mxu0 %v3120
        %5523 = vmatpush1.bf16.msra.mxu0 %v3119
        %5524 = vmatprep.subr.bf16.mxu0 %v3124
        %5525 = vmatpush1.bf16.msra.mxu0 %v3123
        %5526 = vmatprep.subr.bf16.mxu0 %v3128
        %5527 = vmatpush1.bf16.msra.mxu0 %v3127
        %5528 = vmatprep.subr.bf16.mxu0 %v3132
        %5529 = vmatpush1.bf16.msra.mxu0 %v3131
        %5530 = vmatprep.subr.bf16.mxu0 %v3136
        %5531 = vmatpush1.bf16.msra.mxu0 %v3135
        %5532 = vmatprep.subr.bf16.mxu0 %v3140
        %5533 = vmatpush1.bf16.msra.mxu0 %v3139
        %5534 = vmatprep.mubr.bf16.mxu0 %v4688
        %5535 = vmatmul.mubr.bf16.gmra.mrb[0].mxu0 %v4687
        %v5536 = vpop.f32.mrb[0].mxu0
        %v5537 = vadd.f32 %v5486, %v5536
        %v5538 = vpop.f32.mrb[0].mxu0
        %v5539 = vadd.f32 %v5488, %v5538
        %v5540 = vpop.f32.mrb[0].mxu0
        %v5541 = vadd.f32 %v5490, %v5540
        %v5542 = vpop.f32.mrb[0].mxu0
        %v5543 = vadd.f32 %v5492, %v5542
        %5544 = vmatprep.mubr.bf16.mxu0 %v4704
        %5545 = vmatmul.mubr.bf16.gmra.mrb[0].mxu0 %v4703
        %v5546 = vpop.f32.mrb[0].mxu0
        %v5547 = vadd.f32 %v5496, %v5546
        %v5548 = vpop.f32.mrb[0].mxu0
        %v5549 = vadd.f32 %v5498, %v5548
        %v5550 = vpop.f32.mrb[0].mxu0
        %v5551 = vpop.f32.mrb[0].mxu0
        %5552 = vdwg.mxu0
        %vm5553 = vcmp.gt.f32.partialorder %v5129, 0.0
        %vm5554 = vcmp.gt.f32.partialorder %v5131, 0.0
        %vm5555 = vcmp.gt.f32.partialorder %v5537, 0.0
        %vm5556 = vcmp.gt.f32.partialorder %v5539, 0.0
        %vm5557 = vcmp.gt.f32.partialorder %v5133, 0.0
        %vm5558 = vcmp.gt.f32.partialorder %v5135, 0.0
        %vm5559 = vcmp.gt.f32.partialorder %v5541, 0.0
        %vm5560 = vcmp.gt.f32.partialorder %v5543, 0.0
        %vm5561 = vcmp.gt.f32.partialorder %v5139, 0.0
        %vm5562 = vcmp.gt.f32.partialorder %v5141, 0.0
        %vm5563 = vcmp.gt.f32.partialorder %v5547, 0.0
        %vm5564 = vcmp.gt.f32.partialorder %v5549, 0.0
        %v5565 = vmul.f32 %v5129, 0.25
        %v5566 = vmul.f32 %v5131, 0.25
        %v5567 = vmul.f32 %v5537, 0.25
        %v5568 = vmul.f32 %v5539, 0.25
        %v5569 = vmul.f32 %v5133, 0.25
        %v5570 = vmul.f32 %v5135, 0.25
        %v5571 = vmul.f32 %v5541, 0.25
        %v5572 = vmul.f32 %v5543, 0.25
        %v5573 = vmul.f32 %v5139, 0.25
        %v5574 = vmul.f32 %v5141, 0.25
        %v5575 = vmul.f32 %v5547, 0.25
        %v5576 = vmul.f32 %v5549, 0.25
        %v5577 = vsel %vm5553, %v5129, %v5565
        %v5578 = vsel %vm5554, %v5131, %v5566
        %v5579 = vsel %vm5555, %v5537, %v5567
        %v5580 = vsel %vm5556, %v5539, %v5568
        %v5581 = vsel %vm5557, %v5133, %v5569
        %v5582 = vsel %vm5558, %v5135, %v5570
        %v5583 = vsel %vm5559, %v5541, %v5571
        %v5584 = vsel %vm5560, %v5543, %v5572
        %v5585 = vsel %vm5561, %v5139, %v5573
        %v5586 = vsel %vm5562, %v5141, %v5574
        %v5587 = vsel %vm5563, %v5547, %v5575
        %v5588 = vsel %vm5564, %v5549, %v5576
        %v5589 = vpack.c.bf16 %v5581, %v5577
        %v5590 = vpack.c.bf16 %v5582, %v5578
        %v5591 = vpack.c.bf16 %v5583, %v5579
        %v5592 = vpack.c.bf16 %v5584, %v5580
        %v5593 = vpack.c.bf16 %v5585, %v5585
        %v5594 = vpack.c.bf16 %v5586, %v5586
        %v5595 = vpack.c.bf16 %v5587, %v5587
        %v5596 = vpack.c.bf16 %v5588, %v5588
        %v5597 = vld [vmem:[%s3 + $0x100] sm:$0xf]
        %v5598 = vld [vmem:[%s3 + $0x104] sm:$0xf]
        %v5599 = vld [vmem:[%s3 + $0x108] sm:$0xf]
        %v5600 = vld [vmem:[%s3 + $0x10c] sm:$0xf]
        %v5601 = vld [vmem:[%s3 + $0x110] sm:$0xf]
        %v5602 = vld [vmem:[%s3 + $0x114] sm:$0xf]
        %v5603 = vld [vmem:[%s3 + $0x118] sm:$0xf]
        %v5604 = vld [vmem:[%s3 + $0x11c] sm:$0xf]
        %v5605 = vld [vmem:[%s3 + $0x120] sm:$0xf]
        %v5606 = vld [vmem:[%s3 + $0x124] sm:$0xf]
        %v5607 = vld [vmem:[%s3 + $0x128] sm:$0xf]
        %v5608 = vld [vmem:[%s3 + $0x12c] sm:$0xf]
        %v5609 = vld [vmem:[%s3 + $0x130] sm:$0xf]
        %v5610 = vld [vmem:[%s3 + $0x134] sm:$0xf]
        %v5611 = vld [vmem:[%s3 + $0x138] sm:$0xf]
        %v5612 = vld [vmem:[%s3 + $0x13c] sm:$0xf]
        %v5613 = vld [vmem:[%s3 + $0x140] sm:$0xf]
        %v5614 = vld [vmem:[%s3 + $0x144] sm:$0xf]
        %v5615 = vld [vmem:[%s3 + $0x148] sm:$0xf]
        %v5616 = vld [vmem:[%s3 + $0x14c] sm:$0xf]
        %v5617 = vld [vmem:[%s3 + $0x150] sm:$0xf]
        %v5618 = vld [vmem:[%s3 + $0x154] sm:$0xf]
        %v5619 = vld [vmem:[%s3 + $0x158] sm:$0xf]
        %v5620 = vld [vmem:[%s3 + $0x15c] sm:$0xf]
        %v5621 = vld [vmem:[%s3 + $0x160] sm:$0xf]
        %v5622 = vld [vmem:[%s3 + $0x164] sm:$0xf]
        %v5623 = vld [vmem:[%s3 + $0x168] sm:$0xf]
        %v5624 = vld [vmem:[%s3 + $0x16c] sm:$0xf]
        %v5625 = vld [vmem:[%s3 + $0x170] sm:$0xf]
        %v5626 = vld [vmem:[%s3 + $0x174] sm:$0xf]
        %v5627 = vld [vmem:[%s3 + $0x178] sm:$0xf]
        %v5628 = vld [vmem:[%s3 + $0x17c] sm:$0xf]
        %v5629 = vld [vmem:[%s3 + $0x180] sm:$0xf]
        %v5630 = vld [vmem:[%s3 + $0x184] sm:$0xf]
        %v5631 = vld [vmem:[%s3 + $0x188] sm:$0xf]
        %v5632 = vld [vmem:[%s3 + $0x18c] sm:$0xf]
        %v5633 = vld [vmem:[%s3 + $0x190] sm:$0xf]
        %v5634 = vld [vmem:[%s3 + $0x194] sm:$0xf]
        %v5635 = vld [vmem:[%s3 + $0x198] sm:$0xf]
        %v5636 = vld [vmem:[%s3 + $0x19c] sm:$0xf]
        %v5637 = vld [vmem:[%s3 + $0x1a0] sm:$0xf]
        %v5638 = vld [vmem:[%s3 + $0x1a4] sm:$0xf]
        %v5639 = vld [vmem:[%s3 + $0x1a8] sm:$0xf]
        %v5640 = vld [vmem:[%s3 + $0x1ac] sm:$0xf]
        %v5641 = vld [vmem:[%s3 + $0x1b0] sm:$0xf]
        %v5642 = vld [vmem:[%s3 + $0x1b4] sm:$0xf]
        %v5643 = vld [vmem:[%s3 + $0x1b8] sm:$0xf]
        %v5644 = vld [vmem:[%s3 + $0x1bc] sm:$0xf]
        %v5645 = vld [vmem:[%s3 + $0x1c0] sm:$0xf]
        %v5646 = vld [vmem:[%s3 + $0x1c4] sm:$0xf]
        %v5647 = vld [vmem:[%s3 + $0x1c8] sm:$0xf]
        %v5648 = vld [vmem:[%s3 + $0x1cc] sm:$0xf]
        %v5649 = vld [vmem:[%s3 + $0x1d0] sm:$0xf]
        %v5650 = vld [vmem:[%s3 + $0x1d4] sm:$0xf]
        %v5651 = vld [vmem:[%s3 + $0x1d8] sm:$0xf]
        %v5652 = vld [vmem:[%s3 + $0x1dc] sm:$0xf]
        %v5653 = vld [vmem:[%s3 + $0x1e0] sm:$0xf]
        %v5654 = vld [vmem:[%s3 + $0x1e4] sm:$0xf]
        %v5655 = vld [vmem:[%s3 + $0x1e8] sm:$0xf]
        %v5656 = vld [vmem:[%s3 + $0x1ec] sm:$0xf]
        %v5657 = vld [vmem:[%s3 + $0x1f0] sm:$0xf]
        %v5658 = vld [vmem:[%s3 + $0x1f4] sm:$0xf]
        %v5659 = vld [vmem:[%s3 + $0x1f8] sm:$0xf]
        %v5660 = vld [vmem:[%s3 + $0x1fc] sm:$0xf]
        %v5725 = vunpack.c.l.b16 %v5597
        %v5726 = vunpack.c.l.b16 %v5598
        %v5727 = vunpack.c.l.b16 %v5599
        %v5728 = vunpack.c.l.b16 %v5600
        %v5729 = vunpack.c.l.b16 %v5601
        %v5730 = vunpack.c.l.b16 %v5602
        %v5731 = vunpack.c.l.b16 %v5603
        %v5732 = vunpack.c.l.b16 %v5604
        %v5733 = vunpack.c.l.b16 %v5605
        %v5734 = vunpack.c.l.b16 %v5606
        %v5735 = vunpack.c.l.b16 %v5607
        %v5736 = vunpack.c.l.b16 %v5608
        %v5737 = vunpack.c.l.b16 %v5609
        %v5738 = vunpack.c.l.b16 %v5610
        %v5739 = vunpack.c.l.b16 %v5611
        %v5740 = vunpack.c.l.b16 %v5612
        %v5741 = vunpack.c.l.b16 %v5613
        %v5742 = vunpack.c.l.b16 %v5614
        %v5743 = vunpack.c.l.b16 %v5615
        %v5744 = vunpack.c.l.b16 %v5616
        %v5745 = vunpack.c.l.b16 %v5617
        %v5746 = vunpack.c.l.b16 %v5618
        %v5747 = vunpack.c.l.b16 %v5619
        %v5748 = vunpack.c.l.b16 %v5620
        %v5749 = vunpack.c.l.b16 %v5621
        %v5750 = vunpack.c.l.b16 %v5622
        %v5751 = vunpack.c.l.b16 %v5623
        %v5752 = vunpack.c.l.b16 %v5624
        %v5753 = vunpack.c.l.b16 %v5625
        %v5754 = vunpack.c.l.b16 %v5626
        %v5755 = vunpack.c.l.b16 %v5627
        %v5756 = vunpack.c.l.b16 %v5628
        %v5757 = vunpack.c.l.b16 %v5629
        %v5758 = vunpack.c.l.b16 %v5630
        %v5759 = vunpack.c.l.b16 %v5631
        %v5760 = vunpack.c.l.b16 %v5632
        %v5761 = vunpack.c.l.b16 %v5633
        %v5762 = vunpack.c.l.b16 %v5634
        %v5763 = vunpack.c.l.b16 %v5635
        %v5764 = vunpack.c.l.b16 %v5636
        %v5765 = vunpack.c.l.b16 %v5637
        %v5766 = vunpack.c.l.b16 %v5638
        %v5767 = vunpack.c.l.b16 %v5639
        %v5768 = vunpack.c.l.b16 %v5640
        %v5769 = vunpack.c.l.b16 %v5641
        %v5770 = vunpack.c.l.b16 %v5642
        %v5771 = vunpack.c.l.b16 %v5643
        %v5772 = vunpack.c.l.b16 %v5644
        %v5773 = vunpack.c.l.b16 %v5645
        %v5774 = vunpack.c.l.b16 %v5646
        %v5775 = vunpack.c.l.b16 %v5647
        %v5776 = vunpack.c.l.b16 %v5648
        %v5777 = vunpack.c.l.b16 %v5649
        %v5778 = vunpack.c.l.b16 %v5650
        %v5779 = vunpack.c.l.b16 %v5651
        %v5780 = vunpack.c.l.b16 %v5652
        %v5781 = vunpack.c.l.b16 %v5653
        %v5782 = vunpack.c.l.b16 %v5654
        %v5783 = vunpack.c.l.b16 %v5655
        %v5784 = vunpack.c.l.b16 %v5656
        %v5785 = vunpack.c.l.b16 %v5657
        %v5786 = vunpack.c.l.b16 %v5658
        %v5787 = vunpack.c.l.b16 %v5659
        %v5788 = vunpack.c.l.b16 %v5660
        %v5789 = vpack.c.b16 %v5726, %v5725
        %v5790 = vpack.c.b16 %v5728, %v5727
        %v5791 = vpack.c.b16 %v5730, %v5729
        %v5792 = vpack.c.b16 %v5732, %v5731
        %v5793 = vpack.c.b16 %v5734, %v5733
        %v5794 = vpack.c.b16 %v5736, %v5735
        %v5795 = vpack.c.b16 %v5738, %v5737
        %v5796 = vpack.c.b16 %v5740, %v5739
        %v5797 = vpack.c.b16 %v5742, %v5741
        %v5798 = vpack.c.b16 %v5744, %v5743
        %v5799 = vpack.c.b16 %v5746, %v5745
        %v5800 = vpack.c.b16 %v5748, %v5747
        %v5801 = vpack.c.b16 %v5750, %v5749
        %v5802 = vpack.c.b16 %v5752, %v5751
        %v5803 = vpack.c.b16 %v5754, %v5753
        %v5804 = vpack.c.b16 %v5756, %v5755
        %v5805 = vpack.c.b16 %v5758, %v5757
        %v5806 = vpack.c.b16 %v5760, %v5759
        %v5807 = vpack.c.b16 %v5762, %v5761
        %v5808 = vpack.c.b16 %v5764, %v5763
        %v5809 = vpack.c.b16 %v5766, %v5765
        %v5810 = vpack.c.b16 %v5768, %v5767
        %v5811 = vpack.c.b16 %v5770, %v5769
        %v5812 = vpack.c.b16 %v5772, %v5771
        %v5813 = vpack.c.b16 %v5774, %v5773
        %v5814 = vpack.c.b16 %v5776, %v5775
        %v5815 = vpack.c.b16 %v5778, %v5777
        %v5816 = vpack.c.b16 %v5780, %v5779
        %v5817 = vpack.c.b16 %v5782, %v5781
        %v5818 = vpack.c.b16 %v5784, %v5783
        %v5819 = vpack.c.b16 %v5786, %v5785
        %v5820 = vpack.c.b16 %v5788, %v5787
        %5853 = vmatprep.subr.bf16.mxu0 0
        %5854 = vmatpush1.bf16.msra.mxu0 %v5789
        %5855 = vmatprep.subr.bf16.mxu0 0
        %5856 = vmatpush1.bf16.msra.mxu0 %v5790
        %5857 = vmatprep.subr.bf16.mxu0 0
        %5858 = vmatpush1.bf16.msra.mxu0 %v5791
        %5859 = vmatprep.subr.bf16.mxu0 0
        %5860 = vmatpush1.bf16.msra.mxu0 %v5792
        %5861 = vmatprep.subr.bf16.mxu0 0
        %5862 = vmatpush1.bf16.msra.mxu0 %v5793
        %5863 = vmatprep.subr.bf16.mxu0 0
        %5864 = vmatpush1.bf16.msra.mxu0 %v5794
        %5865 = vmatprep.subr.bf16.mxu0 0
        %5866 = vmatpush1.bf16.msra.mxu0 %v5795
        %5867 = vmatprep.subr.bf16.mxu0 0
        %5868 = vmatpush1.bf16.msra.mxu0 %v5796
        %5869 = vmatprep.subr.bf16.mxu0 0
        %5870 = vmatpush1.bf16.msra.mxu0 %v5797
        %5871 = vmatprep.subr.bf16.mxu0 0
        %5872 = vmatpush1.bf16.msra.mxu0 %v5798
        %5873 = vmatprep.subr.bf16.mxu0 0
        %5874 = vmatpush1.bf16.msra.mxu0 %v5799
        %5875 = vmatprep.subr.bf16.mxu0 0
        %5876 = vmatpush1.bf16.msra.mxu0 %v5800
        %5877 = vmatprep.subr.bf16.mxu0 0
        %5878 = vmatpush1.bf16.msra.mxu0 %v5801
        %5879 = vmatprep.subr.bf16.mxu0 0
        %5880 = vmatpush1.bf16.msra.mxu0 %v5802
        %5881 = vmatprep.subr.bf16.mxu0 0
        %5882 = vmatpush1.bf16.msra.mxu0 %v5803
        %5883 = vmatprep.subr.bf16.mxu0 0
        %5884 = vmatpush1.bf16.msra.mxu0 %v5804
        %5885 = vmatprep.mubr.bf16.mxu0 %v5590
        %5886 = vmatmul.mubr.bf16.gmra.mrb[0].mxu0 %v5589
        %v5887 = vpop.f32.mrb[0].mxu0
        %v5888 = vadd.f32 0.0, %v5887
        %v5889 = vpop.f32.mrb[0].mxu0
        %v5890 = vpop.f32.mrb[0].mxu0
        %v5891 = vadd.f32 0.0, %v5890
        %v5892 = vpop.f32.mrb[0].mxu0
        %5893 = vmatprep.mubr.bf16.mxu0 %v5594
        %5894 = vmatmul.mubr.bf16.gmra.mrb[0].mxu0 %v5593
        %v5895 = vpop.f32.mrb[0].mxu0
        %v5896 = vadd.f32 0.0, %v5895
        %v5897 = vpop.f32.mrb[0].mxu0
        %v5898 = vpop.f32.mrb[0].mxu0
        %v5899 = vpop.f32.mrb[0].mxu0
        %5900 = vdwg.mxu0
        %5901 = vmatprep.subr.bf16.mxu0 0
        %5902 = vmatpush1.bf16.msra.mxu0 %v5805
        %5903 = vmatprep.subr.bf16.mxu0 0
        %5904 = vmatpush1.bf16.msra.mxu0 %v5806
        %5905 = vmatprep.subr.bf16.mxu0 0
        %5906 = vmatpush1.bf16.msra.mxu0 %v5807
        %5907 = vmatprep.subr.bf16.mxu0 0
        %5908 = vmatpush1.bf16.msra.mxu0 %v5808
        %5909 = vmatprep.subr.bf16.mxu0 0
        %5910 = vmatpush1.bf16.msra.mxu0 %v5809
        %5911 = vmatprep.subr.bf16.mxu0 0
        %5912 = vmatpush1.bf16.msra.mxu0 %v5810
        %5913 = vmatprep.subr.bf16.mxu0 0
        %5914 = vmatpush1.bf16.msra.mxu0 %v5811
        %5915 = vmatprep.subr.bf16.mxu0 0
        %5916 = vmatpush1.bf16.msra.mxu0 %v5812
        %5917 = vmatprep.subr.bf16.mxu0 0
        %5918 = vmatpush1.bf16.msra.mxu0 %v5813
        %5919 = vmatprep.subr.bf16.mxu0 0
        %5920 = vmatpush1.bf16.msra.mxu0 %v5814
        %5921 = vmatprep.subr.bf16.mxu0 0
        %5922 = vmatpush1.bf16.msra.mxu0 %v5815
        %5923 = vmatprep.subr.bf16.mxu0 0
        %5924 = vmatpush1.bf16.msra.mxu0 %v5816
        %5925 = vmatprep.subr.bf16.mxu0 0
        %5926 = vmatpush1.bf16.msra.mxu0 %v5817
        %5927 = vmatprep.subr.bf16.mxu0 0
        %5928 = vmatpush1.bf16.msra.mxu0 %v5818
        %5929 = vmatprep.subr.bf16.mxu0 0
        %5930 = vmatpush1.bf16.msra.mxu0 %v5819
        %5931 = vmatprep.subr.bf16.mxu0 0
        %5932 = vmatpush1.bf16.msra.mxu0 %v5820
        %5933 = vmatprep.mubr.bf16.mxu0 %v5592
        %5934 = vmatmul.mubr.bf16.gmra.mrb[0].mxu0 %v5591
        %v5935 = vpop.f32.mrb[0].mxu0
        %v5936 = vadd.f32 %v5888, %v5935
        %v5937 = vpop.f32.mrb[0].mxu0
        %v5938 = vpop.f32.mrb[0].mxu0
        %v5939 = vadd.f32 %v5891, %v5938
        %v5940 = vpop.f32.mrb[0].mxu0
        %5941 = vmatprep.mubr.bf16.mxu0 %v5596
        %5942 = vmatmul.mubr.bf16.gmra.mrb[0].mxu0 %v5595
        %v5943 = vpop.f32.mrb[0].mxu0
        %v5944 = vadd.f32 %v5896, %v5943
        %v5945 = vpop.f32.mrb[0].mxu0
        %v5946 = vpop.f32.mrb[0].mxu0
        %v5947 = vpop.f32.mrb[0].mxu0
        %5948 = vdwg.mxu0
        %v6013 = vunpack.c.l.b16 %v4513
        %v6014 = vunpack.c.l.b16 %v4514
        %v6015 = vunpack.c.l.b16 %v4515
        %v6016 = vunpack.c.l.b16 %v4516
        %v6017 = vunpack.c.l.b16 %v4517
        %v6018 = vunpack.c.l.b16 %v4518
        %v6019 = vunpack.c.l.b16 %v4519
        %v6020 = vunpack.c.l.b16 %v4520
        %v6021 = vunpack.c.l.b16 %v4521
        %v6022 = vunpack.c.l.b16 %v4522
        %v6023 = vunpack.c.l.b16 %v4523
        %v6024 = vunpack.c.l.b16 %v4524
        %v6025 = vunpack.c.l.b16 %v4525
        %v6026 = vunpack.c.l.b16 %v4526
        %v6027 = vunpack.c.l.b16 %v4527
        %v6028 = vunpack.c.l.b16 %v4528
        %v6029 = vunpack.c.l.b16 %v4529
        %v6030 = vunpack.c.l.b16 %v4530
        %v6031 = vunpack.c.l.b16 %v4531
        %v6032 = vunpack.c.l.b16 %v4532
        %v6033 = vunpack.c.l.b16 %v4533
        %v6034 = vunpack.c.l.b16 %v4534
        %v6035 = vunpack.c.l.b16 %v4535
        %v6036 = vunpack.c.l.b16 %v4536
        %v6037 = vunpack.c.l.b16 %v4537
        %v6038 = vunpack.c.l.b16 %v4538
        %v6039 = vunpack.c.l.b16 %v4539
        %v6040 = vunpack.c.l.b16 %v4540
        %v6041 = vunpack.c.l.b16 %v4541
        %v6042 = vunpack.c.l.b16 %v4542
        %v6043 = vunpack.c.l.b16 %v4543
        %v6044 = vunpack.c.l.b16 %v4544
        %v6045 = vunpack.c.l.b16 %v4545
        %v6046 = vunpack.c.l.b16 %v4546
        %v6047 = vunpack.c.l.b16 %v4547
        %v6048 = vunpack.c.l.b16 %v4548
        %v6049 = vunpack.c.l.b16 %v4549
        %v6050 = vunpack.c.l.b16 %v4550
        %v6051 = vunpack.c.l.b16 %v4551
        %v6052 = vunpack.c.l.b16 %v4552
        %v6053 = vunpack.c.l.b16 %v4553
        %v6054 = vunpack.c.l.b16 %v4554
        %v6055 = vunpack.c.l.b16 %v4555
        %v6056 = vunpack.c.l.b16 %v4556
        %v6057 = vunpack.c.l.b16 %v4557
        %v6058 = vunpack.c.l.b16 %v4558
        %v6059 = vunpack.c.l.b16 %v4559
        %v6060 = vunpack.c.l.b16 %v4560
        %v6061 = vunpack.c.l.b16 %v4561
        %v6062 = vunpack.c.l.b16 %v4562
        %v6063 = vunpack.c.l.b16 %v4563
        %v6064 = vunpack.c.l.b16 %v4564
        %v6065 = vunpack.c.l.b16 %v4565
        %v6066 = vunpack.c.l.b16 %v4566
        %v6067 = vunpack.c.l.b16 %v4567
        %v6068 = vunpack.c.l.b16 %v4568
        %v6069 = vunpack.c.l.b16 %v4569
        %v6070 = vunpack.c.l.b16 %v4570
        %v6071 = vunpack.c.l.b16 %v4571
        %v6072 = vunpack.c.l.b16 %v4572
        %v6073 = vunpack.c.l.b16 %v4573
        %v6074 = vunpack.c.l.b16 %v4574
        %v6075 = vunpack.c.l.b16 %v4575
        %v6076 = vunpack.c.l.b16 %v4576
        %v6077 = vpack.c.b16 %v6014, %v6013
        %v6078 = vpack.c.b16 %v6016, %v6015
        %v6079 = vpack.c.b16 %v6018, %v6017
        %v6080 = vpack.c.b16 %v6020, %v6019
        %v6081 = vpack.c.b16 %v6022, %v6021
        %v6082 = vpack.c.b16 %v6024, %v6023
        %v6083 = vpack.c.b16 %v6026, %v6025
        %v6084 = vpack.c.b16 %v6028, %v6027
        %v6085 = vpack.c.b16 %v6030, %v6029
        %v6086 = vpack.c.b16 %v6032, %v6031
        %v6087 = vpack.c.b16 %v6034, %v6033
        %v6088 = vpack.c.b16 %v6036, %v6035
        %v6089 = vpack.c.b16 %v6038, %v6037
        %v6090 = vpack.c.b16 %v6040, %v6039
        %v6091 = vpack.c.b16 %v6042, %v6041
        %v6092 = vpack.c.b16 %v6044, %v6043
        %v6093 = vpack.c.b16 %v6046, %v6045
        %v6094 = vpack.c.b16 %v6048, %v6047
        %v6095 = vpack.c.b16 %v6050, %v6049
        %v6096 = vpack.c.b16 %v6052, %v6051
        %v6097 = vpack.c.b16 %v6054, %v6053
        %v6098 = vpack.c.b16 %v6056, %v6055
        %v6099 = vpack.c.b16 %v6058, %v6057
        %v6100 = vpack.c.b16 %v6060, %v6059
        %v6101 = vpack.c.b16 %v6062, %v6061
        %v6102 = vpack.c.b16 %v6064, %v6063
        %v6103 = vpack.c.b16 %v6066, %v6065
        %v6104 = vpack.c.b16 %v6068, %v6067
        %v6105 = vpack.c.b16 %v6070, %v6069
        %v6106 = vpack.c.b16 %v6072, %v6071
        %v6107 = vpack.c.b16 %v6074, %v6073
        %v6108 = vpack.c.b16 %v6076, %v6075
        %6141 = vmatprep.subr.bf16.mxu0 0
        %6142 = vmatpush1.bf16.msra.mxu0 %v6077
        %6143 = vmatprep.subr.bf16.mxu0 0
        %6144 = vmatpush1.bf16.msra.mxu0 %v6078
        %6145 = vmatprep.subr.bf16.mxu0 0
        %6146 = vmatpush1.bf16.msra.mxu0 %v6079
        %6147 = vmatprep.subr.bf16.mxu0 0
        %6148 = vmatpush1.bf16.msra.mxu0 %v6080
        %6149 = vmatprep.subr.bf16.mxu0 0
        %6150 = vmatpush1.bf16.msra.mxu0 %v6081
        %6151 = vmatprep.subr.bf16.mxu0 0
        %6152 = vmatpush1.bf16.msra.mxu0 %v6082
        %6153 = vmatprep.subr.bf16.mxu0 0
        %6154 = vmatpush1.bf16.msra.mxu0 %v6083
        %6155 = vmatprep.subr.bf16.mxu0 0
        %6156 = vmatpush1.bf16.msra.mxu0 %v6084
        %6157 = vmatprep.subr.bf16.mxu0 0
        %6158 = vmatpush1.bf16.msra.mxu0 %v6085
        %6159 = vmatprep.subr.bf16.mxu0 0
        %6160 = vmatpush1.bf16.msra.mxu0 %v6086
        %6161 = vmatprep.subr.bf16.mxu0 0
        %6162 = vmatpush1.bf16.msra.mxu0 %v6087
        %6163 = vmatprep.subr.bf16.mxu0 0
        %6164 = vmatpush1.bf16.msra.mxu0 %v6088
        %6165 = vmatprep.subr.bf16.mxu0 0
        %6166 = vmatpush1.bf16.msra.mxu0 %v6089
        %6167 = vmatprep.subr.bf16.mxu0 0
        %6168 = vmatpush1.bf16.msra.mxu0 %v6090
        %6169 = vmatprep.subr.bf16.mxu0 0
        %6170 = vmatpush1.bf16.msra.mxu0 %v6091
        %6171 = vmatprep.subr.bf16.mxu0 0
        %6172 = vmatpush1.bf16.msra.mxu0 %v6092
        %6173 = vmatprep.mubr.bf16.mxu0 %v4506
        %6174 = vmatmul.mubr.bf16.gmra.mrb[0].mxu0 %v4505
        %v6175 = vpop.f32.mrb[0].mxu0
        %v6176 = vadd.f32 %v5936, %v6175
        %v6177 = vpop.f32.mrb[0].mxu0
        %v6178 = vpop.f32.mrb[0].mxu0
        %v6179 = vadd.f32 %v5939, %v6178
        %v6180 = vpop.f32.mrb[0].mxu0
        %6181 = vmatprep.mubr.bf16.mxu0 %v4510
        %6182 = vmatmul.mubr.bf16.gmra.mrb[0].mxu0 %v4509
        %v6183 = vpop.f32.mrb[0].mxu0
        %v6184 = vadd.f32 %v5944, %v6183
        %v6185 = vpop.f32.mrb[0].mxu0
        %v6186 = vpop.f32.mrb[0].mxu0
        %v6187 = vpop.f32.mrb[0].mxu0
        %6188 = vdwg.mxu0
        %6189 = vmatprep.subr.bf16.mxu0 0
        %6190 = vmatpush1.bf16.msra.mxu0 %v6093
        %6191 = vmatprep.subr.bf16.mxu0 0
        %6192 = vmatpush1.bf16.msra.mxu0 %v6094
        %6193 = vmatprep.subr.bf16.mxu0 0
        %6194 = vmatpush1.bf16.msra.mxu0 %v6095
        %6195 = vmatprep.subr.bf16.mxu0 0
        %6196 = vmatpush1.bf16.msra.mxu0 %v6096
        %6197 = vmatprep.subr.bf16.mxu0 0
        %6198 = vmatpush1.bf16.msra.mxu0 %v6097
        %6199 = vmatprep.subr.bf16.mxu0 0
        %6200 = vmatpush1.bf16.msra.mxu0 %v6098
        %6201 = vmatprep.subr.bf16.mxu0 0
        %6202 = vmatpush1.bf16.msra.mxu0 %v6099
        %6203 = vmatprep.subr.bf16.mxu0 0
        %6204 = vmatpush1.bf16.msra.mxu0 %v6100
        %6205 = vmatprep.subr.bf16.mxu0 0
        %6206 = vmatpush1.bf16.msra.mxu0 %v6101
        %6207 = vmatprep.subr.bf16.mxu0 0
        %6208 = vmatpush1.bf16.msra.mxu0 %v6102
        %6209 = vmatprep.subr.bf16.mxu0 0
        %6210 = vmatpush1.bf16.msra.mxu0 %v6103
        %6211 = vmatprep.subr.bf16.mxu0 0
        %6212 = vmatpush1.bf16.msra.mxu0 %v6104
        %6213 = vmatprep.subr.bf16.mxu0 0
        %6214 = vmatpush1.bf16.msra.mxu0 %v6105
        %6215 = vmatprep.subr.bf16.mxu0 0
        %6216 = vmatpush1.bf16.msra.mxu0 %v6106
        %6217 = vmatprep.subr.bf16.mxu0 0
        %6218 = vmatpush1.bf16.msra.mxu0 %v6107
        %6219 = vmatprep.subr.bf16.mxu0 0
        %6220 = vmatpush1.bf16.msra.mxu0 %v6108
        %6221 = vmatprep.mubr.bf16.mxu0 %v4508
        %6222 = vmatmul.mubr.bf16.gmra.mrb[0].mxu0 %v4507
        %v6223 = vpop.f32.mrb[0].mxu0
        %v6224 = vadd.f32 %v6176, %v6223
        %v6225 = vpop.f32.mrb[0].mxu0
        %v6226 = vpop.f32.mrb[0].mxu0
        %v6227 = vadd.f32 %v6179, %v6226
        %v6228 = vpop.f32.mrb[0].mxu0
        %6229 = vmatprep.mubr.bf16.mxu0 %v4512
        %6230 = vmatmul.mubr.bf16.gmra.mrb[0].mxu0 %v4511
        %v6231 = vpop.f32.mrb[0].mxu0
        %v6232 = vadd.f32 %v6184, %v6231
        %v6233 = vpop.f32.mrb[0].mxu0
        %v6234 = vpop.f32.mrb[0].mxu0
        %v6235 = vpop.f32.mrb[0].mxu0
        %6236 = vdwg.mxu0
        %v6237 = vld [vmem:[%s394 + $0x80] sm:$0xff]
        %v6238 = vld [vmem:[%s394 + $0x88] sm:$0xff]
        %v6239 = vld [vmem:[%s394 + $0x90] sm:$0xff]
        %v6240 = vld [vmem:[%s394 + $0x98] sm:$0xff]
        %v6241 = vld [vmem:[%s394 + $0xa0] sm:$0xff]
        %v6242 = vld [vmem:[%s394 + $0xa8] sm:$0xff]
        %v6243 = vld [vmem:[%s394 + $0xb0] sm:$0xff]
        %v6244 = vld [vmem:[%s394 + $0xb8] sm:$0xff]
        %v6245 = vld [vmem:[%s394 + $0x180] sm:$0xff]
        %v6246 = vld [vmem:[%s394 + $0x188] sm:$0xff]
        %v6247 = vld [vmem:[%s394 + $0x190] sm:$0xff]
        %v6248 = vld [vmem:[%s394 + $0x198] sm:$0xff]
        %v6249 = vld [vmem:[%s394 + $0x1a0] sm:$0xff]
        %v6250 = vld [vmem:[%s394 + $0x1a8] sm:$0xff]
        %v6251 = vld [vmem:[%s394 + $0x1b0] sm:$0xff]
        %v6252 = vld [vmem:[%s394 + $0x1b8] sm:$0xff]
        %v6253 = vld [vmem:[%s394 + $0x280] sm:$0x33]
        %v6254 = vld [vmem:[%s394 + $0x288] sm:$0x33]
        %v6255 = vld [vmem:[%s394 + $0x290] sm:$0x33]
        %v6256 = vld [vmem:[%s394 + $0x298] sm:$0x33]
        %v6257 = vld [vmem:[%s394 + $0x2a0] sm:$0x33]
        %v6258 = vld [vmem:[%s394 + $0x2a8] sm:$0x33]
        %v6259 = vld [vmem:[%s394 + $0x2b0] sm:$0x33]
        %v6260 = vld [vmem:[%s394 + $0x2b8] sm:$0x33]
        %v6285 = vunpack.c.l.b16 %v6237
        %v6286 = vunpack.c.h.b16 %v6237
        %v6287 = vunpack.c.l.b16 %v6238
        %v6288 = vunpack.c.h.b16 %v6238
        %v6289 = vunpack.c.l.b16 %v6239
        %v6290 = vunpack.c.h.b16 %v6239
        %v6291 = vunpack.c.l.b16 %v6240
        %v6292 = vunpack.c.h.b16 %v6240
        %v6293 = vunpack.c.l.b16 %v6241
        %v6294 = vunpack.c.h.b16 %v6241
        %v6295 = vunpack.c.l.b16 %v6242
        %v6296 = vunpack.c.h.b16 %v6242
        %v6297 = vunpack.c.l.b16 %v6243
        %v6298 = vunpack.c.h.b16 %v6243
        %v6299 = vunpack.c.l.b16 %v6244
        %v6300 = vunpack.c.h.b16 %v6244
        %v6301 = vunpack.c.l.b16 %v6245
        %v6302 = vunpack.c.h.b16 %v6245
        %v6303 = vunpack.c.l.b16 %v6246
        %v6304 = vunpack.c.h.b16 %v6246
        %v6305 = vunpack.c.l.b16 %v6247
        %v6306 = vunpack.c.h.b16 %v6247
        %v6307 = vunpack.c.l.b16 %v6248
        %v6308 = vunpack.c.h.b16 %v6248
        %v6309 = vunpack.c.l.b16 %v6249
        %v6310 = vunpack.c.h.b16 %v6249
        %v6311 = vunpack.c.l.b16 %v6250
        %v6312 = vunpack.c.h.b16 %v6250
        %v6313 = vunpack.c.l.b16 %v6251
        %v6314 = vunpack.c.h.b16 %v6251
        %v6315 = vunpack.c.l.b16 %v6252
        %v6316 = vunpack.c.h.b16 %v6252
        %v6317 = vunpack.c.l.b16 %v6253
        %v6318 = vunpack.c.h.b16 %v6253
        %v6319 = vunpack.c.l.b16 %v6254
        %v6320 = vunpack.c.h.b16 %v6254
        %v6321 = vunpack.c.l.b16 %v6255
        %v6322 = vunpack.c.h.b16 %v6255
        %v6323 = vunpack.c.l.b16 %v6256
        %v6324 = vunpack.c.h.b16 %v6256
        %v6325 = vunpack.c.l.b16 %v6257
        %v6326 = vunpack.c.h.b16 %v6257
        %v6327 = vunpack.c.l.b16 %v6258
        %v6328 = vunpack.c.h.b16 %v6258
        %v6329 = vunpack.c.l.b16 %v6259
        %v6330 = vunpack.c.h.b16 %v6259
        %v6331 = vunpack.c.l.b16 %v6260
        %v6332 = vunpack.c.h.b16 %v6260
        %v6333 = vpack.c.b16 %v6301, %v6285
        %v6334 = vpack.c.b16 %v6302, %v6286
        %v6335 = vpack.c.b16 %v6303, %v6287
        %v6336 = vpack.c.b16 %v6304, %v6288
        %v6337 = vpack.c.b16 %v6305, %v6289
        %v6338 = vpack.c.b16 %v6306, %v6290
        %v6339 = vpack.c.b16 %v6307, %v6291
        %v6340 = vpack.c.b16 %v6308, %v6292
        %v6341 = vpack.c.b16 %v6309, %v6293
        %v6342 = vpack.c.b16 %v6310, %v6294
        %v6343 = vpack.c.b16 %v6311, %v6295
        %v6344 = vpack.c.b16 %v6312, %v6296
        %v6345 = vpack.c.b16 %v6313, %v6297
        %v6346 = vpack.c.b16 %v6314, %v6298
        %v6347 = vpack.c.b16 %v6315, %v6299
        %v6348 = vpack.c.b16 %v6316, %v6300
        %v6349 = vpack.c.b16 %v6317, %v6317
        %v6350 = vpack.c.b16 %v6318, %v6318
        %v6351 = vpack.c.b16 %v6319, %v6319
        %v6352 = vpack.c.b16 %v6320, %v6320
        %v6353 = vpack.c.b16 %v6321, %v6321
        %v6354 = vpack.c.b16 %v6322, %v6322
        %v6355 = vpack.c.b16 %v6323, %v6323
        %v6356 = vpack.c.b16 %v6324, %v6324
        %v6357 = vpack.c.b16 %v6325, %v6325
        %v6358 = vpack.c.b16 %v6326, %v6326
        %v6359 = vpack.c.b16 %v6327, %v6327
        %v6360 = vpack.c.b16 %v6328, %v6328
        %v6361 = vpack.c.b16 %v6329, %v6329
        %v6362 = vpack.c.b16 %v6330, %v6330
        %v6363 = vpack.c.b16 %v6331, %v6331
        %v6364 = vpack.c.b16 %v6332, %v6332
        %6397 = vmatprep.subr.bf16.mxu0 %v2630
        %6398 = vmatpush1.bf16.msra.mxu0 %v2629
        %6399 = vmatprep.subr.bf16.mxu0 %v2634
        %6400 = vmatpush1.bf16.msra.mxu0 %v2633
        %6401 = vmatprep.subr.bf16.mxu0 %v2638
        %6402 = vmatpush1.bf16.msra.mxu0 %v2637
        %6403 = vmatprep.subr.bf16.mxu0 %v2642
        %6404 = vmatpush1.bf16.msra.mxu0 %v2641
        %6405 = vmatprep.subr.bf16.mxu0 %v2646
        %6406 = vmatpush1.bf16.msra.mxu0 %v2645
        %6407 = vmatprep.subr.bf16.mxu0 %v2650
        %6408 = vmatpush1.bf16.msra.mxu0 %v2649
        %6409 = vmatprep.subr.bf16.mxu0 %v2654
        %6410 = vmatpush1.bf16.msra.mxu0 %v2653
        %6411 = vmatprep.subr.bf16.mxu0 %v2658
        %6412 = vmatpush1.bf16.msra.mxu0 %v2657
        %6413 = vmatprep.subr.bf16.mxu0 %v2662
        %6414 = vmatpush1.bf16.msra.mxu0 %v2661
        %6415 = vmatprep.subr.bf16.mxu0 %v2666
        %6416 = vmatpush1.bf16.msra.mxu0 %v2665
        %6417 = vmatprep.subr.bf16.mxu0 %v2670
        %6418 = vmatpush1.bf16.msra.mxu0 %v2669
        %6419 = vmatprep.subr.bf16.mxu0 %v2674
        %6420 = vmatpush1.bf16.msra.mxu0 %v2673
        %6421 = vmatprep.subr.bf16.mxu0 %v2678
        %6422 = vmatpush1.bf16.msra.mxu0 %v2677
        %6423 = vmatprep.subr.bf16.mxu0 %v2682
        %6424 = vmatpush1.bf16.msra.mxu0 %v2681
        %6425 = vmatprep.subr.bf16.mxu0 %v2686
        %6426 = vmatpush1.bf16.msra.mxu0 %v2685
        %6427 = vmatprep.subr.bf16.mxu0 %v2690
        %6428 = vmatpush1.bf16.msra.mxu0 %v2689
        %6429 = vmatprep.mubr.bf16.mxu0 %v6334
        %6430 = vmatmul.mubr.bf16.gmra.mrb[0].mxu0 %v6333
        %v6431 = vpop.f32.mrb[0].mxu0
        %v6432 = vadd.f32 %v940, %v6431
        %v6433 = vpop.f32.mrb[0].mxu0
        %v6434 = vadd.f32 %v944, %v6433
        %v6435 = vpop.f32.mrb[0].mxu0
        %v6436 = vadd.f32 %v940, %v6435
        %v6437 = vpop.f32.mrb[0].mxu0
        %v6438 = vadd.f32 %v944, %v6437
        %6439 = vmatprep.mubr.bf16.mxu0 %v6350
        %6440 = vmatmul.mubr.bf16.gmra.mrb[0].mxu0 %v6349
        %v6441 = vpop.f32.mrb[0].mxu0
        %v6442 = vadd.f32 %v940, %v6441
        %v6443 = vpop.f32.mrb[0].mxu0
        %v6444 = vadd.f32 %v944, %v6443
        %v6445 = vpop.f32.mrb[0].mxu0
        %v6446 = vpop.f32.mrb[0].mxu0
        %6447 = vdwg.mxu0
        %6448 = vmatprep.subr.bf16.mxu0 %v2694
        %6449 = vmatpush1.bf16.msra.mxu0 %v2693
        %6450 = vmatprep.subr.bf16.mxu0 %v2698
        %6451 = vmatpush1.bf16.msra.mxu0 %v2697
        %6452 = vmatprep.subr.bf16.mxu0 %v2702
        %6453 = vmatpush1.bf16.msra.mxu0 %v2701
        %6454 = vmatprep.subr.bf16.mxu0 %v2706
        %6455 = vmatpush1.bf16.msra.mxu0 %v2705
        %6456 = vmatprep.subr.bf16.mxu0 %v2710
        %6457 = vmatpush1.bf16.msra.mxu0 %v2709
        %6458 = vmatprep.subr.bf16.mxu0 %v2714
        %6459 = vmatpush1.bf16.msra.mxu0 %v2713
        %6460 = vmatprep.subr.bf16.mxu0 %v2718
        %6461 = vmatpush1.bf16.msra.mxu0 %v2717
        %6462 = vmatprep.subr.bf16.mxu0 %v2722
        %6463 = vmatpush1.bf16.msra.mxu0 %v2721
        %6464 = vmatprep.subr.bf16.mxu0 %v2726
        %6465 = vmatpush1.bf16.msra.mxu0 %v2725
        %6466 = vmatprep.subr.bf16.mxu0 %v2730
        %6467 = vmatpush1.bf16.msra.mxu0 %v2729
        %6468 = vmatprep.subr.bf16.mxu0 %v2734
        %6469 = vmatpush1.bf16.msra.mxu0 %v2733
        %6470 = vmatprep.subr.bf16.mxu0 %v2738
        %6471 = vmatpush1.bf16.msra.mxu0 %v2737
        %6472 = vmatprep.subr.bf16.mxu0 %v2742
        %6473 = vmatpush1.bf16.msra.mxu0 %v2741
        %6474 = vmatprep.subr.bf16.mxu0 %v2746
        %6475 = vmatpush1.bf16.msra.mxu0 %v2745
        %6476 = vmatprep.subr.bf16.mxu0 %v2750
        %6477 = vmatpush1.bf16.msra.mxu0 %v2749
        %6478 = vmatprep.subr.bf16.mxu0 %v2754
        %6479 = vmatpush1.bf16.msra.mxu0 %v2753
        %6480 = vmatprep.mubr.bf16.mxu0 %v6336
        %6481 = vmatmul.mubr.bf16.gmra.mrb[0].mxu0 %v6335
        %v6482 = vpop.f32.mrb[0].mxu0
        %v6483 = vadd.f32 %v6432, %v6482
        %v6484 = vpop.f32.mrb[0].mxu0
        %v6485 = vadd.f32 %v6434, %v6484
        %v6486 = vpop.f32.mrb[0].mxu0
        %v6487 = vadd.f32 %v6436, %v6486
        %v6488 = vpop.f32.mrb[0].mxu0
        %v6489 = vadd.f32 %v6438, %v6488
        %6490 = vmatprep.mubr.bf16.mxu0 %v6352
        %6491 = vmatmul.mubr.bf16.gmra.mrb[0].mxu0 %v6351
        %v6492 = vpop.f32.mrb[0].mxu0
        %v6493 = vadd.f32 %v6442, %v6492
        %v6494 = vpop.f32.mrb[0].mxu0
        %v6495 = vadd.f32 %v6444, %v6494
        %v6496 = vpop.f32.mrb[0].mxu0
        %v6497 = vpop.f32.mrb[0].mxu0
        %6498 = vdwg.mxu0
        %6499 = vmatprep.subr.bf16.mxu0 %v2758
        %6500 = vmatpush1.bf16.msra.mxu0 %v2757
        %6501 = vmatprep.subr.bf16.mxu0 %v2762
        %6502 = vmatpush1.bf16.msra.mxu0 %v2761
        %6503 = vmatprep.subr.bf16.mxu0 %v2766
        %6504 = vmatpush1.bf16.msra.mxu0 %v2765
        %6505 = vmatprep.subr.bf16.mxu0 %v2770
        %6506 = vmatpush1.bf16.msra.mxu0 %v2769
        %6507 = vmatprep.subr.bf16.mxu0 %v2774
        %6508 = vmatpush1.bf16.msra.mxu0 %v2773
        %6509 = vmatprep.subr.bf16.mxu0 %v2778
        %6510 = vmatpush1.bf16.msra.mxu0 %v2777
        %6511 = vmatprep.subr.bf16.mxu0 %v2782
        %6512 = vmatpush1.bf16.msra.mxu0 %v2781
        %6513 = vmatprep.subr.bf16.mxu0 %v2786
        %6514 = vmatpush1.bf16.msra.mxu0 %v2785
        %6515 = vmatprep.subr.bf16.mxu0 %v2790
        %6516 = vmatpush1.bf16.msra.mxu0 %v2789
        %6517 = vmatprep.subr.bf16.mxu0 %v2794
        %6518 = vmatpush1.bf16.msra.mxu0 %v2793
        %6519 = vmatprep.subr.bf16.mxu0 %v2798
        %6520 = vmatpush1.bf16.msra.mxu0 %v2797
        %6521 = vmatprep.subr.bf16.mxu0 %v2802
        %6522 = vmatpush1.bf16.msra.mxu0 %v2801
        %6523 = vmatprep.subr.bf16.mxu0 %v2806
        %6524 = vmatpush1.bf16.msra.mxu0 %v2805
        %6525 = vmatprep.subr.bf16.mxu0 %v2810
        %6526 = vmatpush1.bf16.msra.mxu0 %v2809
        %6527 = vmatprep.subr.bf16.mxu0 %v2814
        %6528 = vmatpush1.bf16.msra.mxu0 %v2813
        %6529 = vmatprep.subr.bf16.mxu0 %v2818
        %6530 = vmatpush1.bf16.msra.mxu0 %v2817
        %6531 = vmatprep.mubr.bf16.mxu0 %v6338
        %6532 = vmatmul.mubr.bf16.gmra.mrb[0].mxu0 %v6337
        %v6533 = vpop.f32.mrb[0].mxu0
        %v6534 = vadd.f32 %v6483, %v6533
        %v6535 = vpop.f32.mrb[0].mxu0
        %v6536 = vadd.f32 %v6485, %v6535
        %v6537 = vpop.f32.mrb[0].mxu0
        %v6538 = vadd.f32 %v6487, %v6537
        %v6539 = vpop.f32.mrb[0].mxu0
        %v6540 = vadd.f32 %v6489, %v6539
        %6541 = vmatprep.mubr.bf16.mxu0 %v6354
        %6542 = vmatmul.mubr.bf16.gmra.mrb[0].mxu0 %v6353
        %v6543 = vpop.f32.mrb[0].mxu0
        %v6544 = vadd.f32 %v6493, %v6543
        %v6545 = vpop.f32.mrb[0].mxu0
        %v6546 = vadd.f32 %v6495, %v6545
        %v6547 = vpop.f32.mrb[0].mxu0
        %v6548 = vpop.f32.mrb[0].mxu0
        %6549 = vdwg.mxu0
        %6550 = vmatprep.subr.bf16.mxu0 %v2822
        %6551 = vmatpush1.bf16.msra.mxu0 %v2821
        %6552 = vmatprep.subr.bf16.mxu0 %v2826
        %6553 = vmatpush1.bf16.msra.mxu0 %v2825
        %6554 = vmatprep.subr.bf16.mxu0 %v2830
        %6555 = vmatpush1.bf16.msra.mxu0 %v2829
        %6556 = vmatprep.subr.bf16.mxu0 %v2834
        %6557 = vmatpush1.bf16.msra.mxu0 %v2833
        %6558 = vmatprep.subr.bf16.mxu0 %v2838
        %6559 = vmatpush1.bf16.msra.mxu0 %v2837
        %6560 = vmatprep.subr.bf16.mxu0 %v2842
        %6561 = vmatpush1.bf16.msra.mxu0 %v2841
        %6562 = vmatprep.subr.bf16.mxu0 %v2846
        %6563 = vmatpush1.bf16.msra.mxu0 %v2845
        %6564 = vmatprep.subr.bf16.mxu0 %v2850
        %6565 = vmatpush1.bf16.msra.mxu0 %v2849
        %6566 = vmatprep.subr.bf16.mxu0 %v2854
        %6567 = vmatpush1.bf16.msra.mxu0 %v2853
        %6568 = vmatprep.subr.bf16.mxu0 %v2858
        %6569 = vmatpush1.bf16.msra.mxu0 %v2857
        %6570 = vmatprep.subr.bf16.mxu0 %v2862
        %6571 = vmatpush1.bf16.msra.mxu0 %v2861
        %6572 = vmatprep.subr.bf16.mxu0 %v2866
        %6573 = vmatpush1.bf16.msra.mxu0 %v2865
        %6574 = vmatprep.subr.bf16.mxu0 %v2870
        %6575 = vmatpush1.bf16.msra.mxu0 %v2869
        %6576 = vmatprep.subr.bf16.mxu0 %v2874
        %6577 = vmatpush1.bf16.msra.mxu0 %v2873
        %6578 = vmatprep.subr.bf16.mxu0 %v2878
        %6579 = vmatpush1.bf16.msra.mxu0 %v2877
        %6580 = vmatprep.subr.bf16.mxu0 %v2882
        %6581 = vmatpush1.bf16.msra.mxu0 %v2881
        %6582 = vmatprep.mubr.bf16.mxu0 %v6340
        %6583 = vmatmul.mubr.bf16.gmra.mrb[0].mxu0 %v6339
        %v6584 = vpop.f32.mrb[0].mxu0
        %v6585 = vadd.f32 %v6534, %v6584
        %v6586 = vpop.f32.mrb[0].mxu0
        %v6587 = vadd.f32 %v6536, %v6586
        %v6588 = vpop.f32.mrb[0].mxu0
        %v6589 = vadd.f32 %v6538, %v6588
        %v6590 = vpop.f32.mrb[0].mxu0
        %v6591 = vadd.f32 %v6540, %v6590
        %6592 = vmatprep.mubr.bf16.mxu0 %v6356
        %6593 = vmatmul.mubr.bf16.gmra.mrb[0].mxu0 %v6355
        %v6594 = vpop.f32.mrb[0].mxu0
        %v6595 = vadd.f32 %v6544, %v6594
        %v6596 = vpop.f32.mrb[0].mxu0
        %v6597 = vadd.f32 %v6546, %v6596
        %v6598 = vpop.f32.mrb[0].mxu0
        %v6599 = vpop.f32.mrb[0].mxu0
        %6600 = vdwg.mxu0
        %6601 = vmatprep.subr.bf16.mxu0 %v2886
        %6602 = vmatpush1.bf16.msra.mxu0 %v2885
        %6603 = vmatprep.subr.bf16.mxu0 %v2890
        %6604 = vmatpush1.bf16.msra.mxu0 %v2889
        %6605 = vmatprep.subr.bf16.mxu0 %v2894
        %6606 = vmatpush1.bf16.msra.mxu0 %v2893
        %6607 = vmatprep.subr.bf16.mxu0 %v2898
        %6608 = vmatpush1.bf16.msra.mxu0 %v2897
        %6609 = vmatprep.subr.bf16.mxu0 %v2902
        %6610 = vmatpush1.bf16.msra.mxu0 %v2901
        %6611 = vmatprep.subr.bf16.mxu0 %v2906
        %6612 = vmatpush1.bf16.msra.mxu0 %v2905
        %6613 = vmatprep.subr.bf16.mxu0 %v2910
        %6614 = vmatpush1.bf16.msra.mxu0 %v2909
        %6615 = vmatprep.subr.bf16.mxu0 %v2914
        %6616 = vmatpush1.bf16.msra.mxu0 %v2913
        %6617 = vmatprep.subr.bf16.mxu0 %v2918
        %6618 = vmatpush1.bf16.msra.mxu0 %v2917
        %6619 = vmatprep.subr.bf16.mxu0 %v2922
        %6620 = vmatpush1.bf16.msra.mxu0 %v2921
        %6621 = vmatprep.subr.bf16.mxu0 %v2926
        %6622 = vmatpush1.bf16.msra.mxu0 %v2925
        %6623 = vmatprep.subr.bf16.mxu0 %v2930
        %6624 = vmatpush1.bf16.msra.mxu0 %v2929
        %6625 = vmatprep.subr.bf16.mxu0 %v2934
        %6626 = vmatpush1.bf16.msra.mxu0 %v2933
        %6627 = vmatprep.subr.bf16.mxu0 %v2938
        %6628 = vmatpush1.bf16.msra.mxu0 %v2937
        %6629 = vmatprep.subr.bf16.mxu0 %v2942
        %6630 = vmatpush1.bf16.msra.mxu0 %v2941
        %6631 = vmatprep.subr.bf16.mxu0 %v2946
        %6632 = vmatpush1.bf16.msra.mxu0 %v2945
        %6633 = vmatprep.mubr.bf16.mxu0 %v6342
        %6634 = vmatmul.mubr.bf16.gmra.mrb[0].mxu0 %v6341
        %v6635 = vpop.f32.mrb[0].mxu0
        %v6636 = vadd.f32 %v6585, %v6635
        %v6637 = vpop.f32.mrb[0].mxu0
        %v6638 = vadd.f32 %v6587, %v6637
        %v6639 = vpop.f32.mrb[0].mxu0
        %v6640 = vadd.f32 %v6589, %v6639
        %v6641 = vpop.f32.mrb[0].mxu0
        %v6642 = vadd.f32 %v6591, %v6641
        %6643 = vmatprep.mubr.bf16.mxu0 %v6358
        %6644 = vmatmul.mubr.bf16.gmra.mrb[0].mxu0 %v6357
        %v6645 = vpop.f32.mrb[0].mxu0
        %v6646 = vadd.f32 %v6595, %v6645
        %v6647 = vpop.f32.mrb[0].mxu0
        %v6648 = vadd.f32 %v6597, %v6647
        %v6649 = vpop.f32.mrb[0].mxu0
        %v6650 = vpop.f32.mrb[0].mxu0
        %6651 = vdwg.mxu0
        %6652 = vmatprep.subr.bf16.mxu0 %v2950
        %6653 = vmatpush1.bf16.msra.mxu0 %v2949
        %6654 = vmatprep.subr.bf16.mxu0 %v2954
        %6655 = vmatpush1.bf16.msra.mxu0 %v2953
        %6656 = vmatprep.subr.bf16.mxu0 %v2958
        %6657 = vmatpush1.bf16.msra.mxu0 %v2957
        %6658 = vmatprep.subr.bf16.mxu0 %v2962
        %6659 = vmatpush1.bf16.msra.mxu0 %v2961
        %6660 = vmatprep.subr.bf16.mxu0 %v2966
        %6661 = vmatpush1.bf16.msra.mxu0 %v2965
        %6662 = vmatprep.subr.bf16.mxu0 %v2970
        %6663 = vmatpush1.bf16.msra.mxu0 %v2969
        %6664 = vmatprep.subr.bf16.mxu0 %v2974
        %6665 = vmatpush1.bf16.msra.mxu0 %v2973
        %6666 = vmatprep.subr.bf16.mxu0 %v2978
        %6667 = vmatpush1.bf16.msra.mxu0 %v2977
        %6668 = vmatprep.subr.bf16.mxu0 %v2982
        %6669 = vmatpush1.bf16.msra.mxu0 %v2981
        %6670 = vmatprep.subr.bf16.mxu0 %v2986
        %6671 = vmatpush1.bf16.msra.mxu0 %v2985
        %6672 = vmatprep.subr.bf16.mxu0 %v2990
        %6673 = vmatpush1.bf16.msra.mxu0 %v2989
        %6674 = vmatprep.subr.bf16.mxu0 %v2994
        %6675 = vmatpush1.bf16.msra.mxu0 %v2993
        %6676 = vmatprep.subr.bf16.mxu0 %v2998
        %6677 = vmatpush1.bf16.msra.mxu0 %v2997
        %6678 = vmatprep.subr.bf16.mxu0 %v3002
        %6679 = vmatpush1.bf16.msra.mxu0 %v3001
        %6680 = vmatprep.subr.bf16.mxu0 %v3006
        %6681 = vmatpush1.bf16.msra.mxu0 %v3005
        %6682 = vmatprep.subr.bf16.mxu0 %v3010
        %6683 = vmatpush1.bf16.msra.mxu0 %v3009
        %6684 = vmatprep.mubr.bf16.mxu0 %v6344
        %6685 = vmatmul.mubr.bf16.gmra.mrb[0].mxu0 %v6343
        %v6686 = vpop.f32.mrb[0].mxu0
        %v6687 = vadd.f32 %v6636, %v6686
        %v6688 = vpop.f32.mrb[0].mxu0
        %v6689 = vadd.f32 %v6638, %v6688
        %v6690 = vpop.f32.mrb[0].mxu0
        %v6691 = vadd.f32 %v6640, %v6690
        %v6692 = vpop.f32.mrb[0].mxu0
        %v6693 = vadd.f32 %v6642, %v6692
        %6694 = vmatprep.mubr.bf16.mxu0 %v6360
        %6695 = vmatmul.mubr.bf16.gmra.mrb[0].mxu0 %v6359
        %v6696 = vpop.f32.mrb[0].mxu0
        %v6697 = vadd.f32 %v6646, %v6696
        %v6698 = vpop.f32.mrb[0].mxu0
        %v6699 = vadd.f32 %v6648, %v6698
        %v6700 = vpop.f32.mrb[0].mxu0
        %v6701 = vpop.f32.mrb[0].mxu0
        %6702 = vdwg.mxu0
        %6703 = vmatprep.subr.bf16.mxu0 %v3014
        %6704 = vmatpush1.bf16.msra.mxu0 %v3013
        %6705 = vmatprep.subr.bf16.mxu0 %v3018
        %6706 = vmatpush1.bf16.msra.mxu0 %v3017
        %6707 = vmatprep.subr.bf16.mxu0 %v3022
        %6708 = vmatpush1.bf16.msra.mxu0 %v3021
        %6709 = vmatprep.subr.bf16.mxu0 %v3026
        %6710 = vmatpush1.bf16.msra.mxu0 %v3025
        %6711 = vmatprep.subr.bf16.mxu0 %v3030
        %6712 = vmatpush1.bf16.msra.mxu0 %v3029
        %6713 = vmatprep.subr.bf16.mxu0 %v3034
        %6714 = vmatpush1.bf16.msra.mxu0 %v3033
        %6715 = vmatprep.subr.bf16.mxu0 %v3038
        %6716 = vmatpush1.bf16.msra.mxu0 %v3037
        %6717 = vmatprep.subr.bf16.mxu0 %v3042
        %6718 = vmatpush1.bf16.msra.mxu0 %v3041
        %6719 = vmatprep.subr.bf16.mxu0 %v3046
        %6720 = vmatpush1.bf16.msra.mxu0 %v3045
        %6721 = vmatprep.subr.bf16.mxu0 %v3050
        %6722 = vmatpush1.bf16.msra.mxu0 %v3049
        %6723 = vmatprep.subr.bf16.mxu0 %v3054
        %6724 = vmatpush1.bf16.msra.mxu0 %v3053
        %6725 = vmatprep.subr.bf16.mxu0 %v3058
        %6726 = vmatpush1.bf16.msra.mxu0 %v3057
        %6727 = vmatprep.subr.bf16.mxu0 %v3062
        %6728 = vmatpush1.bf16.msra.mxu0 %v3061
        %6729 = vmatprep.subr.bf16.mxu0 %v3066
        %6730 = vmatpush1.bf16.msra.mxu0 %v3065
        %6731 = vmatprep.subr.bf16.mxu0 %v3070
        %6732 = vmatpush1.bf16.msra.mxu0 %v3069
        %6733 = vmatprep.subr.bf16.mxu0 %v3074
        %6734 = vmatpush1.bf16.msra.mxu0 %v3073
        %6735 = vmatprep.mubr.bf16.mxu0 %v6346
        %6736 = vmatmul.mubr.bf16.gmra.mrb[0].mxu0 %v6345
        %v6737 = vpop.f32.mrb[0].mxu0
        %v6738 = vadd.f32 %v6687, %v6737
        %v6739 = vpop.f32.mrb[0].mxu0
        %v6740 = vadd.f32 %v6689, %v6739
        %v6741 = vpop.f32.mrb[0].mxu0
        %v6742 = vadd.f32 %v6691, %v6741
        %v6743 = vpop.f32.mrb[0].mxu0
        %v6744 = vadd.f32 %v6693, %v6743
        %6745 = vmatprep.mubr.bf16.mxu0 %v6362
        %6746 = vmatmul.mubr.bf16.gmra.mrb[0].mxu0 %v6361
        %v6747 = vpop.f32.mrb[0].mxu0
        %v6748 = vadd.f32 %v6697, %v6747
        %v6749 = vpop.f32.mrb[0].mxu0
        %v6750 = vadd.f32 %v6699, %v6749
        %v6751 = vpop.f32.mrb[0].mxu0
        %v6752 = vpop.f32.mrb[0].mxu0
        %6753 = vdwg.mxu0
        %6754 = vmatprep.subr.bf16.mxu0 %v3078
        %6755 = vmatpush1.bf16.msra.mxu0 %v3077
        %6756 = vmatprep.subr.bf16.mxu0 %v3082
        %6757 = vmatpush1.bf16.msra.mxu0 %v3081
        %6758 = vmatprep.subr.bf16.mxu0 %v3086
        %6759 = vmatpush1.bf16.msra.mxu0 %v3085
        %6760 = vmatprep.subr.bf16.mxu0 %v3090
        %6761 = vmatpush1.bf16.msra.mxu0 %v3089
        %6762 = vmatprep.subr.bf16.mxu0 %v3094
        %6763 = vmatpush1.bf16.msra.mxu0 %v3093
        %6764 = vmatprep.subr.bf16.mxu0 %v3098
        %6765 = vmatpush1.bf16.msra.mxu0 %v3097
        %6766 = vmatprep.subr.bf16.mxu0 %v3102
        %6767 = vmatpush1.bf16.msra.mxu0 %v3101
        %6768 = vmatprep.subr.bf16.mxu0 %v3106
        %6769 = vmatpush1.bf16.msra.mxu0 %v3105
        %6770 = vmatprep.subr.bf16.mxu0 %v3110
        %6771 = vmatpush1.bf16.msra.mxu0 %v3109
        %6772 = vmatprep.subr.bf16.mxu0 %v3114
        %6773 = vmatpush1.bf16.msra.mxu0 %v3113
        %6774 = vmatprep.subr.bf16.mxu0 %v3118
        %6775 = vmatpush1.bf16.msra.mxu0 %v3117
        %6776 = vmatprep.subr.bf16.mxu0 %v3122
        %6777 = vmatpush1.bf16.msra.mxu0 %v3121
        %6778 = vmatprep.subr.bf16.mxu0 %v3126
        %6779 = vmatpush1.bf16.msra.mxu0 %v3125
        %6780 = vmatprep.subr.bf16.mxu0 %v3130
        %6781 = vmatpush1.bf16.msra.mxu0 %v3129
        %6782 = vmatprep.subr.bf16.mxu0 %v3134
        %6783 = vmatpush1.bf16.msra.mxu0 %v3133
        %6784 = vmatprep.subr.bf16.mxu0 %v3138
        %6785 = vmatpush1.bf16.msra.mxu0 %v3137
        %6786 = vmatprep.mubr.bf16.mxu0 %v6348
        %6787 = vmatmul.mubr.bf16.gmra.mrb[0].mxu0 %v6347
        %v6788 = vpop.f32.mrb[0].mxu0
        %v6789 = vadd.f32 %v6738, %v6788
        %v6790 = vpop.f32.mrb[0].mxu0
        %v6791 = vadd.f32 %v6740, %v6790
        %v6792 = vpop.f32.mrb[0].mxu0
        %v6793 = vadd.f32 %v6742, %v6792
        %v6794 = vpop.f32.mrb[0].mxu0
        %v6795 = vadd.f32 %v6744, %v6794
        %6796 = vmatprep.mubr.bf16.mxu0 %v6364
        %6797 = vmatmul.mubr.bf16.gmra.mrb[0].mxu0 %v6363
        %v6798 = vpop.f32.mrb[0].mxu0
        %v6799 = vadd.f32 %v6748, %v6798
        %v6800 = vpop.f32.mrb[0].mxu0
        %v6801 = vadd.f32 %v6750, %v6800
        %v6802 = vpop.f32.mrb[0].mxu0
        %v6803 = vpop.f32.mrb[0].mxu0
        %6804 = vdwg.mxu0
        %6805 = vmatprep.subr.bf16.mxu0 %v2632
        %6806 = vmatpush1.bf16.msra.mxu0 %v2631
        %6807 = vmatprep.subr.bf16.mxu0 %v2636
        %6808 = vmatpush1.bf16.msra.mxu0 %v2635
        %6809 = vmatprep.subr.bf16.mxu0 %v2640
        %6810 = vmatpush1.bf16.msra.mxu0 %v2639
        %6811 = vmatprep.subr.bf16.mxu0 %v2644
        %6812 = vmatpush1.bf16.msra.mxu0 %v2643
        %6813 = vmatprep.subr.bf16.mxu0 %v2648
        %6814 = vmatpush1.bf16.msra.mxu0 %v2647
        %6815 = vmatprep.subr.bf16.mxu0 %v2652
        %6816 = vmatpush1.bf16.msra.mxu0 %v2651
        %6817 = vmatprep.subr.bf16.mxu0 %v2656
        %6818 = vmatpush1.bf16.msra.mxu0 %v2655
        %6819 = vmatprep.subr.bf16.mxu0 %v2660
        %6820 = vmatpush1.bf16.msra.mxu0 %v2659
        %6821 = vmatprep.subr.bf16.mxu0 %v2664
        %6822 = vmatpush1.bf16.msra.mxu0 %v2663
        %6823 = vmatprep.subr.bf16.mxu0 %v2668
        %6824 = vmatpush1.bf16.msra.mxu0 %v2667
        %6825 = vmatprep.subr.bf16.mxu0 %v2672
        %6826 = vmatpush1.bf16.msra.mxu0 %v2671
        %6827 = vmatprep.subr.bf16.mxu0 %v2676
        %6828 = vmatpush1.bf16.msra.mxu0 %v2675
        %6829 = vmatprep.subr.bf16.mxu0 %v2680
        %6830 = vmatpush1.bf16.msra.mxu0 %v2679
        %6831 = vmatprep.subr.bf16.mxu0 %v2684
        %6832 = vmatpush1.bf16.msra.mxu0 %v2683
        %6833 = vmatprep.subr.bf16.mxu0 %v2688
        %6834 = vmatpush1.bf16.msra.mxu0 %v2687
        %6835 = vmatprep.subr.bf16.mxu0 %v2692
        %6836 = vmatpush1.bf16.msra.mxu0 %v2691
        %6837 = vmatprep.mubr.bf16.mxu0 %v6334
        %6838 = vmatmul.mubr.bf16.gmra.mrb[0].mxu0 %v6333
        %v6839 = vpop.f32.mrb[0].mxu0
        %v6840 = vadd.f32 %v948, %v6839
        %v6841 = vpop.f32.mrb[0].mxu0
        %v6842 = vadd.f32 %v952, %v6841
        %v6843 = vpop.f32.mrb[0].mxu0
        %v6844 = vadd.f32 %v948, %v6843
        %v6845 = vpop.f32.mrb[0].mxu0
        %v6846 = vadd.f32 %v952, %v6845
        %6847 = vmatprep.mubr.bf16.mxu0 %v6350
        %6848 = vmatmul.mubr.bf16.gmra.mrb[0].mxu0 %v6349
        %v6849 = vpop.f32.mrb[0].mxu0
        %v6850 = vadd.f32 %v948, %v6849
        %v6851 = vpop.f32.mrb[0].mxu0
        %v6852 = vadd.f32 %v952, %v6851
        %v6853 = vpop.f32.mrb[0].mxu0
        %v6854 = vpop.f32.mrb[0].mxu0
        %6855 = vdwg.mxu0
        %6856 = vmatprep.subr.bf16.mxu0 %v2696
        %6857 = vmatpush1.bf16.msra.mxu0 %v2695
        %6858 = vmatprep.subr.bf16.mxu0 %v2700
        %6859 = vmatpush1.bf16.msra.mxu0 %v2699
        %6860 = vmatprep.subr.bf16.mxu0 %v2704
        %6861 = vmatpush1.bf16.msra.mxu0 %v2703
        %6862 = vmatprep.subr.bf16.mxu0 %v2708
        %6863 = vmatpush1.bf16.msra.mxu0 %v2707
        %6864 = vmatprep.subr.bf16.mxu0 %v2712
        %6865 = vmatpush1.bf16.msra.mxu0 %v2711
        %6866 = vmatprep.subr.bf16.mxu0 %v2716
        %6867 = vmatpush1.bf16.msra.mxu0 %v2715
        %6868 = vmatprep.subr.bf16.mxu0 %v2720
        %6869 = vmatpush1.bf16.msra.mxu0 %v2719
        %6870 = vmatprep.subr.bf16.mxu0 %v2724
        %6871 = vmatpush1.bf16.msra.mxu0 %v2723
        %6872 = vmatprep.subr.bf16.mxu0 %v2728
        %6873 = vmatpush1.bf16.msra.mxu0 %v2727
        %6874 = vmatprep.subr.bf16.mxu0 %v2732
        %6875 = vmatpush1.bf16.msra.mxu0 %v2731
        %6876 = vmatprep.subr.bf16.mxu0 %v2736
        %6877 = vmatpush1.bf16.msra.mxu0 %v2735
        %6878 = vmatprep.subr.bf16.mxu0 %v2740
        %6879 = vmatpush1.bf16.msra.mxu0 %v2739
        %6880 = vmatprep.subr.bf16.mxu0 %v2744
        %6881 = vmatpush1.bf16.msra.mxu0 %v2743
        %6882 = vmatprep.subr.bf16.mxu0 %v2748
        %6883 = vmatpush1.bf16.msra.mxu0 %v2747
        %6884 = vmatprep.subr.bf16.mxu0 %v2752
        %6885 = vmatpush1.bf16.msra.mxu0 %v2751
        %6886 = vmatprep.subr.bf16.mxu0 %v2756
        %6887 = vmatpush1.bf16.msra.mxu0 %v2755
        %6888 = vmatprep.mubr.bf16.mxu0 %v6336
        %6889 = vmatmul.mubr.bf16.gmra.mrb[0].mxu0 %v6335
        %v6890 = vpop.f32.mrb[0].mxu0
        %v6891 = vadd.f32 %v6840, %v6890
        %v6892 = vpop.f32.mrb[0].mxu0
        %v6893 = vadd.f32 %v6842, %v6892
        %v6894 = vpop.f32.mrb[0].mxu0
        %v6895 = vadd.f32 %v6844, %v6894
        %v6896 = vpop.f32.mrb[0].mxu0
        %v6897 = vadd.f32 %v6846, %v6896
        %6898 = vmatprep.mubr.bf16.mxu0 %v6352
        %6899 = vmatmul.mubr.bf16.gmra.mrb[0].mxu0 %v6351
        %v6900 = vpop.f32.mrb[0].mxu0
        %v6901 = vadd.f32 %v6850, %v6900
        %v6902 = vpop.f32.mrb[0].mxu0
        %v6903 = vadd.f32 %v6852, %v6902
        %v6904 = vpop.f32.mrb[0].mxu0
        %v6905 = vpop.f32.mrb[0].mxu0
        %6906 = vdwg.mxu0
        %6907 = vmatprep.subr.bf16.mxu0 %v2760
        %6908 = vmatpush1.bf16.msra.mxu0 %v2759
        %6909 = vmatprep.subr.bf16.mxu0 %v2764
        %6910 = vmatpush1.bf16.msra.mxu0 %v2763
        %6911 = vmatprep.subr.bf16.mxu0 %v2768
        %6912 = vmatpush1.bf16.msra.mxu0 %v2767
        %6913 = vmatprep.subr.bf16.mxu0 %v2772
        %6914 = vmatpush1.bf16.msra.mxu0 %v2771
        %6915 = vmatprep.subr.bf16.mxu0 %v2776
        %6916 = vmatpush1.bf16.msra.mxu0 %v2775
        %6917 = vmatprep.subr.bf16.mxu0 %v2780
        %6918 = vmatpush1.bf16.msra.mxu0 %v2779
        %6919 = vmatprep.subr.bf16.mxu0 %v2784
        %6920 = vmatpush1.bf16.msra.mxu0 %v2783
        %6921 = vmatprep.subr.bf16.mxu0 %v2788
        %6922 = vmatpush1.bf16.msra.mxu0 %v2787
        %6923 = vmatprep.subr.bf16.mxu0 %v2792
        %6924 = vmatpush1.bf16.msra.mxu0 %v2791
        %6925 = vmatprep.subr.bf16.mxu0 %v2796
        %6926 = vmatpush1.bf16.msra.mxu0 %v2795
        %6927 = vmatprep.subr.bf16.mxu0 %v2800
        %6928 = vmatpush1.bf16.msra.mxu0 %v2799
        %6929 = vmatprep.subr.bf16.mxu0 %v2804
        %6930 = vmatpush1.bf16.msra.mxu0 %v2803
        %6931 = vmatprep.subr.bf16.mxu0 %v2808
        %6932 = vmatpush1.bf16.msra.mxu0 %v2807
        %6933 = vmatprep.subr.bf16.mxu0 %v2812
        %6934 = vmatpush1.bf16.msra.mxu0 %v2811
        %6935 = vmatprep.subr.bf16.mxu0 %v2816
        %6936 = vmatpush1.bf16.msra.mxu0 %v2815
        %6937 = vmatprep.subr.bf16.mxu0 %v2820
        %6938 = vmatpush1.bf16.msra.mxu0 %v2819
        %6939 = vmatprep.mubr.bf16.mxu0 %v6338
        %6940 = vmatmul.mubr.bf16.gmra.mrb[0].mxu0 %v6337
        %v6941 = vpop.f32.mrb[0].mxu0
        %v6942 = vadd.f32 %v6891, %v6941
        %v6943 = vpop.f32.mrb[0].mxu0
        %v6944 = vadd.f32 %v6893, %v6943
        %v6945 = vpop.f32.mrb[0].mxu0
        %v6946 = vadd.f32 %v6895, %v6945
        %v6947 = vpop.f32.mrb[0].mxu0
        %v6948 = vadd.f32 %v6897, %v6947
        %6949 = vmatprep.mubr.bf16.mxu0 %v6354
        %6950 = vmatmul.mubr.bf16.gmra.mrb[0].mxu0 %v6353
        %v6951 = vpop.f32.mrb[0].mxu0
        %v6952 = vadd.f32 %v6901, %v6951
        %v6953 = vpop.f32.mrb[0].mxu0
        %v6954 = vadd.f32 %v6903, %v6953
        %v6955 = vpop.f32.mrb[0].mxu0
        %v6956 = vpop.f32.mrb[0].mxu0
        %6957 = vdwg.mxu0
        %6958 = vmatprep.subr.bf16.mxu0 %v2824
        %6959 = vmatpush1.bf16.msra.mxu0 %v2823
        %6960 = vmatprep.subr.bf16.mxu0 %v2828
        %6961 = vmatpush1.bf16.msra.mxu0 %v2827
        %6962 = vmatprep.subr.bf16.mxu0 %v2832
        %6963 = vmatpush1.bf16.msra.mxu0 %v2831
        %6964 = vmatprep.subr.bf16.mxu0 %v2836
        %6965 = vmatpush1.bf16.msra.mxu0 %v2835
        %6966 = vmatprep.subr.bf16.mxu0 %v2840
        %6967 = vmatpush1.bf16.msra.mxu0 %v2839
        %6968 = vmatprep.subr.bf16.mxu0 %v2844
        %6969 = vmatpush1.bf16.msra.mxu0 %v2843
        %6970 = vmatprep.subr.bf16.mxu0 %v2848
        %6971 = vmatpush1.bf16.msra.mxu0 %v2847
        %6972 = vmatprep.subr.bf16.mxu0 %v2852
        %6973 = vmatpush1.bf16.msra.mxu0 %v2851
        %6974 = vmatprep.subr.bf16.mxu0 %v2856
        %6975 = vmatpush1.bf16.msra.mxu0 %v2855
        %6976 = vmatprep.subr.bf16.mxu0 %v2860
        %6977 = vmatpush1.bf16.msra.mxu0 %v2859
        %6978 = vmatprep.subr.bf16.mxu0 %v2864
        %6979 = vmatpush1.bf16.msra.mxu0 %v2863
        %6980 = vmatprep.subr.bf16.mxu0 %v2868
        %6981 = vmatpush1.bf16.msra.mxu0 %v2867
        %6982 = vmatprep.subr.bf16.mxu0 %v2872
        %6983 = vmatpush1.bf16.msra.mxu0 %v2871
        %6984 = vmatprep.subr.bf16.mxu0 %v2876
        %6985 = vmatpush1.bf16.msra.mxu0 %v2875
        %6986 = vmatprep.subr.bf16.mxu0 %v2880
        %6987 = vmatpush1.bf16.msra.mxu0 %v2879
        %6988 = vmatprep.subr.bf16.mxu0 %v2884
        %6989 = vmatpush1.bf16.msra.mxu0 %v2883
        %6990 = vmatprep.mubr.bf16.mxu0 %v6340
        %6991 = vmatmul.mubr.bf16.gmra.mrb[0].mxu0 %v6339
        %v6992 = vpop.f32.mrb[0].mxu0
        %v6993 = vadd.f32 %v6942, %v6992
        %v6994 = vpop.f32.mrb[0].mxu0
        %v6995 = vadd.f32 %v6944, %v6994
        %v6996 = vpop.f32.mrb[0].mxu0
        %v6997 = vadd.f32 %v6946, %v6996
        %v6998 = vpop.f32.mrb[0].mxu0
        %v6999 = vadd.f32 %v6948, %v6998
        %7000 = vmatprep.mubr.bf16.mxu0 %v6356
        %7001 = vmatmul.mubr.bf16.gmra.mrb[0].mxu0 %v6355
        %v7002 = vpop.f32.mrb[0].mxu0
        %v7003 = vadd.f32 %v6952, %v7002
        %v7004 = vpop.f32.mrb[0].mxu0
        %v7005 = vadd.f32 %v6954, %v7004
        %v7006 = vpop.f32.mrb[0].mxu0
        %v7007 = vpop.f32.mrb[0].mxu0
        %7008 = vdwg.mxu0
        %7009 = vmatprep.subr.bf16.mxu0 %v2888
        %7010 = vmatpush1.bf16.msra.mxu0 %v2887
        %7011 = vmatprep.subr.bf16.mxu0 %v2892
        %7012 = vmatpush1.bf16.msra.mxu0 %v2891
        %7013 = vmatprep.subr.bf16.mxu0 %v2896
        %7014 = vmatpush1.bf16.msra.mxu0 %v2895
        %7015 = vmatprep.subr.bf16.mxu0 %v2900
        %7016 = vmatpush1.bf16.msra.mxu0 %v2899
        %7017 = vmatprep.subr.bf16.mxu0 %v2904
        %7018 = vmatpush1.bf16.msra.mxu0 %v2903
        %7019 = vmatprep.subr.bf16.mxu0 %v2908
        %7020 = vmatpush1.bf16.msra.mxu0 %v2907
        %7021 = vmatprep.subr.bf16.mxu0 %v2912
        %7022 = vmatpush1.bf16.msra.mxu0 %v2911
        %7023 = vmatprep.subr.bf16.mxu0 %v2916
        %7024 = vmatpush1.bf16.msra.mxu0 %v2915
        %7025 = vmatprep.subr.bf16.mxu0 %v2920
        %7026 = vmatpush1.bf16.msra.mxu0 %v2919
        %7027 = vmatprep.subr.bf16.mxu0 %v2924
        %7028 = vmatpush1.bf16.msra.mxu0 %v2923
        %7029 = vmatprep.subr.bf16.mxu0 %v2928
        %7030 = vmatpush1.bf16.msra.mxu0 %v2927
        %7031 = vmatprep.subr.bf16.mxu0 %v2932
        %7032 = vmatpush1.bf16.msra.mxu0 %v2931
        %7033 = vmatprep.subr.bf16.mxu0 %v2936
        %7034 = vmatpush1.bf16.msra.mxu0 %v2935
        %7035 = vmatprep.subr.bf16.mxu0 %v2940
        %7036 = vmatpush1.bf16.msra.mxu0 %v2939
        %7037 = vmatprep.subr.bf16.mxu0 %v2944
        %7038 = vmatpush1.bf16.msra.mxu0 %v2943
        %7039 = vmatprep.subr.bf16.mxu0 %v2948
        %7040 = vmatpush1.bf16.msra.mxu0 %v2947
        %7041 = vmatprep.mubr.bf16.mxu0 %v6342
        %7042 = vmatmul.mubr.bf16.gmra.mrb[0].mxu0 %v6341
        %v7043 = vpop.f32.mrb[0].mxu0
        %v7044 = vadd.f32 %v6993, %v7043
        %v7045 = vpop.f32.mrb[0].mxu0
        %v7046 = vadd.f32 %v6995, %v7045
        %v7047 = vpop.f32.mrb[0].mxu0
        %v7048 = vadd.f32 %v6997, %v7047
        %v7049 = vpop.f32.mrb[0].mxu0
        %v7050 = vadd.f32 %v6999, %v7049
        %7051 = vmatprep.mubr.bf16.mxu0 %v6358
        %7052 = vmatmul.mubr.bf16.gmra.mrb[0].mxu0 %v6357
        %v7053 = vpop.f32.mrb[0].mxu0
        %v7054 = vadd.f32 %v7003, %v7053
        %v7055 = vpop.f32.mrb[0].mxu0
        %v7056 = vadd.f32 %v7005, %v7055
        %v7057 = vpop.f32.mrb[0].mxu0
        %v7058 = vpop.f32.mrb[0].mxu0
        %7059 = vdwg.mxu0
        %7060 = vmatprep.subr.bf16.mxu0 %v2952
        %7061 = vmatpush1.bf16.msra.mxu0 %v2951
        %7062 = vmatprep.subr.bf16.mxu0 %v2956
        %7063 = vmatpush1.bf16.msra.mxu0 %v2955
        %7064 = vmatprep.subr.bf16.mxu0 %v2960
        %7065 = vmatpush1.bf16.msra.mxu0 %v2959
        %7066 = vmatprep.subr.bf16.mxu0 %v2964
        %7067 = vmatpush1.bf16.msra.mxu0 %v2963
        %7068 = vmatprep.subr.bf16.mxu0 %v2968
        %7069 = vmatpush1.bf16.msra.mxu0 %v2967
        %7070 = vmatprep.subr.bf16.mxu0 %v2972
        %7071 = vmatpush1.bf16.msra.mxu0 %v2971
        %7072 = vmatprep.subr.bf16.mxu0 %v2976
        %7073 = vmatpush1.bf16.msra.mxu0 %v2975
        %7074 = vmatprep.subr.bf16.mxu0 %v2980
        %7075 = vmatpush1.bf16.msra.mxu0 %v2979
        %7076 = vmatprep.subr.bf16.mxu0 %v2984
        %7077 = vmatpush1.bf16.msra.mxu0 %v2983
        %7078 = vmatprep.subr.bf16.mxu0 %v2988
        %7079 = vmatpush1.bf16.msra.mxu0 %v2987
        %7080 = vmatprep.subr.bf16.mxu0 %v2992
        %7081 = vmatpush1.bf16.msra.mxu0 %v2991
        %7082 = vmatprep.subr.bf16.mxu0 %v2996
        %7083 = vmatpush1.bf16.msra.mxu0 %v2995
        %7084 = vmatprep.subr.bf16.mxu0 %v3000
        %7085 = vmatpush1.bf16.msra.mxu0 %v2999
        %7086 = vmatprep.subr.bf16.mxu0 %v3004
        %7087 = vmatpush1.bf16.msra.mxu0 %v3003
        %7088 = vmatprep.subr.bf16.mxu0 %v3008
        %7089 = vmatpush1.bf16.msra.mxu0 %v3007
        %7090 = vmatprep.subr.bf16.mxu0 %v3012
        %7091 = vmatpush1.bf16.msra.mxu0 %v3011
        %7092 = vmatprep.mubr.bf16.mxu0 %v6344
        %7093 = vmatmul.mubr.bf16.gmra.mrb[0].mxu0 %v6343
        %v7094 = vpop.f32.mrb[0].mxu0
        %v7095 = vadd.f32 %v7044, %v7094
        %v7096 = vpop.f32.mrb[0].mxu0
        %v7097 = vadd.f32 %v7046, %v7096
        %v7098 = vpop.f32.mrb[0].mxu0
        %v7099 = vadd.f32 %v7048, %v7098
        %v7100 = vpop.f32.mrb[0].mxu0
        %v7101 = vadd.f32 %v7050, %v7100
        %7102 = vmatprep.mubr.bf16.mxu0 %v6360
        %7103 = vmatmul.mubr.bf16.gmra.mrb[0].mxu0 %v6359
        %v7104 = vpop.f32.mrb[0].mxu0
        %v7105 = vadd.f32 %v7054, %v7104
        %v7106 = vpop.f32.mrb[0].mxu0
        %v7107 = vadd.f32 %v7056, %v7106
        %v7108 = vpop.f32.mrb[0].mxu0
        %v7109 = vpop.f32.mrb[0].mxu0
        %7110 = vdwg.mxu0
        %7111 = vmatprep.subr.bf16.mxu0 %v3016
        %7112 = vmatpush1.bf16.msra.mxu0 %v3015
        %7113 = vmatprep.subr.bf16.mxu0 %v3020
        %7114 = vmatpush1.bf16.msra.mxu0 %v3019
        %7115 = vmatprep.subr.bf16.mxu0 %v3024
        %7116 = vmatpush1.bf16.msra.mxu0 %v3023
        %7117 = vmatprep.subr.bf16.mxu0 %v3028
        %7118 = vmatpush1.bf16.msra.mxu0 %v3027
        %7119 = vmatprep.subr.bf16.mxu0 %v3032
        %7120 = vmatpush1.bf16.msra.mxu0 %v3031
        %7121 = vmatprep.subr.bf16.mxu0 %v3036
        %7122 = vmatpush1.bf16.msra.mxu0 %v3035
        %7123 = vmatprep.subr.bf16.mxu0 %v3040
        %7124 = vmatpush1.bf16.msra.mxu0 %v3039
        %7125 = vmatprep.subr.bf16.mxu0 %v3044
        %7126 = vmatpush1.bf16.msra.mxu0 %v3043
        %7127 = vmatprep.subr.bf16.mxu0 %v3048
        %7128 = vmatpush1.bf16.msra.mxu0 %v3047
        %7129 = vmatprep.subr.bf16.mxu0 %v3052
        %7130 = vmatpush1.bf16.msra.mxu0 %v3051
        %7131 = vmatprep.subr.bf16.mxu0 %v3056
        %7132 = vmatpush1.bf16.msra.mxu0 %v3055
        %7133 = vmatprep.subr.bf16.mxu0 %v3060
        %7134 = vmatpush1.bf16.msra.mxu0 %v3059
        %7135 = vmatprep.subr.bf16.mxu0 %v3064
        %7136 = vmatpush1.bf16.msra.mxu0 %v3063
        %7137 = vmatprep.subr.bf16.mxu0 %v3068
        %7138 = vmatpush1.bf16.msra.mxu0 %v3067
        %7139 = vmatprep.subr.bf16.mxu0 %v3072
        %7140 = vmatpush1.bf16.msra.mxu0 %v3071
        %7141 = vmatprep.subr.bf16.mxu0 %v3076
        %7142 = vmatpush1.bf16.msra.mxu0 %v3075
        %7143 = vmatprep.mubr.bf16.mxu0 %v6346
        %7144 = vmatmul.mubr.bf16.gmra.mrb[0].mxu0 %v6345
        %v7145 = vpop.f32.mrb[0].mxu0
        %v7146 = vadd.f32 %v7095, %v7145
        %v7147 = vpop.f32.mrb[0].mxu0
        %v7148 = vadd.f32 %v7097, %v7147
        %v7149 = vpop.f32.mrb[0].mxu0
        %v7150 = vadd.f32 %v7099, %v7149
        %v7151 = vpop.f32.mrb[0].mxu0
        %v7152 = vadd.f32 %v7101, %v7151
        %7153 = vmatprep.mubr.bf16.mxu0 %v6362
        %7154 = vmatmul.mubr.bf16.gmra.mrb[0].mxu0 %v6361
        %v7155 = vpop.f32.mrb[0].mxu0
        %v7156 = vadd.f32 %v7105, %v7155
        %v7157 = vpop.f32.mrb[0].mxu0
        %v7158 = vadd.f32 %v7107, %v7157
        %v7159 = vpop.f32.mrb[0].mxu0
        %v7160 = vpop.f32.mrb[0].mxu0
        %7161 = vdwg.mxu0
        %7162 = vmatprep.subr.bf16.mxu0 %v3080
        %7163 = vmatpush1.bf16.msra.mxu0 %v3079
        %7164 = vmatprep.subr.bf16.mxu0 %v3084
        %7165 = vmatpush1.bf16.msra.mxu0 %v3083
        %7166 = vmatprep.subr.bf16.mxu0 %v3088
        %7167 = vmatpush1.bf16.msra.mxu0 %v3087
        %7168 = vmatprep.subr.bf16.mxu0 %v3092
        %7169 = vmatpush1.bf16.msra.mxu0 %v3091
        %7170 = vmatprep.subr.bf16.mxu0 %v3096
        %7171 = vmatpush1.bf16.msra.mxu0 %v3095
        %7172 = vmatprep.subr.bf16.mxu0 %v3100
        %7173 = vmatpush1.bf16.msra.mxu0 %v3099
        %7174 = vmatprep.subr.bf16.mxu0 %v3104
        %7175 = vmatpush1.bf16.msra.mxu0 %v3103
        %7176 = vmatprep.subr.bf16.mxu0 %v3108
        %7177 = vmatpush1.bf16.msra.mxu0 %v3107
        %7178 = vmatprep.subr.bf16.mxu0 %v3112
        %7179 = vmatpush1.bf16.msra.mxu0 %v3111
        %7180 = vmatprep.subr.bf16.mxu0 %v3116
        %7181 = vmatpush1.bf16.msra.mxu0 %v3115
        %7182 = vmatprep.subr.bf16.mxu0 %v3120
        %7183 = vmatpush1.bf16.msra.mxu0 %v3119
        %7184 = vmatprep.subr.bf16.mxu0 %v3124
        %7185 = vmatpush1.bf16.msra.mxu0 %v3123
        %7186 = vmatprep.subr.bf16.mxu0 %v3128
        %7187 = vmatpush1.bf16.msra.mxu0 %v3127
        %7188 = vmatprep.subr.bf16.mxu0 %v3132
        %7189 = vmatpush1.bf16.msra.mxu0 %v3131
        %7190 = vmatprep.subr.bf16.mxu0 %v3136
        %7191 = vmatpush1.bf16.msra.mxu0 %v3135
        %7192 = vmatprep.subr.bf16.mxu0 %v3140
        %7193 = vmatpush1.bf16.msra.mxu0 %v3139
        %7194 = vmatprep.mubr.bf16.mxu0 %v6348
        %7195 = vmatmul.mubr.bf16.gmra.mrb[0].mxu0 %v6347
        %v7196 = vpop.f32.mrb[0].mxu0
        %v7197 = vadd.f32 %v7146, %v7196
        %v7198 = vpop.f32.mrb[0].mxu0
        %v7199 = vadd.f32 %v7148, %v7198
        %v7200 = vpop.f32.mrb[0].mxu0
        %v7201 = vadd.f32 %v7150, %v7200
        %v7202 = vpop.f32.mrb[0].mxu0
        %v7203 = vadd.f32 %v7152, %v7202
        %7204 = vmatprep.mubr.bf16.mxu0 %v6364
        %7205 = vmatmul.mubr.bf16.gmra.mrb[0].mxu0 %v6363
        %v7206 = vpop.f32.mrb[0].mxu0
        %v7207 = vadd.f32 %v7156, %v7206
        %v7208 = vpop.f32.mrb[0].mxu0
        %v7209 = vadd.f32 %v7158, %v7208
        %v7210 = vpop.f32.mrb[0].mxu0
        %v7211 = vpop.f32.mrb[0].mxu0
        %7212 = vdwg.mxu0
        %vm7213 = vcmp.gt.f32.partialorder %v6789, 0.0
        %vm7214 = vcmp.gt.f32.partialorder %v6791, 0.0
        %vm7215 = vcmp.gt.f32.partialorder %v7197, 0.0
        %vm7216 = vcmp.gt.f32.partialorder %v7199, 0.0
        %vm7217 = vcmp.gt.f32.partialorder %v6793, 0.0
        %vm7218 = vcmp.gt.f32.partialorder %v6795, 0.0
        %vm7219 = vcmp.gt.f32.partialorder %v7201, 0.0
        %vm7220 = vcmp.gt.f32.partialorder %v7203, 0.0
        %vm7221 = vcmp.gt.f32.partialorder %v6799, 0.0
        %vm7222 = vcmp.gt.f32.partialorder %v6801, 0.0
        %vm7223 = vcmp.gt.f32.partialorder %v7207, 0.0
        %vm7224 = vcmp.gt.f32.partialorder %v7209, 0.0
        %v7225 = vmul.f32 %v6789, 0.25
        %v7226 = vmul.f32 %v6791, 0.25
        %v7227 = vmul.f32 %v7197, 0.25
        %v7228 = vmul.f32 %v7199, 0.25
        %v7229 = vmul.f32 %v6793, 0.25
        %v7230 = vmul.f32 %v6795, 0.25
        %v7231 = vmul.f32 %v7201, 0.25
        %v7232 = vmul.f32 %v7203, 0.25
        %v7233 = vmul.f32 %v6799, 0.25
        %v7234 = vmul.f32 %v6801, 0.25
        %v7235 = vmul.f32 %v7207, 0.25
        %v7236 = vmul.f32 %v7209, 0.25
        %v7237 = vsel %vm7213, %v6789, %v7225
        %v7238 = vsel %vm7214, %v6791, %v7226
        %v7239 = vsel %vm7215, %v7197, %v7227
        %v7240 = vsel %vm7216, %v7199, %v7228
        %v7241 = vsel %vm7217, %v6793, %v7229
        %v7242 = vsel %vm7218, %v6795, %v7230
        %v7243 = vsel %vm7219, %v7201, %v7231
        %v7244 = vsel %vm7220, %v7203, %v7232
        %v7245 = vsel %vm7221, %v6799, %v7233
        %v7246 = vsel %vm7222, %v6801, %v7234
        %v7247 = vsel %vm7223, %v7207, %v7235
        %v7248 = vsel %vm7224, %v7209, %v7236
        %v7249 = vpack.c.bf16 %v7241, %v7237
        %v7250 = vpack.c.bf16 %v7242, %v7238
        %v7251 = vpack.c.bf16 %v7243, %v7239
        %v7252 = vpack.c.bf16 %v7244, %v7240
        %v7253 = vpack.c.bf16 %v7245, %v7245
        %v7254 = vpack.c.bf16 %v7246, %v7246
        %v7255 = vpack.c.bf16 %v7247, %v7247
        %v7256 = vpack.c.bf16 %v7248, %v7248
        %v7257 = vld [vmem:[%s3 + $0x200] sm:$0xf]
        %v7258 = vld [vmem:[%s3 + $0x204] sm:$0xf]
        %v7259 = vld [vmem:[%s3 + $0x208] sm:$0xf]
        %v7260 = vld [vmem:[%s3 + $0x20c] sm:$0xf]
        %v7261 = vld [vmem:[%s3 + $0x210] sm:$0xf]
        %v7262 = vld [vmem:[%s3 + $0x214] sm:$0xf]
        %v7263 = vld [vmem:[%s3 + $0x218] sm:$0xf]
        %v7264 = vld [vmem:[%s3 + $0x21c] sm:$0xf]
        %v7265 = vld [vmem:[%s3 + $0x220] sm:$0xf]
        %v7266 = vld [vmem:[%s3 + $0x224] sm:$0xf]
        %v7267 = vld [vmem:[%s3 + $0x228] sm:$0xf]
        %v7268 = vld [vmem:[%s3 + $0x22c] sm:$0xf]
        %v7269 = vld [vmem:[%s3 + $0x230] sm:$0xf]
        %v7270 = vld [vmem:[%s3 + $0x234] sm:$0xf]
        %v7271 = vld [vmem:[%s3 + $0x238] sm:$0xf]
        %v7272 = vld [vmem:[%s3 + $0x23c] sm:$0xf]
        %v7273 = vld [vmem:[%s3 + $0x240] sm:$0xf]
        %v7274 = vld [vmem:[%s3 + $0x244] sm:$0xf]
        %v7275 = vld [vmem:[%s3 + $0x248] sm:$0xf]
        %v7276 = vld [vmem:[%s3 + $0x24c] sm:$0xf]
        %v7277 = vld [vmem:[%s3 + $0x250] sm:$0xf]
        %v7278 = vld [vmem:[%s3 + $0x254] sm:$0xf]
        %v7279 = vld [vmem:[%s3 + $0x258] sm:$0xf]
        %v7280 = vld [vmem:[%s3 + $0x25c] sm:$0xf]
        %v7281 = vld [vmem:[%s3 + $0x260] sm:$0xf]
        %v7282 = vld [vmem:[%s3 + $0x264] sm:$0xf]
        %v7283 = vld [vmem:[%s3 + $0x268] sm:$0xf]
        %v7284 = vld [vmem:[%s3 + $0x26c] sm:$0xf]
        %v7285 = vld [vmem:[%s3 + $0x270] sm:$0xf]
        %v7286 = vld [vmem:[%s3 + $0x274] sm:$0xf]
        %v7287 = vld [vmem:[%s3 + $0x278] sm:$0xf]
        %v7288 = vld [vmem:[%s3 + $0x27c] sm:$0xf]
        %v7289 = vld [vmem:[%s3 + $0x280] sm:$0xf]
        %v7290 = vld [vmem:[%s3 + $0x284] sm:$0xf]
        %v7291 = vld [vmem:[%s3 + $0x288] sm:$0xf]
        %v7292 = vld [vmem:[%s3 + $0x28c] sm:$0xf]
        %v7293 = vld [vmem:[%s3 + $0x290] sm:$0xf]
        %v7294 = vld [vmem:[%s3 + $0x294] sm:$0xf]
        %v7295 = vld [vmem:[%s3 + $0x298] sm:$0xf]
        %v7296 = vld [vmem:[%s3 + $0x29c] sm:$0xf]
        %v7297 = vld [vmem:[%s3 + $0x2a0] sm:$0xf]
        %v7298 = vld [vmem:[%s3 + $0x2a4] sm:$0xf]
        %v7299 = vld [vmem:[%s3 + $0x2a8] sm:$0xf]
        %v7300 = vld [vmem:[%s3 + $0x2ac] sm:$0xf]
        %v7301 = vld [vmem:[%s3 + $0x2b0] sm:$0xf]
        %v7302 = vld [vmem:[%s3 + $0x2b4] sm:$0xf]
        %v7303 = vld [vmem:[%s3 + $0x2b8] sm:$0xf]
        %v7304 = vld [vmem:[%s3 + $0x2bc] sm:$0xf]
        %v7305 = vld [vmem:[%s3 + $0x2c0] sm:$0xf]
        %v7306 = vld [vmem:[%s3 + $0x2c4] sm:$0xf]
        %v7307 = vld [vmem:[%s3 + $0x2c8] sm:$0xf]
        %v7308 = vld [vmem:[%s3 + $0x2cc] sm:$0xf]
        %v7309 = vld [vmem:[%s3 + $0x2d0] sm:$0xf]
        %v7310 = vld [vmem:[%s3 + $0x2d4] sm:$0xf]
        %v7311 = vld [vmem:[%s3 + $0x2d8] sm:$0xf]
        %v7312 = vld [vmem:[%s3 + $0x2dc] sm:$0xf]
        %v7313 = vld [vmem:[%s3 + $0x2e0] sm:$0xf]
        %v7314 = vld [vmem:[%s3 + $0x2e4] sm:$0xf]
        %v7315 = vld [vmem:[%s3 + $0x2e8] sm:$0xf]
        %v7316 = vld [vmem:[%s3 + $0x2ec] sm:$0xf]
        %v7317 = vld [vmem:[%s3 + $0x2f0] sm:$0xf]
        %v7318 = vld [vmem:[%s3 + $0x2f4] sm:$0xf]
        %v7319 = vld [vmem:[%s3 + $0x2f8] sm:$0xf]
        %v7320 = vld [vmem:[%s3 + $0x2fc] sm:$0xf]
        %v7385 = vunpack.c.l.b16 %v7257
        %v7386 = vunpack.c.l.b16 %v7258
        %v7387 = vunpack.c.l.b16 %v7259
        %v7388 = vunpack.c.l.b16 %v7260
        %v7389 = vunpack.c.l.b16 %v7261
        %v7390 = vunpack.c.l.b16 %v7262
        %v7391 = vunpack.c.l.b16 %v7263
        %v7392 = vunpack.c.l.b16 %v7264
        %v7393 = vunpack.c.l.b16 %v7265
        %v7394 = vunpack.c.l.b16 %v7266
        %v7395 = vunpack.c.l.b16 %v7267
        %v7396 = vunpack.c.l.b16 %v7268
        %v7397 = vunpack.c.l.b16 %v7269
        %v7398 = vunpack.c.l.b16 %v7270
        %v7399 = vunpack.c.l.b16 %v7271
        %v7400 = vunpack.c.l.b16 %v7272
        %v7401 = vunpack.c.l.b16 %v7273
        %v7402 = vunpack.c.l.b16 %v7274
        %v7403 = vunpack.c.l.b16 %v7275
        %v7404 = vunpack.c.l.b16 %v7276
        %v7405 = vunpack.c.l.b16 %v7277
        %v7406 = vunpack.c.l.b16 %v7278
        %v7407 = vunpack.c.l.b16 %v7279
        %v7408 = vunpack.c.l.b16 %v7280
        %v7409 = vunpack.c.l.b16 %v7281
        %v7410 = vunpack.c.l.b16 %v7282
        %v7411 = vunpack.c.l.b16 %v7283
        %v7412 = vunpack.c.l.b16 %v7284
        %v7413 = vunpack.c.l.b16 %v7285
        %v7414 = vunpack.c.l.b16 %v7286
        %v7415 = vunpack.c.l.b16 %v7287
        %v7416 = vunpack.c.l.b16 %v7288
        %v7417 = vunpack.c.l.b16 %v7289
        %v7418 = vunpack.c.l.b16 %v7290
        %v7419 = vunpack.c.l.b16 %v7291
        %v7420 = vunpack.c.l.b16 %v7292
        %v7421 = vunpack.c.l.b16 %v7293
        %v7422 = vunpack.c.l.b16 %v7294
        %v7423 = vunpack.c.l.b16 %v7295
        %v7424 = vunpack.c.l.b16 %v7296
        %v7425 = vunpack.c.l.b16 %v7297
        %v7426 = vunpack.c.l.b16 %v7298
        %v7427 = vunpack.c.l.b16 %v7299
        %v7428 = vunpack.c.l.b16 %v7300
        %v7429 = vunpack.c.l.b16 %v7301
        %v7430 = vunpack.c.l.b16 %v7302
        %v7431 = vunpack.c.l.b16 %v7303
        %v7432 = vunpack.c.l.b16 %v7304
        %v7433 = vunpack.c.l.b16 %v7305
        %v7434 = vunpack.c.l.b16 %v7306
        %v7435 = vunpack.c.l.b16 %v7307
        %v7436 = vunpack.c.l.b16 %v7308
        %v7437 = vunpack.c.l.b16 %v7309
        %v7438 = vunpack.c.l.b16 %v7310
        %v7439 = vunpack.c.l.b16 %v7311
        %v7440 = vunpack.c.l.b16 %v7312
        %v7441 = vunpack.c.l.b16 %v7313
        %v7442 = vunpack.c.l.b16 %v7314
        %v7443 = vunpack.c.l.b16 %v7315
        %v7444 = vunpack.c.l.b16 %v7316
        %v7445 = vunpack.c.l.b16 %v7317
        %v7446 = vunpack.c.l.b16 %v7318
        %v7447 = vunpack.c.l.b16 %v7319
        %v7448 = vunpack.c.l.b16 %v7320
        %v7449 = vpack.c.b16 %v7386, %v7385
        %v7450 = vpack.c.b16 %v7388, %v7387
        %v7451 = vpack.c.b16 %v7390, %v7389
        %v7452 = vpack.c.b16 %v7392, %v7391
        %v7453 = vpack.c.b16 %v7394, %v7393
        %v7454 = vpack.c.b16 %v7396, %v7395
        %v7455 = vpack.c.b16 %v7398, %v7397
        %v7456 = vpack.c.b16 %v7400, %v7399
        %v7457 = vpack.c.b16 %v7402, %v7401
        %v7458 = vpack.c.b16 %v7404, %v7403
        %v7459 = vpack.c.b16 %v7406, %v7405
        %v7460 = vpack.c.b16 %v7408, %v7407
        %v7461 = vpack.c.b16 %v7410, %v7409
        %v7462 = vpack.c.b16 %v7412, %v7411
        %v7463 = vpack.c.b16 %v7414, %v7413
        %v7464 = vpack.c.b16 %v7416, %v7415
        %v7465 = vpack.c.b16 %v7418, %v7417
        %v7466 = vpack.c.b16 %v7420, %v7419
        %v7467 = vpack.c.b16 %v7422, %v7421
        %v7468 = vpack.c.b16 %v7424, %v7423
        %v7469 = vpack.c.b16 %v7426, %v7425
        %v7470 = vpack.c.b16 %v7428, %v7427
        %v7471 = vpack.c.b16 %v7430, %v7429
        %v7472 = vpack.c.b16 %v7432, %v7431
        %v7473 = vpack.c.b16 %v7434, %v7433
        %v7474 = vpack.c.b16 %v7436, %v7435
        %v7475 = vpack.c.b16 %v7438, %v7437
        %v7476 = vpack.c.b16 %v7440, %v7439
        %v7477 = vpack.c.b16 %v7442, %v7441
        %v7478 = vpack.c.b16 %v7444, %v7443
        %v7479 = vpack.c.b16 %v7446, %v7445
        %v7480 = vpack.c.b16 %v7448, %v7447
        %7513 = vmatprep.subr.bf16.mxu0 0
        %7514 = vmatpush1.bf16.msra.mxu0 %v7449
        %7515 = vmatprep.subr.bf16.mxu0 0
        %7516 = vmatpush1.bf16.msra.mxu0 %v7450
        %7517 = vmatprep.subr.bf16.mxu0 0
        %7518 = vmatpush1.bf16.msra.mxu0 %v7451
        %7519 = vmatprep.subr.bf16.mxu0 0
        %7520 = vmatpush1.bf16.msra.mxu0 %v7452
        %7521 = vmatprep.subr.bf16.mxu0 0
        %7522 = vmatpush1.bf16.msra.mxu0 %v7453
        %7523 = vmatprep.subr.bf16.mxu0 0
        %7524 = vmatpush1.bf16.msra.mxu0 %v7454
        %7525 = vmatprep.subr.bf16.mxu0 0
        %7526 = vmatpush1.bf16.msra.mxu0 %v7455
        %7527 = vmatprep.subr.bf16.mxu0 0
        %7528 = vmatpush1.bf16.msra.mxu0 %v7456
        %7529 = vmatprep.subr.bf16.mxu0 0
        %7530 = vmatpush1.bf16.msra.mxu0 %v7457
        %7531 = vmatprep.subr.bf16.mxu0 0
        %7532 = vmatpush1.bf16.msra.mxu0 %v7458
        %7533 = vmatprep.subr.bf16.mxu0 0
        %7534 = vmatpush1.bf16.msra.mxu0 %v7459
        %7535 = vmatprep.subr.bf16.mxu0 0
        %7536 = vmatpush1.bf16.msra.mxu0 %v7460
        %7537 = vmatprep.subr.bf16.mxu0 0
        %7538 = vmatpush1.bf16.msra.mxu0 %v7461
        %7539 = vmatprep.subr.bf16.mxu0 0
        %7540 = vmatpush1.bf16.msra.mxu0 %v7462
        %7541 = vmatprep.subr.bf16.mxu0 0
        %7542 = vmatpush1.bf16.msra.mxu0 %v7463
        %7543 = vmatprep.subr.bf16.mxu0 0
        %7544 = vmatpush1.bf16.msra.mxu0 %v7464
        %7545 = vmatprep.mubr.bf16.mxu0 %v7250
        %7546 = vmatmul.mubr.bf16.gmra.mrb[0].mxu0 %v7249
        %v7547 = vpop.f32.mrb[0].mxu0
        %v7548 = vadd.f32 0.0, %v7547
        %v7549 = vpop.f32.mrb[0].mxu0
        %v7550 = vpop.f32.mrb[0].mxu0
        %v7551 = vadd.f32 0.0, %v7550
        %v7552 = vpop.f32.mrb[0].mxu0
        %7553 = vmatprep.mubr.bf16.mxu0 %v7254
        %7554 = vmatmul.mubr.bf16.gmra.mrb[0].mxu0 %v7253
        %v7555 = vpop.f32.mrb[0].mxu0
        %v7556 = vadd.f32 0.0, %v7555
        %v7557 = vpop.f32.mrb[0].mxu0
        %v7558 = vpop.f32.mrb[0].mxu0
        %v7559 = vpop.f32.mrb[0].mxu0
        %7560 = vdwg.mxu0
        %7561 = vmatprep.subr.bf16.mxu0 0
        %7562 = vmatpush1.bf16.msra.mxu0 %v7465
        %7563 = vmatprep.subr.bf16.mxu0 0
        %7564 = vmatpush1.bf16.msra.mxu0 %v7466
        %7565 = vmatprep.subr.bf16.mxu0 0
        %7566 = vmatpush1.bf16.msra.mxu0 %v7467
        %7567 = vmatprep.subr.bf16.mxu0 0
        %7568 = vmatpush1.bf16.msra.mxu0 %v7468
        %7569 = vmatprep.subr.bf16.mxu0 0
        %7570 = vmatpush1.bf16.msra.mxu0 %v7469
        %7571 = vmatprep.subr.bf16.mxu0 0
        %7572 = vmatpush1.bf16.msra.mxu0 %v7470
        %7573 = vmatprep.subr.bf16.mxu0 0
        %7574 = vmatpush1.bf16.msra.mxu0 %v7471
        %7575 = vmatprep.subr.bf16.mxu0 0
        %7576 = vmatpush1.bf16.msra.mxu0 %v7472
        %7577 = vmatprep.subr.bf16.mxu0 0
        %7578 = vmatpush1.bf16.msra.mxu0 %v7473
        %7579 = vmatprep.subr.bf16.mxu0 0
        %7580 = vmatpush1.bf16.msra.mxu0 %v7474
        %7581 = vmatprep.subr.bf16.mxu0 0
        %7582 = vmatpush1.bf16.msra.mxu0 %v7475
        %7583 = vmatprep.subr.bf16.mxu0 0
        %7584 = vmatpush1.bf16.msra.mxu0 %v7476
        %7585 = vmatprep.subr.bf16.mxu0 0
        %7586 = vmatpush1.bf16.msra.mxu0 %v7477
        %7587 = vmatprep.subr.bf16.mxu0 0
        %7588 = vmatpush1.bf16.msra.mxu0 %v7478
        %7589 = vmatprep.subr.bf16.mxu0 0
        %7590 = vmatpush1.bf16.msra.mxu0 %v7479
        %7591 = vmatprep.subr.bf16.mxu0 0
        %7592 = vmatpush1.bf16.msra.mxu0 %v7480
        %7593 = vmatprep.mubr.bf16.mxu0 %v7252
        %7594 = vmatmul.mubr.bf16.gmra.mrb[0].mxu0 %v7251
        %v7595 = vpop.f32.mrb[0].mxu0
        %v7596 = vadd.f32 %v7548, %v7595
        %v7597 = vpop.f32.mrb[0].mxu0
        %v7598 = vpop.f32.mrb[0].mxu0
        %v7599 = vadd.f32 %v7551, %v7598
        %v7600 = vpop.f32.mrb[0].mxu0
        %7601 = vmatprep.mubr.bf16.mxu0 %v7256
        %7602 = vmatmul.mubr.bf16.gmra.mrb[0].mxu0 %v7255
        %v7603 = vpop.f32.mrb[0].mxu0
        %v7604 = vadd.f32 %v7556, %v7603
        %v7605 = vpop.f32.mrb[0].mxu0
        %v7606 = vpop.f32.mrb[0].mxu0
        %v7607 = vpop.f32.mrb[0].mxu0
        %7608 = vdwg.mxu0
        %v7609 = vadd.f32 %v6224, %v7596
        %v7610 = vadd.f32 %v6227, %v7599
        %v7611 = vadd.f32 %v6232, %v7604
        %v7612 = vld [vmem:[%s394 + $0xc0] sm:$0xff]
        %v7613 = vld [vmem:[%s394 + $0xc8] sm:$0xff]
        %v7614 = vld [vmem:[%s394 + $0xd0] sm:$0xff]
        %v7615 = vld [vmem:[%s394 + $0xd8] sm:$0xff]
        %v7616 = vld [vmem:[%s394 + $0xe0] sm:$0xff]
        %v7617 = vld [vmem:[%s394 + $0xe8] sm:$0xff]
        %v7618 = vld [vmem:[%s394 + $0xf0] sm:$0xff]
        %v7619 = vld [vmem:[%s394 + $0xf8] sm:$0xff]
        %v7620 = vld [vmem:[%s394 + $0x1c0] sm:$0xff]
        %v7621 = vld [vmem:[%s394 + $0x1c8] sm:$0xff]
        %v7622 = vld [vmem:[%s394 + $0x1d0] sm:$0xff]
        %v7623 = vld [vmem:[%s394 + $0x1d8] sm:$0xff]
        %v7624 = vld [vmem:[%s394 + $0x1e0] sm:$0xff]
        %v7625 = vld [vmem:[%s394 + $0x1e8] sm:$0xff]
        %v7626 = vld [vmem:[%s394 + $0x1f0] sm:$0xff]
        %v7627 = vld [vmem:[%s394 + $0x1f8] sm:$0xff]
        %v7628 = vld [vmem:[%s394 + $0x2c0] sm:$0x33]
        %v7629 = vld [vmem:[%s394 + $0x2c8] sm:$0x33]
        %v7630 = vld [vmem:[%s394 + $0x2d0] sm:$0x33]
        %v7631 = vld [vmem:[%s394 + $0x2d8] sm:$0x33]
        %v7632 = vld [vmem:[%s394 + $0x2e0] sm:$0x33]
        %v7633 = vld [vmem:[%s394 + $0x2e8] sm:$0x33]
        %v7634 = vld [vmem:[%s394 + $0x2f0] sm:$0x33]
        %v7635 = vld [vmem:[%s394 + $0x2f8] sm:$0x33]
        %v7660 = vunpack.c.l.b16 %v7612
        %v7661 = vunpack.c.h.b16 %v7612
        %v7662 = vunpack.c.l.b16 %v7613
        %v7663 = vunpack.c.h.b16 %v7613
        %v7664 = vunpack.c.l.b16 %v7614
        %v7665 = vunpack.c.h.b16 %v7614
        %v7666 = vunpack.c.l.b16 %v7615
        %v7667 = vunpack.c.h.b16 %v7615
        %v7668 = vunpack.c.l.b16 %v7616
        %v7669 = vunpack.c.h.b16 %v7616
        %v7670 = vunpack.c.l.b16 %v7617
        %v7671 = vunpack.c.h.b16 %v7617
        %v7672 = vunpack.c.l.b16 %v7618
        %v7673 = vunpack.c.h.b16 %v7618
        %v7674 = vunpack.c.l.b16 %v7619
        %v7675 = vunpack.c.h.b16 %v7619
        %v7676 = vunpack.c.l.b16 %v7620
        %v7677 = vunpack.c.h.b16 %v7620
        %v7678 = vunpack.c.l.b16 %v7621
        %v7679 = vunpack.c.h.b16 %v7621
        %v7680 = vunpack.c.l.b16 %v7622
        %v7681 = vunpack.c.h.b16 %v7622
        %v7682 = vunpack.c.l.b16 %v7623
        %v7683 = vunpack.c.h.b16 %v7623
        %v7684 = vunpack.c.l.b16 %v7624
        %v7685 = vunpack.c.h.b16 %v7624
        %v7686 = vunpack.c.l.b16 %v7625
        %v7687 = vunpack.c.h.b16 %v7625
        %v7688 = vunpack.c.l.b16 %v7626
        %v7689 = vunpack.c.h.b16 %v7626
        %v7690 = vunpack.c.l.b16 %v7627
        %v7691 = vunpack.c.h.b16 %v7627
        %v7692 = vunpack.c.l.b16 %v7628
        %v7693 = vunpack.c.h.b16 %v7628
        %v7694 = vunpack.c.l.b16 %v7629
        %v7695 = vunpack.c.h.b16 %v7629
        %v7696 = vunpack.c.l.b16 %v7630
        %v7697 = vunpack.c.h.b16 %v7630
        %v7698 = vunpack.c.l.b16 %v7631
        %v7699 = vunpack.c.h.b16 %v7631
        %v7700 = vunpack.c.l.b16 %v7632
        %v7701 = vunpack.c.h.b16 %v7632
        %v7702 = vunpack.c.l.b16 %v7633
        %v7703 = vunpack.c.h.b16 %v7633
        %v7704 = vunpack.c.l.b16 %v7634
        %v7705 = vunpack.c.h.b16 %v7634
        %v7706 = vunpack.c.l.b16 %v7635
        %v7707 = vunpack.c.h.b16 %v7635
        %v7708 = vpack.c.b16 %v7676, %v7660
        %v7709 = vpack.c.b16 %v7677, %v7661
        %v7710 = vpack.c.b16 %v7678, %v7662
        %v7711 = vpack.c.b16 %v7679, %v7663
        %v7712 = vpack.c.b16 %v7680, %v7664
        %v7713 = vpack.c.b16 %v7681, %v7665
        %v7714 = vpack.c.b16 %v7682, %v7666
        %v7715 = vpack.c.b16 %v7683, %v7667
        %v7716 = vpack.c.b16 %v7684, %v7668
        %v7717 = vpack.c.b16 %v7685, %v7669
        %v7718 = vpack.c.b16 %v7686, %v7670
        %v7719 = vpack.c.b16 %v7687, %v7671
        %v7720 = vpack.c.b16 %v7688, %v7672
        %v7721 = vpack.c.b16 %v7689, %v7673
        %v7722 = vpack.c.b16 %v7690, %v7674
        %v7723 = vpack.c.b16 %v7691, %v7675
        %v7724 = vpack.c.b16 %v7692, %v7692
        %v7725 = vpack.c.b16 %v7693, %v7693
        %v7726 = vpack.c.b16 %v7694, %v7694
        %v7727 = vpack.c.b16 %v7695, %v7695
        %v7728 = vpack.c.b16 %v7696, %v7696
        %v7729 = vpack.c.b16 %v7697, %v7697
        %v7730 = vpack.c.b16 %v7698, %v7698
        %v7731 = vpack.c.b16 %v7699, %v7699
        %v7732 = vpack.c.b16 %v7700, %v7700
        %v7733 = vpack.c.b16 %v7701, %v7701
        %v7734 = vpack.c.b16 %v7702, %v7702
        %v7735 = vpack.c.b16 %v7703, %v7703
        %v7736 = vpack.c.b16 %v7704, %v7704
        %v7737 = vpack.c.b16 %v7705, %v7705
        %v7738 = vpack.c.b16 %v7706, %v7706
        %v7739 = vpack.c.b16 %v7707, %v7707
        %7772 = vmatprep.subr.bf16.mxu0 %v2630
        %7773 = vmatpush1.bf16.msra.mxu0 %v2629
        %7774 = vmatprep.subr.bf16.mxu0 %v2634
        %7775 = vmatpush1.bf16.msra.mxu0 %v2633
        %7776 = vmatprep.subr.bf16.mxu0 %v2638
        %7777 = vmatpush1.bf16.msra.mxu0 %v2637
        %7778 = vmatprep.subr.bf16.mxu0 %v2642
        %7779 = vmatpush1.bf16.msra.mxu0 %v2641
        %7780 = vmatprep.subr.bf16.mxu0 %v2646
        %7781 = vmatpush1.bf16.msra.mxu0 %v2645
        %7782 = vmatprep.subr.bf16.mxu0 %v2650
        %7783 = vmatpush1.bf16.msra.mxu0 %v2649
        %7784 = vmatprep.subr.bf16.mxu0 %v2654
        %7785 = vmatpush1.bf16.msra.mxu0 %v2653
        %7786 = vmatprep.subr.bf16.mxu0 %v2658
        %7787 = vmatpush1.bf16.msra.mxu0 %v2657
        %7788 = vmatprep.subr.bf16.mxu0 %v2662
        %7789 = vmatpush1.bf16.msra.mxu0 %v2661
        %7790 = vmatprep.subr.bf16.mxu0 %v2666
        %7791 = vmatpush1.bf16.msra.mxu0 %v2665
        %7792 = vmatprep.subr.bf16.mxu0 %v2670
        %7793 = vmatpush1.bf16.msra.mxu0 %v2669
        %7794 = vmatprep.subr.bf16.mxu0 %v2674
        %7795 = vmatpush1.bf16.msra.mxu0 %v2673
        %7796 = vmatprep.subr.bf16.mxu0 %v2678
        %7797 = vmatpush1.bf16.msra.mxu0 %v2677
        %7798 = vmatprep.subr.bf16.mxu0 %v2682
        %7799 = vmatpush1.bf16.msra.mxu0 %v2681
        %7800 = vmatprep.subr.bf16.mxu0 %v2686
        %7801 = vmatpush1.bf16.msra.mxu0 %v2685
        %7802 = vmatprep.subr.bf16.mxu0 %v2690
        %7803 = vmatpush1.bf16.msra.mxu0 %v2689
        %7804 = vmatprep.mubr.bf16.mxu0 %v7709
        %7805 = vmatmul.mubr.bf16.gmra.mrb[0].mxu0 %v7708
        %v7806 = vpop.f32.mrb[0].mxu0
        %v7807 = vadd.f32 %v940, %v7806
        %v7808 = vpop.f32.mrb[0].mxu0
        %v7809 = vadd.f32 %v944, %v7808
        %v7810 = vpop.f32.mrb[0].mxu0
        %v7811 = vadd.f32 %v940, %v7810
        %v7812 = vpop.f32.mrb[0].mxu0
        %v7813 = vadd.f32 %v944, %v7812
        %7814 = vmatprep.mubr.bf16.mxu0 %v7725
        %7815 = vmatmul.mubr.bf16.gmra.mrb[0].mxu0 %v7724
        %v7816 = vpop.f32.mrb[0].mxu0
        %v7817 = vadd.f32 %v940, %v7816
        %v7818 = vpop.f32.mrb[0].mxu0
        %v7819 = vadd.f32 %v944, %v7818
        %v7820 = vpop.f32.mrb[0].mxu0
        %v7821 = vpop.f32.mrb[0].mxu0
        %7822 = vdwg.mxu0
        %7823 = vmatprep.subr.bf16.mxu0 %v2694
        %7824 = vmatpush1.bf16.msra.mxu0 %v2693
        %7825 = vmatprep.subr.bf16.mxu0 %v2698
        %7826 = vmatpush1.bf16.msra.mxu0 %v2697
        %7827 = vmatprep.subr.bf16.mxu0 %v2702
        %7828 = vmatpush1.bf16.msra.mxu0 %v2701
        %7829 = vmatprep.subr.bf16.mxu0 %v2706
        %7830 = vmatpush1.bf16.msra.mxu0 %v2705
        %7831 = vmatprep.subr.bf16.mxu0 %v2710
        %7832 = vmatpush1.bf16.msra.mxu0 %v2709
        %7833 = vmatprep.subr.bf16.mxu0 %v2714
        %7834 = vmatpush1.bf16.msra.mxu0 %v2713
        %7835 = vmatprep.subr.bf16.mxu0 %v2718
        %7836 = vmatpush1.bf16.msra.mxu0 %v2717
        %7837 = vmatprep.subr.bf16.mxu0 %v2722
        %7838 = vmatpush1.bf16.msra.mxu0 %v2721
        %7839 = vmatprep.subr.bf16.mxu0 %v2726
        %7840 = vmatpush1.bf16.msra.mxu0 %v2725
        %7841 = vmatprep.subr.bf16.mxu0 %v2730
        %7842 = vmatpush1.bf16.msra.mxu0 %v2729
        %7843 = vmatprep.subr.bf16.mxu0 %v2734
        %7844 = vmatpush1.bf16.msra.mxu0 %v2733
        %7845 = vmatprep.subr.bf16.mxu0 %v2738
        %7846 = vmatpush1.bf16.msra.mxu0 %v2737
        %7847 = vmatprep.subr.bf16.mxu0 %v2742
        %7848 = vmatpush1.bf16.msra.mxu0 %v2741
        %7849 = vmatprep.subr.bf16.mxu0 %v2746
        %7850 = vmatpush1.bf16.msra.mxu0 %v2745
        %7851 = vmatprep.subr.bf16.mxu0 %v2750
        %7852 = vmatpush1.bf16.msra.mxu0 %v2749
        %7853 = vmatprep.subr.bf16.mxu0 %v2754
        %7854 = vmatpush1.bf16.msra.mxu0 %v2753
        %7855 = vmatprep.mubr.bf16.mxu0 %v7711
        %7856 = vmatmul.mubr.bf16.gmra.mrb[0].mxu0 %v7710
        %v7857 = vpop.f32.mrb[0].mxu0
        %v7858 = vadd.f32 %v7807, %v7857
        %v7859 = vpop.f32.mrb[0].mxu0
        %v7860 = vadd.f32 %v7809, %v7859
        %v7861 = vpop.f32.mrb[0].mxu0
        %v7862 = vadd.f32 %v7811, %v7861
        %v7863 = vpop.f32.mrb[0].mxu0
        %v7864 = vadd.f32 %v7813, %v7863
        %7865 = vmatprep.mubr.bf16.mxu0 %v7727
        %7866 = vmatmul.mubr.bf16.gmra.mrb[0].mxu0 %v7726
        %v7867 = vpop.f32.mrb[0].mxu0
        %v7868 = vadd.f32 %v7817, %v7867
        %v7869 = vpop.f32.mrb[0].mxu0
        %v7870 = vadd.f32 %v7819, %v7869
        %v7871 = vpop.f32.mrb[0].mxu0
        %v7872 = vpop.f32.mrb[0].mxu0
        %7873 = vdwg.mxu0
        %7874 = vmatprep.subr.bf16.mxu0 %v2758
        %7875 = vmatpush1.bf16.msra.mxu0 %v2757
        %7876 = vmatprep.subr.bf16.mxu0 %v2762
        %7877 = vmatpush1.bf16.msra.mxu0 %v2761
        %7878 = vmatprep.subr.bf16.mxu0 %v2766
        %7879 = vmatpush1.bf16.msra.mxu0 %v2765
        %7880 = vmatprep.subr.bf16.mxu0 %v2770
        %7881 = vmatpush1.bf16.msra.mxu0 %v2769
        %7882 = vmatprep.subr.bf16.mxu0 %v2774
        %7883 = vmatpush1.bf16.msra.mxu0 %v2773
        %7884 = vmatprep.subr.bf16.mxu0 %v2778
        %7885 = vmatpush1.bf16.msra.mxu0 %v2777
        %7886 = vmatprep.subr.bf16.mxu0 %v2782
        %7887 = vmatpush1.bf16.msra.mxu0 %v2781
        %7888 = vmatprep.subr.bf16.mxu0 %v2786
        %7889 = vmatpush1.bf16.msra.mxu0 %v2785
        %7890 = vmatprep.subr.bf16.mxu0 %v2790
        %7891 = vmatpush1.bf16.msra.mxu0 %v2789
        %7892 = vmatprep.subr.bf16.mxu0 %v2794
        %7893 = vmatpush1.bf16.msra.mxu0 %v2793
        %7894 = vmatprep.subr.bf16.mxu0 %v2798
        %7895 = vmatpush1.bf16.msra.mxu0 %v2797
        %7896 = vmatprep.subr.bf16.mxu0 %v2802
        %7897 = vmatpush1.bf16.msra.mxu0 %v2801
        %7898 = vmatprep.subr.bf16.mxu0 %v2806
        %7899 = vmatpush1.bf16.msra.mxu0 %v2805
        %7900 = vmatprep.subr.bf16.mxu0 %v2810
        %7901 = vmatpush1.bf16.msra.mxu0 %v2809
        %7902 = vmatprep.subr.bf16.mxu0 %v2814
        %7903 = vmatpush1.bf16.msra.mxu0 %v2813
        %7904 = vmatprep.subr.bf16.mxu0 %v2818
        %7905 = vmatpush1.bf16.msra.mxu0 %v2817
        %7906 = vmatprep.mubr.bf16.mxu0 %v7713
        %7907 = vmatmul.mubr.bf16.gmra.mrb[0].mxu0 %v7712
        %v7908 = vpop.f32.mrb[0].mxu0
        %v7909 = vadd.f32 %v7858, %v7908
        %v7910 = vpop.f32.mrb[0].mxu0
        %v7911 = vadd.f32 %v7860, %v7910
        %v7912 = vpop.f32.mrb[0].mxu0
        %v7913 = vadd.f32 %v7862, %v7912
        %v7914 = vpop.f32.mrb[0].mxu0
        %v7915 = vadd.f32 %v7864, %v7914
        %7916 = vmatprep.mubr.bf16.mxu0 %v7729
        %7917 = vmatmul.mubr.bf16.gmra.mrb[0].mxu0 %v7728
        %v7918 = vpop.f32.mrb[0].mxu0
        %v7919 = vadd.f32 %v7868, %v7918
        %v7920 = vpop.f32.mrb[0].mxu0
        %v7921 = vadd.f32 %v7870, %v7920
        %v7922 = vpop.f32.mrb[0].mxu0
        %v7923 = vpop.f32.mrb[0].mxu0
        %7924 = vdwg.mxu0
        %7925 = vmatprep.subr.bf16.mxu0 %v2822
        %7926 = vmatpush1.bf16.msra.mxu0 %v2821
        %7927 = vmatprep.subr.bf16.mxu0 %v2826
        %7928 = vmatpush1.bf16.msra.mxu0 %v2825
        %7929 = vmatprep.subr.bf16.mxu0 %v2830
        %7930 = vmatpush1.bf16.msra.mxu0 %v2829
        %7931 = vmatprep.subr.bf16.mxu0 %v2834
        %7932 = vmatpush1.bf16.msra.mxu0 %v2833
        %7933 = vmatprep.subr.bf16.mxu0 %v2838
        %7934 = vmatpush1.bf16.msra.mxu0 %v2837
        %7935 = vmatprep.subr.bf16.mxu0 %v2842
        %7936 = vmatpush1.bf16.msra.mxu0 %v2841
        %7937 = vmatprep.subr.bf16.mxu0 %v2846
        %7938 = vmatpush1.bf16.msra.mxu0 %v2845
        %7939 = vmatprep.subr.bf16.mxu0 %v2850
        %7940 = vmatpush1.bf16.msra.mxu0 %v2849
        %7941 = vmatprep.subr.bf16.mxu0 %v2854
        %7942 = vmatpush1.bf16.msra.mxu0 %v2853
        %7943 = vmatprep.subr.bf16.mxu0 %v2858
        %7944 = vmatpush1.bf16.msra.mxu0 %v2857
        %7945 = vmatprep.subr.bf16.mxu0 %v2862
        %7946 = vmatpush1.bf16.msra.mxu0 %v2861
        %7947 = vmatprep.subr.bf16.mxu0 %v2866
        %7948 = vmatpush1.bf16.msra.mxu0 %v2865
        %7949 = vmatprep.subr.bf16.mxu0 %v2870
        %7950 = vmatpush1.bf16.msra.mxu0 %v2869
        %7951 = vmatprep.subr.bf16.mxu0 %v2874
        %7952 = vmatpush1.bf16.msra.mxu0 %v2873
        %7953 = vmatprep.subr.bf16.mxu0 %v2878
        %7954 = vmatpush1.bf16.msra.mxu0 %v2877
        %7955 = vmatprep.subr.bf16.mxu0 %v2882
        %7956 = vmatpush1.bf16.msra.mxu0 %v2881
        %7957 = vmatprep.mubr.bf16.mxu0 %v7715
        %7958 = vmatmul.mubr.bf16.gmra.mrb[0].mxu0 %v7714
        %v7959 = vpop.f32.mrb[0].mxu0
        %v7960 = vadd.f32 %v7909, %v7959
        %v7961 = vpop.f32.mrb[0].mxu0
        %v7962 = vadd.f32 %v7911, %v7961
        %v7963 = vpop.f32.mrb[0].mxu0
        %v7964 = vadd.f32 %v7913, %v7963
        %v7965 = vpop.f32.mrb[0].mxu0
        %v7966 = vadd.f32 %v7915, %v7965
        %7967 = vmatprep.mubr.bf16.mxu0 %v7731
        %7968 = vmatmul.mubr.bf16.gmra.mrb[0].mxu0 %v7730
        %v7969 = vpop.f32.mrb[0].mxu0
        %v7970 = vadd.f32 %v7919, %v7969
        %v7971 = vpop.f32.mrb[0].mxu0
        %v7972 = vadd.f32 %v7921, %v7971
        %v7973 = vpop.f32.mrb[0].mxu0
        %v7974 = vpop.f32.mrb[0].mxu0
        %7975 = vdwg.mxu0
        %7976 = vmatprep.subr.bf16.mxu0 %v2886
        %7977 = vmatpush1.bf16.msra.mxu0 %v2885
        %7978 = vmatprep.subr.bf16.mxu0 %v2890
        %7979 = vmatpush1.bf16.msra.mxu0 %v2889
        %7980 = vmatprep.subr.bf16.mxu0 %v2894
        %7981 = vmatpush1.bf16.msra.mxu0 %v2893
        %7982 = vmatprep.subr.bf16.mxu0 %v2898
        %7983 = vmatpush1.bf16.msra.mxu0 %v2897
        %7984 = vmatprep.subr.bf16.mxu0 %v2902
        %7985 = vmatpush1.bf16.msra.mxu0 %v2901
        %7986 = vmatprep.subr.bf16.mxu0 %v2906
        %7987 = vmatpush1.bf16.msra.mxu0 %v2905
        %7988 = vmatprep.subr.bf16.mxu0 %v2910
        %7989 = vmatpush1.bf16.msra.mxu0 %v2909
        %7990 = vmatprep.subr.bf16.mxu0 %v2914
        %7991 = vmatpush1.bf16.msra.mxu0 %v2913
        %7992 = vmatprep.subr.bf16.mxu0 %v2918
        %7993 = vmatpush1.bf16.msra.mxu0 %v2917
        %7994 = vmatprep.subr.bf16.mxu0 %v2922
        %7995 = vmatpush1.bf16.msra.mxu0 %v2921
        %7996 = vmatprep.subr.bf16.mxu0 %v2926
        %7997 = vmatpush1.bf16.msra.mxu0 %v2925
        %7998 = vmatprep.subr.bf16.mxu0 %v2930
        %7999 = vmatpush1.bf16.msra.mxu0 %v2929
        %8000 = vmatprep.subr.bf16.mxu0 %v2934
        %8001 = vmatpush1.bf16.msra.mxu0 %v2933
        %8002 = vmatprep.subr.bf16.mxu0 %v2938
        %8003 = vmatpush1.bf16.msra.mxu0 %v2937
        %8004 = vmatprep.subr.bf16.mxu0 %v2942
        %8005 = vmatpush1.bf16.msra.mxu0 %v2941
        %8006 = vmatprep.subr.bf16.mxu0 %v2946
        %8007 = vmatpush1.bf16.msra.mxu0 %v2945
        %8008 = vmatprep.mubr.bf16.mxu0 %v7717
        %8009 = vmatmul.mubr.bf16.gmra.mrb[0].mxu0 %v7716
        %v8010 = vpop.f32.mrb[0].mxu0
        %v8011 = vadd.f32 %v7960, %v8010
        %v8012 = vpop.f32.mrb[0].mxu0
        %v8013 = vadd.f32 %v7962, %v8012
        %v8014 = vpop.f32.mrb[0].mxu0
        %v8015 = vadd.f32 %v7964, %v8014
        %v8016 = vpop.f32.mrb[0].mxu0
        %v8017 = vadd.f32 %v7966, %v8016
        %8018 = vmatprep.mubr.bf16.mxu0 %v7733
        %8019 = vmatmul.mubr.bf16.gmra.mrb[0].mxu0 %v7732
        %v8020 = vpop.f32.mrb[0].mxu0
        %v8021 = vadd.f32 %v7970, %v8020
        %v8022 = vpop.f32.mrb[0].mxu0
        %v8023 = vadd.f32 %v7972, %v8022
        %v8024 = vpop.f32.mrb[0].mxu0
        %v8025 = vpop.f32.mrb[0].mxu0
        %8026 = vdwg.mxu0
        %8027 = vmatprep.subr.bf16.mxu0 %v2950
        %8028 = vmatpush1.bf16.msra.mxu0 %v2949
        %8029 = vmatprep.subr.bf16.mxu0 %v2954
        %8030 = vmatpush1.bf16.msra.mxu0 %v2953
        %8031 = vmatprep.subr.bf16.mxu0 %v2958
        %8032 = vmatpush1.bf16.msra.mxu0 %v2957
        %8033 = vmatprep.subr.bf16.mxu0 %v2962
        %8034 = vmatpush1.bf16.msra.mxu0 %v2961
        %8035 = vmatprep.subr.bf16.mxu0 %v2966
        %8036 = vmatpush1.bf16.msra.mxu0 %v2965
        %8037 = vmatprep.subr.bf16.mxu0 %v2970
        %8038 = vmatpush1.bf16.msra.mxu0 %v2969
        %8039 = vmatprep.subr.bf16.mxu0 %v2974
        %8040 = vmatpush1.bf16.msra.mxu0 %v2973
        %8041 = vmatprep.subr.bf16.mxu0 %v2978
        %8042 = vmatpush1.bf16.msra.mxu0 %v2977
        %8043 = vmatprep.subr.bf16.mxu0 %v2982
        %8044 = vmatpush1.bf16.msra.mxu0 %v2981
        %8045 = vmatprep.subr.bf16.mxu0 %v2986
        %8046 = vmatpush1.bf16.msra.mxu0 %v2985
        %8047 = vmatprep.subr.bf16.mxu0 %v2990
        %8048 = vmatpush1.bf16.msra.mxu0 %v2989
        %8049 = vmatprep.subr.bf16.mxu0 %v2994
        %8050 = vmatpush1.bf16.msra.mxu0 %v2993
        %8051 = vmatprep.subr.bf16.mxu0 %v2998
        %8052 = vmatpush1.bf16.msra.mxu0 %v2997
        %8053 = vmatprep.subr.bf16.mxu0 %v3002
        %8054 = vmatpush1.bf16.msra.mxu0 %v3001
        %8055 = vmatprep.subr.bf16.mxu0 %v3006
        %8056 = vmatpush1.bf16.msra.mxu0 %v3005
        %8057 = vmatprep.subr.bf16.mxu0 %v3010
        %8058 = vmatpush1.bf16.msra.mxu0 %v3009
        %8059 = vmatprep.mubr.bf16.mxu0 %v7719
        %8060 = vmatmul.mubr.bf16.gmra.mrb[0].mxu0 %v7718
        %v8061 = vpop.f32.mrb[0].mxu0
        %v8062 = vadd.f32 %v8011, %v8061
        %v8063 = vpop.f32.mrb[0].mxu0
        %v8064 = vadd.f32 %v8013, %v8063
        %v8065 = vpop.f32.mrb[0].mxu0
        %v8066 = vadd.f32 %v8015, %v8065
        %v8067 = vpop.f32.mrb[0].mxu0
        %v8068 = vadd.f32 %v8017, %v8067
        %8069 = vmatprep.mubr.bf16.mxu0 %v7735
        %8070 = vmatmul.mubr.bf16.gmra.mrb[0].mxu0 %v7734
        %v8071 = vpop.f32.mrb[0].mxu0
        %v8072 = vadd.f32 %v8021, %v8071
        %v8073 = vpop.f32.mrb[0].mxu0
        %v8074 = vadd.f32 %v8023, %v8073
        %v8075 = vpop.f32.mrb[0].mxu0
        %v8076 = vpop.f32.mrb[0].mxu0
        %8077 = vdwg.mxu0
        %8078 = vmatprep.subr.bf16.mxu0 %v3014
        %8079 = vmatpush1.bf16.msra.mxu0 %v3013
        %8080 = vmatprep.subr.bf16.mxu0 %v3018
        %8081 = vmatpush1.bf16.msra.mxu0 %v3017
        %8082 = vmatprep.subr.bf16.mxu0 %v3022
        %8083 = vmatpush1.bf16.msra.mxu0 %v3021
        %8084 = vmatprep.subr.bf16.mxu0 %v3026
        %8085 = vmatpush1.bf16.msra.mxu0 %v3025
        %8086 = vmatprep.subr.bf16.mxu0 %v3030
        %8087 = vmatpush1.bf16.msra.mxu0 %v3029
        %8088 = vmatprep.subr.bf16.mxu0 %v3034
        %8089 = vmatpush1.bf16.msra.mxu0 %v3033
        %8090 = vmatprep.subr.bf16.mxu0 %v3038
        %8091 = vmatpush1.bf16.msra.mxu0 %v3037
        %8092 = vmatprep.subr.bf16.mxu0 %v3042
        %8093 = vmatpush1.bf16.msra.mxu0 %v3041
        %8094 = vmatprep.subr.bf16.mxu0 %v3046
        %8095 = vmatpush1.bf16.msra.mxu0 %v3045
        %8096 = vmatprep.subr.bf16.mxu0 %v3050
        %8097 = vmatpush1.bf16.msra.mxu0 %v3049
        %8098 = vmatprep.subr.bf16.mxu0 %v3054
        %8099 = vmatpush1.bf16.msra.mxu0 %v3053
        %8100 = vmatprep.subr.bf16.mxu0 %v3058
        %8101 = vmatpush1.bf16.msra.mxu0 %v3057
        %8102 = vmatprep.subr.bf16.mxu0 %v3062
        %8103 = vmatpush1.bf16.msra.mxu0 %v3061
        %8104 = vmatprep.subr.bf16.mxu0 %v3066
        %8105 = vmatpush1.bf16.msra.mxu0 %v3065
        %8106 = vmatprep.subr.bf16.mxu0 %v3070
        %8107 = vmatpush1.bf16.msra.mxu0 %v3069
        %8108 = vmatprep.subr.bf16.mxu0 %v3074
        %8109 = vmatpush1.bf16.msra.mxu0 %v3073
        %8110 = vmatprep.mubr.bf16.mxu0 %v7721
        %8111 = vmatmul.mubr.bf16.gmra.mrb[0].mxu0 %v7720
        %v8112 = vpop.f32.mrb[0].mxu0
        %v8113 = vadd.f32 %v8062, %v8112
        %v8114 = vpop.f32.mrb[0].mxu0
        %v8115 = vadd.f32 %v8064, %v8114
        %v8116 = vpop.f32.mrb[0].mxu0
        %v8117 = vadd.f32 %v8066, %v8116
        %v8118 = vpop.f32.mrb[0].mxu0
        %v8119 = vadd.f32 %v8068, %v8118
        %8120 = vmatprep.mubr.bf16.mxu0 %v7737
        %8121 = vmatmul.mubr.bf16.gmra.mrb[0].mxu0 %v7736
        %v8122 = vpop.f32.mrb[0].mxu0
        %v8123 = vadd.f32 %v8072, %v8122
        %v8124 = vpop.f32.mrb[0].mxu0
        %v8125 = vadd.f32 %v8074, %v8124
        %v8126 = vpop.f32.mrb[0].mxu0
        %v8127 = vpop.f32.mrb[0].mxu0
        %8128 = vdwg.mxu0
        %8129 = vmatprep.subr.bf16.mxu0 %v3078
        %8130 = vmatpush1.bf16.msra.mxu0 %v3077
        %8131 = vmatprep.subr.bf16.mxu0 %v3082
        %8132 = vmatpush1.bf16.msra.mxu0 %v3081
        %8133 = vmatprep.subr.bf16.mxu0 %v3086
        %8134 = vmatpush1.bf16.msra.mxu0 %v3085
        %8135 = vmatprep.subr.bf16.mxu0 %v3090
        %8136 = vmatpush1.bf16.msra.mxu0 %v3089
        %8137 = vmatprep.subr.bf16.mxu0 %v3094
        %8138 = vmatpush1.bf16.msra.mxu0 %v3093
        %8139 = vmatprep.subr.bf16.mxu0 %v3098
        %8140 = vmatpush1.bf16.msra.mxu0 %v3097
        %8141 = vmatprep.subr.bf16.mxu0 %v3102
        %8142 = vmatpush1.bf16.msra.mxu0 %v3101
        %8143 = vmatprep.subr.bf16.mxu0 %v3106
        %8144 = vmatpush1.bf16.msra.mxu0 %v3105
        %8145 = vmatprep.subr.bf16.mxu0 %v3110
        %8146 = vmatpush1.bf16.msra.mxu0 %v3109
        %8147 = vmatprep.subr.bf16.mxu0 %v3114
        %8148 = vmatpush1.bf16.msra.mxu0 %v3113
        %8149 = vmatprep.subr.bf16.mxu0 %v3118
        %8150 = vmatpush1.bf16.msra.mxu0 %v3117
        %8151 = vmatprep.subr.bf16.mxu0 %v3122
        %8152 = vmatpush1.bf16.msra.mxu0 %v3121
        %8153 = vmatprep.subr.bf16.mxu0 %v3126
        %8154 = vmatpush1.bf16.msra.mxu0 %v3125
        %8155 = vmatprep.subr.bf16.mxu0 %v3130
        %8156 = vmatpush1.bf16.msra.mxu0 %v3129
        %8157 = vmatprep.subr.bf16.mxu0 %v3134
        %8158 = vmatpush1.bf16.msra.mxu0 %v3133
        %8159 = vmatprep.subr.bf16.mxu0 %v3138
        %8160 = vmatpush1.bf16.msra.mxu0 %v3137
        %8161 = vmatprep.mubr.bf16.mxu0 %v7723
        %8162 = vmatmul.mubr.bf16.gmra.mrb[0].mxu0 %v7722
        %v8163 = vpop.f32.mrb[0].mxu0
        %v8164 = vadd.f32 %v8113, %v8163
        %v8165 = vpop.f32.mrb[0].mxu0
        %v8166 = vadd.f32 %v8115, %v8165
        %v8167 = vpop.f32.mrb[0].mxu0
        %v8168 = vadd.f32 %v8117, %v8167
        %v8169 = vpop.f32.mrb[0].mxu0
        %v8170 = vadd.f32 %v8119, %v8169
        %8171 = vmatprep.mubr.bf16.mxu0 %v7739
        %8172 = vmatmul.mubr.bf16.gmra.mrb[0].mxu0 %v7738
        %v8173 = vpop.f32.mrb[0].mxu0
        %v8174 = vadd.f32 %v8123, %v8173
        %v8175 = vpop.f32.mrb[0].mxu0
        %v8176 = vadd.f32 %v8125, %v8175
        %v8177 = vpop.f32.mrb[0].mxu0
        %v8178 = vpop.f32.mrb[0].mxu0
        %8179 = vdwg.mxu0
        %8180 = vmatprep.subr.bf16.mxu0 %v2632
        %8181 = vmatpush1.bf16.msra.mxu0 %v2631
        %8182 = vmatprep.subr.bf16.mxu0 %v2636
        %8183 = vmatpush1.bf16.msra.mxu0 %v2635
        %8184 = vmatprep.subr.bf16.mxu0 %v2640
        %8185 = vmatpush1.bf16.msra.mxu0 %v2639
        %8186 = vmatprep.subr.bf16.mxu0 %v2644
        %8187 = vmatpush1.bf16.msra.mxu0 %v2643
        %8188 = vmatprep.subr.bf16.mxu0 %v2648
        %8189 = vmatpush1.bf16.msra.mxu0 %v2647
        %8190 = vmatprep.subr.bf16.mxu0 %v2652
        %8191 = vmatpush1.bf16.msra.mxu0 %v2651
        %8192 = vmatprep.subr.bf16.mxu0 %v2656
        %8193 = vmatpush1.bf16.msra.mxu0 %v2655
        %8194 = vmatprep.subr.bf16.mxu0 %v2660
        %8195 = vmatpush1.bf16.msra.mxu0 %v2659
        %8196 = vmatprep.subr.bf16.mxu0 %v2664
        %8197 = vmatpush1.bf16.msra.mxu0 %v2663
        %8198 = vmatprep.subr.bf16.mxu0 %v2668
        %8199 = vmatpush1.bf16.msra.mxu0 %v2667
        %8200 = vmatprep.subr.bf16.mxu0 %v2672
        %8201 = vmatpush1.bf16.msra.mxu0 %v2671
        %8202 = vmatprep.subr.bf16.mxu0 %v2676
        %8203 = vmatpush1.bf16.msra.mxu0 %v2675
        %8204 = vmatprep.subr.bf16.mxu0 %v2680
        %8205 = vmatpush1.bf16.msra.mxu0 %v2679
        %8206 = vmatprep.subr.bf16.mxu0 %v2684
        %8207 = vmatpush1.bf16.msra.mxu0 %v2683
        %8208 = vmatprep.subr.bf16.mxu0 %v2688
        %8209 = vmatpush1.bf16.msra.mxu0 %v2687
        %8210 = vmatprep.subr.bf16.mxu0 %v2692
        %8211 = vmatpush1.bf16.msra.mxu0 %v2691
        %8212 = vmatprep.mubr.bf16.mxu0 %v7709
        %8213 = vmatmul.mubr.bf16.gmra.mrb[0].mxu0 %v7708
        %v8214 = vpop.f32.mrb[0].mxu0
        %v8215 = vadd.f32 %v948, %v8214
        %v8216 = vpop.f32.mrb[0].mxu0
        %v8217 = vadd.f32 %v952, %v8216
        %v8218 = vpop.f32.mrb[0].mxu0
        %v8219 = vadd.f32 %v948, %v8218
        %v8220 = vpop.f32.mrb[0].mxu0
        %v8221 = vadd.f32 %v952, %v8220
        %8222 = vmatprep.mubr.bf16.mxu0 %v7725
        %8223 = vmatmul.mubr.bf16.gmra.mrb[0].mxu0 %v7724
        %v8224 = vpop.f32.mrb[0].mxu0
        %v8225 = vadd.f32 %v948, %v8224
        %v8226 = vpop.f32.mrb[0].mxu0
        %v8227 = vadd.f32 %v952, %v8226
        %v8228 = vpop.f32.mrb[0].mxu0
        %v8229 = vpop.f32.mrb[0].mxu0
        %8230 = vdwg.mxu0
        %8231 = vmatprep.subr.bf16.mxu0 %v2696
        %8232 = vmatpush1.bf16.msra.mxu0 %v2695
        %8233 = vmatprep.subr.bf16.mxu0 %v2700
        %8234 = vmatpush1.bf16.msra.mxu0 %v2699
        %8235 = vmatprep.subr.bf16.mxu0 %v2704
        %8236 = vmatpush1.bf16.msra.mxu0 %v2703
        %8237 = vmatprep.subr.bf16.mxu0 %v2708
        %8238 = vmatpush1.bf16.msra.mxu0 %v2707
        %8239 = vmatprep.subr.bf16.mxu0 %v2712
        %8240 = vmatpush1.bf16.msra.mxu0 %v2711
        %8241 = vmatprep.subr.bf16.mxu0 %v2716
        %8242 = vmatpush1.bf16.msra.mxu0 %v2715
        %8243 = vmatprep.subr.bf16.mxu0 %v2720
        %8244 = vmatpush1.bf16.msra.mxu0 %v2719
        %8245 = vmatprep.subr.bf16.mxu0 %v2724
        %8246 = vmatpush1.bf16.msra.mxu0 %v2723
        %8247 = vmatprep.subr.bf16.mxu0 %v2728
        %8248 = vmatpush1.bf16.msra.mxu0 %v2727
        %8249 = vmatprep.subr.bf16.mxu0 %v2732
        %8250 = vmatpush1.bf16.msra.mxu0 %v2731
        %8251 = vmatprep.subr.bf16.mxu0 %v2736
        %8252 = vmatpush1.bf16.msra.mxu0 %v2735
        %8253 = vmatprep.subr.bf16.mxu0 %v2740
        %8254 = vmatpush1.bf16.msra.mxu0 %v2739
        %8255 = vmatprep.subr.bf16.mxu0 %v2744
        %8256 = vmatpush1.bf16.msra.mxu0 %v2743
        %8257 = vmatprep.subr.bf16.mxu0 %v2748
        %8258 = vmatpush1.bf16.msra.mxu0 %v2747
        %8259 = vmatprep.subr.bf16.mxu0 %v2752
        %8260 = vmatpush1.bf16.msra.mxu0 %v2751
        %8261 = vmatprep.subr.bf16.mxu0 %v2756
        %8262 = vmatpush1.bf16.msra.mxu0 %v2755
        %8263 = vmatprep.mubr.bf16.mxu0 %v7711
        %8264 = vmatmul.mubr.bf16.gmra.mrb[0].mxu0 %v7710
        %v8265 = vpop.f32.mrb[0].mxu0
        %v8266 = vadd.f32 %v8215, %v8265
        %v8267 = vpop.f32.mrb[0].mxu0
        %v8268 = vadd.f32 %v8217, %v8267
        %v8269 = vpop.f32.mrb[0].mxu0
        %v8270 = vadd.f32 %v8219, %v8269
        %v8271 = vpop.f32.mrb[0].mxu0
        %v8272 = vadd.f32 %v8221, %v8271
        %8273 = vmatprep.mubr.bf16.mxu0 %v7727
        %8274 = vmatmul.mubr.bf16.gmra.mrb[0].mxu0 %v7726
        %v8275 = vpop.f32.mrb[0].mxu0
        %v8276 = vadd.f32 %v8225, %v8275
        %v8277 = vpop.f32.mrb[0].mxu0
        %v8278 = vadd.f32 %v8227, %v8277
        %v8279 = vpop.f32.mrb[0].mxu0
        %v8280 = vpop.f32.mrb[0].mxu0
        %8281 = vdwg.mxu0
        %8282 = vmatprep.subr.bf16.mxu0 %v2760
        %8283 = vmatpush1.bf16.msra.mxu0 %v2759
        %8284 = vmatprep.subr.bf16.mxu0 %v2764
        %8285 = vmatpush1.bf16.msra.mxu0 %v2763
        %8286 = vmatprep.subr.bf16.mxu0 %v2768
        %8287 = vmatpush1.bf16.msra.mxu0 %v2767
        %8288 = vmatprep.subr.bf16.mxu0 %v2772
        %8289 = vmatpush1.bf16.msra.mxu0 %v2771
        %8290 = vmatprep.subr.bf16.mxu0 %v2776
        %8291 = vmatpush1.bf16.msra.mxu0 %v2775
        %8292 = vmatprep.subr.bf16.mxu0 %v2780
        %8293 = vmatpush1.bf16.msra.mxu0 %v2779
        %8294 = vmatprep.subr.bf16.mxu0 %v2784
        %8295 = vmatpush1.bf16.msra.mxu0 %v2783
        %8296 = vmatprep.subr.bf16.mxu0 %v2788
        %8297 = vmatpush1.bf16.msra.mxu0 %v2787
        %8298 = vmatprep.subr.bf16.mxu0 %v2792
        %8299 = vmatpush1.bf16.msra.mxu0 %v2791
        %8300 = vmatprep.subr.bf16.mxu0 %v2796
        %8301 = vmatpush1.bf16.msra.mxu0 %v2795
        %8302 = vmatprep.subr.bf16.mxu0 %v2800
        %8303 = vmatpush1.bf16.msra.mxu0 %v2799
        %8304 = vmatprep.subr.bf16.mxu0 %v2804
        %8305 = vmatpush1.bf16.msra.mxu0 %v2803
        %8306 = vmatprep.subr.bf16.mxu0 %v2808
        %8307 = vmatpush1.bf16.msra.mxu0 %v2807
        %8308 = vmatprep.subr.bf16.mxu0 %v2812
        %8309 = vmatpush1.bf16.msra.mxu0 %v2811
        %8310 = vmatprep.subr.bf16.mxu0 %v2816
        %8311 = vmatpush1.bf16.msra.mxu0 %v2815
        %8312 = vmatprep.subr.bf16.mxu0 %v2820
        %8313 = vmatpush1.bf16.msra.mxu0 %v2819
        %8314 = vmatprep.mubr.bf16.mxu0 %v7713
        %8315 = vmatmul.mubr.bf16.gmra.mrb[0].mxu0 %v7712
        %v8316 = vpop.f32.mrb[0].mxu0
        %v8317 = vadd.f32 %v8266, %v8316
        %v8318 = vpop.f32.mrb[0].mxu0
        %v8319 = vadd.f32 %v8268, %v8318
        %v8320 = vpop.f32.mrb[0].mxu0
        %v8321 = vadd.f32 %v8270, %v8320
        %v8322 = vpop.f32.mrb[0].mxu0
        %v8323 = vadd.f32 %v8272, %v8322
        %8324 = vmatprep.mubr.bf16.mxu0 %v7729
        %8325 = vmatmul.mubr.bf16.gmra.mrb[0].mxu0 %v7728
        %v8326 = vpop.f32.mrb[0].mxu0
        %v8327 = vadd.f32 %v8276, %v8326
        %v8328 = vpop.f32.mrb[0].mxu0
        %v8329 = vadd.f32 %v8278, %v8328
        %v8330 = vpop.f32.mrb[0].mxu0
        %v8331 = vpop.f32.mrb[0].mxu0
        %8332 = vdwg.mxu0
        %8333 = vmatprep.subr.bf16.mxu0 %v2824
        %8334 = vmatpush1.bf16.msra.mxu0 %v2823
        %8335 = vmatprep.subr.bf16.mxu0 %v2828
        %8336 = vmatpush1.bf16.msra.mxu0 %v2827
        %8337 = vmatprep.subr.bf16.mxu0 %v2832
        %8338 = vmatpush1.bf16.msra.mxu0 %v2831
        %8339 = vmatprep.subr.bf16.mxu0 %v2836
        %8340 = vmatpush1.bf16.msra.mxu0 %v2835
        %8341 = vmatprep.subr.bf16.mxu0 %v2840
        %8342 = vmatpush1.bf16.msra.mxu0 %v2839
        %8343 = vmatprep.subr.bf16.mxu0 %v2844
        %8344 = vmatpush1.bf16.msra.mxu0 %v2843
        %8345 = vmatprep.subr.bf16.mxu0 %v2848
        %8346 = vmatpush1.bf16.msra.mxu0 %v2847
        %8347 = vmatprep.subr.bf16.mxu0 %v2852
        %8348 = vmatpush1.bf16.msra.mxu0 %v2851
        %8349 = vmatprep.subr.bf16.mxu0 %v2856
        %8350 = vmatpush1.bf16.msra.mxu0 %v2855
        %8351 = vmatprep.subr.bf16.mxu0 %v2860
        %8352 = vmatpush1.bf16.msra.mxu0 %v2859
        %8353 = vmatprep.subr.bf16.mxu0 %v2864
        %8354 = vmatpush1.bf16.msra.mxu0 %v2863
        %8355 = vmatprep.subr.bf16.mxu0 %v2868
        %8356 = vmatpush1.bf16.msra.mxu0 %v2867
        %8357 = vmatprep.subr.bf16.mxu0 %v2872
        %8358 = vmatpush1.bf16.msra.mxu0 %v2871
        %8359 = vmatprep.subr.bf16.mxu0 %v2876
        %8360 = vmatpush1.bf16.msra.mxu0 %v2875
        %8361 = vmatprep.subr.bf16.mxu0 %v2880
        %8362 = vmatpush1.bf16.msra.mxu0 %v2879
        %8363 = vmatprep.subr.bf16.mxu0 %v2884
        %8364 = vmatpush1.bf16.msra.mxu0 %v2883
        %8365 = vmatprep.mubr.bf16.mxu0 %v7715
        %8366 = vmatmul.mubr.bf16.gmra.mrb[0].mxu0 %v7714
        %v8367 = vpop.f32.mrb[0].mxu0
        %v8368 = vadd.f32 %v8317, %v8367
        %v8369 = vpop.f32.mrb[0].mxu0
        %v8370 = vadd.f32 %v8319, %v8369
        %v8371 = vpop.f32.mrb[0].mxu0
        %v8372 = vadd.f32 %v8321, %v8371
        %v8373 = vpop.f32.mrb[0].mxu0
        %v8374 = vadd.f32 %v8323, %v8373
        %8375 = vmatprep.mubr.bf16.mxu0 %v7731
        %8376 = vmatmul.mubr.bf16.gmra.mrb[0].mxu0 %v7730
        %v8377 = vpop.f32.mrb[0].mxu0
        %v8378 = vadd.f32 %v8327, %v8377
        %v8379 = vpop.f32.mrb[0].mxu0
        %v8380 = vadd.f32 %v8329, %v8379
        %v8381 = vpop.f32.mrb[0].mxu0
        %v8382 = vpop.f32.mrb[0].mxu0
        %8383 = vdwg.mxu0
        %8384 = vmatprep.subr.bf16.mxu0 %v2888
        %8385 = vmatpush1.bf16.msra.mxu0 %v2887
        %8386 = vmatprep.subr.bf16.mxu0 %v2892
        %8387 = vmatpush1.bf16.msra.mxu0 %v2891
        %8388 = vmatprep.subr.bf16.mxu0 %v2896
        %8389 = vmatpush1.bf16.msra.mxu0 %v2895
        %8390 = vmatprep.subr.bf16.mxu0 %v2900
        %8391 = vmatpush1.bf16.msra.mxu0 %v2899
        %8392 = vmatprep.subr.bf16.mxu0 %v2904
        %8393 = vmatpush1.bf16.msra.mxu0 %v2903
        %8394 = vmatprep.subr.bf16.mxu0 %v2908
        %8395 = vmatpush1.bf16.msra.mxu0 %v2907
        %8396 = vmatprep.subr.bf16.mxu0 %v2912
        %8397 = vmatpush1.bf16.msra.mxu0 %v2911
        %8398 = vmatprep.subr.bf16.mxu0 %v2916
        %8399 = vmatpush1.bf16.msra.mxu0 %v2915
        %8400 = vmatprep.subr.bf16.mxu0 %v2920
        %8401 = vmatpush1.bf16.msra.mxu0 %v2919
        %8402 = vmatprep.subr.bf16.mxu0 %v2924
        %8403 = vmatpush1.bf16.msra.mxu0 %v2923
        %8404 = vmatprep.subr.bf16.mxu0 %v2928
        %8405 = vmatpush1.bf16.msra.mxu0 %v2927
        %8406 = vmatprep.subr.bf16.mxu0 %v2932
        %8407 = vmatpush1.bf16.msra.mxu0 %v2931
        %8408 = vmatprep.subr.bf16.mxu0 %v2936
        %8409 = vmatpush1.bf16.msra.mxu0 %v2935
        %8410 = vmatprep.subr.bf16.mxu0 %v2940
        %8411 = vmatpush1.bf16.msra.mxu0 %v2939
        %8412 = vmatprep.subr.bf16.mxu0 %v2944
        %8413 = vmatpush1.bf16.msra.mxu0 %v2943
        %8414 = vmatprep.subr.bf16.mxu0 %v2948
        %8415 = vmatpush1.bf16.msra.mxu0 %v2947
        %8416 = vmatprep.mubr.bf16.mxu0 %v7717
        %8417 = vmatmul.mubr.bf16.gmra.mrb[0].mxu0 %v7716
        %v8418 = vpop.f32.mrb[0].mxu0
        %v8419 = vadd.f32 %v8368, %v8418
        %v8420 = vpop.f32.mrb[0].mxu0
        %v8421 = vadd.f32 %v8370, %v8420
        %v8422 = vpop.f32.mrb[0].mxu0
        %v8423 = vadd.f32 %v8372, %v8422
        %v8424 = vpop.f32.mrb[0].mxu0
        %v8425 = vadd.f32 %v8374, %v8424
        %8426 = vmatprep.mubr.bf16.mxu0 %v7733
        %8427 = vmatmul.mubr.bf16.gmra.mrb[0].mxu0 %v7732
        %v8428 = vpop.f32.mrb[0].mxu0
        %v8429 = vadd.f32 %v8378, %v8428
        %v8430 = vpop.f32.mrb[0].mxu0
        %v8431 = vadd.f32 %v8380, %v8430
        %v8432 = vpop.f32.mrb[0].mxu0
        %v8433 = vpop.f32.mrb[0].mxu0
        %8434 = vdwg.mxu0
        %8435 = vmatprep.subr.bf16.mxu0 %v2952
        %8436 = vmatpush1.bf16.msra.mxu0 %v2951
        %8437 = vmatprep.subr.bf16.mxu0 %v2956
        %8438 = vmatpush1.bf16.msra.mxu0 %v2955
        %8439 = vmatprep.subr.bf16.mxu0 %v2960
        %8440 = vmatpush1.bf16.msra.mxu0 %v2959
        %8441 = vmatprep.subr.bf16.mxu0 %v2964
        %8442 = vmatpush1.bf16.msra.mxu0 %v2963
        %8443 = vmatprep.subr.bf16.mxu0 %v2968
        %8444 = vmatpush1.bf16.msra.mxu0 %v2967
        %8445 = vmatprep.subr.bf16.mxu0 %v2972
        %8446 = vmatpush1.bf16.msra.mxu0 %v2971
        %8447 = vmatprep.subr.bf16.mxu0 %v2976
        %8448 = vmatpush1.bf16.msra.mxu0 %v2975
        %8449 = vmatprep.subr.bf16.mxu0 %v2980
        %8450 = vmatpush1.bf16.msra.mxu0 %v2979
        %8451 = vmatprep.subr.bf16.mxu0 %v2984
        %8452 = vmatpush1.bf16.msra.mxu0 %v2983
        %8453 = vmatprep.subr.bf16.mxu0 %v2988
        %8454 = vmatpush1.bf16.msra.mxu0 %v2987
        %8455 = vmatprep.subr.bf16.mxu0 %v2992
        %8456 = vmatpush1.bf16.msra.mxu0 %v2991
        %8457 = vmatprep.subr.bf16.mxu0 %v2996
        %8458 = vmatpush1.bf16.msra.mxu0 %v2995
        %8459 = vmatprep.subr.bf16.mxu0 %v3000
        %8460 = vmatpush1.bf16.msra.mxu0 %v2999
        %8461 = vmatprep.subr.bf16.mxu0 %v3004
        %8462 = vmatpush1.bf16.msra.mxu0 %v3003
        %8463 = vmatprep.subr.bf16.mxu0 %v3008
        %8464 = vmatpush1.bf16.msra.mxu0 %v3007
        %8465 = vmatprep.subr.bf16.mxu0 %v3012
        %8466 = vmatpush1.bf16.msra.mxu0 %v3011
        %8467 = vmatprep.mubr.bf16.mxu0 %v7719
        %8468 = vmatmul.mubr.bf16.gmra.mrb[0].mxu0 %v7718
        %v8469 = vpop.f32.mrb[0].mxu0
        %v8470 = vadd.f32 %v8419, %v8469
        %v8471 = vpop.f32.mrb[0].mxu0
        %v8472 = vadd.f32 %v8421, %v8471
        %v8473 = vpop.f32.mrb[0].mxu0
        %v8474 = vadd.f32 %v8423, %v8473
        %v8475 = vpop.f32.mrb[0].mxu0
        %v8476 = vadd.f32 %v8425, %v8475
        %8477 = vmatprep.mubr.bf16.mxu0 %v7735
        %8478 = vmatmul.mubr.bf16.gmra.mrb[0].mxu0 %v7734
        %v8479 = vpop.f32.mrb[0].mxu0
        %v8480 = vadd.f32 %v8429, %v8479
        %v8481 = vpop.f32.mrb[0].mxu0
        %v8482 = vadd.f32 %v8431, %v8481
        %v8483 = vpop.f32.mrb[0].mxu0
        %v8484 = vpop.f32.mrb[0].mxu0
        %8485 = vdwg.mxu0
        %8486 = vmatprep.subr.bf16.mxu0 %v3016
        %8487 = vmatpush1.bf16.msra.mxu0 %v3015
        %8488 = vmatprep.subr.bf16.mxu0 %v3020
        %8489 = vmatpush1.bf16.msra.mxu0 %v3019
        %8490 = vmatprep.subr.bf16.mxu0 %v3024
        %8491 = vmatpush1.bf16.msra.mxu0 %v3023
        %8492 = vmatprep.subr.bf16.mxu0 %v3028
        %8493 = vmatpush1.bf16.msra.mxu0 %v3027
        %8494 = vmatprep.subr.bf16.mxu0 %v3032
        %8495 = vmatpush1.bf16.msra.mxu0 %v3031
        %8496 = vmatprep.subr.bf16.mxu0 %v3036
        %8497 = vmatpush1.bf16.msra.mxu0 %v3035
        %8498 = vmatprep.subr.bf16.mxu0 %v3040
        %8499 = vmatpush1.bf16.msra.mxu0 %v3039
        %8500 = vmatprep.subr.bf16.mxu0 %v3044
        %8501 = vmatpush1.bf16.msra.mxu0 %v3043
        %8502 = vmatprep.subr.bf16.mxu0 %v3048
        %8503 = vmatpush1.bf16.msra.mxu0 %v3047
        %8504 = vmatprep.subr.bf16.mxu0 %v3052
        %8505 = vmatpush1.bf16.msra.mxu0 %v3051
        %8506 = vmatprep.subr.bf16.mxu0 %v3056
        %8507 = vmatpush1.bf16.msra.mxu0 %v3055
        %8508 = vmatprep.subr.bf16.mxu0 %v3060
        %8509 = vmatpush1.bf16.msra.mxu0 %v3059
        %8510 = vmatprep.subr.bf16.mxu0 %v3064
        %8511 = vmatpush1.bf16.msra.mxu0 %v3063
        %8512 = vmatprep.subr.bf16.mxu0 %v3068
        %8513 = vmatpush1.bf16.msra.mxu0 %v3067
        %8514 = vmatprep.subr.bf16.mxu0 %v3072
        %8515 = vmatpush1.bf16.msra.mxu0 %v3071
        %8516 = vmatprep.subr.bf16.mxu0 %v3076
        %8517 = vmatpush1.bf16.msra.mxu0 %v3075
        %8518 = vmatprep.mubr.bf16.mxu0 %v7721
        %8519 = vmatmul.mubr.bf16.gmra.mrb[0].mxu0 %v7720
        %v8520 = vpop.f32.mrb[0].mxu0
        %v8521 = vadd.f32 %v8470, %v8520
        %v8522 = vpop.f32.mrb[0].mxu0
        %v8523 = vadd.f32 %v8472, %v8522
        %v8524 = vpop.f32.mrb[0].mxu0
        %v8525 = vadd.f32 %v8474, %v8524
        %v8526 = vpop.f32.mrb[0].mxu0
        %v8527 = vadd.f32 %v8476, %v8526
        %8528 = vmatprep.mubr.bf16.mxu0 %v7737
        %8529 = vmatmul.mubr.bf16.gmra.mrb[0].mxu0 %v7736
        %v8530 = vpop.f32.mrb[0].mxu0
        %v8531 = vadd.f32 %v8480, %v8530
        %v8532 = vpop.f32.mrb[0].mxu0
        %v8533 = vadd.f32 %v8482, %v8532
        %v8534 = vpop.f32.mrb[0].mxu0
        %v8535 = vpop.f32.mrb[0].mxu0
        %8536 = vdwg.mxu0
        %8537 = vmatprep.subr.bf16.mxu0 %v3080
        %8538 = vmatpush1.bf16.msra.mxu0 %v3079
        %8539 = vmatprep.subr.bf16.mxu0 %v3084
        %8540 = vmatpush1.bf16.msra.mxu0 %v3083
        %8541 = vmatprep.subr.bf16.mxu0 %v3088
        %8542 = vmatpush1.bf16.msra.mxu0 %v3087
        %8543 = vmatprep.subr.bf16.mxu0 %v3092
        %8544 = vmatpush1.bf16.msra.mxu0 %v3091
        %8545 = vmatprep.subr.bf16.mxu0 %v3096
        %8546 = vmatpush1.bf16.msra.mxu0 %v3095
        %8547 = vmatprep.subr.bf16.mxu0 %v3100
        %8548 = vmatpush1.bf16.msra.mxu0 %v3099
        %8549 = vmatprep.subr.bf16.mxu0 %v3104
        %8550 = vmatpush1.bf16.msra.mxu0 %v3103
        %8551 = vmatprep.subr.bf16.mxu0 %v3108
        %8552 = vmatpush1.bf16.msra.mxu0 %v3107
        %8553 = vmatprep.subr.bf16.mxu0 %v3112
        %8554 = vmatpush1.bf16.msra.mxu0 %v3111
        %8555 = vmatprep.subr.bf16.mxu0 %v3116
        %8556 = vmatpush1.bf16.msra.mxu0 %v3115
        %8557 = vmatprep.subr.bf16.mxu0 %v3120
        %8558 = vmatpush1.bf16.msra.mxu0 %v3119
        %8559 = vmatprep.subr.bf16.mxu0 %v3124
        %8560 = vmatpush1.bf16.msra.mxu0 %v3123
        %8561 = vmatprep.subr.bf16.mxu0 %v3128
        %8562 = vmatpush1.bf16.msra.mxu0 %v3127
        %8563 = vmatprep.subr.bf16.mxu0 %v3132
        %8564 = vmatpush1.bf16.msra.mxu0 %v3131
        %8565 = vmatprep.subr.bf16.mxu0 %v3136
        %8566 = vmatpush1.bf16.msra.mxu0 %v3135
        %8567 = vmatprep.subr.bf16.mxu0 %v3140
        %8568 = vmatpush1.bf16.msra.mxu0 %v3139
        %8569 = vmatprep.mubr.bf16.mxu0 %v7723
        %8570 = vmatmul.mubr.bf16.gmra.mrb[0].mxu0 %v7722
        %v8571 = vpop.f32.mrb[0].mxu0
        %v8572 = vadd.f32 %v8521, %v8571
        %v8573 = vpop.f32.mrb[0].mxu0
        %v8574 = vadd.f32 %v8523, %v8573
        %v8575 = vpop.f32.mrb[0].mxu0
        %v8576 = vadd.f32 %v8525, %v8575
        %v8577 = vpop.f32.mrb[0].mxu0
        %v8578 = vadd.f32 %v8527, %v8577
        %8579 = vmatprep.mubr.bf16.mxu0 %v7739
        %8580 = vmatmul.mubr.bf16.gmra.mrb[0].mxu0 %v7738
        %v8581 = vpop.f32.mrb[0].mxu0
        %v8582 = vadd.f32 %v8531, %v8581
        %v8583 = vpop.f32.mrb[0].mxu0
        %v8584 = vadd.f32 %v8533, %v8583
        %v8585 = vpop.f32.mrb[0].mxu0
        %v8586 = vpop.f32.mrb[0].mxu0
        %8587 = vdwg.mxu0
        %vm8588 = vcmp.gt.f32.partialorder %v8164, 0.0
        %vm8589 = vcmp.gt.f32.partialorder %v8166, 0.0
        %vm8590 = vcmp.gt.f32.partialorder %v8572, 0.0
        %vm8591 = vcmp.gt.f32.partialorder %v8574, 0.0
        %vm8592 = vcmp.gt.f32.partialorder %v8168, 0.0
        %vm8593 = vcmp.gt.f32.partialorder %v8170, 0.0
        %vm8594 = vcmp.gt.f32.partialorder %v8576, 0.0
        %vm8595 = vcmp.gt.f32.partialorder %v8578, 0.0
        %vm8596 = vcmp.gt.f32.partialorder %v8174, 0.0
        %vm8597 = vcmp.gt.f32.partialorder %v8176, 0.0
        %vm8598 = vcmp.gt.f32.partialorder %v8582, 0.0
        %vm8599 = vcmp.gt.f32.partialorder %v8584, 0.0
        %v8600 = vmul.f32 %v8164, 0.25
        %v8601 = vmul.f32 %v8166, 0.25
        %v8602 = vmul.f32 %v8572, 0.25
        %v8603 = vmul.f32 %v8574, 0.25
        %v8604 = vmul.f32 %v8168, 0.25
        %v8605 = vmul.f32 %v8170, 0.25
        %v8606 = vmul.f32 %v8576, 0.25
        %v8607 = vmul.f32 %v8578, 0.25
        %v8608 = vmul.f32 %v8174, 0.25
        %v8609 = vmul.f32 %v8176, 0.25
        %v8610 = vmul.f32 %v8582, 0.25
        %v8611 = vmul.f32 %v8584, 0.25
        %v8612 = vsel %vm8588, %v8164, %v8600
        %v8613 = vsel %vm8589, %v8166, %v8601
        %v8614 = vsel %vm8590, %v8572, %v8602
        %v8615 = vsel %vm8591, %v8574, %v8603
        %v8616 = vsel %vm8592, %v8168, %v8604
        %v8617 = vsel %vm8593, %v8170, %v8605
        %v8618 = vsel %vm8594, %v8576, %v8606
        %v8619 = vsel %vm8595, %v8578, %v8607
        %v8620 = vsel %vm8596, %v8174, %v8608
        %v8621 = vsel %vm8597, %v8176, %v8609
        %v8622 = vsel %vm8598, %v8582, %v8610
        %v8623 = vsel %vm8599, %v8584, %v8611
        %v8624 = vpack.c.bf16 %v8616, %v8612
        %v8625 = vpack.c.bf16 %v8617, %v8613
        %v8626 = vpack.c.bf16 %v8618, %v8614
        %v8627 = vpack.c.bf16 %v8619, %v8615
        %v8628 = vpack.c.bf16 %v8620, %v8620
        %v8629 = vpack.c.bf16 %v8621, %v8621
        %v8630 = vpack.c.bf16 %v8622, %v8622
        %v8631 = vpack.c.bf16 %v8623, %v8623
        %v8632 = vld [vmem:[%s3 + $0x300] sm:$0xf]
        %v8633 = vld [vmem:[%s3 + $0x304] sm:$0xf]
        %v8634 = vld [vmem:[%s3 + $0x308] sm:$0xf]
        %v8635 = vld [vmem:[%s3 + $0x30c] sm:$0xf]
        %v8636 = vld [vmem:[%s3 + $0x310] sm:$0xf]
        %v8637 = vld [vmem:[%s3 + $0x314] sm:$0xf]
        %v8638 = vld [vmem:[%s3 + $0x318] sm:$0xf]
        %v8639 = vld [vmem:[%s3 + $0x31c] sm:$0xf]
        %v8640 = vld [vmem:[%s3 + $0x320] sm:$0xf]
        %v8641 = vld [vmem:[%s3 + $0x324] sm:$0xf]
        %v8642 = vld [vmem:[%s3 + $0x328] sm:$0xf]
        %v8643 = vld [vmem:[%s3 + $0x32c] sm:$0xf]
        %v8644 = vld [vmem:[%s3 + $0x330] sm:$0xf]
        %v8645 = vld [vmem:[%s3 + $0x334] sm:$0xf]
        %v8646 = vld [vmem:[%s3 + $0x338] sm:$0xf]
        %v8647 = vld [vmem:[%s3 + $0x33c] sm:$0xf]
        %v8648 = vld [vmem:[%s3 + $0x340] sm:$0xf]
        %v8649 = vld [vmem:[%s3 + $0x344] sm:$0xf]
        %v8650 = vld [vmem:[%s3 + $0x348] sm:$0xf]
        %v8651 = vld [vmem:[%s3 + $0x34c] sm:$0xf]
        %v8652 = vld [vmem:[%s3 + $0x350] sm:$0xf]
        %v8653 = vld [vmem:[%s3 + $0x354] sm:$0xf]
        %v8654 = vld [vmem:[%s3 + $0x358] sm:$0xf]
        %v8655 = vld [vmem:[%s3 + $0x35c] sm:$0xf]
        %v8656 = vld [vmem:[%s3 + $0x360] sm:$0xf]
        %v8657 = vld [vmem:[%s3 + $0x364] sm:$0xf]
        %v8658 = vld [vmem:[%s3 + $0x368] sm:$0xf]
        %v8659 = vld [vmem:[%s3 + $0x36c] sm:$0xf]
        %v8660 = vld [vmem:[%s3 + $0x370] sm:$0xf]
        %v8661 = vld [vmem:[%s3 + $0x374] sm:$0xf]
        %v8662 = vld [vmem:[%s3 + $0x378] sm:$0xf]
        %v8663 = vld [vmem:[%s3 + $0x37c] sm:$0xf]
        %v8664 = vld [vmem:[%s3 + $0x380] sm:$0xf]
        %v8665 = vld [vmem:[%s3 + $0x384] sm:$0xf]
        %v8666 = vld [vmem:[%s3 + $0x388] sm:$0xf]
        %v8667 = vld [vmem:[%s3 + $0x38c] sm:$0xf]
        %v8668 = vld [vmem:[%s3 + $0x390] sm:$0xf]
        %v8669 = vld [vmem:[%s3 + $0x394] sm:$0xf]
        %v8670 = vld [vmem:[%s3 + $0x398] sm:$0xf]
        %v8671 = vld [vmem:[%s3 + $0x39c] sm:$0xf]
        %v8672 = vld [vmem:[%s3 + $0x3a0] sm:$0xf]
        %v8673 = vld [vmem:[%s3 + $0x3a4] sm:$0xf]
        %v8674 = vld [vmem:[%s3 + $0x3a8] sm:$0xf]
        %v8675 = vld [vmem:[%s3 + $0x3ac] sm:$0xf]
        %v8676 = vld [vmem:[%s3 + $0x3b0] sm:$0xf]
        %v8677 = vld [vmem:[%s3 + $0x3b4] sm:$0xf]
        %v8678 = vld [vmem:[%s3 + $0x3b8] sm:$0xf]
        %v8679 = vld [vmem:[%s3 + $0x3bc] sm:$0xf]
        %v8680 = vld [vmem:[%s3 + $0x3c0] sm:$0xf]
        %v8681 = vld [vmem:[%s3 + $0x3c4] sm:$0xf]
        %v8682 = vld [vmem:[%s3 + $0x3c8] sm:$0xf]
        %v8683 = vld [vmem:[%s3 + $0x3cc] sm:$0xf]
        %v8684 = vld [vmem:[%s3 + $0x3d0] sm:$0xf]
        %v8685 = vld [vmem:[%s3 + $0x3d4] sm:$0xf]
        %v8686 = vld [vmem:[%s3 + $0x3d8] sm:$0xf]
        %v8687 = vld [vmem:[%s3 + $0x3dc] sm:$0xf]
        %v8688 = vld [vmem:[%s3 + $0x3e0] sm:$0xf]
        %v8689 = vld [vmem:[%s3 + $0x3e4] sm:$0xf]
        %v8690 = vld [vmem:[%s3 + $0x3e8] sm:$0xf]
        %v8691 = vld [vmem:[%s3 + $0x3ec] sm:$0xf]
        %v8692 = vld [vmem:[%s3 + $0x3f0] sm:$0xf]
        %v8693 = vld [vmem:[%s3 + $0x3f4] sm:$0xf]
        %v8694 = vld [vmem:[%s3 + $0x3f8] sm:$0xf]
        %v8695 = vld [vmem:[%s3 + $0x3fc] sm:$0xf]
        %v8760 = vunpack.c.l.b16 %v8632
        %v8761 = vunpack.c.l.b16 %v8633
        %v8762 = vunpack.c.l.b16 %v8634
        %v8763 = vunpack.c.l.b16 %v8635
        %v8764 = vunpack.c.l.b16 %v8636
        %v8765 = vunpack.c.l.b16 %v8637
        %v8766 = vunpack.c.l.b16 %v8638
        %v8767 = vunpack.c.l.b16 %v8639
        %v8768 = vunpack.c.l.b16 %v8640
        %v8769 = vunpack.c.l.b16 %v8641
        %v8770 = vunpack.c.l.b16 %v8642
        %v8771 = vunpack.c.l.b16 %v8643
        %v8772 = vunpack.c.l.b16 %v8644
        %v8773 = vunpack.c.l.b16 %v8645
        %v8774 = vunpack.c.l.b16 %v8646
        %v8775 = vunpack.c.l.b16 %v8647
        %v8776 = vunpack.c.l.b16 %v8648
        %v8777 = vunpack.c.l.b16 %v8649
        %v8778 = vunpack.c.l.b16 %v8650
        %v8779 = vunpack.c.l.b16 %v8651
        %v8780 = vunpack.c.l.b16 %v8652
        %v8781 = vunpack.c.l.b16 %v8653
        %v8782 = vunpack.c.l.b16 %v8654
        %v8783 = vunpack.c.l.b16 %v8655
        %v8784 = vunpack.c.l.b16 %v8656
        %v8785 = vunpack.c.l.b16 %v8657
        %v8786 = vunpack.c.l.b16 %v8658
        %v8787 = vunpack.c.l.b16 %v8659
        %v8788 = vunpack.c.l.b16 %v8660
        %v8789 = vunpack.c.l.b16 %v8661
        %v8790 = vunpack.c.l.b16 %v8662
        %v8791 = vunpack.c.l.b16 %v8663
        %v8792 = vunpack.c.l.b16 %v8664
        %v8793 = vunpack.c.l.b16 %v8665
        %v8794 = vunpack.c.l.b16 %v8666
        %v8795 = vunpack.c.l.b16 %v8667
        %v8796 = vunpack.c.l.b16 %v8668
        %v8797 = vunpack.c.l.b16 %v8669
        %v8798 = vunpack.c.l.b16 %v8670
        %v8799 = vunpack.c.l.b16 %v8671
        %v8800 = vunpack.c.l.b16 %v8672
        %v8801 = vunpack.c.l.b16 %v8673
        %v8802 = vunpack.c.l.b16 %v8674
        %v8803 = vunpack.c.l.b16 %v8675
        %v8804 = vunpack.c.l.b16 %v8676
        %v8805 = vunpack.c.l.b16 %v8677
        %v8806 = vunpack.c.l.b16 %v8678
        %v8807 = vunpack.c.l.b16 %v8679
        %v8808 = vunpack.c.l.b16 %v8680
        %v8809 = vunpack.c.l.b16 %v8681
        %v8810 = vunpack.c.l.b16 %v8682
        %v8811 = vunpack.c.l.b16 %v8683
        %v8812 = vunpack.c.l.b16 %v8684
        %v8813 = vunpack.c.l.b16 %v8685
        %v8814 = vunpack.c.l.b16 %v8686
        %v8815 = vunpack.c.l.b16 %v8687
        %v8816 = vunpack.c.l.b16 %v8688
        %v8817 = vunpack.c.l.b16 %v8689
        %v8818 = vunpack.c.l.b16 %v8690
        %v8819 = vunpack.c.l.b16 %v8691
        %v8820 = vunpack.c.l.b16 %v8692
        %v8821 = vunpack.c.l.b16 %v8693
        %v8822 = vunpack.c.l.b16 %v8694
        %v8823 = vunpack.c.l.b16 %v8695
        %v8824 = vpack.c.b16 %v8761, %v8760
        %v8825 = vpack.c.b16 %v8763, %v8762
        %v8826 = vpack.c.b16 %v8765, %v8764
        %v8827 = vpack.c.b16 %v8767, %v8766
        %v8828 = vpack.c.b16 %v8769, %v8768
        %v8829 = vpack.c.b16 %v8771, %v8770
        %v8830 = vpack.c.b16 %v8773, %v8772
        %v8831 = vpack.c.b16 %v8775, %v8774
        %v8832 = vpack.c.b16 %v8777, %v8776
        %v8833 = vpack.c.b16 %v8779, %v8778
        %v8834 = vpack.c.b16 %v8781, %v8780
        %v8835 = vpack.c.b16 %v8783, %v8782
        %v8836 = vpack.c.b16 %v8785, %v8784
        %v8837 = vpack.c.b16 %v8787, %v8786
        %v8838 = vpack.c.b16 %v8789, %v8788
        %v8839 = vpack.c.b16 %v8791, %v8790
        %v8840 = vpack.c.b16 %v8793, %v8792
        %v8841 = vpack.c.b16 %v8795, %v8794
        %v8842 = vpack.c.b16 %v8797, %v8796
        %v8843 = vpack.c.b16 %v8799, %v8798
        %v8844 = vpack.c.b16 %v8801, %v8800
        %v8845 = vpack.c.b16 %v8803, %v8802
        %v8846 = vpack.c.b16 %v8805, %v8804
        %v8847 = vpack.c.b16 %v8807, %v8806
        %v8848 = vpack.c.b16 %v8809, %v8808
        %v8849 = vpack.c.b16 %v8811, %v8810
        %v8850 = vpack.c.b16 %v8813, %v8812
        %v8851 = vpack.c.b16 %v8815, %v8814
        %v8852 = vpack.c.b16 %v8817, %v8816
        %v8853 = vpack.c.b16 %v8819, %v8818
        %v8854 = vpack.c.b16 %v8821, %v8820
        %v8855 = vpack.c.b16 %v8823, %v8822
        %8888 = vmatprep.subr.bf16.mxu0 0
        %8889 = vmatpush1.bf16.msra.mxu0 %v8824
        %8890 = vmatprep.subr.bf16.mxu0 0
        %8891 = vmatpush1.bf16.msra.mxu0 %v8825
        %8892 = vmatprep.subr.bf16.mxu0 0
        %8893 = vmatpush1.bf16.msra.mxu0 %v8826
        %8894 = vmatprep.subr.bf16.mxu0 0
        %8895 = vmatpush1.bf16.msra.mxu0 %v8827
        %8896 = vmatprep.subr.bf16.mxu0 0
        %8897 = vmatpush1.bf16.msra.mxu0 %v8828
        %8898 = vmatprep.subr.bf16.mxu0 0
        %8899 = vmatpush1.bf16.msra.mxu0 %v8829
        %8900 = vmatprep.subr.bf16.mxu0 0
        %8901 = vmatpush1.bf16.msra.mxu0 %v8830
        %8902 = vmatprep.subr.bf16.mxu0 0
        %8903 = vmatpush1.bf16.msra.mxu0 %v8831
        %8904 = vmatprep.subr.bf16.mxu0 0
        %8905 = vmatpush1.bf16.msra.mxu0 %v8832
        %8906 = vmatprep.subr.bf16.mxu0 0
        %8907 = vmatpush1.bf16.msra.mxu0 %v8833
        %8908 = vmatprep.subr.bf16.mxu0 0
        %8909 = vmatpush1.bf16.msra.mxu0 %v8834
        %8910 = vmatprep.subr.bf16.mxu0 0
        %8911 = vmatpush1.bf16.msra.mxu0 %v8835
        %8912 = vmatprep.subr.bf16.mxu0 0
        %8913 = vmatpush1.bf16.msra.mxu0 %v8836
        %8914 = vmatprep.subr.bf16.mxu0 0
        %8915 = vmatpush1.bf16.msra.mxu0 %v8837
        %8916 = vmatprep.subr.bf16.mxu0 0
        %8917 = vmatpush1.bf16.msra.mxu0 %v8838
        %8918 = vmatprep.subr.bf16.mxu0 0
        %8919 = vmatpush1.bf16.msra.mxu0 %v8839
        %8920 = vmatprep.mubr.bf16.mxu0 %v8625
        %8921 = vmatmul.mubr.bf16.gmra.mrb[0].mxu0 %v8624
        %v8922 = vpop.f32.mrb[0].mxu0
        %v8923 = vadd.f32 0.0, %v8922
        %v8924 = vpop.f32.mrb[0].mxu0
        %v8925 = vpop.f32.mrb[0].mxu0
        %v8926 = vadd.f32 0.0, %v8925
        %v8927 = vpop.f32.mrb[0].mxu0
        %8928 = vmatprep.mubr.bf16.mxu0 %v8629
        %8929 = vmatmul.mubr.bf16.gmra.mrb[0].mxu0 %v8628
        %v8930 = vpop.f32.mrb[0].mxu0
        %v8931 = vadd.f32 0.0, %v8930
        %v8932 = vpop.f32.mrb[0].mxu0
        %v8933 = vpop.f32.mrb[0].mxu0
        %v8934 = vpop.f32.mrb[0].mxu0
        %8935 = vdwg.mxu0
        %8936 = vmatprep.subr.bf16.mxu0 0
        %8937 = vmatpush1.bf16.msra.mxu0 %v8840
        %8938 = vmatprep.subr.bf16.mxu0 0
        %8939 = vmatpush1.bf16.msra.mxu0 %v8841
        %8940 = vmatprep.subr.bf16.mxu0 0
        %8941 = vmatpush1.bf16.msra.mxu0 %v8842
        %8942 = vmatprep.subr.bf16.mxu0 0
        %8943 = vmatpush1.bf16.msra.mxu0 %v8843
        %8944 = vmatprep.subr.bf16.mxu0 0
        %8945 = vmatpush1.bf16.msra.mxu0 %v8844
        %8946 = vmatprep.subr.bf16.mxu0 0
        %8947 = vmatpush1.bf16.msra.mxu0 %v8845
        %8948 = vmatprep.subr.bf16.mxu0 0
        %8949 = vmatpush1.bf16.msra.mxu0 %v8846
        %8950 = vmatprep.subr.bf16.mxu0 0
        %8951 = vmatpush1.bf16.msra.mxu0 %v8847
        %8952 = vmatprep.subr.bf16.mxu0 0
        %8953 = vmatpush1.bf16.msra.mxu0 %v8848
        %8954 = vmatprep.subr.bf16.mxu0 0
        %8955 = vmatpush1.bf16.msra.mxu0 %v8849
        %8956 = vmatprep.subr.bf16.mxu0 0
        %8957 = vmatpush1.bf16.msra.mxu0 %v8850
        %8958 = vmatprep.subr.bf16.mxu0 0
        %8959 = vmatpush1.bf16.msra.mxu0 %v8851
        %8960 = vmatprep.subr.bf16.mxu0 0
        %8961 = vmatpush1.bf16.msra.mxu0 %v8852
        %8962 = vmatprep.subr.bf16.mxu0 0
        %8963 = vmatpush1.bf16.msra.mxu0 %v8853
        %8964 = vmatprep.subr.bf16.mxu0 0
        %8965 = vmatpush1.bf16.msra.mxu0 %v8854
        %8966 = vmatprep.subr.bf16.mxu0 0
        %8967 = vmatpush1.bf16.msra.mxu0 %v8855
        %8968 = vmatprep.mubr.bf16.mxu0 %v8627
        %8969 = vmatmul.mubr.bf16.gmra.mrb[0].mxu0 %v8626
        %v8970 = vpop.f32.mrb[0].mxu0
        %v8971 = vadd.f32 %v8923, %v8970
        %v8972 = vpop.f32.mrb[0].mxu0
        %v8973 = vpop.f32.mrb[0].mxu0
        %v8974 = vadd.f32 %v8926, %v8973
        %v8975 = vpop.f32.mrb[0].mxu0
        %8976 = vmatprep.mubr.bf16.mxu0 %v8631
        %8977 = vmatmul.mubr.bf16.gmra.mrb[0].mxu0 %v8630
        %v8978 = vpop.f32.mrb[0].mxu0
        %v8979 = vadd.f32 %v8931, %v8978
        %v8980 = vpop.f32.mrb[0].mxu0
        %v8981 = vpop.f32.mrb[0].mxu0
        %v8982 = vpop.f32.mrb[0].mxu0
        %8983 = vdwg.mxu0
        %v8984 = vadd.f32 %v7609, %v8971
        %v8985 = vadd.f32 %v7610, %v8974
        %v8986 = vadd.f32 %v7611, %v8979
        %v8987 = vld [vmem:[%s4] sm:$0x1]
        %v8989 = vlaneseq
        %v8990 = vshrl.u32 %v8989, 7
        %v8991 = vsub.s32 0, %v8990
        %v8992 = vrot.slane %v8987, %v8991
        %v8994 = vadd.f32 %v8984, %v8992
        %v8995 = vadd.f32 %v8985, %v8992
        %v8996 = vadd.f32 %v8986, %v8992
        %vm8997 = vcmp.gt.f32.partialorder %v8994, 0.0
        %vm8998 = vcmp.gt.f32.partialorder %v8995, 0.0
        %vm8999 = vcmp.gt.f32.partialorder %v8996, 0.0
        %v9000 = vmul.f32 %v8994, 0.25
        %v9001 = vmul.f32 %v8995, 0.25
        %v9002 = vmul.f32 %v8996, 0.25
        %v9003 = vsel %vm8997, %v8994, %v9000
        %v9004 = vsel %vm8998, %v8995, %v9001
        %v9005 = vsel %vm8999, %v8996, %v9002
        %v9006 = vpack.c.bf16 %v9004, %v9003
        %v9007 = vpack.c.bf16 %v9005, %v9005
        %v9008 = vld [vmem:[%s6] sm:$0x3]
        %v9009 = vld [vmem:[#allocation2] sm:$0xff]
        %v9010 = vld [vmem:[#allocation2 + $0x8] sm:$0xff]
        %v9011 = vld [vmem:[#allocation2 + $0x10] sm:$0xff]
        %v9012 = vld [vmem:[#allocation2 + $0x18] sm:$0xff]
        %v9013 = vld [vmem:[#allocation2 + $0x20] sm:$0xff]
        %v9014 = vld [vmem:[#allocation2 + $0x28] sm:$0xff]
        %v9015 = vld [vmem:[#allocation2 + $0x30] sm:$0xff]
        %v9016 = vld [vmem:[#allocation2 + $0x38] sm:$0xff]
        %v9017 = vld [vmem:[#allocation2 + $0x40] sm:$0xff]
        %v9018 = vld [vmem:[#allocation2 + $0x48] sm:$0xff]
        %v9019 = vld [vmem:[#allocation2 + $0x50] sm:$0xff]
        %v9020 = vld [vmem:[#allocation2 + $0x58] sm:$0xff]
        %v9021 = vld [vmem:[#allocation2 + $0x60] sm:$0xff]
        %v9022 = vld [vmem:[#allocation2 + $0x68] sm:$0xff]
        %v9023 = vld [vmem:[#allocation2 + $0x70] sm:$0xff]
        %v9024 = vld [vmem:[#allocation2 + $0x78] sm:$0xff]
        %v9041 = vunpack.c.l.b16 %v9009
        %v9042 = vunpack.c.h.b16 %v9009
        %v9043 = vunpack.c.l.b16 %v9010
        %v9044 = vunpack.c.h.b16 %v9010
        %v9045 = vunpack.c.l.b16 %v9011
        %v9046 = vunpack.c.h.b16 %v9011
        %v9047 = vunpack.c.l.b16 %v9012
        %v9048 = vunpack.c.h.b16 %v9012
        %v9049 = vunpack.c.l.b16 %v9013
        %v9050 = vunpack.c.h.b16 %v9013
        %v9051 = vunpack.c.l.b16 %v9014
        %v9052 = vunpack.c.h.b16 %v9014
        %v9053 = vunpack.c.l.b16 %v9015
        %v9054 = vunpack.c.h.b16 %v9015
        %v9055 = vunpack.c.l.b16 %v9016
        %v9056 = vunpack.c.h.b16 %v9016
        %v9057 = vunpack.c.l.b16 %v9017
        %v9058 = vunpack.c.h.b16 %v9017
        %v9059 = vunpack.c.l.b16 %v9018
        %v9060 = vunpack.c.h.b16 %v9018
        %v9061 = vunpack.c.l.b16 %v9019
        %v9062 = vunpack.c.h.b16 %v9019
        %v9063 = vunpack.c.l.b16 %v9020
        %v9064 = vunpack.c.h.b16 %v9020
        %v9065 = vunpack.c.l.b16 %v9021
        %v9066 = vunpack.c.h.b16 %v9021
        %v9067 = vunpack.c.l.b16 %v9022
        %v9068 = vunpack.c.h.b16 %v9022
        %v9069 = vunpack.c.l.b16 %v9023
        %v9070 = vunpack.c.h.b16 %v9023
        %v9071 = vunpack.c.l.b16 %v9024
        %v9072 = vunpack.c.h.b16 %v9024
        %v9073 = vpack.c.b16 %v9043, %v9041
        %v9074 = vpack.c.b16 %v9044, %v9042
        %v9075 = vpack.c.b16 %v9047, %v9045
        %v9076 = vpack.c.b16 %v9048, %v9046
        %v9077 = vpack.c.b16 %v9051, %v9049
        %v9078 = vpack.c.b16 %v9052, %v9050
        %v9079 = vpack.c.b16 %v9055, %v9053
        %v9080 = vpack.c.b16 %v9056, %v9054
        %v9081 = vpack.c.b16 %v9059, %v9057
        %v9082 = vpack.c.b16 %v9060, %v9058
        %v9083 = vpack.c.b16 %v9063, %v9061
        %v9084 = vpack.c.b16 %v9064, %v9062
        %v9085 = vpack.c.b16 %v9067, %v9065
        %v9086 = vpack.c.b16 %v9068, %v9066
        %v9087 = vpack.c.b16 %v9071, %v9069
        %v9088 = vpack.c.b16 %v9072, %v9070
        %9105 = vmatprep.subr.bf16.mxu0 %v9074
        %9106 = vmatpush1.bf16.msra.mxu0 %v9073
        %9107 = vmatprep.subr.bf16.mxu0 %v9076
        %9108 = vmatpush1.bf16.msra.mxu0 %v9075
        %9109 = vmatprep.subr.bf16.mxu0 %v9078
        %9110 = vmatpush1.bf16.msra.mxu0 %v9077
        %9111 = vmatprep.subr.bf16.mxu0 %v9080
        %9112 = vmatpush1.bf16.msra.mxu0 %v9079
        %9113 = vmatprep.subr.bf16.mxu0 %v9082
        %9114 = vmatpush1.bf16.msra.mxu0 %v9081
        %9115 = vmatprep.subr.bf16.mxu0 %v9084
        %9116 = vmatpush1.bf16.msra.mxu0 %v9083
        %9117 = vmatprep.subr.bf16.mxu0 %v9086
        %9118 = vmatpush1.bf16.msra.mxu0 %v9085
        %9119 = vmatprep.subr.bf16.mxu0 %v9088
        %9120 = vmatpush1.bf16.msra.mxu0 %v9087
        %9121 = vmatprep.subr.bf16.mxu0 0
        %9122 = vmatpush1.bf16.msra.mxu0 0
        %9123 = vmatprep.subr.bf16.mxu0 0
        %9124 = vmatpush1.bf16.msra.mxu0 0
        %9125 = vmatprep.subr.bf16.mxu0 0
        %9126 = vmatpush1.bf16.msra.mxu0 0
        %9127 = vmatprep.subr.bf16.mxu0 0
        %9128 = vmatpush1.bf16.msra.mxu0 0
        %9129 = vmatprep.subr.bf16.mxu0 0
        %9130 = vmatpush1.bf16.msra.mxu0 0
        %9131 = vmatprep.subr.bf16.mxu0 0
        %9132 = vmatpush1.bf16.msra.mxu0 0
        %9133 = vmatprep.subr.bf16.mxu0 0
        %9134 = vmatpush1.bf16.msra.mxu0 0
        %9135 = vmatprep.subr.bf16.mxu0 0
        %9136 = vmatpush1.bf16.msra.mxu0 0
        %9137 = vmatprep.mubr.bf16.mxu0 0
        %9138 = vmatmul.mubr.bf16.gmra.mrb[0].mxu0 %v9006
        %v9139 = vpop.f32.mrb[0].mxu0
        %v9140 = vadd.f32 0.0, %v9139
        %v9141 = vpop.f32.mrb[0].mxu0
        %v9142 = vadd.f32 0.0, %v9141
        %v9143 = vpop.f32.mrb[0].mxu0
        %v9144 = vpop.f32.mrb[0].mxu0
        %9145 = vdwg.mxu0
        %v9148 = vcombine.low %v9140, %v9142
        %v9150 = vunpack.c.l.s4 1966171168
        %v9151 = vunpack.c.0.s8 %v9150
        %v9152 = vlaneseq
        %v9153 = vshrl.u32 %v9152, 7
        %v9154 = vsub.s32 %v9151, %v9153
        %v9155 = vrot.slane %v9148, %v9154
        %v9157 = vunpack.c.l.s4 1966171168
        %v9158 = vunpack.c.0.s8 %v9157
        %v9159 = vlaneseq
        %v9160 = vshrl.u32 %v9159, 7
        %v9161 = vsub.s32 %v9158, %v9160
        %v9162 = vrot.slane %v9155, %v9161
        %v9164 = vadd.f32 %v9008, %v9162
        %v9165 = vld [vmem:[#allocation2 + $0x80] sm:$0xff]
        %v9166 = vld [vmem:[#allocation2 + $0x88] sm:$0xff]
        %v9167 = vld [vmem:[#allocation2 + $0x90] sm:$0xff]
        %v9168 = vld [vmem:[#allocation2 + $0x98] sm:$0xff]
        %v9169 = vld [vmem:[#allocation2 + $0xa0] sm:$0xff]
        %v9170 = vld [vmem:[#allocation2 + $0xa8] sm:$0xff]
        %v9171 = vld [vmem:[#allocation2 + $0xb0] sm:$0xff]
        %v9172 = vld [vmem:[#allocation2 + $0xb8] sm:$0xff]
        %v9173 = vld [vmem:[#allocation2 + $0xc0] sm:$0xff]
        %v9174 = vld [vmem:[#allocation2 + $0xc8] sm:$0xff]
        %v9175 = vld [vmem:[#allocation2 + $0xd0] sm:$0xff]
        %v9176 = vld [vmem:[#allocation2 + $0xd8] sm:$0xff]
        %v9177 = vld [vmem:[#allocation2 + $0xe0] sm:$0xff]
        %v9178 = vld [vmem:[#allocation2 + $0xe8] sm:$0xff]
        %v9179 = vld [vmem:[#allocation2 + $0xf0] sm:$0xff]
        %v9180 = vld [vmem:[#allocation2 + $0xf8] sm:$0xff]
        %v9182 = vshrl.u32 %v9006, 16
        %v9201 = vunpack.c.l.b16 %v9165
        %v9202 = vunpack.c.h.b16 %v9165
        %v9203 = vunpack.c.l.b16 %v9166
        %v9204 = vunpack.c.h.b16 %v9166
        %v9205 = vunpack.c.l.b16 %v9167
        %v9206 = vunpack.c.h.b16 %v9167
        %v9207 = vunpack.c.l.b16 %v9168
        %v9208 = vunpack.c.h.b16 %v9168
        %v9209 = vunpack.c.l.b16 %v9169
        %v9210 = vunpack.c.h.b16 %v9169
        %v9211 = vunpack.c.l.b16 %v9170
        %v9212 = vunpack.c.h.b16 %v9170
        %v9213 = vunpack.c.l.b16 %v9171
        %v9214 = vunpack.c.h.b16 %v9171
        %v9215 = vunpack.c.l.b16 %v9172
        %v9216 = vunpack.c.h.b16 %v9172
        %v9217 = vunpack.c.l.b16 %v9173
        %v9218 = vunpack.c.h.b16 %v9173
        %v9219 = vunpack.c.l.b16 %v9174
        %v9220 = vunpack.c.h.b16 %v9174
        %v9221 = vunpack.c.l.b16 %v9175
        %v9222 = vunpack.c.h.b16 %v9175
        %v9223 = vunpack.c.l.b16 %v9176
        %v9224 = vunpack.c.h.b16 %v9176
        %v9225 = vunpack.c.l.b16 %v9177
        %v9226 = vunpack.c.h.b16 %v9177
        %v9227 = vunpack.c.l.b16 %v9178
        %v9228 = vunpack.c.h.b16 %v9178
        %v9229 = vunpack.c.l.b16 %v9179
        %v9230 = vunpack.c.h.b16 %v9179
        %v9231 = vunpack.c.l.b16 %v9180
        %v9232 = vunpack.c.h.b16 %v9180
        %v9233 = vpack.c.b16 %v9203, %v9201
        %v9234 = vpack.c.b16 %v9204, %v9202
        %v9235 = vpack.c.b16 %v9207, %v9205
        %v9236 = vpack.c.b16 %v9208, %v9206
        %v9237 = vpack.c.b16 %v9211, %v9209
        %v9238 = vpack.c.b16 %v9212, %v9210
        %v9239 = vpack.c.b16 %v9215, %v9213
        %v9240 = vpack.c.b16 %v9216, %v9214
        %v9241 = vpack.c.b16 %v9219, %v9217
        %v9242 = vpack.c.b16 %v9220, %v9218
        %v9243 = vpack.c.b16 %v9223, %v9221
        %v9244 = vpack.c.b16 %v9224, %v9222
        %v9245 = vpack.c.b16 %v9227, %v9225
        %v9246 = vpack.c.b16 %v9228, %v9226
        %v9247 = vpack.c.b16 %v9231, %v9229
        %v9248 = vpack.c.b16 %v9232, %v9230
        %9265 = vmatprep.subr.bf16.mxu0 %v9234
        %9266 = vmatpush1.bf16.msra.mxu0 %v9233
        %9267 = vmatprep.subr.bf16.mxu0 %v9236
        %9268 = vmatpush1.bf16.msra.mxu0 %v9235
        %9269 = vmatprep.subr.bf16.mxu0 %v9238
        %9270 = vmatpush1.bf16.msra.mxu0 %v9237
        %9271 = vmatprep.subr.bf16.mxu0 %v9240
        %9272 = vmatpush1.bf16.msra.mxu0 %v9239
        %9273 = vmatprep.subr.bf16.mxu0 %v9242
        %9274 = vmatpush1.bf16.msra.mxu0 %v9241
        %9275 = vmatprep.subr.bf16.mxu0 %v9244
        %9276 = vmatpush1.bf16.msra.mxu0 %v9243
        %9277 = vmatprep.subr.bf16.mxu0 %v9246
        %9278 = vmatpush1.bf16.msra.mxu0 %v9245
        %9279 = vmatprep.subr.bf16.mxu0 %v9248
        %9280 = vmatpush1.bf16.msra.mxu0 %v9247
        %9281 = vmatprep.subr.bf16.mxu0 0
        %9282 = vmatpush1.bf16.msra.mxu0 0
        %9283 = vmatprep.subr.bf16.mxu0 0
        %9284 = vmatpush1.bf16.msra.mxu0 0
        %9285 = vmatprep.subr.bf16.mxu0 0
        %9286 = vmatpush1.bf16.msra.mxu0 0
        %9287 = vmatprep.subr.bf16.mxu0 0
        %9288 = vmatpush1.bf16.msra.mxu0 0
        %9289 = vmatprep.subr.bf16.mxu0 0
        %9290 = vmatpush1.bf16.msra.mxu0 0
        %9291 = vmatprep.subr.bf16.mxu0 0
        %9292 = vmatpush1.bf16.msra.mxu0 0
        %9293 = vmatprep.subr.bf16.mxu0 0
        %9294 = vmatpush1.bf16.msra.mxu0 0
        %9295 = vmatprep.subr.bf16.mxu0 0
        %9296 = vmatpush1.bf16.msra.mxu0 0
        %9297 = vmatprep.mubr.bf16.mxu0 0
        %9298 = vmatmul.mubr.bf16.gmra.mrb[0].mxu0 %v9182
        %v9299 = vpop.f32.mrb[0].mxu0
        %v9300 = vadd.f32 0.0, %v9299
        %v9301 = vpop.f32.mrb[0].mxu0
        %v9302 = vadd.f32 0.0, %v9301
        %v9303 = vpop.f32.mrb[0].mxu0
        %v9304 = vpop.f32.mrb[0].mxu0
        %9305 = vdwg.mxu0
        %v9308 = vcombine.low %v9300, %v9302
        %v9310 = vunpack.c.l.s4 1966171168
        %v9311 = vunpack.c.0.s8 %v9310
        %v9312 = vlaneseq
        %v9313 = vshrl.u32 %v9312, 7
        %v9314 = vsub.s32 %v9311, %v9313
        %v9315 = vrot.slane %v9308, %v9314
        %v9317 = vunpack.c.l.s4 1966171168
        %v9318 = vunpack.c.0.s8 %v9317
        %v9319 = vlaneseq
        %v9320 = vshrl.u32 %v9319, 7
        %v9321 = vsub.s32 %v9318, %v9320
        %v9322 = vrot.slane %v9315, %v9321
        %v9324 = vadd.f32 %v9164, %v9322
        %v9325 = vld [vmem:[#allocation2 + $0x100] sm:$0xff]
        %v9326 = vld [vmem:[#allocation2 + $0x108] sm:$0xff]
        %v9327 = vld [vmem:[#allocation2 + $0x110] sm:$0xff]
        %v9328 = vld [vmem:[#allocation2 + $0x118] sm:$0xff]
        %v9329 = vld [vmem:[#allocation2 + $0x120] sm:$0xff]
        %v9330 = vld [vmem:[#allocation2 + $0x128] sm:$0xff]
        %v9331 = vld [vmem:[#allocation2 + $0x130] sm:$0xff]
        %v9332 = vld [vmem:[#allocation2 + $0x138] sm:$0xff]
        %v9333 = vld [vmem:[#allocation2 + $0x140] sm:$0xff]
        %v9334 = vld [vmem:[#allocation2 + $0x148] sm:$0xff]
        %v9335 = vld [vmem:[#allocation2 + $0x150] sm:$0xff]
        %v9336 = vld [vmem:[#allocation2 + $0x158] sm:$0xff]
        %v9337 = vld [vmem:[#allocation2 + $0x160] sm:$0xff]
        %v9338 = vld [vmem:[#allocation2 + $0x168] sm:$0xff]
        %v9339 = vld [vmem:[#allocation2 + $0x170] sm:$0xff]
        %v9340 = vld [vmem:[#allocation2 + $0x178] sm:$0xff]
        %v9342 = vrot.slane %v9006, 1
        %v9360 = vunpack.c.l.b16 %v9325
        %v9361 = vunpack.c.h.b16 %v9325
        %v9362 = vunpack.c.l.b16 %v9326
        %v9363 = vunpack.c.h.b16 %v9326
        %v9364 = vunpack.c.l.b16 %v9327
        %v9365 = vunpack.c.h.b16 %v9327
        %v9366 = vunpack.c.l.b16 %v9328
        %v9367 = vunpack.c.h.b16 %v9328
        %v9368 = vunpack.c.l.b16 %v9329
        %v9369 = vunpack.c.h.b16 %v9329
        %v9370 = vunpack.c.l.b16 %v9330
        %v9371 = vunpack.c.h.b16 %v9330
        %v9372 = vunpack.c.l.b16 %v9331
        %v9373 = vunpack.c.h.b16 %v9331
        %v9374 = vunpack.c.l.b16 %v9332
        %v9375 = vunpack.c.h.b16 %v9332
        %v9376 = vunpack.c.l.b16 %v9333
        %v9377 = vunpack.c.h.b16 %v9333
        %v9378 = vunpack.c.l.b16 %v9334
        %v9379 = vunpack.c.h.b16 %v9334
        %v9380 = vunpack.c.l.b16 %v9335
        %v9381 = vunpack.c.h.b16 %v9335
        %v9382 = vunpack.c.l.b16 %v9336
        %v9383 = vunpack.c.h.b16 %v9336
        %v9384 = vunpack.c.l.b16 %v9337
        %v9385 = vunpack.c.h.b16 %v9337
        %v9386 = vunpack.c.l.b16 %v9338
        %v9387 = vunpack.c.h.b16 %v9338
        %v9388 = vunpack.c.l.b16 %v9339
        %v9389 = vunpack.c.h.b16 %v9339
        %v9390 = vunpack.c.l.b16 %v9340
        %v9391 = vunpack.c.h.b16 %v9340
        %v9392 = vpack.c.b16 %v9362, %v9360
        %v9393 = vpack.c.b16 %v9363, %v9361
        %v9394 = vpack.c.b16 %v9366, %v9364
        %v9395 = vpack.c.b16 %v9367, %v9365
        %v9396 = vpack.c.b16 %v9370, %v9368
        %v9397 = vpack.c.b16 %v9371, %v9369
        %v9398 = vpack.c.b16 %v9374, %v9372
        %v9399 = vpack.c.b16 %v9375, %v9373
        %v9400 = vpack.c.b16 %v9378, %v9376
        %v9401 = vpack.c.b16 %v9379, %v9377
        %v9402 = vpack.c.b16 %v9382, %v9380
        %v9403 = vpack.c.b16 %v9383, %v9381
        %v9404 = vpack.c.b16 %v9386, %v9384
        %v9405 = vpack.c.b16 %v9387, %v9385
        %v9406 = vpack.c.b16 %v9390, %v9388
        %v9407 = vpack.c.b16 %v9391, %v9389
        %9424 = vmatprep.subr.bf16.mxu0 %v9393
        %9425 = vmatpush1.bf16.msra.mxu0 %v9392
        %9426 = vmatprep.subr.bf16.mxu0 %v9395
        %9427 = vmatpush1.bf16.msra.mxu0 %v9394
        %9428 = vmatprep.subr.bf16.mxu0 %v9397
        %9429 = vmatpush1.bf16.msra.mxu0 %v9396
        %9430 = vmatprep.subr.bf16.mxu0 %v9399
        %9431 = vmatpush1.bf16.msra.mxu0 %v9398
        %9432 = vmatprep.subr.bf16.mxu0 %v9401
        %9433 = vmatpush1.bf16.msra.mxu0 %v9400
        %9434 = vmatprep.subr.bf16.mxu0 %v9403
        %9435 = vmatpush1.bf16.msra.mxu0 %v9402
        %9436 = vmatprep.subr.bf16.mxu0 %v9405
        %9437 = vmatpush1.bf16.msra.mxu0 %v9404
        %9438 = vmatprep.subr.bf16.mxu0 %v9407
        %9439 = vmatpush1.bf16.msra.mxu0 %v9406
        %9440 = vmatprep.subr.bf16.mxu0 0
        %9441 = vmatpush1.bf16.msra.mxu0 0
        %9442 = vmatprep.subr.bf16.mxu0 0
        %9443 = vmatpush1.bf16.msra.mxu0 0
        %9444 = vmatprep.subr.bf16.mxu0 0
        %9445 = vmatpush1.bf16.msra.mxu0 0
        %9446 = vmatprep.subr.bf16.mxu0 0
        %9447 = vmatpush1.bf16.msra.mxu0 0
        %9448 = vmatprep.subr.bf16.mxu0 0
        %9449 = vmatpush1.bf16.msra.mxu0 0
        %9450 = vmatprep.subr.bf16.mxu0 0
        %9451 = vmatpush1.bf16.msra.mxu0 0
        %9452 = vmatprep.subr.bf16.mxu0 0
        %9453 = vmatpush1.bf16.msra.mxu0 0
        %9454 = vmatprep.subr.bf16.mxu0 0
        %9455 = vmatpush1.bf16.msra.mxu0 0
        %9456 = vmatprep.mubr.bf16.mxu0 0
        %9457 = vmatmul.mubr.bf16.gmra.mrb[0].mxu0 %v9342
        %v9458 = vpop.f32.mrb[0].mxu0
        %v9459 = vadd.f32 0.0, %v9458
        %v9460 = vpop.f32.mrb[0].mxu0
        %v9461 = vadd.f32 0.0, %v9460
        %v9462 = vpop.f32.mrb[0].mxu0
        %v9463 = vpop.f32.mrb[0].mxu0
        %9464 = vdwg.mxu0
        %v9467 = vcombine.low %v9459, %v9461
        %v9469 = vunpack.c.l.s4 1966171168
        %v9470 = vunpack.c.0.s8 %v9469
        %v9471 = vlaneseq
        %v9472 = vshrl.u32 %v9471, 7
        %v9473 = vsub.s32 %v9470, %v9472
        %v9474 = vrot.slane %v9467, %v9473
        %v9476 = vunpack.c.l.s4 1966171168
        %v9477 = vunpack.c.0.s8 %v9476
        %v9478 = vlaneseq
        %v9479 = vshrl.u32 %v9478, 7
        %v9480 = vsub.s32 %v9477, %v9479
        %v9481 = vrot.slane %v9474, %v9480
        %v9483 = vadd.f32 %v9324, %v9481
        %v9484 = vld [vmem:[#allocation2 + $0x180] sm:$0xff]
        %v9485 = vld [vmem:[#allocation2 + $0x188] sm:$0xff]
        %v9486 = vld [vmem:[#allocation2 + $0x190] sm:$0xff]
        %v9487 = vld [vmem:[#allocation2 + $0x198] sm:$0xff]
        %v9488 = vld [vmem:[#allocation2 + $0x1a0] sm:$0xff]
        %v9489 = vld [vmem:[#allocation2 + $0x1a8] sm:$0xff]
        %v9490 = vld [vmem:[#allocation2 + $0x1b0] sm:$0xff]
        %v9491 = vld [vmem:[#allocation2 + $0x1b8] sm:$0xff]
        %v9492 = vld [vmem:[#allocation2 + $0x1c0] sm:$0xff]
        %v9493 = vld [vmem:[#allocation2 + $0x1c8] sm:$0xff]
        %v9494 = vld [vmem:[#allocation2 + $0x1d0] sm:$0xff]
        %v9495 = vld [vmem:[#allocation2 + $0x1d8] sm:$0xff]
        %v9496 = vld [vmem:[#allocation2 + $0x1e0] sm:$0xff]
        %v9497 = vld [vmem:[#allocation2 + $0x1e8] sm:$0xff]
        %v9498 = vld [vmem:[#allocation2 + $0x1f0] sm:$0xff]
        %v9499 = vld [vmem:[#allocation2 + $0x1f8] sm:$0xff]
        %v9500 = vrot.slane %v9182, 1
        %v9518 = vunpack.c.l.b16 %v9484
        %v9519 = vunpack.c.h.b16 %v9484
        %v9520 = vunpack.c.l.b16 %v9485
        %v9521 = vunpack.c.h.b16 %v9485
        %v9522 = vunpack.c.l.b16 %v9486
        %v9523 = vunpack.c.h.b16 %v9486
        %v9524 = vunpack.c.l.b16 %v9487
        %v9525 = vunpack.c.h.b16 %v9487
        %v9526 = vunpack.c.l.b16 %v9488
        %v9527 = vunpack.c.h.b16 %v9488
        %v9528 = vunpack.c.l.b16 %v9489
        %v9529 = vunpack.c.h.b16 %v9489
        %v9530 = vunpack.c.l.b16 %v9490
        %v9531 = vunpack.c.h.b16 %v9490
        %v9532 = vunpack.c.l.b16 %v9491
        %v9533 = vunpack.c.h.b16 %v9491
        %v9534 = vunpack.c.l.b16 %v9492
        %v9535 = vunpack.c.h.b16 %v9492
        %v9536 = vunpack.c.l.b16 %v9493
        %v9537 = vunpack.c.h.b16 %v9493
        %v9538 = vunpack.c.l.b16 %v9494
        %v9539 = vunpack.c.h.b16 %v9494
        %v9540 = vunpack.c.l.b16 %v9495
        %v9541 = vunpack.c.h.b16 %v9495
        %v9542 = vunpack.c.l.b16 %v9496
        %v9543 = vunpack.c.h.b16 %v9496
        %v9544 = vunpack.c.l.b16 %v9497
        %v9545 = vunpack.c.h.b16 %v9497
        %v9546 = vunpack.c.l.b16 %v9498
        %v9547 = vunpack.c.h.b16 %v9498
        %v9548 = vunpack.c.l.b16 %v9499
        %v9549 = vunpack.c.h.b16 %v9499
        %v9550 = vpack.c.b16 %v9520, %v9518
        %v9551 = vpack.c.b16 %v9521, %v9519
        %v9552 = vpack.c.b16 %v9524, %v9522
        %v9553 = vpack.c.b16 %v9525, %v9523
        %v9554 = vpack.c.b16 %v9528, %v9526
        %v9555 = vpack.c.b16 %v9529, %v9527
        %v9556 = vpack.c.b16 %v9532, %v9530
        %v9557 = vpack.c.b16 %v9533, %v9531
        %v9558 = vpack.c.b16 %v9536, %v9534
        %v9559 = vpack.c.b16 %v9537, %v9535
        %v9560 = vpack.c.b16 %v9540, %v9538
        %v9561 = vpack.c.b16 %v9541, %v9539
        %v9562 = vpack.c.b16 %v9544, %v9542
        %v9563 = vpack.c.b16 %v9545, %v9543
        %v9564 = vpack.c.b16 %v9548, %v9546
        %v9565 = vpack.c.b16 %v9549, %v9547
        %9582 = vmatprep.subr.bf16.mxu0 %v9551
        %9583 = vmatpush1.bf16.msra.mxu0 %v9550
        %9584 = vmatprep.subr.bf16.mxu0 %v9553
        %9585 = vmatpush1.bf16.msra.mxu0 %v9552
        %9586 = vmatprep.subr.bf16.mxu0 %v9555
        %9587 = vmatpush1.bf16.msra.mxu0 %v9554
        %9588 = vmatprep.subr.bf16.mxu0 %v9557
        %9589 = vmatpush1.bf16.msra.mxu0 %v9556
        %9590 = vmatprep.subr.bf16.mxu0 %v9559
        %9591 = vmatpush1.bf16.msra.mxu0 %v9558
        %9592 = vmatprep.subr.bf16.mxu0 %v9561
        %9593 = vmatpush1.bf16.msra.mxu0 %v9560
        %9594 = vmatprep.subr.bf16.mxu0 %v9563
        %9595 = vmatpush1.bf16.msra.mxu0 %v9562
        %9596 = vmatprep.subr.bf16.mxu0 %v9565
        %9597 = vmatpush1.bf16.msra.mxu0 %v9564
        %9598 = vmatprep.subr.bf16.mxu0 0
        %9599 = vmatpush1.bf16.msra.mxu0 0
        %9600 = vmatprep.subr.bf16.mxu0 0
        %9601 = vmatpush1.bf16.msra.mxu0 0
        %9602 = vmatprep.subr.bf16.mxu0 0
        %9603 = vmatpush1.bf16.msra.mxu0 0
        %9604 = vmatprep.subr.bf16.mxu0 0
        %9605 = vmatpush1.bf16.msra.mxu0 0
        %9606 = vmatprep.subr.bf16.mxu0 0
        %9607 = vmatpush1.bf16.msra.mxu0 0
        %9608 = vmatprep.subr.bf16.mxu0 0
        %9609 = vmatpush1.bf16.msra.mxu0 0
        %9610 = vmatprep.subr.bf16.mxu0 0
        %9611 = vmatpush1.bf16.msra.mxu0 0
        %9612 = vmatprep.subr.bf16.mxu0 0
        %9613 = vmatpush1.bf16.msra.mxu0 0
        %9614 = vmatprep.mubr.bf16.mxu0 0
        %9615 = vmatmul.mubr.bf16.gmra.mrb[0].mxu0 %v9500
        %v9616 = vpop.f32.mrb[0].mxu0
        %v9617 = vadd.f32 0.0, %v9616
        %v9618 = vpop.f32.mrb[0].mxu0
        %v9619 = vadd.f32 0.0, %v9618
        %v9620 = vpop.f32.mrb[0].mxu0
        %v9621 = vpop.f32.mrb[0].mxu0
        %9622 = vdwg.mxu0
        %v9625 = vcombine.low %v9617, %v9619
        %v9627 = vunpack.c.l.s4 1966171168
        %v9628 = vunpack.c.0.s8 %v9627
        %v9629 = vlaneseq
        %v9630 = vshrl.u32 %v9629, 7
        %v9631 = vsub.s32 %v9628, %v9630
        %v9632 = vrot.slane %v9625, %v9631
        %v9634 = vunpack.c.l.s4 1966171168
        %v9635 = vunpack.c.0.s8 %v9634
        %v9636 = vlaneseq
        %v9637 = vshrl.u32 %v9636, 7
        %v9638 = vsub.s32 %v9635, %v9637
        %v9639 = vrot.slane %v9632, %v9638
        %v9641 = vadd.f32 %v9483, %v9639
        %v9642 = vld [vmem:[#allocation2 + $0x200] sm:$0xff]
        %v9643 = vld [vmem:[#allocation2 + $0x208] sm:$0xff]
        %v9644 = vld [vmem:[#allocation2 + $0x210] sm:$0xff]
        %v9645 = vld [vmem:[#allocation2 + $0x218] sm:$0xff]
        %v9646 = vld [vmem:[#allocation2 + $0x220] sm:$0xff]
        %v9647 = vld [vmem:[#allocation2 + $0x228] sm:$0xff]
        %v9648 = vld [vmem:[#allocation2 + $0x230] sm:$0xff]
        %v9649 = vld [vmem:[#allocation2 + $0x238] sm:$0xff]
        %v9650 = vld [vmem:[#allocation2 + $0x240] sm:$0xff]
        %v9651 = vld [vmem:[#allocation2 + $0x248] sm:$0xff]
        %v9652 = vld [vmem:[#allocation2 + $0x250] sm:$0xff]
        %v9653 = vld [vmem:[#allocation2 + $0x258] sm:$0xff]
        %v9654 = vld [vmem:[#allocation2 + $0x260] sm:$0xff]
        %v9655 = vld [vmem:[#allocation2 + $0x268] sm:$0xff]
        %v9656 = vld [vmem:[#allocation2 + $0x270] sm:$0xff]
        %v9657 = vld [vmem:[#allocation2 + $0x278] sm:$0xff]
        %v9658 = vrot.slane %v9006, 2
        %v9676 = vunpack.c.l.b16 %v9642
        %v9677 = vunpack.c.h.b16 %v9642
        %v9678 = vunpack.c.l.b16 %v9643
        %v9679 = vunpack.c.h.b16 %v9643
        %v9680 = vunpack.c.l.b16 %v9644
        %v9681 = vunpack.c.h.b16 %v9644
        %v9682 = vunpack.c.l.b16 %v9645
        %v9683 = vunpack.c.h.b16 %v9645
        %v9684 = vunpack.c.l.b16 %v9646
        %v9685 = vunpack.c.h.b16 %v9646
        %v9686 = vunpack.c.l.b16 %v9647
        %v9687 = vunpack.c.h.b16 %v9647
        %v9688 = vunpack.c.l.b16 %v9648
        %v9689 = vunpack.c.h.b16 %v9648
        %v9690 = vunpack.c.l.b16 %v9649
        %v9691 = vunpack.c.h.b16 %v9649
        %v9692 = vunpack.c.l.b16 %v9650
        %v9693 = vunpack.c.h.b16 %v9650
        %v9694 = vunpack.c.l.b16 %v9651
        %v9695 = vunpack.c.h.b16 %v9651
        %v9696 = vunpack.c.l.b16 %v9652
        %v9697 = vunpack.c.h.b16 %v9652
        %v9698 = vunpack.c.l.b16 %v9653
        %v9699 = vunpack.c.h.b16 %v9653
        %v9700 = vunpack.c.l.b16 %v9654
        %v9701 = vunpack.c.h.b16 %v9654
        %v9702 = vunpack.c.l.b16 %v9655
        %v9703 = vunpack.c.h.b16 %v9655
        %v9704 = vunpack.c.l.b16 %v9656
        %v9705 = vunpack.c.h.b16 %v9656
        %v9706 = vunpack.c.l.b16 %v9657
        %v9707 = vunpack.c.h.b16 %v9657
        %v9708 = vpack.c.b16 %v9678, %v9676
        %v9709 = vpack.c.b16 %v9679, %v9677
        %v9710 = vpack.c.b16 %v9682, %v9680
        %v9711 = vpack.c.b16 %v9683, %v9681
        %v9712 = vpack.c.b16 %v9686, %v9684
        %v9713 = vpack.c.b16 %v9687, %v9685
        %v9714 = vpack.c.b16 %v9690, %v9688
        %v9715 = vpack.c.b16 %v9691, %v9689
        %v9716 = vpack.c.b16 %v9694, %v9692
        %v9717 = vpack.c.b16 %v9695, %v9693
        %v9718 = vpack.c.b16 %v9698, %v9696
        %v9719 = vpack.c.b16 %v9699, %v9697
        %v9720 = vpack.c.b16 %v9702, %v9700
        %v9721 = vpack.c.b16 %v9703, %v9701
        %v9722 = vpack.c.b16 %v9706, %v9704
        %v9723 = vpack.c.b16 %v9707, %v9705
        %9740 = vmatprep.subr.bf16.mxu0 %v9709
        %9741 = vmatpush1.bf16.msra.mxu0 %v9708
        %9742 = vmatprep.subr.bf16.mxu0 %v9711
        %9743 = vmatpush1.bf16.msra.mxu0 %v9710
        %9744 = vmatprep.subr.bf16.mxu0 %v9713
        %9745 = vmatpush1.bf16.msra.mxu0 %v9712
        %9746 = vmatprep.subr.bf16.mxu0 %v9715
        %9747 = vmatpush1.bf16.msra.mxu0 %v9714
        %9748 = vmatprep.subr.bf16.mxu0 %v9717
        %9749 = vmatpush1.bf16.msra.mxu0 %v9716
        %9750 = vmatprep.subr.bf16.mxu0 %v9719
        %9751 = vmatpush1.bf16.msra.mxu0 %v9718
        %9752 = vmatprep.subr.bf16.mxu0 %v9721
        %9753 = vmatpush1.bf16.msra.mxu0 %v9720
        %9754 = vmatprep.subr.bf16.mxu0 %v9723
        %9755 = vmatpush1.bf16.msra.mxu0 %v9722
        %9756 = vmatprep.subr.bf16.mxu0 0
        %9757 = vmatpush1.bf16.msra.mxu0 0
        %9758 = vmatprep.subr.bf16.mxu0 0
        %9759 = vmatpush1.bf16.msra.mxu0 0
        %9760 = vmatprep.subr.bf16.mxu0 0
        %9761 = vmatpush1.bf16.msra.mxu0 0
        %9762 = vmatprep.subr.bf16.mxu0 0
        %9763 = vmatpush1.bf16.msra.mxu0 0
        %9764 = vmatprep.subr.bf16.mxu0 0
        %9765 = vmatpush1.bf16.msra.mxu0 0
        %9766 = vmatprep.subr.bf16.mxu0 0
        %9767 = vmatpush1.bf16.msra.mxu0 0
        %9768 = vmatprep.subr.bf16.mxu0 0
        %9769 = vmatpush1.bf16.msra.mxu0 0
        %9770 = vmatprep.subr.bf16.mxu0 0
        %9771 = vmatpush1.bf16.msra.mxu0 0
        %9772 = vmatprep.mubr.bf16.mxu0 0
        %9773 = vmatmul.mubr.bf16.gmra.mrb[0].mxu0 %v9658
        %v9774 = vpop.f32.mrb[0].mxu0
        %v9775 = vadd.f32 0.0, %v9774
        %v9776 = vpop.f32.mrb[0].mxu0
        %v9777 = vadd.f32 0.0, %v9776
        %v9778 = vpop.f32.mrb[0].mxu0
        %v9779 = vpop.f32.mrb[0].mxu0
        %9780 = vdwg.mxu0
        %v9783 = vcombine.low %v9775, %v9777
        %v9785 = vunpack.c.l.s4 1966171168
        %v9786 = vunpack.c.0.s8 %v9785
        %v9787 = vlaneseq
        %v9788 = vshrl.u32 %v9787, 7
        %v9789 = vsub.s32 %v9786, %v9788
        %v9790 = vrot.slane %v9783, %v9789
        %v9792 = vunpack.c.l.s4 1966171168
        %v9793 = vunpack.c.0.s8 %v9792
        %v9794 = vlaneseq
        %v9795 = vshrl.u32 %v9794, 7
        %v9796 = vsub.s32 %v9793, %v9795
        %v9797 = vrot.slane %v9790, %v9796
        %v9799 = vadd.f32 %v9641, %v9797
        %v9800 = vld [vmem:[#allocation2 + $0x280] sm:$0xff]
        %v9801 = vld [vmem:[#allocation2 + $0x288] sm:$0xff]
        %v9802 = vld [vmem:[#allocation2 + $0x290] sm:$0xff]
        %v9803 = vld [vmem:[#allocation2 + $0x298] sm:$0xff]
        %v9804 = vld [vmem:[#allocation2 + $0x2a0] sm:$0xff]
        %v9805 = vld [vmem:[#allocation2 + $0x2a8] sm:$0xff]
        %v9806 = vld [vmem:[#allocation2 + $0x2b0] sm:$0xff]
        %v9807 = vld [vmem:[#allocation2 + $0x2b8] sm:$0xff]
        %v9808 = vld [vmem:[#allocation2 + $0x2c0] sm:$0xff]
        %v9809 = vld [vmem:[#allocation2 + $0x2c8] sm:$0xff]
        %v9810 = vld [vmem:[#allocation2 + $0x2d0] sm:$0xff]
        %v9811 = vld [vmem:[#allocation2 + $0x2d8] sm:$0xff]
        %v9812 = vld [vmem:[#allocation2 + $0x2e0] sm:$0xff]
        %v9813 = vld [vmem:[#allocation2 + $0x2e8] sm:$0xff]
        %v9814 = vld [vmem:[#allocation2 + $0x2f0] sm:$0xff]
        %v9815 = vld [vmem:[#allocation2 + $0x2f8] sm:$0xff]
        %v9816 = vrot.slane %v9182, 2
        %v9834 = vunpack.c.l.b16 %v9800
        %v9835 = vunpack.c.h.b16 %v9800
        %v9836 = vunpack.c.l.b16 %v9801
        %v9837 = vunpack.c.h.b16 %v9801
        %v9838 = vunpack.c.l.b16 %v9802
        %v9839 = vunpack.c.h.b16 %v9802
        %v9840 = vunpack.c.l.b16 %v9803
        %v9841 = vunpack.c.h.b16 %v9803
        %v9842 = vunpack.c.l.b16 %v9804
        %v9843 = vunpack.c.h.b16 %v9804
        %v9844 = vunpack.c.l.b16 %v9805
        %v9845 = vunpack.c.h.b16 %v9805
        %v9846 = vunpack.c.l.b16 %v9806
        %v9847 = vunpack.c.h.b16 %v9806
        %v9848 = vunpack.c.l.b16 %v9807
        %v9849 = vunpack.c.h.b16 %v9807
        %v9850 = vunpack.c.l.b16 %v9808
        %v9851 = vunpack.c.h.b16 %v9808
        %v9852 = vunpack.c.l.b16 %v9809
        %v9853 = vunpack.c.h.b16 %v9809
        %v9854 = vunpack.c.l.b16 %v9810
        %v9855 = vunpack.c.h.b16 %v9810
        %v9856 = vunpack.c.l.b16 %v9811
        %v9857 = vunpack.c.h.b16 %v9811
        %v9858 = vunpack.c.l.b16 %v9812
        %v9859 = vunpack.c.h.b16 %v9812
        %v9860 = vunpack.c.l.b16 %v9813
        %v9861 = vunpack.c.h.b16 %v9813
        %v9862 = vunpack.c.l.b16 %v9814
        %v9863 = vunpack.c.h.b16 %v9814
        %v9864 = vunpack.c.l.b16 %v9815
        %v9865 = vunpack.c.h.b16 %v9815
        %v9866 = vpack.c.b16 %v9836, %v9834
        %v9867 = vpack.c.b16 %v9837, %v9835
        %v9868 = vpack.c.b16 %v9840, %v9838
        %v9869 = vpack.c.b16 %v9841, %v9839
        %v9870 = vpack.c.b16 %v9844, %v9842
        %v9871 = vpack.c.b16 %v9845, %v9843
        %v9872 = vpack.c.b16 %v9848, %v9846
        %v9873 = vpack.c.b16 %v9849, %v9847
        %v9874 = vpack.c.b16 %v9852, %v9850
        %v9875 = vpack.c.b16 %v9853, %v9851
        %v9876 = vpack.c.b16 %v9856, %v9854
        %v9877 = vpack.c.b16 %v9857, %v9855
        %v9878 = vpack.c.b16 %v9860, %v9858
        %v9879 = vpack.c.b16 %v9861, %v9859
        %v9880 = vpack.c.b16 %v9864, %v9862
        %v9881 = vpack.c.b16 %v9865, %v9863
        %9898 = vmatprep.subr.bf16.mxu0 %v9867
        %9899 = vmatpush1.bf16.msra.mxu0 %v9866
        %9900 = vmatprep.subr.bf16.mxu0 %v9869
        %9901 = vmatpush1.bf16.msra.mxu0 %v9868
        %9902 = vmatprep.subr.bf16.mxu0 %v9871
        %9903 = vmatpush1.bf16.msra.mxu0 %v9870
        %9904 = vmatprep.subr.bf16.mxu0 %v9873
        %9905 = vmatpush1.bf16.msra.mxu0 %v9872
        %9906 = vmatprep.subr.bf16.mxu0 %v9875
        %9907 = vmatpush1.bf16.msra.mxu0 %v9874
        %9908 = vmatprep.subr.bf16.mxu0 %v9877
        %9909 = vmatpush1.bf16.msra.mxu0 %v9876
        %9910 = vmatprep.subr.bf16.mxu0 %v9879
        %9911 = vmatpush1.bf16.msra.mxu0 %v9878
        %9912 = vmatprep.subr.bf16.mxu0 %v9881
        %9913 = vmatpush1.bf16.msra.mxu0 %v9880
        %9914 = vmatprep.subr.bf16.mxu0 0
        %9915 = vmatpush1.bf16.msra.mxu0 0
        %9916 = vmatprep.subr.bf16.mxu0 0
        %9917 = vmatpush1.bf16.msra.mxu0 0
        %9918 = vmatprep.subr.bf16.mxu0 0
        %9919 = vmatpush1.bf16.msra.mxu0 0
        %9920 = vmatprep.subr.bf16.mxu0 0
        %9921 = vmatpush1.bf16.msra.mxu0 0
        %9922 = vmatprep.subr.bf16.mxu0 0
        %9923 = vmatpush1.bf16.msra.mxu0 0
        %9924 = vmatprep.subr.bf16.mxu0 0
        %9925 = vmatpush1.bf16.msra.mxu0 0
        %9926 = vmatprep.subr.bf16.mxu0 0
        %9927 = vmatpush1.bf16.msra.mxu0 0
        %9928 = vmatprep.subr.bf16.mxu0 0
        %9929 = vmatpush1.bf16.msra.mxu0 0
        %9930 = vmatprep.mubr.bf16.mxu0 0
        %9931 = vmatmul.mubr.bf16.gmra.mrb[0].mxu0 %v9816
        %v9932 = vpop.f32.mrb[0].mxu0
        %v9933 = vadd.f32 0.0, %v9932
        %v9934 = vpop.f32.mrb[0].mxu0
        %v9935 = vadd.f32 0.0, %v9934
        %v9936 = vpop.f32.mrb[0].mxu0
        %v9937 = vpop.f32.mrb[0].mxu0
        %9938 = vdwg.mxu0
        %v9941 = vcombine.low %v9933, %v9935
        %v9943 = vunpack.c.l.s4 1966171168
        %v9944 = vunpack.c.0.s8 %v9943
        %v9945 = vlaneseq
        %v9946 = vshrl.u32 %v9945, 7
        %v9947 = vsub.s32 %v9944, %v9946
        %v9948 = vrot.slane %v9941, %v9947
        %v9950 = vunpack.c.l.s4 1966171168
        %v9951 = vunpack.c.0.s8 %v9950
        %v9952 = vlaneseq
        %v9953 = vshrl.u32 %v9952, 7
        %v9954 = vsub.s32 %v9951, %v9953
        %v9955 = vrot.slane %v9948, %v9954
        %v9957 = vadd.f32 %v9799, %v9955
        %v9958 = vld [vmem:[#allocation2 + $0x300] sm:$0xff]
        %v9959 = vld [vmem:[#allocation2 + $0x308] sm:$0xff]
        %v9960 = vld [vmem:[#allocation2 + $0x310] sm:$0xff]
        %v9961 = vld [vmem:[#allocation2 + $0x318] sm:$0xff]
        %v9962 = vld [vmem:[#allocation2 + $0x320] sm:$0xff]
        %v9963 = vld [vmem:[#allocation2 + $0x328] sm:$0xff]
        %v9964 = vld [vmem:[#allocation2 + $0x330] sm:$0xff]
        %v9965 = vld [vmem:[#allocation2 + $0x338] sm:$0xff]
        %v9966 = vld [vmem:[#allocation2 + $0x340] sm:$0xff]
        %v9967 = vld [vmem:[#allocation2 + $0x348] sm:$0xff]
        %v9968 = vld [vmem:[#allocation2 + $0x350] sm:$0xff]
        %v9969 = vld [vmem:[#allocation2 + $0x358] sm:$0xff]
        %v9970 = vld [vmem:[#allocation2 + $0x360] sm:$0xff]
        %v9971 = vld [vmem:[#allocation2 + $0x368] sm:$0xff]
        %v9972 = vld [vmem:[#allocation2 + $0x370] sm:$0xff]
        %v9973 = vld [vmem:[#allocation2 + $0x378] sm:$0xff]
        %v9974 = vrot.slane %v9006, 3
        %v9992 = vunpack.c.l.b16 %v9958
        %v9993 = vunpack.c.h.b16 %v9958
        %v9994 = vunpack.c.l.b16 %v9959
        %v9995 = vunpack.c.h.b16 %v9959
        %v9996 = vunpack.c.l.b16 %v9960
        %v9997 = vunpack.c.h.b16 %v9960
        %v9998 = vunpack.c.l.b16 %v9961
        %v9999 = vunpack.c.h.b16 %v9961
        %v10000 = vunpack.c.l.b16 %v9962
        %v10001 = vunpack.c.h.b16 %v9962
        %v10002 = vunpack.c.l.b16 %v9963
        %v10003 = vunpack.c.h.b16 %v9963
        %v10004 = vunpack.c.l.b16 %v9964
        %v10005 = vunpack.c.h.b16 %v9964
        %v10006 = vunpack.c.l.b16 %v9965
        %v10007 = vunpack.c.h.b16 %v9965
        %v10008 = vunpack.c.l.b16 %v9966
        %v10009 = vunpack.c.h.b16 %v9966
        %v10010 = vunpack.c.l.b16 %v9967
        %v10011 = vunpack.c.h.b16 %v9967
        %v10012 = vunpack.c.l.b16 %v9968
        %v10013 = vunpack.c.h.b16 %v9968
        %v10014 = vunpack.c.l.b16 %v9969
        %v10015 = vunpack.c.h.b16 %v9969
        %v10016 = vunpack.c.l.b16 %v9970
        %v10017 = vunpack.c.h.b16 %v9970
        %v10018 = vunpack.c.l.b16 %v9971
        %v10019 = vunpack.c.h.b16 %v9971
        %v10020 = vunpack.c.l.b16 %v9972
        %v10021 = vunpack.c.h.b16 %v9972
        %v10022 = vunpack.c.l.b16 %v9973
        %v10023 = vunpack.c.h.b16 %v9973
        %v10024 = vpack.c.b16 %v9994, %v9992
        %v10025 = vpack.c.b16 %v9995, %v9993
        %v10026 = vpack.c.b16 %v9998, %v9996
        %v10027 = vpack.c.b16 %v9999, %v9997
        %v10028 = vpack.c.b16 %v10002, %v10000
        %v10029 = vpack.c.b16 %v10003, %v10001
        %v10030 = vpack.c.b16 %v10006, %v10004
        %v10031 = vpack.c.b16 %v10007, %v10005
        %v10032 = vpack.c.b16 %v10010, %v10008
        %v10033 = vpack.c.b16 %v10011, %v10009
        %v10034 = vpack.c.b16 %v10014, %v10012
        %v10035 = vpack.c.b16 %v10015, %v10013
        %v10036 = vpack.c.b16 %v10018, %v10016
        %v10037 = vpack.c.b16 %v10019, %v10017
        %v10038 = vpack.c.b16 %v10022, %v10020
        %v10039 = vpack.c.b16 %v10023, %v10021
        %10056 = vmatprep.subr.bf16.mxu0 %v10025
        %10057 = vmatpush1.bf16.msra.mxu0 %v10024
        %10058 = vmatprep.subr.bf16.mxu0 %v10027
        %10059 = vmatpush1.bf16.msra.mxu0 %v10026
        %10060 = vmatprep.subr.bf16.mxu0 %v10029
        %10061 = vmatpush1.bf16.msra.mxu0 %v10028
        %10062 = vmatprep.subr.bf16.mxu0 %v10031
        %10063 = vmatpush1.bf16.msra.mxu0 %v10030
        %10064 = vmatprep.subr.bf16.mxu0 %v10033
        %10065 = vmatpush1.bf16.msra.mxu0 %v10032
        %10066 = vmatprep.subr.bf16.mxu0 %v10035
        %10067 = vmatpush1.bf16.msra.mxu0 %v10034
        %10068 = vmatprep.subr.bf16.mxu0 %v10037
        %10069 = vmatpush1.bf16.msra.mxu0 %v10036
        %10070 = vmatprep.subr.bf16.mxu0 %v10039
        %10071 = vmatpush1.bf16.msra.mxu0 %v10038
        %10072 = vmatprep.subr.bf16.mxu0 0
        %10073 = vmatpush1.bf16.msra.mxu0 0
        %10074 = vmatprep.subr.bf16.mxu0 0
        %10075 = vmatpush1.bf16.msra.mxu0 0
        %10076 = vmatprep.subr.bf16.mxu0 0
        %10077 = vmatpush1.bf16.msra.mxu0 0
        %10078 = vmatprep.subr.bf16.mxu0 0
        %10079 = vmatpush1.bf16.msra.mxu0 0
        %10080 = vmatprep.subr.bf16.mxu0 0
        %10081 = vmatpush1.bf16.msra.mxu0 0
        %10082 = vmatprep.subr.bf16.mxu0 0
        %10083 = vmatpush1.bf16.msra.mxu0 0
        %10084 = vmatprep.subr.bf16.mxu0 0
        %10085 = vmatpush1.bf16.msra.mxu0 0
        %10086 = vmatprep.subr.bf16.mxu0 0
        %10087 = vmatpush1.bf16.msra.mxu0 0
        %10088 = vmatprep.mubr.bf16.mxu0 0
        %10089 = vmatmul.mubr.bf16.gmra.mrb[0].mxu0 %v9974
        %v10090 = vpop.f32.mrb[0].mxu0
        %v10091 = vadd.f32 0.0, %v10090
        %v10092 = vpop.f32.mrb[0].mxu0
        %v10093 = vadd.f32 0.0, %v10092
        %v10094 = vpop.f32.mrb[0].mxu0
        %v10095 = vpop.f32.mrb[0].mxu0
        %10096 = vdwg.mxu0
        %v10099 = vcombine.low %v10091, %v10093
        %v10101 = vunpack.c.l.s4 1966171168
        %v10102 = vunpack.c.0.s8 %v10101
        %v10103 = vlaneseq
        %v10104 = vshrl.u32 %v10103, 7
        %v10105 = vsub.s32 %v10102, %v10104
        %v10106 = vrot.slane %v10099, %v10105
        %v10108 = vunpack.c.l.s4 1966171168
        %v10109 = vunpack.c.0.s8 %v10108
        %v10110 = vlaneseq
        %v10111 = vshrl.u32 %v10110, 7
        %v10112 = vsub.s32 %v10109, %v10111
        %v10113 = vrot.slane %v10106, %v10112
        %v10115 = vadd.f32 %v9957, %v10113
        %v10116 = vld [vmem:[#allocation2 + $0x380] sm:$0xff]
        %v10117 = vld [vmem:[#allocation2 + $0x388] sm:$0xff]
        %v10118 = vld [vmem:[#allocation2 + $0x390] sm:$0xff]
        %v10119 = vld [vmem:[#allocation2 + $0x398] sm:$0xff]
        %v10120 = vld [vmem:[#allocation2 + $0x3a0] sm:$0xff]
        %v10121 = vld [vmem:[#allocation2 + $0x3a8] sm:$0xff]
        %v10122 = vld [vmem:[#allocation2 + $0x3b0] sm:$0xff]
        %v10123 = vld [vmem:[#allocation2 + $0x3b8] sm:$0xff]
        %v10124 = vld [vmem:[#allocation2 + $0x3c0] sm:$0xff]
        %v10125 = vld [vmem:[#allocation2 + $0x3c8] sm:$0xff]
        %v10126 = vld [vmem:[#allocation2 + $0x3d0] sm:$0xff]
        %v10127 = vld [vmem:[#allocation2 + $0x3d8] sm:$0xff]
        %v10128 = vld [vmem:[#allocation2 + $0x3e0] sm:$0xff]
        %v10129 = vld [vmem:[#allocation2 + $0x3e8] sm:$0xff]
        %v10130 = vld [vmem:[#allocation2 + $0x3f0] sm:$0xff]
        %v10131 = vld [vmem:[#allocation2 + $0x3f8] sm:$0xff]
        %v10132 = vrot.slane %v9182, 3
        %v10150 = vunpack.c.l.b16 %v10116
        %v10151 = vunpack.c.h.b16 %v10116
        %v10152 = vunpack.c.l.b16 %v10117
        %v10153 = vunpack.c.h.b16 %v10117
        %v10154 = vunpack.c.l.b16 %v10118
        %v10155 = vunpack.c.h.b16 %v10118
        %v10156 = vunpack.c.l.b16 %v10119
        %v10157 = vunpack.c.h.b16 %v10119
        %v10158 = vunpack.c.l.b16 %v10120
        %v10159 = vunpack.c.h.b16 %v10120
        %v10160 = vunpack.c.l.b16 %v10121
        %v10161 = vunpack.c.h.b16 %v10121
        %v10162 = vunpack.c.l.b16 %v10122
        %v10163 = vunpack.c.h.b16 %v10122
        %v10164 = vunpack.c.l.b16 %v10123
        %v10165 = vunpack.c.h.b16 %v10123
        %v10166 = vunpack.c.l.b16 %v10124
        %v10167 = vunpack.c.h.b16 %v10124
        %v10168 = vunpack.c.l.b16 %v10125
        %v10169 = vunpack.c.h.b16 %v10125
        %v10170 = vunpack.c.l.b16 %v10126
        %v10171 = vunpack.c.h.b16 %v10126
        %v10172 = vunpack.c.l.b16 %v10127
        %v10173 = vunpack.c.h.b16 %v10127
        %v10174 = vunpack.c.l.b16 %v10128
        %v10175 = vunpack.c.h.b16 %v10128
        %v10176 = vunpack.c.l.b16 %v10129
        %v10177 = vunpack.c.h.b16 %v10129
        %v10178 = vunpack.c.l.b16 %v10130
        %v10179 = vunpack.c.h.b16 %v10130
        %v10180 = vunpack.c.l.b16 %v10131
        %v10181 = vunpack.c.h.b16 %v10131
        %v10182 = vpack.c.b16 %v10152, %v10150
        %v10183 = vpack.c.b16 %v10153, %v10151
        %v10184 = vpack.c.b16 %v10156, %v10154
        %v10185 = vpack.c.b16 %v10157, %v10155
        %v10186 = vpack.c.b16 %v10160, %v10158
        %v10187 = vpack.c.b16 %v10161, %v10159
        %v10188 = vpack.c.b16 %v10164, %v10162
        %v10189 = vpack.c.b16 %v10165, %v10163
        %v10190 = vpack.c.b16 %v10168, %v10166
        %v10191 = vpack.c.b16 %v10169, %v10167
        %v10192 = vpack.c.b16 %v10172, %v10170
        %v10193 = vpack.c.b16 %v10173, %v10171
        %v10194 = vpack.c.b16 %v10176, %v10174
        %v10195 = vpack.c.b16 %v10177, %v10175
        %v10196 = vpack.c.b16 %v10180, %v10178
        %v10197 = vpack.c.b16 %v10181, %v10179
        %10214 = vmatprep.subr.bf16.mxu0 %v10183
        %10215 = vmatpush1.bf16.msra.mxu0 %v10182
        %10216 = vmatprep.subr.bf16.mxu0 %v10185
        %10217 = vmatpush1.bf16.msra.mxu0 %v10184
        %10218 = vmatprep.subr.bf16.mxu0 %v10187
        %10219 = vmatpush1.bf16.msra.mxu0 %v10186
        %10220 = vmatprep.subr.bf16.mxu0 %v10189
        %10221 = vmatpush1.bf16.msra.mxu0 %v10188
        %10222 = vmatprep.subr.bf16.mxu0 %v10191
        %10223 = vmatpush1.bf16.msra.mxu0 %v10190
        %10224 = vmatprep.subr.bf16.mxu0 %v10193
        %10225 = vmatpush1.bf16.msra.mxu0 %v10192
        %10226 = vmatprep.subr.bf16.mxu0 %v10195
        %10227 = vmatpush1.bf16.msra.mxu0 %v10194
        %10228 = vmatprep.subr.bf16.mxu0 %v10197
        %10229 = vmatpush1.bf16.msra.mxu0 %v10196
        %10230 = vmatprep.subr.bf16.mxu0 0
        %10231 = vmatpush1.bf16.msra.mxu0 0
        %10232 = vmatprep.subr.bf16.mxu0 0
        %10233 = vmatpush1.bf16.msra.mxu0 0
        %10234 = vmatprep.subr.bf16.mxu0 0
        %10235 = vmatpush1.bf16.msra.mxu0 0
        %10236 = vmatprep.subr.bf16.mxu0 0
        %10237 = vmatpush1.bf16.msra.mxu0 0
        %10238 = vmatprep.subr.bf16.mxu0 0
        %10239 = vmatpush1.bf16.msra.mxu0 0
        %10240 = vmatprep.subr.bf16.mxu0 0
        %10241 = vmatpush1.bf16.msra.mxu0 0
        %10242 = vmatprep.subr.bf16.mxu0 0
        %10243 = vmatpush1.bf16.msra.mxu0 0
        %10244 = vmatprep.subr.bf16.mxu0 0
        %10245 = vmatpush1.bf16.msra.mxu0 0
        %10246 = vmatprep.mubr.bf16.mxu0 0
        %10247 = vmatmul.mubr.bf16.gmra.mrb[0].mxu0 %v10132
        %v10248 = vpop.f32.mrb[0].mxu0
        %v10249 = vadd.f32 0.0, %v10248
        %v10250 = vpop.f32.mrb[0].mxu0
        %v10251 = vadd.f32 0.0, %v10250
        %v10252 = vpop.f32.mrb[0].mxu0
        %v10253 = vpop.f32.mrb[0].mxu0
        %10254 = vdwg.mxu0
        %v10257 = vcombine.low %v10249, %v10251
        %v10259 = vunpack.c.l.s4 1966171168
        %v10260 = vunpack.c.0.s8 %v10259
        %v10261 = vlaneseq
        %v10262 = vshrl.u32 %v10261, 7
        %v10263 = vsub.s32 %v10260, %v10262
        %v10264 = vrot.slane %v10257, %v10263
        %v10266 = vunpack.c.l.s4 1966171168
        %v10267 = vunpack.c.0.s8 %v10266
        %v10268 = vlaneseq
        %v10269 = vshrl.u32 %v10268, 7
        %v10270 = vsub.s32 %v10267, %v10269
        %v10271 = vrot.slane %v10264, %v10270
        %v10273 = vadd.f32 %v10115, %v10271
        %v10274 = vld [vmem:[#allocation2 + $0x400] sm:$0xff]
        %v10275 = vld [vmem:[#allocation2 + $0x408] sm:$0xff]
        %v10276 = vld [vmem:[#allocation2 + $0x410] sm:$0xff]
        %v10277 = vld [vmem:[#allocation2 + $0x418] sm:$0xff]
        %v10278 = vld [vmem:[#allocation2 + $0x420] sm:$0xff]
        %v10279 = vld [vmem:[#allocation2 + $0x428] sm:$0xff]
        %v10280 = vld [vmem:[#allocation2 + $0x430] sm:$0xff]
        %v10281 = vld [vmem:[#allocation2 + $0x438] sm:$0xff]
        %v10282 = vld [vmem:[#allocation2 + $0x440] sm:$0xff]
        %v10283 = vld [vmem:[#allocation2 + $0x448] sm:$0xff]
        %v10284 = vld [vmem:[#allocation2 + $0x450] sm:$0xff]
        %v10285 = vld [vmem:[#allocation2 + $0x458] sm:$0xff]
        %v10286 = vld [vmem:[#allocation2 + $0x460] sm:$0xff]
        %v10287 = vld [vmem:[#allocation2 + $0x468] sm:$0xff]
        %v10288 = vld [vmem:[#allocation2 + $0x470] sm:$0xff]
        %v10289 = vld [vmem:[#allocation2 + $0x478] sm:$0xff]
        %v10290 = vrot.slane %v9006, 4
        %v10308 = vunpack.c.l.b16 %v10274
        %v10309 = vunpack.c.h.b16 %v10274
        %v10310 = vunpack.c.l.b16 %v10275
        %v10311 = vunpack.c.h.b16 %v10275
        %v10312 = vunpack.c.l.b16 %v10276
        %v10313 = vunpack.c.h.b16 %v10276
        %v10314 = vunpack.c.l.b16 %v10277
        %v10315 = vunpack.c.h.b16 %v10277
        %v10316 = vunpack.c.l.b16 %v10278
        %v10317 = vunpack.c.h.b16 %v10278
        %v10318 = vunpack.c.l.b16 %v10279
        %v10319 = vunpack.c.h.b16 %v10279
        %v10320 = vunpack.c.l.b16 %v10280
        %v10321 = vunpack.c.h.b16 %v10280
        %v10322 = vunpack.c.l.b16 %v10281
        %v10323 = vunpack.c.h.b16 %v10281
        %v10324 = vunpack.c.l.b16 %v10282
        %v10325 = vunpack.c.h.b16 %v10282
        %v10326 = vunpack.c.l.b16 %v10283
        %v10327 = vunpack.c.h.b16 %v10283
        %v10328 = vunpack.c.l.b16 %v10284
        %v10329 = vunpack.c.h.b16 %v10284
        %v10330 = vunpack.c.l.b16 %v10285
        %v10331 = vunpack.c.h.b16 %v10285
        %v10332 = vunpack.c.l.b16 %v10286
        %v10333 = vunpack.c.h.b16 %v10286
        %v10334 = vunpack.c.l.b16 %v10287
        %v10335 = vunpack.c.h.b16 %v10287
        %v10336 = vunpack.c.l.b16 %v10288
        %v10337 = vunpack.c.h.b16 %v10288
        %v10338 = vunpack.c.l.b16 %v10289
        %v10339 = vunpack.c.h.b16 %v10289
        %v10340 = vpack.c.b16 %v10310, %v10308
        %v10341 = vpack.c.b16 %v10311, %v10309
        %v10342 = vpack.c.b16 %v10314, %v10312
        %v10343 = vpack.c.b16 %v10315, %v10313
        %v10344 = vpack.c.b16 %v10318, %v10316
        %v10345 = vpack.c.b16 %v10319, %v10317
        %v10346 = vpack.c.b16 %v10322, %v10320
        %v10347 = vpack.c.b16 %v10323, %v10321
        %v10348 = vpack.c.b16 %v10326, %v10324
        %v10349 = vpack.c.b16 %v10327, %v10325
        %v10350 = vpack.c.b16 %v10330, %v10328
        %v10351 = vpack.c.b16 %v10331, %v10329
        %v10352 = vpack.c.b16 %v10334, %v10332
        %v10353 = vpack.c.b16 %v10335, %v10333
        %v10354 = vpack.c.b16 %v10338, %v10336
        %v10355 = vpack.c.b16 %v10339, %v10337
        %10372 = vmatprep.subr.bf16.mxu0 %v10341
        %10373 = vmatpush1.bf16.msra.mxu0 %v10340
        %10374 = vmatprep.subr.bf16.mxu0 %v10343
        %10375 = vmatpush1.bf16.msra.mxu0 %v10342
        %10376 = vmatprep.subr.bf16.mxu0 %v10345
        %10377 = vmatpush1.bf16.msra.mxu0 %v10344
        %10378 = vmatprep.subr.bf16.mxu0 %v10347
        %10379 = vmatpush1.bf16.msra.mxu0 %v10346
        %10380 = vmatprep.subr.bf16.mxu0 %v10349
        %10381 = vmatpush1.bf16.msra.mxu0 %v10348
        %10382 = vmatprep.subr.bf16.mxu0 %v10351
        %10383 = vmatpush1.bf16.msra.mxu0 %v10350
        %10384 = vmatprep.subr.bf16.mxu0 %v10353
        %10385 = vmatpush1.bf16.msra.mxu0 %v10352
        %10386 = vmatprep.subr.bf16.mxu0 %v10355
        %10387 = vmatpush1.bf16.msra.mxu0 %v10354
        %10388 = vmatprep.subr.bf16.mxu0 0
        %10389 = vmatpush1.bf16.msra.mxu0 0
        %10390 = vmatprep.subr.bf16.mxu0 0
        %10391 = vmatpush1.bf16.msra.mxu0 0
        %10392 = vmatprep.subr.bf16.mxu0 0
        %10393 = vmatpush1.bf16.msra.mxu0 0
        %10394 = vmatprep.subr.bf16.mxu0 0
        %10395 = vmatpush1.bf16.msra.mxu0 0
        %10396 = vmatprep.subr.bf16.mxu0 0
        %10397 = vmatpush1.bf16.msra.mxu0 0
        %10398 = vmatprep.subr.bf16.mxu0 0
        %10399 = vmatpush1.bf16.msra.mxu0 0
        %10400 = vmatprep.subr.bf16.mxu0 0
        %10401 = vmatpush1.bf16.msra.mxu0 0
        %10402 = vmatprep.subr.bf16.mxu0 0
        %10403 = vmatpush1.bf16.msra.mxu0 0
        %10404 = vmatprep.mubr.bf16.mxu0 0
        %10405 = vmatmul.mubr.bf16.gmra.mrb[0].mxu0 %v10290
        %v10406 = vpop.f32.mrb[0].mxu0
        %v10407 = vadd.f32 0.0, %v10406
        %v10408 = vpop.f32.mrb[0].mxu0
        %v10409 = vadd.f32 0.0, %v10408
        %v10410 = vpop.f32.mrb[0].mxu0
        %v10411 = vpop.f32.mrb[0].mxu0
        %10412 = vdwg.mxu0
        %v10415 = vcombine.low %v10407, %v10409
        %v10417 = vunpack.c.l.s4 1966171168
        %v10418 = vunpack.c.0.s8 %v10417
        %v10419 = vlaneseq
        %v10420 = vshrl.u32 %v10419, 7
        %v10421 = vsub.s32 %v10418, %v10420
        %v10422 = vrot.slane %v10415, %v10421
        %v10424 = vunpack.c.l.s4 1966171168
        %v10425 = vunpack.c.0.s8 %v10424
        %v10426 = vlaneseq
        %v10427 = vshrl.u32 %v10426, 7
        %v10428 = vsub.s32 %v10425, %v10427
        %v10429 = vrot.slane %v10422, %v10428
        %v10431 = vadd.f32 %v10273, %v10429
        %v10432 = vld [vmem:[#allocation2 + $0x480] sm:$0xff]
        %v10433 = vld [vmem:[#allocation2 + $0x488] sm:$0xff]
        %v10434 = vld [vmem:[#allocation2 + $0x490] sm:$0xff]
        %v10435 = vld [vmem:[#allocation2 + $0x498] sm:$0xff]
        %v10436 = vld [vmem:[#allocation2 + $0x4a0] sm:$0xff]
        %v10437 = vld [vmem:[#allocation2 + $0x4a8] sm:$0xff]
        %v10438 = vld [vmem:[#allocation2 + $0x4b0] sm:$0xff]
        %v10439 = vld [vmem:[#allocation2 + $0x4b8] sm:$0xff]
        %v10440 = vld [vmem:[#allocation2 + $0x4c0] sm:$0xff]
        %v10441 = vld [vmem:[#allocation2 + $0x4c8] sm:$0xff]
        %v10442 = vld [vmem:[#allocation2 + $0x4d0] sm:$0xff]
        %v10443 = vld [vmem:[#allocation2 + $0x4d8] sm:$0xff]
        %v10444 = vld [vmem:[#allocation2 + $0x4e0] sm:$0xff]
        %v10445 = vld [vmem:[#allocation2 + $0x4e8] sm:$0xff]
        %v10446 = vld [vmem:[#allocation2 + $0x4f0] sm:$0xff]
        %v10447 = vld [vmem:[#allocation2 + $0x4f8] sm:$0xff]
        %v10448 = vrot.slane %v9182, 4
        %v10466 = vunpack.c.l.b16 %v10432
        %v10467 = vunpack.c.h.b16 %v10432
        %v10468 = vunpack.c.l.b16 %v10433
        %v10469 = vunpack.c.h.b16 %v10433
        %v10470 = vunpack.c.l.b16 %v10434
        %v10471 = vunpack.c.h.b16 %v10434
        %v10472 = vunpack.c.l.b16 %v10435
        %v10473 = vunpack.c.h.b16 %v10435
        %v10474 = vunpack.c.l.b16 %v10436
        %v10475 = vunpack.c.h.b16 %v10436
        %v10476 = vunpack.c.l.b16 %v10437
        %v10477 = vunpack.c.h.b16 %v10437
        %v10478 = vunpack.c.l.b16 %v10438
        %v10479 = vunpack.c.h.b16 %v10438
        %v10480 = vunpack.c.l.b16 %v10439
        %v10481 = vunpack.c.h.b16 %v10439
        %v10482 = vunpack.c.l.b16 %v10440
        %v10483 = vunpack.c.h.b16 %v10440
        %v10484 = vunpack.c.l.b16 %v10441
        %v10485 = vunpack.c.h.b16 %v10441
        %v10486 = vunpack.c.l.b16 %v10442
        %v10487 = vunpack.c.h.b16 %v10442
        %v10488 = vunpack.c.l.b16 %v10443
        %v10489 = vunpack.c.h.b16 %v10443
        %v10490 = vunpack.c.l.b16 %v10444
        %v10491 = vunpack.c.h.b16 %v10444
        %v10492 = vunpack.c.l.b16 %v10445
        %v10493 = vunpack.c.h.b16 %v10445
        %v10494 = vunpack.c.l.b16 %v10446
        %v10495 = vunpack.c.h.b16 %v10446
        %v10496 = vunpack.c.l.b16 %v10447
        %v10497 = vunpack.c.h.b16 %v10447
        %v10498 = vpack.c.b16 %v10468, %v10466
        %v10499 = vpack.c.b16 %v10469, %v10467
        %v10500 = vpack.c.b16 %v10472, %v10470
        %v10501 = vpack.c.b16 %v10473, %v10471
        %v10502 = vpack.c.b16 %v10476, %v10474
        %v10503 = vpack.c.b16 %v10477, %v10475
        %v10504 = vpack.c.b16 %v10480, %v10478
        %v10505 = vpack.c.b16 %v10481, %v10479
        %v10506 = vpack.c.b16 %v10484, %v10482
        %v10507 = vpack.c.b16 %v10485, %v10483
        %v10508 = vpack.c.b16 %v10488, %v10486
        %v10509 = vpack.c.b16 %v10489, %v10487
        %v10510 = vpack.c.b16 %v10492, %v10490
        %v10511 = vpack.c.b16 %v10493, %v10491
        %v10512 = vpack.c.b16 %v10496, %v10494
        %v10513 = vpack.c.b16 %v10497, %v10495
        %10530 = vmatprep.subr.bf16.mxu0 %v10499
        %10531 = vmatpush1.bf16.msra.mxu0 %v10498
        %10532 = vmatprep.subr.bf16.mxu0 %v10501
        %10533 = vmatpush1.bf16.msra.mxu0 %v10500
        %10534 = vmatprep.subr.bf16.mxu0 %v10503
        %10535 = vmatpush1.bf16.msra.mxu0 %v10502
        %10536 = vmatprep.subr.bf16.mxu0 %v10505
        %10537 = vmatpush1.bf16.msra.mxu0 %v10504
        %10538 = vmatprep.subr.bf16.mxu0 %v10507
        %10539 = vmatpush1.bf16.msra.mxu0 %v10506
        %10540 = vmatprep.subr.bf16.mxu0 %v10509
        %10541 = vmatpush1.bf16.msra.mxu0 %v10508
        %10542 = vmatprep.subr.bf16.mxu0 %v10511
        %10543 = vmatpush1.bf16.msra.mxu0 %v10510
        %10544 = vmatprep.subr.bf16.mxu0 %v10513
        %10545 = vmatpush1.bf16.msra.mxu0 %v10512
        %10546 = vmatprep.subr.bf16.mxu0 0
        %10547 = vmatpush1.bf16.msra.mxu0 0
        %10548 = vmatprep.subr.bf16.mxu0 0
        %10549 = vmatpush1.bf16.msra.mxu0 0
        %10550 = vmatprep.subr.bf16.mxu0 0
        %10551 = vmatpush1.bf16.msra.mxu0 0
        %10552 = vmatprep.subr.bf16.mxu0 0
        %10553 = vmatpush1.bf16.msra.mxu0 0
        %10554 = vmatprep.subr.bf16.mxu0 0
        %10555 = vmatpush1.bf16.msra.mxu0 0
        %10556 = vmatprep.subr.bf16.mxu0 0
        %10557 = vmatpush1.bf16.msra.mxu0 0
        %10558 = vmatprep.subr.bf16.mxu0 0
        %10559 = vmatpush1.bf16.msra.mxu0 0
        %10560 = vmatprep.subr.bf16.mxu0 0
        %10561 = vmatpush1.bf16.msra.mxu0 0
        %10562 = vmatprep.mubr.bf16.mxu0 0
        %10563 = vmatmul.mubr.bf16.gmra.mrb[0].mxu0 %v10448
        %v10564 = vpop.f32.mrb[0].mxu0
        %v10565 = vadd.f32 0.0, %v10564
        %v10566 = vpop.f32.mrb[0].mxu0
        %v10567 = vadd.f32 0.0, %v10566
        %v10568 = vpop.f32.mrb[0].mxu0
        %v10569 = vpop.f32.mrb[0].mxu0
        %10570 = vdwg.mxu0
        %v10573 = vcombine.low %v10565, %v10567
        %v10575 = vunpack.c.l.s4 1966171168
        %v10576 = vunpack.c.0.s8 %v10575
        %v10577 = vlaneseq
        %v10578 = vshrl.u32 %v10577, 7
        %v10579 = vsub.s32 %v10576, %v10578
        %v10580 = vrot.slane %v10573, %v10579
        %v10582 = vunpack.c.l.s4 1966171168
        %v10583 = vunpack.c.0.s8 %v10582
        %v10584 = vlaneseq
        %v10585 = vshrl.u32 %v10584, 7
        %v10586 = vsub.s32 %v10583, %v10585
        %v10587 = vrot.slane %v10580, %v10586
        %v10589 = vadd.f32 %v10431, %v10587
        %v10590 = vld [vmem:[#allocation2 + $0x500] sm:$0xff]
        %v10591 = vld [vmem:[#allocation2 + $0x508] sm:$0xff]
        %v10592 = vld [vmem:[#allocation2 + $0x510] sm:$0xff]
        %v10593 = vld [vmem:[#allocation2 + $0x518] sm:$0xff]
        %v10594 = vld [vmem:[#allocation2 + $0x520] sm:$0xff]
        %v10595 = vld [vmem:[#allocation2 + $0x528] sm:$0xff]
        %v10596 = vld [vmem:[#allocation2 + $0x530] sm:$0xff]
        %v10597 = vld [vmem:[#allocation2 + $0x538] sm:$0xff]
        %v10598 = vld [vmem:[#allocation2 + $0x540] sm:$0xff]
        %v10599 = vld [vmem:[#allocation2 + $0x548] sm:$0xff]
        %v10600 = vld [vmem:[#allocation2 + $0x550] sm:$0xff]
        %v10601 = vld [vmem:[#allocation2 + $0x558] sm:$0xff]
        %v10602 = vld [vmem:[#allocation2 + $0x560] sm:$0xff]
        %v10603 = vld [vmem:[#allocation2 + $0x568] sm:$0xff]
        %v10604 = vld [vmem:[#allocation2 + $0x570] sm:$0xff]
        %v10605 = vld [vmem:[#allocation2 + $0x578] sm:$0xff]
        %v10606 = vrot.slane %v9006, 5
        %v10624 = vunpack.c.l.b16 %v10590
        %v10625 = vunpack.c.h.b16 %v10590
        %v10626 = vunpack.c.l.b16 %v10591
        %v10627 = vunpack.c.h.b16 %v10591
        %v10628 = vunpack.c.l.b16 %v10592
        %v10629 = vunpack.c.h.b16 %v10592
        %v10630 = vunpack.c.l.b16 %v10593
        %v10631 = vunpack.c.h.b16 %v10593
        %v10632 = vunpack.c.l.b16 %v10594
        %v10633 = vunpack.c.h.b16 %v10594
        %v10634 = vunpack.c.l.b16 %v10595
        %v10635 = vunpack.c.h.b16 %v10595
        %v10636 = vunpack.c.l.b16 %v10596
        %v10637 = vunpack.c.h.b16 %v10596
        %v10638 = vunpack.c.l.b16 %v10597
        %v10639 = vunpack.c.h.b16 %v10597
        %v10640 = vunpack.c.l.b16 %v10598
        %v10641 = vunpack.c.h.b16 %v10598
        %v10642 = vunpack.c.l.b16 %v10599
        %v10643 = vunpack.c.h.b16 %v10599
        %v10644 = vunpack.c.l.b16 %v10600
        %v10645 = vunpack.c.h.b16 %v10600
        %v10646 = vunpack.c.l.b16 %v10601
        %v10647 = vunpack.c.h.b16 %v10601
        %v10648 = vunpack.c.l.b16 %v10602
        %v10649 = vunpack.c.h.b16 %v10602
        %v10650 = vunpack.c.l.b16 %v10603
        %v10651 = vunpack.c.h.b16 %v10603
        %v10652 = vunpack.c.l.b16 %v10604
        %v10653 = vunpack.c.h.b16 %v10604
        %v10654 = vunpack.c.l.b16 %v10605
        %v10655 = vunpack.c.h.b16 %v10605
        %v10656 = vpack.c.b16 %v10626, %v10624
        %v10657 = vpack.c.b16 %v10627, %v10625
        %v10658 = vpack.c.b16 %v10630, %v10628
        %v10659 = vpack.c.b16 %v10631, %v10629
        %v10660 = vpack.c.b16 %v10634, %v10632
        %v10661 = vpack.c.b16 %v10635, %v10633
        %v10662 = vpack.c.b16 %v10638, %v10636
        %v10663 = vpack.c.b16 %v10639, %v10637
        %v10664 = vpack.c.b16 %v10642, %v10640
        %v10665 = vpack.c.b16 %v10643, %v10641
        %v10666 = vpack.c.b16 %v10646, %v10644
        %v10667 = vpack.c.b16 %v10647, %v10645
        %v10668 = vpack.c.b16 %v10650, %v10648
        %v10669 = vpack.c.b16 %v10651, %v10649
        %v10670 = vpack.c.b16 %v10654, %v10652
        %v10671 = vpack.c.b16 %v10655, %v10653
        %10688 = vmatprep.subr.bf16.mxu0 %v10657
        %10689 = vmatpush1.bf16.msra.mxu0 %v10656
        %10690 = vmatprep.subr.bf16.mxu0 %v10659
        %10691 = vmatpush1.bf16.msra.mxu0 %v10658
        %10692 = vmatprep.subr.bf16.mxu0 %v10661
        %10693 = vmatpush1.bf16.msra.mxu0 %v10660
        %10694 = vmatprep.subr.bf16.mxu0 %v10663
        %10695 = vmatpush1.bf16.msra.mxu0 %v10662
        %10696 = vmatprep.subr.bf16.mxu0 %v10665
        %10697 = vmatpush1.bf16.msra.mxu0 %v10664
        %10698 = vmatprep.subr.bf16.mxu0 %v10667
        %10699 = vmatpush1.bf16.msra.mxu0 %v10666
        %10700 = vmatprep.subr.bf16.mxu0 %v10669
        %10701 = vmatpush1.bf16.msra.mxu0 %v10668
        %10702 = vmatprep.subr.bf16.mxu0 %v10671
        %10703 = vmatpush1.bf16.msra.mxu0 %v10670
        %10704 = vmatprep.subr.bf16.mxu0 0
        %10705 = vmatpush1.bf16.msra.mxu0 0
        %10706 = vmatprep.subr.bf16.mxu0 0
        %10707 = vmatpush1.bf16.msra.mxu0 0
        %10708 = vmatprep.subr.bf16.mxu0 0
        %10709 = vmatpush1.bf16.msra.mxu0 0
        %10710 = vmatprep.subr.bf16.mxu0 0
        %10711 = vmatpush1.bf16.msra.mxu0 0
        %10712 = vmatprep.subr.bf16.mxu0 0
        %10713 = vmatpush1.bf16.msra.mxu0 0
        %10714 = vmatprep.subr.bf16.mxu0 0
        %10715 = vmatpush1.bf16.msra.mxu0 0
        %10716 = vmatprep.subr.bf16.mxu0 0
        %10717 = vmatpush1.bf16.msra.mxu0 0
        %10718 = vmatprep.subr.bf16.mxu0 0
        %10719 = vmatpush1.bf16.msra.mxu0 0
        %10720 = vmatprep.mubr.bf16.mxu0 0
        %10721 = vmatmul.mubr.bf16.gmra.mrb[0].mxu0 %v10606
        %v10722 = vpop.f32.mrb[0].mxu0
        %v10723 = vadd.f32 0.0, %v10722
        %v10724 = vpop.f32.mrb[0].mxu0
        %v10725 = vadd.f32 0.0, %v10724
        %v10726 = vpop.f32.mrb[0].mxu0
        %v10727 = vpop.f32.mrb[0].mxu0
        %10728 = vdwg.mxu0
        %v10731 = vcombine.low %v10723, %v10725
        %v10733 = vunpack.c.l.s4 1966171168
        %v10734 = vunpack.c.0.s8 %v10733
        %v10735 = vlaneseq
        %v10736 = vshrl.u32 %v10735, 7
        %v10737 = vsub.s32 %v10734, %v10736
        %v10738 = vrot.slane %v10731, %v10737
        %v10740 = vunpack.c.l.s4 1966171168
        %v10741 = vunpack.c.0.s8 %v10740
        %v10742 = vlaneseq
        %v10743 = vshrl.u32 %v10742, 7
        %v10744 = vsub.s32 %v10741, %v10743
        %v10745 = vrot.slane %v10738, %v10744
        %v10747 = vadd.f32 %v10589, %v10745
        %v10748 = vld [vmem:[#allocation2 + $0x580] sm:$0xff]
        %v10749 = vld [vmem:[#allocation2 + $0x588] sm:$0xff]
        %v10750 = vld [vmem:[#allocation2 + $0x590] sm:$0xff]
        %v10751 = vld [vmem:[#allocation2 + $0x598] sm:$0xff]
        %v10752 = vld [vmem:[#allocation2 + $0x5a0] sm:$0xff]
        %v10753 = vld [vmem:[#allocation2 + $0x5a8] sm:$0xff]
        %v10754 = vld [vmem:[#allocation2 + $0x5b0] sm:$0xff]
        %v10755 = vld [vmem:[#allocation2 + $0x5b8] sm:$0xff]
        %v10756 = vld [vmem:[#allocation2 + $0x5c0] sm:$0xff]
        %v10757 = vld [vmem:[#allocation2 + $0x5c8] sm:$0xff]
        %v10758 = vld [vmem:[#allocation2 + $0x5d0] sm:$0xff]
        %v10759 = vld [vmem:[#allocation2 + $0x5d8] sm:$0xff]
        %v10760 = vld [vmem:[#allocation2 + $0x5e0] sm:$0xff]
        %v10761 = vld [vmem:[#allocation2 + $0x5e8] sm:$0xff]
        %v10762 = vld [vmem:[#allocation2 + $0x5f0] sm:$0xff]
        %v10763 = vld [vmem:[#allocation2 + $0x5f8] sm:$0xff]
        %v10764 = vrot.slane %v9182, 5
        %v10782 = vunpack.c.l.b16 %v10748
        %v10783 = vunpack.c.h.b16 %v10748
        %v10784 = vunpack.c.l.b16 %v10749
        %v10785 = vunpack.c.h.b16 %v10749
        %v10786 = vunpack.c.l.b16 %v10750
        %v10787 = vunpack.c.h.b16 %v10750
        %v10788 = vunpack.c.l.b16 %v10751
        %v10789 = vunpack.c.h.b16 %v10751
        %v10790 = vunpack.c.l.b16 %v10752
        %v10791 = vunpack.c.h.b16 %v10752
        %v10792 = vunpack.c.l.b16 %v10753
        %v10793 = vunpack.c.h.b16 %v10753
        %v10794 = vunpack.c.l.b16 %v10754
        %v10795 = vunpack.c.h.b16 %v10754
        %v10796 = vunpack.c.l.b16 %v10755
        %v10797 = vunpack.c.h.b16 %v10755
        %v10798 = vunpack.c.l.b16 %v10756
        %v10799 = vunpack.c.h.b16 %v10756
        %v10800 = vunpack.c.l.b16 %v10757
        %v10801 = vunpack.c.h.b16 %v10757
        %v10802 = vunpack.c.l.b16 %v10758
        %v10803 = vunpack.c.h.b16 %v10758
        %v10804 = vunpack.c.l.b16 %v10759
        %v10805 = vunpack.c.h.b16 %v10759
        %v10806 = vunpack.c.l.b16 %v10760
        %v10807 = vunpack.c.h.b16 %v10760
        %v10808 = vunpack.c.l.b16 %v10761
        %v10809 = vunpack.c.h.b16 %v10761
        %v10810 = vunpack.c.l.b16 %v10762
        %v10811 = vunpack.c.h.b16 %v10762
        %v10812 = vunpack.c.l.b16 %v10763
        %v10813 = vunpack.c.h.b16 %v10763
        %v10814 = vpack.c.b16 %v10784, %v10782
        %v10815 = vpack.c.b16 %v10785, %v10783
        %v10816 = vpack.c.b16 %v10788, %v10786
        %v10817 = vpack.c.b16 %v10789, %v10787
        %v10818 = vpack.c.b16 %v10792, %v10790
        %v10819 = vpack.c.b16 %v10793, %v10791
        %v10820 = vpack.c.b16 %v10796, %v10794
        %v10821 = vpack.c.b16 %v10797, %v10795
        %v10822 = vpack.c.b16 %v10800, %v10798
        %v10823 = vpack.c.b16 %v10801, %v10799
        %v10824 = vpack.c.b16 %v10804, %v10802
        %v10825 = vpack.c.b16 %v10805, %v10803
        %v10826 = vpack.c.b16 %v10808, %v10806
        %v10827 = vpack.c.b16 %v10809, %v10807
        %v10828 = vpack.c.b16 %v10812, %v10810
        %v10829 = vpack.c.b16 %v10813, %v10811
        %10846 = vmatprep.subr.bf16.mxu0 %v10815
        %10847 = vmatpush1.bf16.msra.mxu0 %v10814
        %10848 = vmatprep.subr.bf16.mxu0 %v10817
        %10849 = vmatpush1.bf16.msra.mxu0 %v10816
        %10850 = vmatprep.subr.bf16.mxu0 %v10819
        %10851 = vmatpush1.bf16.msra.mxu0 %v10818
        %10852 = vmatprep.subr.bf16.mxu0 %v10821
        %10853 = vmatpush1.bf16.msra.mxu0 %v10820
        %10854 = vmatprep.subr.bf16.mxu0 %v10823
        %10855 = vmatpush1.bf16.msra.mxu0 %v10822
        %10856 = vmatprep.subr.bf16.mxu0 %v10825
        %10857 = vmatpush1.bf16.msra.mxu0 %v10824
        %10858 = vmatprep.subr.bf16.mxu0 %v10827
        %10859 = vmatpush1.bf16.msra.mxu0 %v10826
        %10860 = vmatprep.subr.bf16.mxu0 %v10829
        %10861 = vmatpush1.bf16.msra.mxu0 %v10828
        %10862 = vmatprep.subr.bf16.mxu0 0
        %10863 = vmatpush1.bf16.msra.mxu0 0
        %10864 = vmatprep.subr.bf16.mxu0 0
        %10865 = vmatpush1.bf16.msra.mxu0 0
        %10866 = vmatprep.subr.bf16.mxu0 0
        %10867 = vmatpush1.bf16.msra.mxu0 0
        %10868 = vmatprep.subr.bf16.mxu0 0
        %10869 = vmatpush1.bf16.msra.mxu0 0
        %10870 = vmatprep.subr.bf16.mxu0 0
        %10871 = vmatpush1.bf16.msra.mxu0 0
        %10872 = vmatprep.subr.bf16.mxu0 0
        %10873 = vmatpush1.bf16.msra.mxu0 0
        %10874 = vmatprep.subr.bf16.mxu0 0
        %10875 = vmatpush1.bf16.msra.mxu0 0
        %10876 = vmatprep.subr.bf16.mxu0 0
        %10877 = vmatpush1.bf16.msra.mxu0 0
        %10878 = vmatprep.mubr.bf16.mxu0 0
        %10879 = vmatmul.mubr.bf16.gmra.mrb[0].mxu0 %v10764
        %v10880 = vpop.f32.mrb[0].mxu0
        %v10881 = vadd.f32 0.0, %v10880
        %v10882 = vpop.f32.mrb[0].mxu0
        %v10883 = vadd.f32 0.0, %v10882
        %v10884 = vpop.f32.mrb[0].mxu0
        %v10885 = vpop.f32.mrb[0].mxu0
        %10886 = vdwg.mxu0
        %v10889 = vcombine.low %v10881, %v10883
        %v10891 = vunpack.c.l.s4 1966171168
        %v10892 = vunpack.c.0.s8 %v10891
        %v10893 = vlaneseq
        %v10894 = vshrl.u32 %v10893, 7
        %v10895 = vsub.s32 %v10892, %v10894
        %v10896 = vrot.slane %v10889, %v10895
        %v10898 = vunpack.c.l.s4 1966171168
        %v10899 = vunpack.c.0.s8 %v10898
        %v10900 = vlaneseq
        %v10901 = vshrl.u32 %v10900, 7
        %v10902 = vsub.s32 %v10899, %v10901
        %v10903 = vrot.slane %v10896, %v10902
        %v10905 = vadd.f32 %v10747, %v10903
        %v10906 = vld [vmem:[#allocation2 + $0x600] sm:$0xff]
        %v10907 = vld [vmem:[#allocation2 + $0x608] sm:$0xff]
        %v10908 = vld [vmem:[#allocation2 + $0x610] sm:$0xff]
        %v10909 = vld [vmem:[#allocation2 + $0x618] sm:$0xff]
        %v10910 = vld [vmem:[#allocation2 + $0x620] sm:$0xff]
        %v10911 = vld [vmem:[#allocation2 + $0x628] sm:$0xff]
        %v10912 = vld [vmem:[#allocation2 + $0x630] sm:$0xff]
        %v10913 = vld [vmem:[#allocation2 + $0x638] sm:$0xff]
        %v10914 = vld [vmem:[#allocation2 + $0x640] sm:$0xff]
        %v10915 = vld [vmem:[#allocation2 + $0x648] sm:$0xff]
        %v10916 = vld [vmem:[#allocation2 + $0x650] sm:$0xff]
        %v10917 = vld [vmem:[#allocation2 + $0x658] sm:$0xff]
        %v10918 = vld [vmem:[#allocation2 + $0x660] sm:$0xff]
        %v10919 = vld [vmem:[#allocation2 + $0x668] sm:$0xff]
        %v10920 = vld [vmem:[#allocation2 + $0x670] sm:$0xff]
        %v10921 = vld [vmem:[#allocation2 + $0x678] sm:$0xff]
        %v10922 = vrot.slane %v9006, 6
        %v10940 = vunpack.c.l.b16 %v10906
        %v10941 = vunpack.c.h.b16 %v10906
        %v10942 = vunpack.c.l.b16 %v10907
        %v10943 = vunpack.c.h.b16 %v10907
        %v10944 = vunpack.c.l.b16 %v10908
        %v10945 = vunpack.c.h.b16 %v10908
        %v10946 = vunpack.c.l.b16 %v10909
        %v10947 = vunpack.c.h.b16 %v10909
        %v10948 = vunpack.c.l.b16 %v10910
        %v10949 = vunpack.c.h.b16 %v10910
        %v10950 = vunpack.c.l.b16 %v10911
        %v10951 = vunpack.c.h.b16 %v10911
        %v10952 = vunpack.c.l.b16 %v10912
        %v10953 = vunpack.c.h.b16 %v10912
        %v10954 = vunpack.c.l.b16 %v10913
        %v10955 = vunpack.c.h.b16 %v10913
        %v10956 = vunpack.c.l.b16 %v10914
        %v10957 = vunpack.c.h.b16 %v10914
        %v10958 = vunpack.c.l.b16 %v10915
        %v10959 = vunpack.c.h.b16 %v10915
        %v10960 = vunpack.c.l.b16 %v10916
        %v10961 = vunpack.c.h.b16 %v10916
        %v10962 = vunpack.c.l.b16 %v10917
        %v10963 = vunpack.c.h.b16 %v10917
        %v10964 = vunpack.c.l.b16 %v10918
        %v10965 = vunpack.c.h.b16 %v10918
        %v10966 = vunpack.c.l.b16 %v10919
        %v10967 = vunpack.c.h.b16 %v10919
        %v10968 = vunpack.c.l.b16 %v10920
        %v10969 = vunpack.c.h.b16 %v10920
        %v10970 = vunpack.c.l.b16 %v10921
        %v10971 = vunpack.c.h.b16 %v10921
        %v10972 = vpack.c.b16 %v10942, %v10940
        %v10973 = vpack.c.b16 %v10943, %v10941
        %v10974 = vpack.c.b16 %v10946, %v10944
        %v10975 = vpack.c.b16 %v10947, %v10945
        %v10976 = vpack.c.b16 %v10950, %v10948
        %v10977 = vpack.c.b16 %v10951, %v10949
        %v10978 = vpack.c.b16 %v10954, %v10952
        %v10979 = vpack.c.b16 %v10955, %v10953
        %v10980 = vpack.c.b16 %v10958, %v10956
        %v10981 = vpack.c.b16 %v10959, %v10957
        %v10982 = vpack.c.b16 %v10962, %v10960
        %v10983 = vpack.c.b16 %v10963, %v10961
        %v10984 = vpack.c.b16 %v10966, %v10964
        %v10985 = vpack.c.b16 %v10967, %v10965
        %v10986 = vpack.c.b16 %v10970, %v10968
        %v10987 = vpack.c.b16 %v10971, %v10969
        %11004 = vmatprep.subr.bf16.mxu0 %v10973
        %11005 = vmatpush1.bf16.msra.mxu0 %v10972
        %11006 = vmatprep.subr.bf16.mxu0 %v10975
        %11007 = vmatpush1.bf16.msra.mxu0 %v10974
        %11008 = vmatprep.subr.bf16.mxu0 %v10977
        %11009 = vmatpush1.bf16.msra.mxu0 %v10976
        %11010 = vmatprep.subr.bf16.mxu0 %v10979
        %11011 = vmatpush1.bf16.msra.mxu0 %v10978
        %11012 = vmatprep.subr.bf16.mxu0 %v10981
        %11013 = vmatpush1.bf16.msra.mxu0 %v10980
        %11014 = vmatprep.subr.bf16.mxu0 %v10983
        %11015 = vmatpush1.bf16.msra.mxu0 %v10982
        %11016 = vmatprep.subr.bf16.mxu0 %v10985
        %11017 = vmatpush1.bf16.msra.mxu0 %v10984
        %11018 = vmatprep.subr.bf16.mxu0 %v10987
        %11019 = vmatpush1.bf16.msra.mxu0 %v10986
        %11020 = vmatprep.subr.bf16.mxu0 0
        %11021 = vmatpush1.bf16.msra.mxu0 0
        %11022 = vmatprep.subr.bf16.mxu0 0
        %11023 = vmatpush1.bf16.msra.mxu0 0
        %11024 = vmatprep.subr.bf16.mxu0 0
        %11025 = vmatpush1.bf16.msra.mxu0 0
        %11026 = vmatprep.subr.bf16.mxu0 0
        %11027 = vmatpush1.bf16.msra.mxu0 0
        %11028 = vmatprep.subr.bf16.mxu0 0
        %11029 = vmatpush1.bf16.msra.mxu0 0
        %11030 = vmatprep.subr.bf16.mxu0 0
        %11031 = vmatpush1.bf16.msra.mxu0 0
        %11032 = vmatprep.subr.bf16.mxu0 0
        %11033 = vmatpush1.bf16.msra.mxu0 0
        %11034 = vmatprep.subr.bf16.mxu0 0
        %11035 = vmatpush1.bf16.msra.mxu0 0
        %11036 = vmatprep.mubr.bf16.mxu0 0
        %11037 = vmatmul.mubr.bf16.gmra.mrb[0].mxu0 %v10922
        %v11038 = vpop.f32.mrb[0].mxu0
        %v11039 = vadd.f32 0.0, %v11038
        %v11040 = vpop.f32.mrb[0].mxu0
        %v11041 = vadd.f32 0.0, %v11040
        %v11042 = vpop.f32.mrb[0].mxu0
        %v11043 = vpop.f32.mrb[0].mxu0
        %11044 = vdwg.mxu0
        %v11047 = vcombine.low %v11039, %v11041
        %v11049 = vunpack.c.l.s4 1966171168
        %v11050 = vunpack.c.0.s8 %v11049
        %v11051 = vlaneseq
        %v11052 = vshrl.u32 %v11051, 7
        %v11053 = vsub.s32 %v11050, %v11052
        %v11054 = vrot.slane %v11047, %v11053
        %v11056 = vunpack.c.l.s4 1966171168
        %v11057 = vunpack.c.0.s8 %v11056
        %v11058 = vlaneseq
        %v11059 = vshrl.u32 %v11058, 7
        %v11060 = vsub.s32 %v11057, %v11059
        %v11061 = vrot.slane %v11054, %v11060
        %v11063 = vadd.f32 %v10905, %v11061
        %v11064 = vld [vmem:[#allocation2 + $0x680] sm:$0xff]
        %v11065 = vld [vmem:[#allocation2 + $0x688] sm:$0xff]
        %v11066 = vld [vmem:[#allocation2 + $0x690] sm:$0xff]
        %v11067 = vld [vmem:[#allocation2 + $0x698] sm:$0xff]
        %v11068 = vld [vmem:[#allocation2 + $0x6a0] sm:$0xff]
        %v11069 = vld [vmem:[#allocation2 + $0x6a8] sm:$0xff]
        %v11070 = vld [vmem:[#allocation2 + $0x6b0] sm:$0xff]
        %v11071 = vld [vmem:[#allocation2 + $0x6b8] sm:$0xff]
        %v11072 = vld [vmem:[#allocation2 + $0x6c0] sm:$0xff]
        %v11073 = vld [vmem:[#allocation2 + $0x6c8] sm:$0xff]
        %v11074 = vld [vmem:[#allocation2 + $0x6d0] sm:$0xff]
        %v11075 = vld [vmem:[#allocation2 + $0x6d8] sm:$0xff]
        %v11076 = vld [vmem:[#allocation2 + $0x6e0] sm:$0xff]
        %v11077 = vld [vmem:[#allocation2 + $0x6e8] sm:$0xff]
        %v11078 = vld [vmem:[#allocation2 + $0x6f0] sm:$0xff]
        %v11079 = vld [vmem:[#allocation2 + $0x6f8] sm:$0xff]
        %v11080 = vrot.slane %v9182, 6
        %v11098 = vunpack.c.l.b16 %v11064
        %v11099 = vunpack.c.h.b16 %v11064
        %v11100 = vunpack.c.l.b16 %v11065
        %v11101 = vunpack.c.h.b16 %v11065
        %v11102 = vunpack.c.l.b16 %v11066
        %v11103 = vunpack.c.h.b16 %v11066
        %v11104 = vunpack.c.l.b16 %v11067
        %v11105 = vunpack.c.h.b16 %v11067
        %v11106 = vunpack.c.l.b16 %v11068
        %v11107 = vunpack.c.h.b16 %v11068
        %v11108 = vunpack.c.l.b16 %v11069
        %v11109 = vunpack.c.h.b16 %v11069
        %v11110 = vunpack.c.l.b16 %v11070
        %v11111 = vunpack.c.h.b16 %v11070
        %v11112 = vunpack.c.l.b16 %v11071
        %v11113 = vunpack.c.h.b16 %v11071
        %v11114 = vunpack.c.l.b16 %v11072
        %v11115 = vunpack.c.h.b16 %v11072
        %v11116 = vunpack.c.l.b16 %v11073
        %v11117 = vunpack.c.h.b16 %v11073
        %v11118 = vunpack.c.l.b16 %v11074
        %v11119 = vunpack.c.h.b16 %v11074
        %v11120 = vunpack.c.l.b16 %v11075
        %v11121 = vunpack.c.h.b16 %v11075
        %v11122 = vunpack.c.l.b16 %v11076
        %v11123 = vunpack.c.h.b16 %v11076
        %v11124 = vunpack.c.l.b16 %v11077
        %v11125 = vunpack.c.h.b16 %v11077
        %v11126 = vunpack.c.l.b16 %v11078
        %v11127 = vunpack.c.h.b16 %v11078
        %v11128 = vunpack.c.l.b16 %v11079
        %v11129 = vunpack.c.h.b16 %v11079
        %v11130 = vpack.c.b16 %v11100, %v11098
        %v11131 = vpack.c.b16 %v11101, %v11099
        %v11132 = vpack.c.b16 %v11104, %v11102
        %v11133 = vpack.c.b16 %v11105, %v11103
        %v11134 = vpack.c.b16 %v11108, %v11106
        %v11135 = vpack.c.b16 %v11109, %v11107
        %v11136 = vpack.c.b16 %v11112, %v11110
        %v11137 = vpack.c.b16 %v11113, %v11111
        %v11138 = vpack.c.b16 %v11116, %v11114
        %v11139 = vpack.c.b16 %v11117, %v11115
        %v11140 = vpack.c.b16 %v11120, %v11118
        %v11141 = vpack.c.b16 %v11121, %v11119
        %v11142 = vpack.c.b16 %v11124, %v11122
        %v11143 = vpack.c.b16 %v11125, %v11123
        %v11144 = vpack.c.b16 %v11128, %v11126
        %v11145 = vpack.c.b16 %v11129, %v11127
        %11162 = vmatprep.subr.bf16.mxu0 %v11131
        %11163 = vmatpush1.bf16.msra.mxu0 %v11130
        %11164 = vmatprep.subr.bf16.mxu0 %v11133
        %11165 = vmatpush1.bf16.msra.mxu0 %v11132
        %11166 = vmatprep.subr.bf16.mxu0 %v11135
        %11167 = vmatpush1.bf16.msra.mxu0 %v11134
        %11168 = vmatprep.subr.bf16.mxu0 %v11137
        %11169 = vmatpush1.bf16.msra.mxu0 %v11136
        %11170 = vmatprep.subr.bf16.mxu0 %v11139
        %11171 = vmatpush1.bf16.msra.mxu0 %v11138
        %11172 = vmatprep.subr.bf16.mxu0 %v11141
        %11173 = vmatpush1.bf16.msra.mxu0 %v11140
        %11174 = vmatprep.subr.bf16.mxu0 %v11143
        %11175 = vmatpush1.bf16.msra.mxu0 %v11142
        %11176 = vmatprep.subr.bf16.mxu0 %v11145
        %11177 = vmatpush1.bf16.msra.mxu0 %v11144
        %11178 = vmatprep.subr.bf16.mxu0 0
        %11179 = vmatpush1.bf16.msra.mxu0 0
        %11180 = vmatprep.subr.bf16.mxu0 0
        %11181 = vmatpush1.bf16.msra.mxu0 0
        %11182 = vmatprep.subr.bf16.mxu0 0
        %11183 = vmatpush1.bf16.msra.mxu0 0
        %11184 = vmatprep.subr.bf16.mxu0 0
        %11185 = vmatpush1.bf16.msra.mxu0 0
        %11186 = vmatprep.subr.bf16.mxu0 0
        %11187 = vmatpush1.bf16.msra.mxu0 0
        %11188 = vmatprep.subr.bf16.mxu0 0
        %11189 = vmatpush1.bf16.msra.mxu0 0
        %11190 = vmatprep.subr.bf16.mxu0 0
        %11191 = vmatpush1.bf16.msra.mxu0 0
        %11192 = vmatprep.subr.bf16.mxu0 0
        %11193 = vmatpush1.bf16.msra.mxu0 0
        %11194 = vmatprep.mubr.bf16.mxu0 0
        %11195 = vmatmul.mubr.bf16.gmra.mrb[0].mxu0 %v11080
        %v11196 = vpop.f32.mrb[0].mxu0
        %v11197 = vadd.f32 0.0, %v11196
        %v11198 = vpop.f32.mrb[0].mxu0
        %v11199 = vadd.f32 0.0, %v11198
        %v11200 = vpop.f32.mrb[0].mxu0
        %v11201 = vpop.f32.mrb[0].mxu0
        %11202 = vdwg.mxu0
        %v11205 = vcombine.low %v11197, %v11199
        %v11207 = vunpack.c.l.s4 1966171168
        %v11208 = vunpack.c.0.s8 %v11207
        %v11209 = vlaneseq
        %v11210 = vshrl.u32 %v11209, 7
        %v11211 = vsub.s32 %v11208, %v11210
        %v11212 = vrot.slane %v11205, %v11211
        %v11214 = vunpack.c.l.s4 1966171168
        %v11215 = vunpack.c.0.s8 %v11214
        %v11216 = vlaneseq
        %v11217 = vshrl.u32 %v11216, 7
        %v11218 = vsub.s32 %v11215, %v11217
        %v11219 = vrot.slane %v11212, %v11218
        %v11221 = vadd.f32 %v11063, %v11219
        %v11222 = vld [vmem:[#allocation2 + $0x700] sm:$0xff]
        %v11223 = vld [vmem:[#allocation2 + $0x708] sm:$0xff]
        %v11224 = vld [vmem:[#allocation2 + $0x710] sm:$0xff]
        %v11225 = vld [vmem:[#allocation2 + $0x718] sm:$0xff]
        %v11226 = vld [vmem:[#allocation2 + $0x720] sm:$0xff]
        %v11227 = vld [vmem:[#allocation2 + $0x728] sm:$0xff]
        %v11228 = vld [vmem:[#allocation2 + $0x730] sm:$0xff]
        %v11229 = vld [vmem:[#allocation2 + $0x738] sm:$0xff]
        %v11230 = vld [vmem:[#allocation2 + $0x740] sm:$0xff]
        %v11231 = vld [vmem:[#allocation2 + $0x748] sm:$0xff]
        %v11232 = vld [vmem:[#allocation2 + $0x750] sm:$0xff]
        %v11233 = vld [vmem:[#allocation2 + $0x758] sm:$0xff]
        %v11234 = vld [vmem:[#allocation2 + $0x760] sm:$0xff]
        %v11235 = vld [vmem:[#allocation2 + $0x768] sm:$0xff]
        %v11236 = vld [vmem:[#allocation2 + $0x770] sm:$0xff]
        %v11237 = vld [vmem:[#allocation2 + $0x778] sm:$0xff]
        %v11238 = vrot.slane %v9006, 7
        %v11256 = vunpack.c.l.b16 %v11222
        %v11257 = vunpack.c.h.b16 %v11222
        %v11258 = vunpack.c.l.b16 %v11223
        %v11259 = vunpack.c.h.b16 %v11223
        %v11260 = vunpack.c.l.b16 %v11224
        %v11261 = vunpack.c.h.b16 %v11224
        %v11262 = vunpack.c.l.b16 %v11225
        %v11263 = vunpack.c.h.b16 %v11225
        %v11264 = vunpack.c.l.b16 %v11226
        %v11265 = vunpack.c.h.b16 %v11226
        %v11266 = vunpack.c.l.b16 %v11227
        %v11267 = vunpack.c.h.b16 %v11227
        %v11268 = vunpack.c.l.b16 %v11228
        %v11269 = vunpack.c.h.b16 %v11228
        %v11270 = vunpack.c.l.b16 %v11229
        %v11271 = vunpack.c.h.b16 %v11229
        %v11272 = vunpack.c.l.b16 %v11230
        %v11273 = vunpack.c.h.b16 %v11230
        %v11274 = vunpack.c.l.b16 %v11231
        %v11275 = vunpack.c.h.b16 %v11231
        %v11276 = vunpack.c.l.b16 %v11232
        %v11277 = vunpack.c.h.b16 %v11232
        %v11278 = vunpack.c.l.b16 %v11233
        %v11279 = vunpack.c.h.b16 %v11233
        %v11280 = vunpack.c.l.b16 %v11234
        %v11281 = vunpack.c.h.b16 %v11234
        %v11282 = vunpack.c.l.b16 %v11235
        %v11283 = vunpack.c.h.b16 %v11235
        %v11284 = vunpack.c.l.b16 %v11236
        %v11285 = vunpack.c.h.b16 %v11236
        %v11286 = vunpack.c.l.b16 %v11237
        %v11287 = vunpack.c.h.b16 %v11237
        %v11288 = vpack.c.b16 %v11258, %v11256
        %v11289 = vpack.c.b16 %v11259, %v11257
        %v11290 = vpack.c.b16 %v11262, %v11260
        %v11291 = vpack.c.b16 %v11263, %v11261
        %v11292 = vpack.c.b16 %v11266, %v11264
        %v11293 = vpack.c.b16 %v11267, %v11265
        %v11294 = vpack.c.b16 %v11270, %v11268
        %v11295 = vpack.c.b16 %v11271, %v11269
        %v11296 = vpack.c.b16 %v11274, %v11272
        %v11297 = vpack.c.b16 %v11275, %v11273
        %v11298 = vpack.c.b16 %v11278, %v11276
        %v11299 = vpack.c.b16 %v11279, %v11277
        %v11300 = vpack.c.b16 %v11282, %v11280
        %v11301 = vpack.c.b16 %v11283, %v11281
        %v11302 = vpack.c.b16 %v11286, %v11284
        %v11303 = vpack.c.b16 %v11287, %v11285
        %11320 = vmatprep.subr.bf16.mxu0 %v11289
        %11321 = vmatpush1.bf16.msra.mxu0 %v11288
        %11322 = vmatprep.subr.bf16.mxu0 %v11291
        %11323 = vmatpush1.bf16.msra.mxu0 %v11290
        %11324 = vmatprep.subr.bf16.mxu0 %v11293
        %11325 = vmatpush1.bf16.msra.mxu0 %v11292
        %11326 = vmatprep.subr.bf16.mxu0 %v11295
        %11327 = vmatpush1.bf16.msra.mxu0 %v11294
        %11328 = vmatprep.subr.bf16.mxu0 %v11297
        %11329 = vmatpush1.bf16.msra.mxu0 %v11296
        %11330 = vmatprep.subr.bf16.mxu0 %v11299
        %11331 = vmatpush1.bf16.msra.mxu0 %v11298
        %11332 = vmatprep.subr.bf16.mxu0 %v11301
        %11333 = vmatpush1.bf16.msra.mxu0 %v11300
        %11334 = vmatprep.subr.bf16.mxu0 %v11303
        %11335 = vmatpush1.bf16.msra.mxu0 %v11302
        %11336 = vmatprep.subr.bf16.mxu0 0
        %11337 = vmatpush1.bf16.msra.mxu0 0
        %11338 = vmatprep.subr.bf16.mxu0 0
        %11339 = vmatpush1.bf16.msra.mxu0 0
        %11340 = vmatprep.subr.bf16.mxu0 0
        %11341 = vmatpush1.bf16.msra.mxu0 0
        %11342 = vmatprep.subr.bf16.mxu0 0
        %11343 = vmatpush1.bf16.msra.mxu0 0
        %11344 = vmatprep.subr.bf16.mxu0 0
        %11345 = vmatpush1.bf16.msra.mxu0 0
        %11346 = vmatprep.subr.bf16.mxu0 0
        %11347 = vmatpush1.bf16.msra.mxu0 0
        %11348 = vmatprep.subr.bf16.mxu0 0
        %11349 = vmatpush1.bf16.msra.mxu0 0
        %11350 = vmatprep.subr.bf16.mxu0 0
        %11351 = vmatpush1.bf16.msra.mxu0 0
        %11352 = vmatprep.mubr.bf16.mxu0 0
        %11353 = vmatmul.mubr.bf16.gmra.mrb[0].mxu0 %v11238
        %v11354 = vpop.f32.mrb[0].mxu0
        %v11355 = vadd.f32 0.0, %v11354
        %v11356 = vpop.f32.mrb[0].mxu0
        %v11357 = vadd.f32 0.0, %v11356
        %v11358 = vpop.f32.mrb[0].mxu0
        %v11359 = vpop.f32.mrb[0].mxu0
        %11360 = vdwg.mxu0
        %v11363 = vcombine.low %v11355, %v11357
        %v11365 = vunpack.c.l.s4 1966171168
        %v11366 = vunpack.c.0.s8 %v11365
        %v11367 = vlaneseq
        %v11368 = vshrl.u32 %v11367, 7
        %v11369 = vsub.s32 %v11366, %v11368
        %v11370 = vrot.slane %v11363, %v11369
        %v11372 = vunpack.c.l.s4 1966171168
        %v11373 = vunpack.c.0.s8 %v11372
        %v11374 = vlaneseq
        %v11375 = vshrl.u32 %v11374, 7
        %v11376 = vsub.s32 %v11373, %v11375
        %v11377 = vrot.slane %v11370, %v11376
        %v11379 = vadd.f32 %v11221, %v11377
        %v11380 = vld [vmem:[#allocation2 + $0x780] sm:$0xff]
        %v11381 = vld [vmem:[#allocation2 + $0x788] sm:$0xff]
        %v11382 = vld [vmem:[#allocation2 + $0x790] sm:$0xff]
        %v11383 = vld [vmem:[#allocation2 + $0x798] sm:$0xff]
        %v11384 = vld [vmem:[#allocation2 + $0x7a0] sm:$0xff]
        %v11385 = vld [vmem:[#allocation2 + $0x7a8] sm:$0xff]
        %v11386 = vld [vmem:[#allocation2 + $0x7b0] sm:$0xff]
        %v11387 = vld [vmem:[#allocation2 + $0x7b8] sm:$0xff]
        %v11388 = vld [vmem:[#allocation2 + $0x7c0] sm:$0xff]
        %v11389 = vld [vmem:[#allocation2 + $0x7c8] sm:$0xff]
        %v11390 = vld [vmem:[#allocation2 + $0x7d0] sm:$0xff]
        %v11391 = vld [vmem:[#allocation2 + $0x7d8] sm:$0xff]
        %v11392 = vld [vmem:[#allocation2 + $0x7e0] sm:$0xff]
        %v11393 = vld [vmem:[#allocation2 + $0x7e8] sm:$0xff]
        %v11394 = vld [vmem:[#allocation2 + $0x7f0] sm:$0xff]
        %v11395 = vld [vmem:[#allocation2 + $0x7f8] sm:$0xff]
        %v11396 = vrot.slane %v9182, 7
        %v11414 = vunpack.c.l.b16 %v11380
        %v11415 = vunpack.c.h.b16 %v11380
        %v11416 = vunpack.c.l.b16 %v11381
        %v11417 = vunpack.c.h.b16 %v11381
        %v11418 = vunpack.c.l.b16 %v11382
        %v11419 = vunpack.c.h.b16 %v11382
        %v11420 = vunpack.c.l.b16 %v11383
        %v11421 = vunpack.c.h.b16 %v11383
        %v11422 = vunpack.c.l.b16 %v11384
        %v11423 = vunpack.c.h.b16 %v11384
        %v11424 = vunpack.c.l.b16 %v11385
        %v11425 = vunpack.c.h.b16 %v11385
        %v11426 = vunpack.c.l.b16 %v11386
        %v11427 = vunpack.c.h.b16 %v11386
        %v11428 = vunpack.c.l.b16 %v11387
        %v11429 = vunpack.c.h.b16 %v11387
        %v11430 = vunpack.c.l.b16 %v11388
        %v11431 = vunpack.c.h.b16 %v11388
        %v11432 = vunpack.c.l.b16 %v11389
        %v11433 = vunpack.c.h.b16 %v11389
        %v11434 = vunpack.c.l.b16 %v11390
        %v11435 = vunpack.c.h.b16 %v11390
        %v11436 = vunpack.c.l.b16 %v11391
        %v11437 = vunpack.c.h.b16 %v11391
        %v11438 = vunpack.c.l.b16 %v11392
        %v11439 = vunpack.c.h.b16 %v11392
        %v11440 = vunpack.c.l.b16 %v11393
        %v11441 = vunpack.c.h.b16 %v11393
        %v11442 = vunpack.c.l.b16 %v11394
        %v11443 = vunpack.c.h.b16 %v11394
        %v11444 = vunpack.c.l.b16 %v11395
        %v11445 = vunpack.c.h.b16 %v11395
        %v11446 = vpack.c.b16 %v11416, %v11414
        %v11447 = vpack.c.b16 %v11417, %v11415
        %v11448 = vpack.c.b16 %v11420, %v11418
        %v11449 = vpack.c.b16 %v11421, %v11419
        %v11450 = vpack.c.b16 %v11424, %v11422
        %v11451 = vpack.c.b16 %v11425, %v11423
        %v11452 = vpack.c.b16 %v11428, %v11426
        %v11453 = vpack.c.b16 %v11429, %v11427
        %v11454 = vpack.c.b16 %v11432, %v11430
        %v11455 = vpack.c.b16 %v11433, %v11431
        %v11456 = vpack.c.b16 %v11436, %v11434
        %v11457 = vpack.c.b16 %v11437, %v11435
        %v11458 = vpack.c.b16 %v11440, %v11438
        %v11459 = vpack.c.b16 %v11441, %v11439
        %v11460 = vpack.c.b16 %v11444, %v11442
        %v11461 = vpack.c.b16 %v11445, %v11443
        %11478 = vmatprep.subr.bf16.mxu0 %v11447
        %11479 = vmatpush1.bf16.msra.mxu0 %v11446
        %11480 = vmatprep.subr.bf16.mxu0 %v11449
        %11481 = vmatpush1.bf16.msra.mxu0 %v11448
        %11482 = vmatprep.subr.bf16.mxu0 %v11451
        %11483 = vmatpush1.bf16.msra.mxu0 %v11450
        %11484 = vmatprep.subr.bf16.mxu0 %v11453
        %11485 = vmatpush1.bf16.msra.mxu0 %v11452
        %11486 = vmatprep.subr.bf16.mxu0 %v11455
        %11487 = vmatpush1.bf16.msra.mxu0 %v11454
        %11488 = vmatprep.subr.bf16.mxu0 %v11457
        %11489 = vmatpush1.bf16.msra.mxu0 %v11456
        %11490 = vmatprep.subr.bf16.mxu0 %v11459
        %11491 = vmatpush1.bf16.msra.mxu0 %v11458
        %11492 = vmatprep.subr.bf16.mxu0 %v11461
        %11493 = vmatpush1.bf16.msra.mxu0 %v11460
        %11494 = vmatprep.subr.bf16.mxu0 0
        %11495 = vmatpush1.bf16.msra.mxu0 0
        %11496 = vmatprep.subr.bf16.mxu0 0
        %11497 = vmatpush1.bf16.msra.mxu0 0
        %11498 = vmatprep.subr.bf16.mxu0 0
        %11499 = vmatpush1.bf16.msra.mxu0 0
        %11500 = vmatprep.subr.bf16.mxu0 0
        %11501 = vmatpush1.bf16.msra.mxu0 0
        %11502 = vmatprep.subr.bf16.mxu0 0
        %11503 = vmatpush1.bf16.msra.mxu0 0
        %11504 = vmatprep.subr.bf16.mxu0 0
        %11505 = vmatpush1.bf16.msra.mxu0 0
        %11506 = vmatprep.subr.bf16.mxu0 0
        %11507 = vmatpush1.bf16.msra.mxu0 0
        %11508 = vmatprep.subr.bf16.mxu0 0
        %11509 = vmatpush1.bf16.msra.mxu0 0
        %11510 = vmatprep.mubr.bf16.mxu0 0
        %11511 = vmatmul.mubr.bf16.gmra.mrb[0].mxu0 %v11396
        %v11512 = vpop.f32.mrb[0].mxu0
        %v11513 = vadd.f32 0.0, %v11512
        %v11514 = vpop.f32.mrb[0].mxu0
        %v11515 = vadd.f32 0.0, %v11514
        %v11516 = vpop.f32.mrb[0].mxu0
        %v11517 = vpop.f32.mrb[0].mxu0
        %11518 = vdwg.mxu0
        %v11521 = vcombine.low %v11513, %v11515
        %v11523 = vunpack.c.l.s4 1966171168
        %v11524 = vunpack.c.0.s8 %v11523
        %v11525 = vlaneseq
        %v11526 = vshrl.u32 %v11525, 7
        %v11527 = vsub.s32 %v11524, %v11526
        %v11528 = vrot.slane %v11521, %v11527
        %v11530 = vunpack.c.l.s4 1966171168
        %v11531 = vunpack.c.0.s8 %v11530
        %v11532 = vlaneseq
        %v11533 = vshrl.u32 %v11532, 7
        %v11534 = vsub.s32 %v11531, %v11533
        %v11535 = vrot.slane %v11528, %v11534
        %v11537 = vadd.f32 %v11379, %v11535
        %v11538 = vld [vmem:[#allocation2 + $0x800] sm:$0xff]
        %v11539 = vld [vmem:[#allocation2 + $0x808] sm:$0xff]
        %v11540 = vld [vmem:[#allocation2 + $0x810] sm:$0xff]
        %v11541 = vld [vmem:[#allocation2 + $0x818] sm:$0xff]
        %v11542 = vld [vmem:[#allocation2 + $0x820] sm:$0xff]
        %v11543 = vld [vmem:[#allocation2 + $0x828] sm:$0xff]
        %v11544 = vld [vmem:[#allocation2 + $0x830] sm:$0xff]
        %v11545 = vld [vmem:[#allocation2 + $0x838] sm:$0xff]
        %v11546 = vld [vmem:[#allocation2 + $0x840] sm:$0xff]
        %v11547 = vld [vmem:[#allocation2 + $0x848] sm:$0xff]
        %v11548 = vld [vmem:[#allocation2 + $0x850] sm:$0xff]
        %v11549 = vld [vmem:[#allocation2 + $0x858] sm:$0xff]
        %v11550 = vld [vmem:[#allocation2 + $0x860] sm:$0xff]
        %v11551 = vld [vmem:[#allocation2 + $0x868] sm:$0xff]
        %v11552 = vld [vmem:[#allocation2 + $0x870] sm:$0xff]
        %v11553 = vld [vmem:[#allocation2 + $0x878] sm:$0xff]
        %v11570 = vunpack.c.l.b16 %v11538
        %v11571 = vunpack.c.h.b16 %v11538
        %v11572 = vunpack.c.l.b16 %v11539
        %v11573 = vunpack.c.h.b16 %v11539
        %v11574 = vunpack.c.l.b16 %v11540
        %v11575 = vunpack.c.h.b16 %v11540
        %v11576 = vunpack.c.l.b16 %v11541
        %v11577 = vunpack.c.h.b16 %v11541
        %v11578 = vunpack.c.l.b16 %v11542
        %v11579 = vunpack.c.h.b16 %v11542
        %v11580 = vunpack.c.l.b16 %v11543
        %v11581 = vunpack.c.h.b16 %v11543
        %v11582 = vunpack.c.l.b16 %v11544
        %v11583 = vunpack.c.h.b16 %v11544
        %v11584 = vunpack.c.l.b16 %v11545
        %v11585 = vunpack.c.h.b16 %v11545
        %v11586 = vunpack.c.l.b16 %v11546
        %v11587 = vunpack.c.h.b16 %v11546
        %v11588 = vunpack.c.l.b16 %v11547
        %v11589 = vunpack.c.h.b16 %v11547
        %v11590 = vunpack.c.l.b16 %v11548
        %v11591 = vunpack.c.h.b16 %v11548
        %v11592 = vunpack.c.l.b16 %v11549
        %v11593 = vunpack.c.h.b16 %v11549
        %v11594 = vunpack.c.l.b16 %v11550
        %v11595 = vunpack.c.h.b16 %v11550
        %v11596 = vunpack.c.l.b16 %v11551
        %v11597 = vunpack.c.h.b16 %v11551
        %v11598 = vunpack.c.l.b16 %v11552
        %v11599 = vunpack.c.h.b16 %v11552
        %v11600 = vunpack.c.l.b16 %v11553
        %v11601 = vunpack.c.h.b16 %v11553
        %v11602 = vpack.c.b16 %v11572, %v11570
        %v11603 = vpack.c.b16 %v11573, %v11571
        %v11604 = vpack.c.b16 %v11576, %v11574
        %v11605 = vpack.c.b16 %v11577, %v11575
        %v11606 = vpack.c.b16 %v11580, %v11578
        %v11607 = vpack.c.b16 %v11581, %v11579
        %v11608 = vpack.c.b16 %v11584, %v11582
        %v11609 = vpack.c.b16 %v11585, %v11583
        %v11610 = vpack.c.b16 %v11588, %v11586
        %v11611 = vpack.c.b16 %v11589, %v11587
        %v11612 = vpack.c.b16 %v11592, %v11590
        %v11613 = vpack.c.b16 %v11593, %v11591
        %v11614 = vpack.c.b16 %v11596, %v11594
        %v11615 = vpack.c.b16 %v11597, %v11595
        %v11616 = vpack.c.b16 %v11600, %v11598
        %v11617 = vpack.c.b16 %v11601, %v11599
        %11634 = vmatprep.subr.bf16.mxu0 %v11603
        %11635 = vmatpush1.bf16.msra.mxu0 %v11602
        %11636 = vmatprep.subr.bf16.mxu0 %v11605
        %11637 = vmatpush1.bf16.msra.mxu0 %v11604
        %11638 = vmatprep.subr.bf16.mxu0 %v11607
        %11639 = vmatpush1.bf16.msra.mxu0 %v11606
        %11640 = vmatprep.subr.bf16.mxu0 %v11609
        %11641 = vmatpush1.bf16.msra.mxu0 %v11608
        %11642 = vmatprep.subr.bf16.mxu0 %v11611
        %11643 = vmatpush1.bf16.msra.mxu0 %v11610
        %11644 = vmatprep.subr.bf16.mxu0 %v11613
        %11645 = vmatpush1.bf16.msra.mxu0 %v11612
        %11646 = vmatprep.subr.bf16.mxu0 %v11615
        %11647 = vmatpush1.bf16.msra.mxu0 %v11614
        %11648 = vmatprep.subr.bf16.mxu0 %v11617
        %11649 = vmatpush1.bf16.msra.mxu0 %v11616
        %11650 = vmatprep.subr.bf16.mxu0 0
        %11651 = vmatpush1.bf16.msra.mxu0 0
        %11652 = vmatprep.subr.bf16.mxu0 0
        %11653 = vmatpush1.bf16.msra.mxu0 0
        %11654 = vmatprep.subr.bf16.mxu0 0
        %11655 = vmatpush1.bf16.msra.mxu0 0
        %11656 = vmatprep.subr.bf16.mxu0 0
        %11657 = vmatpush1.bf16.msra.mxu0 0
        %11658 = vmatprep.subr.bf16.mxu0 0
        %11659 = vmatpush1.bf16.msra.mxu0 0
        %11660 = vmatprep.subr.bf16.mxu0 0
        %11661 = vmatpush1.bf16.msra.mxu0 0
        %11662 = vmatprep.subr.bf16.mxu0 0
        %11663 = vmatpush1.bf16.msra.mxu0 0
        %11664 = vmatprep.subr.bf16.mxu0 0
        %11665 = vmatpush1.bf16.msra.mxu0 0
        %11666 = vmatprep.mubr.bf16.mxu0 0
        %11667 = vmatmul.mubr.bf16.gmra.mrb[0].mxu0 %v9007
        %v11668 = vpop.f32.mrb[0].mxu0
        %v11669 = vadd.f32 0.0, %v11668
        %v11670 = vpop.f32.mrb[0].mxu0
        %v11671 = vadd.f32 0.0, %v11670
        %v11672 = vpop.f32.mrb[0].mxu0
        %v11673 = vpop.f32.mrb[0].mxu0
        %11674 = vdwg.mxu0
        %v11677 = vcombine.low %v11669, %v11671
        %v11679 = vunpack.c.l.s4 1966171168
        %v11680 = vunpack.c.0.s8 %v11679
        %v11681 = vlaneseq
        %v11682 = vshrl.u32 %v11681, 7
        %v11683 = vsub.s32 %v11680, %v11682
        %v11684 = vrot.slane %v11677, %v11683
        %v11686 = vunpack.c.l.s4 1966171168
        %v11687 = vunpack.c.0.s8 %v11686
        %v11688 = vlaneseq
        %v11689 = vshrl.u32 %v11688, 7
        %v11690 = vsub.s32 %v11687, %v11689
        %v11691 = vrot.slane %v11684, %v11690
        %v11693 = vadd.f32 %v11537, %v11691
        %v11694 = vld [vmem:[#allocation2 + $0x880] sm:$0xff]
        %v11695 = vld [vmem:[#allocation2 + $0x888] sm:$0xff]
        %v11696 = vld [vmem:[#allocation2 + $0x890] sm:$0xff]
        %v11697 = vld [vmem:[#allocation2 + $0x898] sm:$0xff]
        %v11698 = vld [vmem:[#allocation2 + $0x8a0] sm:$0xff]
        %v11699 = vld [vmem:[#allocation2 + $0x8a8] sm:$0xff]
        %v11700 = vld [vmem:[#allocation2 + $0x8b0] sm:$0xff]
        %v11701 = vld [vmem:[#allocation2 + $0x8b8] sm:$0xff]
        %v11702 = vld [vmem:[#allocation2 + $0x8c0] sm:$0xff]
        %v11703 = vld [vmem:[#allocation2 + $0x8c8] sm:$0xff]
        %v11704 = vld [vmem:[#allocation2 + $0x8d0] sm:$0xff]
        %v11705 = vld [vmem:[#allocation2 + $0x8d8] sm:$0xff]
        %v11706 = vld [vmem:[#allocation2 + $0x8e0] sm:$0xff]
        %v11707 = vld [vmem:[#allocation2 + $0x8e8] sm:$0xff]
        %v11708 = vld [vmem:[#allocation2 + $0x8f0] sm:$0xff]
        %v11709 = vld [vmem:[#allocation2 + $0x8f8] sm:$0xff]
        %v11711 = vshrl.u32 %v9007, 16
        %v11730 = vunpack.c.l.b16 %v11694
        %v11731 = vunpack.c.h.b16 %v11694
        %v11732 = vunpack.c.l.b16 %v11695
        %v11733 = vunpack.c.h.b16 %v11695
        %v11734 = vunpack.c.l.b16 %v11696
        %v11735 = vunpack.c.h.b16 %v11696
        %v11736 = vunpack.c.l.b16 %v11697
        %v11737 = vunpack.c.h.b16 %v11697
        %v11738 = vunpack.c.l.b16 %v11698
        %v11739 = vunpack.c.h.b16 %v11698
        %v11740 = vunpack.c.l.b16 %v11699
        %v11741 = vunpack.c.h.b16 %v11699
        %v11742 = vunpack.c.l.b16 %v11700
        %v11743 = vunpack.c.h.b16 %v11700
        %v11744 = vunpack.c.l.b16 %v11701
        %v11745 = vunpack.c.h.b16 %v11701
        %v11746 = vunpack.c.l.b16 %v11702
        %v11747 = vunpack.c.h.b16 %v11702
        %v11748 = vunpack.c.l.b16 %v11703
        %v11749 = vunpack.c.h.b16 %v11703
        %v11750 = vunpack.c.l.b16 %v11704
        %v11751 = vunpack.c.h.b16 %v11704
        %v11752 = vunpack.c.l.b16 %v11705
        %v11753 = vunpack.c.h.b16 %v11705
        %v11754 = vunpack.c.l.b16 %v11706
        %v11755 = vunpack.c.h.b16 %v11706
        %v11756 = vunpack.c.l.b16 %v11707
        %v11757 = vunpack.c.h.b16 %v11707
        %v11758 = vunpack.c.l.b16 %v11708
        %v11759 = vunpack.c.h.b16 %v11708
        %v11760 = vunpack.c.l.b16 %v11709
        %v11761 = vunpack.c.h.b16 %v11709
        %v11762 = vpack.c.b16 %v11732, %v11730
        %v11763 = vpack.c.b16 %v11733, %v11731
        %v11764 = vpack.c.b16 %v11736, %v11734
        %v11765 = vpack.c.b16 %v11737, %v11735
        %v11766 = vpack.c.b16 %v11740, %v11738
        %v11767 = vpack.c.b16 %v11741, %v11739
        %v11768 = vpack.c.b16 %v11744, %v11742
        %v11769 = vpack.c.b16 %v11745, %v11743
        %v11770 = vpack.c.b16 %v11748, %v11746
        %v11771 = vpack.c.b16 %v11749, %v11747
        %v11772 = vpack.c.b16 %v11752, %v11750
        %v11773 = vpack.c.b16 %v11753, %v11751
        %v11774 = vpack.c.b16 %v11756, %v11754
        %v11775 = vpack.c.b16 %v11757, %v11755
        %v11776 = vpack.c.b16 %v11760, %v11758
        %v11777 = vpack.c.b16 %v11761, %v11759
        %11794 = vmatprep.subr.bf16.mxu0 %v11763
        %11795 = vmatpush1.bf16.msra.mxu0 %v11762
        %11796 = vmatprep.subr.bf16.mxu0 %v11765
        %11797 = vmatpush1.bf16.msra.mxu0 %v11764
        %11798 = vmatprep.subr.bf16.mxu0 %v11767
        %11799 = vmatpush1.bf16.msra.mxu0 %v11766
        %11800 = vmatprep.subr.bf16.mxu0 %v11769
        %11801 = vmatpush1.bf16.msra.mxu0 %v11768
        %11802 = vmatprep.subr.bf16.mxu0 %v11771
        %11803 = vmatpush1.bf16.msra.mxu0 %v11770
        %11804 = vmatprep.subr.bf16.mxu0 %v11773
        %11805 = vmatpush1.bf16.msra.mxu0 %v11772
        %11806 = vmatprep.subr.bf16.mxu0 %v11775
        %11807 = vmatpush1.bf16.msra.mxu0 %v11774
        %11808 = vmatprep.subr.bf16.mxu0 %v11777
        %11809 = vmatpush1.bf16.msra.mxu0 %v11776
        %11810 = vmatprep.subr.bf16.mxu0 0
        %11811 = vmatpush1.bf16.msra.mxu0 0
        %11812 = vmatprep.subr.bf16.mxu0 0
        %11813 = vmatpush1.bf16.msra.mxu0 0
        %11814 = vmatprep.subr.bf16.mxu0 0
        %11815 = vmatpush1.bf16.msra.mxu0 0
        %11816 = vmatprep.subr.bf16.mxu0 0
        %11817 = vmatpush1.bf16.msra.mxu0 0
        %11818 = vmatprep.subr.bf16.mxu0 0
        %11819 = vmatpush1.bf16.msra.mxu0 0
        %11820 = vmatprep.subr.bf16.mxu0 0
        %11821 = vmatpush1.bf16.msra.mxu0 0
        %11822 = vmatprep.subr.bf16.mxu0 0
        %11823 = vmatpush1.bf16.msra.mxu0 0
        %11824 = vmatprep.subr.bf16.mxu0 0
        %11825 = vmatpush1.bf16.msra.mxu0 0
        %11826 = vmatprep.mubr.bf16.mxu0 0
        %11827 = vmatmul.mubr.bf16.gmra.mrb[0].mxu0 %v11711
        %v11828 = vpop.f32.mrb[0].mxu0
        %v11829 = vadd.f32 0.0, %v11828
        %v11830 = vpop.f32.mrb[0].mxu0
        %v11831 = vadd.f32 0.0, %v11830
        %v11832 = vpop.f32.mrb[0].mxu0
        %v11833 = vpop.f32.mrb[0].mxu0
        %11834 = vdwg.mxu0
        %v11837 = vcombine.low %v11829, %v11831
        %v11839 = vunpack.c.l.s4 1966171168
        %v11840 = vunpack.c.0.s8 %v11839
        %v11841 = vlaneseq
        %v11842 = vshrl.u32 %v11841, 7
        %v11843 = vsub.s32 %v11840, %v11842
        %v11844 = vrot.slane %v11837, %v11843
        %v11846 = vunpack.c.l.s4 1966171168
        %v11847 = vunpack.c.0.s8 %v11846
        %v11848 = vlaneseq
        %v11849 = vshrl.u32 %v11848, 7
        %v11850 = vsub.s32 %v11847, %v11849
        %v11851 = vrot.slane %v11844, %v11850
        %v11853 = vadd.f32 %v11693, %v11851
        %v11854 = vld [vmem:[#allocation2 + $0x900] sm:$0xff]
        %v11855 = vld [vmem:[#allocation2 + $0x908] sm:$0xff]
        %v11856 = vld [vmem:[#allocation2 + $0x910] sm:$0xff]
        %v11857 = vld [vmem:[#allocation2 + $0x918] sm:$0xff]
        %v11858 = vld [vmem:[#allocation2 + $0x920] sm:$0xff]
        %v11859 = vld [vmem:[#allocation2 + $0x928] sm:$0xff]
        %v11860 = vld [vmem:[#allocation2 + $0x930] sm:$0xff]
        %v11861 = vld [vmem:[#allocation2 + $0x938] sm:$0xff]
        %v11862 = vld [vmem:[#allocation2 + $0x940] sm:$0xff]
        %v11863 = vld [vmem:[#allocation2 + $0x948] sm:$0xff]
        %v11864 = vld [vmem:[#allocation2 + $0x950] sm:$0xff]
        %v11865 = vld [vmem:[#allocation2 + $0x958] sm:$0xff]
        %v11866 = vld [vmem:[#allocation2 + $0x960] sm:$0xff]
        %v11867 = vld [vmem:[#allocation2 + $0x968] sm:$0xff]
        %v11868 = vld [vmem:[#allocation2 + $0x970] sm:$0xff]
        %v11869 = vld [vmem:[#allocation2 + $0x978] sm:$0xff]
        %v11871 = vrot.slane %v9007, 1
        %v11889 = vunpack.c.l.b16 %v11854
        %v11890 = vunpack.c.h.b16 %v11854
        %v11891 = vunpack.c.l.b16 %v11855
        %v11892 = vunpack.c.h.b16 %v11855
        %v11893 = vunpack.c.l.b16 %v11856
        %v11894 = vunpack.c.h.b16 %v11856
        %v11895 = vunpack.c.l.b16 %v11857
        %v11896 = vunpack.c.h.b16 %v11857
        %v11897 = vunpack.c.l.b16 %v11858
        %v11898 = vunpack.c.h.b16 %v11858
        %v11899 = vunpack.c.l.b16 %v11859
        %v11900 = vunpack.c.h.b16 %v11859
        %v11901 = vunpack.c.l.b16 %v11860
        %v11902 = vunpack.c.h.b16 %v11860
        %v11903 = vunpack.c.l.b16 %v11861
        %v11904 = vunpack.c.h.b16 %v11861
        %v11905 = vunpack.c.l.b16 %v11862
        %v11906 = vunpack.c.h.b16 %v11862
        %v11907 = vunpack.c.l.b16 %v11863
        %v11908 = vunpack.c.h.b16 %v11863
        %v11909 = vunpack.c.l.b16 %v11864
        %v11910 = vunpack.c.h.b16 %v11864
        %v11911 = vunpack.c.l.b16 %v11865
        %v11912 = vunpack.c.h.b16 %v11865
        %v11913 = vunpack.c.l.b16 %v11866
        %v11914 = vunpack.c.h.b16 %v11866
        %v11915 = vunpack.c.l.b16 %v11867
        %v11916 = vunpack.c.h.b16 %v11867
        %v11917 = vunpack.c.l.b16 %v11868
        %v11918 = vunpack.c.h.b16 %v11868
        %v11919 = vunpack.c.l.b16 %v11869
        %v11920 = vunpack.c.h.b16 %v11869
        %v11921 = vpack.c.b16 %v11891, %v11889
        %v11922 = vpack.c.b16 %v11892, %v11890
        %v11923 = vpack.c.b16 %v11895, %v11893
        %v11924 = vpack.c.b16 %v11896, %v11894
        %v11925 = vpack.c.b16 %v11899, %v11897
        %v11926 = vpack.c.b16 %v11900, %v11898
        %v11927 = vpack.c.b16 %v11903, %v11901
        %v11928 = vpack.c.b16 %v11904, %v11902
        %v11929 = vpack.c.b16 %v11907, %v11905
        %v11930 = vpack.c.b16 %v11908, %v11906
        %v11931 = vpack.c.b16 %v11911, %v11909
        %v11932 = vpack.c.b16 %v11912, %v11910
        %v11933 = vpack.c.b16 %v11915, %v11913
        %v11934 = vpack.c.b16 %v11916, %v11914
        %v11935 = vpack.c.b16 %v11919, %v11917
        %v11936 = vpack.c.b16 %v11920, %v11918
        %11953 = vmatprep.subr.bf16.mxu0 %v11922
        %11954 = vmatpush1.bf16.msra.mxu0 %v11921
        %11955 = vmatprep.subr.bf16.mxu0 %v11924
        %11956 = vmatpush1.bf16.msra.mxu0 %v11923
        %11957 = vmatprep.subr.bf16.mxu0 %v11926
        %11958 = vmatpush1.bf16.msra.mxu0 %v11925
        %11959 = vmatprep.subr.bf16.mxu0 %v11928
        %11960 = vmatpush1.bf16.msra.mxu0 %v11927
        %11961 = vmatprep.subr.bf16.mxu0 %v11930
        %11962 = vmatpush1.bf16.msra.mxu0 %v11929
        %11963 = vmatprep.subr.bf16.mxu0 %v11932
        %11964 = vmatpush1.bf16.msra.mxu0 %v11931
        %11965 = vmatprep.subr.bf16.mxu0 %v11934
        %11966 = vmatpush1.bf16.msra.mxu0 %v11933
        %11967 = vmatprep.subr.bf16.mxu0 %v11936
        %11968 = vmatpush1.bf16.msra.mxu0 %v11935
        %11969 = vmatprep.subr.bf16.mxu0 0
        %11970 = vmatpush1.bf16.msra.mxu0 0
        %11971 = vmatprep.subr.bf16.mxu0 0
        %11972 = vmatpush1.bf16.msra.mxu0 0
        %11973 = vmatprep.subr.bf16.mxu0 0
        %11974 = vmatpush1.bf16.msra.mxu0 0
        %11975 = vmatprep.subr.bf16.mxu0 0
        %11976 = vmatpush1.bf16.msra.mxu0 0
        %11977 = vmatprep.subr.bf16.mxu0 0
        %11978 = vmatpush1.bf16.msra.mxu0 0
        %11979 = vmatprep.subr.bf16.mxu0 0
        %11980 = vmatpush1.bf16.msra.mxu0 0
        %11981 = vmatprep.subr.bf16.mxu0 0
        %11982 = vmatpush1.bf16.msra.mxu0 0
        %11983 = vmatprep.subr.bf16.mxu0 0
        %11984 = vmatpush1.bf16.msra.mxu0 0
        %11985 = vmatprep.mubr.bf16.mxu0 0
        %11986 = vmatmul.mubr.bf16.gmra.mrb[0].mxu0 %v11871
        %v11987 = vpop.f32.mrb[0].mxu0
        %v11988 = vadd.f32 0.0, %v11987
        %v11989 = vpop.f32.mrb[0].mxu0
        %v11990 = vadd.f32 0.0, %v11989
        %v11991 = vpop.f32.mrb[0].mxu0
        %v11992 = vpop.f32.mrb[0].mxu0
        %11993 = vdwg.mxu0
        %v11996 = vcombine.low %v11988, %v11990
        %v11998 = vunpack.c.l.s4 1966171168
        %v11999 = vunpack.c.0.s8 %v11998
        %v12000 = vlaneseq
        %v12001 = vshrl.u32 %v12000, 7
        %v12002 = vsub.s32 %v11999, %v12001
        %v12003 = vrot.slane %v11996, %v12002
        %v12005 = vunpack.c.l.s4 1966171168
        %v12006 = vunpack.c.0.s8 %v12005
        %v12007 = vlaneseq
        %v12008 = vshrl.u32 %v12007, 7
        %v12009 = vsub.s32 %v12006, %v12008
        %v12010 = vrot.slane %v12003, %v12009
        %v12012 = vadd.f32 %v11853, %v12010
        %vm12013 = vcmp.gt.f32.partialorder %v12012, 0.0
        %v12014 = vmul.f32 %v12012, 0.25
        %v12015 = vsel %vm12013, %v12012, %v12014
        %v12017 = vlaneseq
        %v12018 = vshrl.u32 %v12017, 7
        %v12019 = vsub.s32 0, %v12018
        %v12020 = vrot.slane %v12015, %v12019
        %v12021 = vlaneseq
        %v12022 = vshrl.u32 %v12021, 7
        %v12023 = vsub.s32 1, %v12022
        %v12024 = vrot.slane %v12015, %v12023
        %v12027 = vpack.c.bf16 %v12020, %v12020
        %v12028 = vpack.c.bf16 %v12024, %v12024
        %v12029 = vld [vmem:[%s7] sm:$0xf]
        %v12030 = vld [vmem:[%s7 + $0x4] sm:$0xf]
        %v12031 = vld [vmem:[%s7 + $0x8] sm:$0xf]
        %v12032 = vld [vmem:[%s7 + $0xc] sm:$0xf]
        %v12033 = vld [vmem:[%s7 + $0x10] sm:$0xf]
        %v12034 = vld [vmem:[%s7 + $0x14] sm:$0xf]
        %v12035 = vld [vmem:[%s7 + $0x18] sm:$0xf]
        %v12036 = vld [vmem:[%s7 + $0x1c] sm:$0xf]
        %v12037 = vld [vmem:[%s7 + $0x20] sm:$0xf]
        %v12038 = vld [vmem:[%s7 + $0x24] sm:$0xf]
        %v12039 = vld [vmem:[%s7 + $0x28] sm:$0xf]
        %v12040 = vld [vmem:[%s7 + $0x2c] sm:$0xf]
        %v12041 = vld [vmem:[%s7 + $0x30] sm:$0xf]
        %v12042 = vld [vmem:[%s7 + $0x34] sm:$0xf]
        %v12043 = vld [vmem:[%s7 + $0x38] sm:$0xf]
        %v12044 = vld [vmem:[%s7 + $0x3c] sm:$0xf]
        %v12045 = vld [vmem:[%s7 + $0x40] sm:$0xf]
        %v12046 = vld [vmem:[%s7 + $0x44] sm:$0xf]
        %v12047 = vld [vmem:[%s7 + $0x48] sm:$0xf]
        %v12048 = vld [vmem:[%s7 + $0x4c] sm:$0xf]
        %v12049 = vld [vmem:[%s7 + $0x50] sm:$0xf]
        %v12050 = vld [vmem:[%s7 + $0x54] sm:$0xf]
        %v12051 = vld [vmem:[%s7 + $0x58] sm:$0xf]
        %v12052 = vld [vmem:[%s7 + $0x5c] sm:$0xf]
        %v12053 = vld [vmem:[%s7 + $0x60] sm:$0xf]
        %v12054 = vld [vmem:[%s7 + $0x64] sm:$0xf]
        %v12055 = vld [vmem:[%s7 + $0x68] sm:$0xf]
        %v12056 = vld [vmem:[%s7 + $0x6c] sm:$0xf]
        %v12057 = vld [vmem:[%s7 + $0x70] sm:$0xf]
        %v12058 = vld [vmem:[%s7 + $0x74] sm:$0xf]
        %v12059 = vld [vmem:[%s7 + $0x78] sm:$0xf]
        %v12060 = vld [vmem:[%s7 + $0x7c] sm:$0xf]
        %v12061 = vld [vmem:[%s8] sm:$0x1]
        %v12094 = vunpack.c.l.b16 %v12029
        %v12095 = vunpack.c.l.b16 %v12030
        %v12096 = vunpack.c.l.b16 %v12031
        %v12097 = vunpack.c.l.b16 %v12032
        %v12098 = vunpack.c.l.b16 %v12033
        %v12099 = vunpack.c.l.b16 %v12034
        %v12100 = vunpack.c.l.b16 %v12035
        %v12101 = vunpack.c.l.b16 %v12036
        %v12102 = vunpack.c.l.b16 %v12037
        %v12103 = vunpack.c.l.b16 %v12038
        %v12104 = vunpack.c.l.b16 %v12039
        %v12105 = vunpack.c.l.b16 %v12040
        %v12106 = vunpack.c.l.b16 %v12041
        %v12107 = vunpack.c.l.b16 %v12042
        %v12108 = vunpack.c.l.b16 %v12043
        %v12109 = vunpack.c.l.b16 %v12044
        %v12110 = vunpack.c.l.b16 %v12045
        %v12111 = vunpack.c.l.b16 %v12046
        %v12112 = vunpack.c.l.b16 %v12047
        %v12113 = vunpack.c.l.b16 %v12048
        %v12114 = vunpack.c.l.b16 %v12049
        %v12115 = vunpack.c.l.b16 %v12050
        %v12116 = vunpack.c.l.b16 %v12051
        %v12117 = vunpack.c.l.b16 %v12052
        %v12118 = vunpack.c.l.b16 %v12053
        %v12119 = vunpack.c.l.b16 %v12054
        %v12120 = vunpack.c.l.b16 %v12055
        %v12121 = vunpack.c.l.b16 %v12056
        %v12122 = vunpack.c.l.b16 %v12057
        %v12123 = vunpack.c.l.b16 %v12058
        %v12124 = vunpack.c.l.b16 %v12059
        %v12125 = vunpack.c.l.b16 %v12060
        %v12126 = vpack.c.b16 %v12095, %v12094
        %v12127 = vpack.c.b16 %v12097, %v12096
        %v12128 = vpack.c.b16 %v12099, %v12098
        %v12129 = vpack.c.b16 %v12101, %v12100
        %v12130 = vpack.c.b16 %v12103, %v12102
        %v12131 = vpack.c.b16 %v12105, %v12104
        %v12132 = vpack.c.b16 %v12107, %v12106
        %v12133 = vpack.c.b16 %v12109, %v12108
        %v12134 = vpack.c.b16 %v12111, %v12110
        %v12135 = vpack.c.b16 %v12113, %v12112
        %v12136 = vpack.c.b16 %v12115, %v12114
        %v12137 = vpack.c.b16 %v12117, %v12116
        %v12138 = vpack.c.b16 %v12119, %v12118
        %v12139 = vpack.c.b16 %v12121, %v12120
        %v12140 = vpack.c.b16 %v12123, %v12122
        %v12141 = vpack.c.b16 %v12125, %v12124
        %12158 = vmatprep.subr.bf16.mxu0 0
        %12159 = vmatpush1.bf16.msra.mxu0 %v12126
        %12160 = vmatprep.subr.bf16.mxu0 0
        %12161 = vmatpush1.bf16.msra.mxu0 %v12127
        %12162 = vmatprep.subr.bf16.mxu0 0
        %12163 = vmatpush1.bf16.msra.mxu0 %v12128
        %12164 = vmatprep.subr.bf16.mxu0 0
        %12165 = vmatpush1.bf16.msra.mxu0 %v12129
        %12166 = vmatprep.subr.bf16.mxu0 0
        %12167 = vmatpush1.bf16.msra.mxu0 %v12130
        %12168 = vmatprep.subr.bf16.mxu0 0
        %12169 = vmatpush1.bf16.msra.mxu0 %v12131
        %12170 = vmatprep.subr.bf16.mxu0 0
        %12171 = vmatpush1.bf16.msra.mxu0 %v12132
        %12172 = vmatprep.subr.bf16.mxu0 0
        %12173 = vmatpush1.bf16.msra.mxu0 %v12133
        %12174 = vmatprep.subr.bf16.mxu0 0
        %12175 = vmatpush1.bf16.msra.mxu0 %v12134
        %12176 = vmatprep.subr.bf16.mxu0 0
        %12177 = vmatpush1.bf16.msra.mxu0 %v12135
        %12178 = vmatprep.subr.bf16.mxu0 0
        %12179 = vmatpush1.bf16.msra.mxu0 %v12136
        %12180 = vmatprep.subr.bf16.mxu0 0
        %12181 = vmatpush1.bf16.msra.mxu0 %v12137
        %12182 = vmatprep.subr.bf16.mxu0 0
        %12183 = vmatpush1.bf16.msra.mxu0 %v12138
        %12184 = vmatprep.subr.bf16.mxu0 0
        %12185 = vmatpush1.bf16.msra.mxu0 %v12139
        %12186 = vmatprep.subr.bf16.mxu0 0
        %12187 = vmatpush1.bf16.msra.mxu0 %v12140
        %12188 = vmatprep.subr.bf16.mxu0 0
        %12189 = vmatpush1.bf16.msra.mxu0 %v12141
        %12190 = vmatprep.mubr.bf16.mxu0 %v12028
        %12191 = vmatmul.mubr.bf16.gmra.mrb[0].mxu0 %v12027
        %v12192 = vpop.f32.mrb[0].mxu0
        %v12193 = vadd.f32 %v12061, %v12192
        %v12194 = vpop.f32.mrb[0].mxu0
        %v12195 = vpop.f32.mrb[0].mxu0
        %v12196 = vpop.f32.mrb[0].mxu0
        %12197 = vdwg.mxu0
        %vm12198 = vcmp.gt.f32.partialorder %v12193, 0.0
        %v12199 = vmul.f32 %v12193, 0.25
        %v12200 = vsel %vm12198, %v12193, %v12199
        %v12201 = vpack.c.bf16 %v12200, %v12200
        %v12202 = vld [vmem:[%s9] sm:$0xf]
        %v12203 = vld [vmem:[%s9 + $0x4] sm:$0xf]
        %v12204 = vld [vmem:[%s9 + $0x8] sm:$0xf]
        %v12205 = vld [vmem:[%s9 + $0xc] sm:$0xf]
        %v12206 = vld [vmem:[%s9 + $0x10] sm:$0xf]
        %v12207 = vld [vmem:[%s9 + $0x14] sm:$0xf]
        %v12208 = vld [vmem:[%s9 + $0x18] sm:$0xf]
        %v12209 = vld [vmem:[%s9 + $0x1c] sm:$0xf]
        %v12210 = vld [vmem:[%s10] sm:$0x1]
        %v12219 = vunpack.c.l.b16 %v12202
        %v12220 = vunpack.c.l.b16 %v12203
        %v12221 = vunpack.c.l.b16 %v12204
        %v12222 = vunpack.c.l.b16 %v12205
        %v12223 = vunpack.c.l.b16 %v12206
        %v12224 = vunpack.c.l.b16 %v12207
        %v12225 = vunpack.c.l.b16 %v12208
        %v12226 = vunpack.c.l.b16 %v12209
        %v12227 = vpack.c.b16 %v12220, %v12219
        %v12228 = vpack.c.b16 %v12222, %v12221
        %v12229 = vpack.c.b16 %v12224, %v12223
        %v12230 = vpack.c.b16 %v12226, %v12225
        %vm12235 = vcmask 523264
        %v12237 = vsel %vm12235, %v12201, 0
        %12239 = vmatprep.subr.bf16.mxu0 0
        %12240 = vmatpush1.bf16.msra.mxu0 %v12227
        %12241 = vmatprep.subr.bf16.mxu0 0
        %12242 = vmatpush1.bf16.msra.mxu0 %v12228
        %12243 = vmatprep.subr.bf16.mxu0 0
        %12244 = vmatpush1.bf16.msra.mxu0 %v12229
        %12245 = vmatprep.subr.bf16.mxu0 0
        %12246 = vmatpush1.bf16.msra.mxu0 %v12230
        %12247 = vmatprep.subr.bf16.mxu0 0
        %12248 = vmatpush1.bf16.msra.mxu0 0
        %12249 = vmatprep.subr.bf16.mxu0 0
        %12250 = vmatpush1.bf16.msra.mxu0 0
        %12251 = vmatprep.subr.bf16.mxu0 0
        %12252 = vmatpush1.bf16.msra.mxu0 0
        %12253 = vmatprep.subr.bf16.mxu0 0
        %12254 = vmatpush1.bf16.msra.mxu0 0
        %12255 = vmatprep.subr.bf16.mxu0 0
        %12256 = vmatpush1.bf16.msra.mxu0 0
        %12257 = vmatprep.subr.bf16.mxu0 0
        %12258 = vmatpush1.bf16.msra.mxu0 0
        %12259 = vmatprep.subr.bf16.mxu0 0
        %12260 = vmatpush1.bf16.msra.mxu0 0
        %12261 = vmatprep.subr.bf16.mxu0 0
        %12262 = vmatpush1.bf16.msra.mxu0 0
        %12263 = vmatprep.subr.bf16.mxu0 0
        %12264 = vmatpush1.bf16.msra.mxu0 0
        %12265 = vmatprep.subr.bf16.mxu0 0
        %12266 = vmatpush1.bf16.msra.mxu0 0
        %12267 = vmatprep.subr.bf16.mxu0 0
        %12268 = vmatpush1.bf16.msra.mxu0 0
        %12269 = vmatprep.subr.bf16.mxu0 0
        %12270 = vmatpush1.bf16.msra.mxu0 0
        %12271 = vmatprep.mubr.bf16.mxu0 0
        %12272 = vmatmul.mubr.bf16.gmra.mrb[0].mxu0 %v12237
        %v12273 = vpop.f32.mrb[0].mxu0
        %v12274 = vadd.f32 %v12210, %v12273
        %v12275 = vpop.f32.mrb[0].mxu0
        %v12276 = vpop.f32.mrb[0].mxu0
        %v12277 = vpop.f32.mrb[0].mxu0
        %12278 = vdwg.mxu0
        %12279 = vst [vmem:[%s397] sm:$0x1] %v12274
        %p12280 = scmp.lt.s32.totalorder %s23, 3
        %s12281 = scalar_select %p12280, %s23, 3
        %s12282 = scalar_lea.vmem %s11, %s12281
        // Predicated region
        $region69: #{residual_model_forward.1} parent=63 // pred_check
          %p12283 = pneg %p277
        $region70: #{residual_model_forward.1} parent=63 // pred_check_branch
          %12285 = sbr.rel (%p12283) target = $region72
        $region71: #{residual_model_forward.1} parent=63 // pred_region
          _
        $region72: #{residual_model_forward.1} parent=63 // pred_fallthru
          _
      $region64: #{residual_model_forward.1} parent=5 // pred_fallthru
        _
      %p12286 = scmp.le.s32.totalorder 2, %s18
      // Predicated region
      $region73: #{residual_model_forward.1} parent=5 // pred_check
        %p12287 = pneg %p12286
      $region74: #{residual_model_forward.1} parent=5 // pred_check_branch
        %12289 = sbr.rel (%p12287) target = $region76
      $region75: #{residual_model_forward.1} parent=5 // pred_region
        %s12290 = ssub.s32 %s18, 2
        // Predicated region
        $region77: #{residual_model_forward.1} parent=75 // pred_check
          %p12291 = pneg %p283
        $region78: #{residual_model_forward.1} parent=75 // pred_check_branch
          %12293 = sbr.rel (%p12291) target = $region80
        $region79: #{residual_model_forward.1} parent=75 // pred_region
          %p12294 = scmp.lt.s32.totalorder %s24, 3
          %s12295 = scalar_select %p12294, %s24, 3
          %s12296 = scalar_lea.vmem %s11, %s12295
        $region80: #{residual_model_forward.1} parent=75 // pred_fallthru
          _
      $region76: #{residual_model_forward.1} parent=5 // pred_fallthru
        _
    $region6: #{residual_model_forward.1} parent=1 // loop_footer
      %s22 = sadd.s32 1, %s18
    $region7: #{residual_model_forward.1} parent=1 // loop_footer_branch
      %17 = sbr.rel target = $region3
    $region8: #{residual_model_forward.1} parent=1 // loop_exit
      _
    %12297 = vsyncpa [#allocation3], 1
    %s12298 = scalar_lea.sflag [#allocation3], 1
    %12299 = vsyncpa %s12298, 1

</llo_original>
